<compile_context>
chip_gen: v7x
topology: tpu7x:2x2x1
jax: 0.10.0
libtpu: 0.0.40
codegen_flags: <defaults>
</compile_context>

<pallas_src>
import jax
import jax.numpy as jnp
from jax.experimental import pallas as pl
from jax.experimental.pallas import tpu as pltpu


_MAX_TM = 512
_VMEM_LIMIT = 32 * 1024 * 1024


def _round_up(x, m):
    return (x + m - 1) // m * m


def _compiler_params():
    return pltpu.CompilerParams(
        dimension_semantics=("parallel",),
        vmem_limit_bytes=_VMEM_LIMIT,
    )


def _elu(x):
    # ELU(alpha=1): x if x > 0 else exp(x) - 1  (exp arg clamped for safety)
    return jnp.where(x > 0.0, x, jnp.exp(jnp.minimum(x, 0.0)) - 1.0)


# ---------------------------------------------------------------------------
# Pallas kernels (bf16 operands, f32 accumulation, fused bias + ELU)
# ---------------------------------------------------------------------------

def _mm_kernel(a_ref, w_ref, b_ref, o_ref):
    acc = jnp.dot(a_ref[...], w_ref[...], preferred_element_type=jnp.float32)
    acc = acc + b_ref[...]
    o_ref[...] = _elu(acc).astype(o_ref.dtype)


def _pool_mm_kernel(a_ref, w_ref, b_ref, o_ref):
    # a_ref: (4, TM, C) = the four 2x2 max-pool taps.  max-pool -> 1x1 conv -> ELU.
    x = jnp.maximum(jnp.maximum(a_ref[0], a_ref[1]),
                    jnp.maximum(a_ref[2], a_ref[3]))
    acc = jnp.dot(x, w_ref[...], preferred_element_type=jnp.float32) + b_ref[...]
    o_ref[...] = _elu(acc).astype(o_ref.dtype)


def _dilated_mm_kernel(a_ref, w_ref, b_ref, o_ref):
    # Four dilated-conv branches: sum_d ELU(A_d @ W_d + b_d), all in one kernel.
    acc = None
    for d in range(4):
        y = jnp.dot(a_ref[d], w_ref[d], preferred_element_type=jnp.float32)
        y = _elu(y + b_ref[d])
        acc = y if acc is None else acc + y
    o_ref[...] = acc.astype(o_ref.dtype)


# ---------------------------------------------------------------------------
# Pallas wrappers (single big M tile, parallel grid axis)
# ---------------------------------------------------------------------------

def _tile_rows(m):
    tm = _round_up(m, 8) if m <= _MAX_TM else _MAX_TM
    return tm, _round_up(m, tm)


def matmul_bias_elu(a, w, b, out_dtype=jnp.bfloat16):
    """(M,K) @ (K,N) + bias, fused ELU, on the MXU."""
    M, K = a.shape
    N = w.shape[1]
    TM, Mp = _tile_rows(M)
    a = a.astype(jnp.bfloat16)
    if Mp != M:
        a = jnp.pad(a, ((0, Mp - M), (0, 0)))
    out = pl.pallas_call(
        _mm_kernel,
        out_shape=jax.ShapeDtypeStruct((Mp, N), out_dtype),
        grid=(Mp // TM,),
        in_specs=[
            pl.BlockSpec((TM, K), lambda i: (i, 0)),
            pl.BlockSpec((K, N), lambda i: (0, 0)),
            pl.BlockSpec((1, N), lambda i: (0, 0)),
        ],
        out_specs=pl.BlockSpec((TM, N), lambda i: (i, 0)),
        compiler_params=_compiler_params(),
    )(a, w.astype(jnp.bfloat16), b.reshape(1, N).astype(jnp.float32))
    return out if Mp == M else out[:M]


def pool_squeeze_elu(a4, w, b, out_dtype=jnp.bfloat16):
    """a4: (4, M, C) pool taps. Fused maxpool2x2 + 1x1 conv + bias + ELU."""
    _, M, C = a4.shape
    N = w.shape[1]
    TM, Mp = _tile_rows(M)
    a4 = a4.astype(jnp.bfloat16)
    if Mp != M:
        a4 = jnp.pad(a4, ((0, 0), (0, Mp - M), (0, 0)))
    out = pl.pallas_call(
        _pool_mm_kernel,
        out_shape=jax.ShapeDtypeStruct((Mp, N), out_dtype),
        grid=(Mp // TM,),
        in_specs=[
            pl.BlockSpec((4, TM, C), lambda i: (0, i, 0)),
            pl.BlockSpec((C, N), lambda i: (0, 0)),
            pl.BlockSpec((1, N), lambda i: (0, 0)),
        ],
        out_specs=pl.BlockSpec((TM, N), lambda i: (i, 0)),
        compiler_params=_compiler_params(),
    )(a4, w.astype(jnp.bfloat16), b.reshape(1, N).astype(jnp.float32))
    return out if Mp == M else out[:M]


def dilated_sum_elu(a4, w4, b4, out_dtype=jnp.bfloat16):
    """a4: (4, M, K), w4: (4, K, N), b4: (4, 1, N).  sum_d ELU(A_d @ W_d + b_d)."""
    _, M, K = a4.shape
    N = w4.shape[2]
    TM, Mp = _tile_rows(M)
    a4 = a4.astype(jnp.bfloat16)
    if Mp != M:
        a4 = jnp.pad(a4, ((0, 0), (0, Mp - M), (0, 0)))
    out = pl.pallas_call(
        _dilated_mm_kernel,
        out_shape=jax.ShapeDtypeStruct((Mp, N), out_dtype),
        grid=(Mp // TM,),
        in_specs=[
            pl.BlockSpec((4, TM, K), lambda i: (0, i, 0)),
            pl.BlockSpec((4, K, N), lambda i: (0, 0, 0)),
            pl.BlockSpec((4, 1, N), lambda i: (0, 0, 0)),
        ],
        out_specs=pl.BlockSpec((TM, N), lambda i: (i, 0)),
        compiler_params=_compiler_params(),
    )(a4, w4.astype(jnp.bfloat16), b4.astype(jnp.float32))
    return out if Mp == M else out[:M]


# ---------------------------------------------------------------------------
# Glue: NHWC im2col (lane-axis concat) and weight packing
# ---------------------------------------------------------------------------

def _im2col3x3(x, padding, dilation=1, stride=1):
    """NHWC -> (N*Ho*Wo, 9*C), column order (dy, dx, c)."""
    N, H, W, C = x.shape
    Ho = (H + 2 * padding - dilation * 2 - 1) // stride + 1
    Wo = (W + 2 * padding - dilation * 2 - 1) // stride + 1
    xp = jnp.pad(x, ((0, 0), (padding, padding), (padding, padding), (0, 0)))
    cols = []
    for dy in range(3):
        for dx in range(3):
            cols.append(
                xp[:, dy * dilation: dy * dilation + stride * (Ho - 1) + 1: stride,
                      dx * dilation: dx * dilation + stride * (Wo - 1) + 1: stride, :])
    a = jnp.concatenate(cols, axis=-1)                     # (N, Ho, Wo, 9*C)
    return a.reshape(N * Ho * Wo, 9 * C), (N, Ho, Wo)


def _w3x3(w):
    """(Cout, Cin, 3, 3) -> (9*Cin, Cout), row order (dy, dx, cin)."""
    cout, cin = w.shape[0], w.shape[1]
    return jnp.transpose(w, (2, 3, 1, 0)).reshape(9 * cin, cout)


def conv3x3_elu(x, prm, stride=1, padding=1, dilation=1):
    cout = prm["w"].shape[0]
    a, (N, Ho, Wo) = _im2col3x3(x.astype(jnp.bfloat16), padding, dilation, stride)
    y = matmul_bias_elu(a, _w3x3(prm["w"]), prm["b"])
    return y.reshape(N, Ho, Wo, cout)


# ---------------------------------------------------------------------------
# SQNet blocks
# ---------------------------------------------------------------------------

def fire_block(prm, x, pool):
    N, H, W, C = x.shape
    sq = prm["squeeze"]["w"].shape[0]
    wsq = prm["squeeze"]["w"].reshape(sq, C).T             # (C, sq)
    bsq = prm["squeeze"]["b"]

    if pool:  # fused MaxPool2d(2,2) + 1x1 squeeze + ELU (one Pallas call)
        H, W = H // 2, W // 2
        taps = [x[:, py::2, px::2, :].reshape(N * H * W, C)
                for py in (0, 1) for px in (0, 1)]
        s = pool_squeeze_elu(jnp.stack(taps, axis=0), wsq, bsq)
    else:
        s = matmul_bias_elu(x.reshape(N * H * W, C), wsq, bsq)
    s = s.reshape(N, H, W, sq)

    # Fuse branch1 (1x1) + branch2 (3x3) into one matmul.  Branches have no
    # activation in torch; ELU is applied after the channel concat, and since
    # ELU(concat) == concat(ELU) it is fused per output column here.
    w1, b1 = prm["branch1"]["w"], prm["branch1"]["b"]
    w2, b2 = prm["branch2"]["w"], prm["branch2"]["b"]
    ex = w1.shape[0]
    wb2 = _w3x3(w2)                                        # (9*sq, ex)
    wb1 = jnp.zeros((9 * sq, ex), w1.dtype).at[4 * sq:5 * sq, :].set(
        w1.reshape(ex, sq).T)                              # center tap (dy=dx=1)
    wcat = jnp.concatenate([wb1, wb2], axis=1)             # (9*sq, 2*ex)
    bcat = jnp.concatenate([b1, b2])
    a, (N, Ho, Wo) = _im2col3x3(s, padding=1, dilation=1)
    y = matmul_bias_elu(a, wcat, bcat)
    return y.reshape(N, Ho, Wo, 2 * ex)


def parallel_dilated_elu(prms, x):
    # Concurrent(sum) of four dilated 3x3 convs, each with its own bias + ELU
    # (ELU applied per branch BEFORE the sum, as in the PyTorch module).
    N, H, W, C = x.shape
    cout = prms[0]["w"].shape[0]
    xb = x.astype(jnp.bfloat16)
    a4 = jnp.stack([_im2col3x3(xb, padding=d, dilation=d)[0]
                    for d in (1, 2, 3, 4)], axis=0)        # (4, M, 9*C)
    w4 = jnp.stack([_w3x3(p["w"]) for p in prms], axis=0)  # (4, 9*C, cout)
    b4 = jnp.stack([p["b"].reshape(1, cout) for p in prms], axis=0)
    y = dilated_sum_elu(a4, w4, b4)
    return y.reshape(N, H, W, cout)


# sub-pixel phase -> {2x2 tap index: (kh, kw)} of the transposed-conv kernel
_DECONV_PHASE_TAPS = (
    {0: (1, 1)},                                   # (even row, even col)
    {0: (1, 2), 1: (1, 0)},                        # (even, odd)
    {0: (2, 1), 2: (0, 1)},                        # (odd, even)
    {0: (2, 2), 1: (2, 0), 2: (0, 2), 3: (0, 0)},  # (odd, odd)
)


def deconv3x3_s2_elu(x, prm):
    """ConvTranspose2d(k=3, s=2, p=1, output_padding=1) + bias + ELU via the
    sub-pixel (4-phase) decomposition: one matmul over a 2x2 im2col of x."""
    N, H, W, C = x.shape
    w, b = prm["w"], prm["b"]                              # w: (Cin, Cout, 3, 3)
    cout = w.shape[1]
    xp = jnp.pad(x.astype(jnp.bfloat16), ((0, 0), (0, 1), (0, 1), (0, 0)))
    a = jnp.concatenate([xp[:, ty:ty + H, tx:tx + W, :]
                         for ty in (0, 1) for tx in (0, 1)], axis=-1)
    a = a.reshape(N * H * W, 4 * C)
    wd = jnp.zeros((4 * C, 4 * cout), w.dtype)
    for ph, mapping in enumerate(_DECONV_PHASE_TAPS):
        for tt, (kh, kw) in mapping.items():
            wd = wd.at[tt * C:(tt + 1) * C,
                       ph * cout:(ph + 1) * cout].set(w[:, :, kh, kw])
    bd = jnp.tile(b, 4)
    y = matmul_bias_elu(a, wd, bd)                         # (M, 4*cout)
    y = y.reshape(N, H, W, 2, 2, cout)
    y = jnp.transpose(y, (0, 1, 3, 2, 4, 5)).reshape(N, 2 * H, 2 * W, cout)
    return y


def up_stage(prm, x):
    if "parallel" in prm:
        x = parallel_dilated_elu(prm["parallel"], x)
    else:
        x = conv3x3_elu(x, prm["conv"])
    return deconv3x3_s2_elu(x, prm["deconv"])


def sqnet_forward(p, x):
    # Interface: NCHW float32 in / out (PyTorch layout); NHWC bf16 internally.
    x = jnp.transpose(x, (0, 2, 3, 1)).astype(jnp.bfloat16)
    depth = len(p["down"])
    x = conv3x3_elu(x, p["stem"], stride=2, padding=1)
    down_outs = [x]
    for i in range(depth):
        for j, blk in enumerate(p["down"][i]):
            x = fire_block(blk, x, pool=(j == 0))
        down_outs.append(x)
    # Hourglass upward pass with 'cat' merge (up stages applied deepest-first).
    for i in range(depth + 1):
        if i != 0:
            y = conv3x3_elu(down_outs[depth - i], p["skip"][depth - i])
            x = jnp.concatenate([x, y], axis=-1)
        if i != depth:
            x = up_stage(p["up"][i], x)
    x = up_stage(p["head"], x)
    return jnp.transpose(x, (0, 3, 1, 2)).astype(jnp.float32)


# ---------------------------------------------------------------------------
# Deterministic parameter initialization (synthetic; shapes follow __init__)
# ---------------------------------------------------------------------------

def _conv_init(key, cout, cin, kh, kw):
    fan_in = cin * kh * kw
    bound = (6.0 / fan_in) ** 0.5       # kaiming_uniform (a=0) bound
    w = jax.random.uniform(key, (cout, cin, kh, kw), jnp.float32, -bound, bound)
    return {"w": w, "b": jnp.zeros((cout,), jnp.float32)}


def _deconv_init(key, cin, cout, kh, kw):
    fan_in = cin * kh * kw
    bound = (6.0 / fan_in) ** 0.5
    w = jax.random.uniform(key, (cin, cout, kh, kw), jnp.float32, -bound, bound)
    return {"w": w, "b": jnp.zeros((cout,), jnp.float32)}


def init_sqnet_params(key, in_channels, init_block_channels, channels, layers, num_classes):
    keys = iter(jax.random.split(key, 256))
    p = {"stem": _conv_init(next(keys), init_block_channels, in_channels, 3, 3)}
    in_ch = init_block_channels
    skips, downs = [], []
    for i, out_channels in enumerate(channels[0]):
        skips.append(_conv_init(next(keys), in_ch, in_ch, 3, 3))
        stage = []
        for _ in range(layers[i]):
            sq, ex = out_channels // 8, out_channels // 2
            stage.append({
                "squeeze": _conv_init(next(keys), sq, in_ch, 1, 1),
                "branch1": _conv_init(next(keys), ex, sq, 1, 1),
                "branch2": _conv_init(next(keys), ex, sq, 3, 3),
            })
            in_ch = out_channels
        downs.append(stage)
    p["skip"], p["down"] = skips, downs
    in_ch = in_ch // 2
    ups = []
    for i, out_channels in enumerate(channels[1]):
        cin = 2 * in_ch
        up = {}
        if i == 0:  # ParallelDilatedConv (dilations 1..4)
            up["parallel"] = [_conv_init(next(keys), cin, cin, 3, 3) for _ in range(4)]
        else:
            up["conv"] = _conv_init(next(keys), cin, cin, 3, 3)
        up["deconv"] = _deconv_init(next(keys), cin, out_channels, 3, 3)
        ups.append(up)
        in_ch = out_channels
    p["up"] = ups
    head_in = 2 * in_ch
    p["head"] = {
        "conv": _conv_init(next(keys), head_in, head_in, 3, 3),
        "deconv": _deconv_init(next(keys), head_in, num_classes, 3, 3),
    }
    return p


# ---------------------------------------------------------------------------

if __name__ == "__main__":
    key = jax.random.PRNGKey(0)
    kp, kx = jax.random.split(key)

    # Small SQNet config consistent with the module's structural constraints:
    #   channels[1][0] == channels[0][-2], channels[1][-1] == init_block_channels,
    #   encoder stage channels divisible by 8, in_size divisible by 8.
    in_channels = 3
    init_block_channels = 8
    channels = [[16, 32], [16, 8]]
    layers = [1, 1]
    num_classes = 4
    in_size = (32, 32)

    params = init_sqnet_params(kp, in_channels, init_block_channels,
                               channels, layers, num_classes)
    x = jax.random.normal(kx, (2, in_channels, in_size[0], in_size[1]), jnp.float32)

    fwd = jax.jit(sqnet_forward)
    out = jax.block_until_ready(fwd(params, x))

    assert out.shape == (2, num_classes, in_size[0], in_size[1]), out.shape
    assert bool(jnp.all(jnp.isfinite(out)))
    print("KERNEL_OK")
</pallas_src>

<mosaic_0001>
module attributes {stable_mosaic.version = 11 : i64} {
  func.func @_mm_kernel(%arg0: i32, %arg1: memref<512x27xbf16, #tpu.memory_space<vmem>>, %arg2: memref<27x8xbf16, #tpu.memory_space<vmem>>, %arg3: memref<1x8xf32, #tpu.memory_space<vmem>>, %arg4: memref<512x8xbf16, #tpu.memory_space<vmem>>) attributes {dimension_semantics = [#tpu.dimension_semantics<parallel>], iteration_bounds = array<i64: 1>, scalar_prefetch = 0 : i64, scratch_operands = 0 : i64, tpu.core_type = #tpu.core_type<tc>, window_params = [{transform_indices = @transform_0, window_bounds = array<i64: 512, 27>}, {pipeline_mode = #tpu.pipeline_mode<synchronous>, transform_indices = @transform_1, window_bounds = array<i64: 27, 8>}, {pipeline_mode = #tpu.pipeline_mode<synchronous>, transform_indices = @transform_2, window_bounds = array<i64: 1, 8>}, {transform_indices = @transform_3, window_bounds = array<i64: 512, 8>}]} {
    %c0 = arith.constant 0 : index
    %c0_0 = arith.constant 0 : index
    %0 = vector.load %arg1[%c0, %c0_0] : memref<512x27xbf16, #tpu.memory_space<vmem>>, vector<512x27xbf16>
    %c0_1 = arith.constant 0 : index
    %c0_2 = arith.constant 0 : index
    %1 = vector.load %arg2[%c0_1, %c0_2] : memref<27x8xbf16, #tpu.memory_space<vmem>>, vector<27x8xbf16>
    %cst = arith.constant dense<0.000000e+00> : vector<512x8xf32>
    %2 = tpu.matmul %0, %1, %cst {dimension_numbers = #tpu.dot_dimension_numbers<[1], [0], [0], [1], [0, 0, 1, 1], [], []>} : vector<512x27xbf16>, vector<27x8xbf16>, vector<512x8xf32> -> vector<512x8xf32>
    %c0_3 = arith.constant 0 : index
    %c0_4 = arith.constant 0 : index
    %3 = vector.load %arg3[%c0_3, %c0_4] : memref<1x8xf32, #tpu.memory_space<vmem>>, vector<1x8xf32>
    %4 = vector.broadcast %3 : vector<1x8xf32> to vector<512x8xf32>
    %5 = arith.addf %2, %4 : vector<512x8xf32>
    %cst_5 = arith.constant 0.000000e+00 : f32
    %6 = vector.broadcast %cst_5 : f32 to vector<512x8xf32>
    %7 = arith.cmpf ogt, %5, %6 : vector<512x8xf32>
    %cst_6 = arith.constant 0.000000e+00 : f32
    %8 = vector.broadcast %cst_6 : f32 to vector<512x8xf32>
    %9 = arith.minimumf %5, %8 : vector<512x8xf32>
    %10 = math.exp %9 : vector<512x8xf32>
    %cst_7 = arith.constant 1.000000e+00 : f32
    %11 = vector.broadcast %cst_7 : f32 to vector<512x8xf32>
    %12 = arith.subf %10, %11 : vector<512x8xf32>
    %13 = arith.select %7, %5, %12 : vector<512x8xi1>, vector<512x8xf32>
    %14 = arith.truncf %13 : vector<512x8xf32> to vector<512x8xbf16>
    %c0_8 = arith.constant 0 : index
    %c0_9 = arith.constant 0 : index
    %15 = vector.load %arg4[%c0_8, %c0_9] : memref<512x8xbf16, #tpu.memory_space<vmem>>, vector<512x8xbf16>
    tpu.vector_store %arg4[%c0_8, %c0_9], %14 {strides = array<i32>} : memref<512x8xbf16, #tpu.memory_space<vmem>>, vector<512x8xbf16>,
    return
  }
  func.func @transform_0(%arg0: i32) -> (i32, i32) {
    %c0_i32 = arith.constant 0 : i32
    %c0_i32_0 = arith.constant 0 : i32
    return %arg0, %c0_i32 : i32, i32
  }
  func.func @transform_1(%arg0: i32) -> (i32, i32) {
    %c0_i32 = arith.constant 0 : i32
    %c0_i32_0 = arith.constant 0 : i32
    %c0_i32_1 = arith.constant 0 : i32
    return %c0_i32, %c0_i32_0 : i32, i32
  }
  func.func @transform_2(%arg0: i32) -> (i32, i32) {
    %c0_i32 = arith.constant 0 : i32
    %c0_i32_0 = arith.constant 0 : i32
    %c0_i32_1 = arith.constant 0 : i32
    return %c0_i32, %c0_i32_0 : i32, i32
  }
  func.func @transform_3(%arg0: i32) -> (i32, i32) {
    %c0_i32 = arith.constant 0 : i32
    %c0_i32_0 = arith.constant 0 : i32
    return %arg0, %c0_i32 : i32, i32
  }
}

module attributes {stable_mosaic.version = 11 : i64} {
  func.func @_pool_mm_kernel(%arg0: i32, %arg1: memref<4x128x8xbf16, #tpu.memory_space<vmem>>, %arg2: memref<8x2xbf16, #tpu.memory_space<vmem>>, %arg3: memref<1x2xf32, #tpu.memory_space<vmem>>, %arg4: memref<128x2xbf16, #tpu.memory_space<vmem>>) attributes {dimension_semantics = [#tpu.dimension_semantics<parallel>], iteration_bounds = array<i64: 1>, scalar_prefetch = 0 : i64, scratch_operands = 0 : i64, tpu.core_type = #tpu.core_type<tc>, window_params = [{transform_indices = @transform_0, window_bounds = array<i64: 4, 128, 8>}, {pipeline_mode = #tpu.pipeline_mode<synchronous>, transform_indices = @transform_1, window_bounds = array<i64: 8, 2>}, {pipeline_mode = #tpu.pipeline_mode<synchronous>, transform_indices = @transform_2, window_bounds = array<i64: 1, 2>}, {transform_indices = @transform_3, window_bounds = array<i64: 128, 2>}]} {
    %c0 = arith.constant 0 : index
    %c0_0 = arith.constant 0 : index
    %c0_1 = arith.constant 0 : index
    %0 = vector.load %arg1[%c0, %c0_0, %c0_1] : memref<4x128x8xbf16, #tpu.memory_space<vmem>>, vector<1x128x8xbf16>
    %1 = vector.shape_cast %0 : vector<1x128x8xbf16> to vector<128x8xbf16>
    %c1 = arith.constant 1 : index
    %c0_2 = arith.constant 0 : index
    %c0_3 = arith.constant 0 : index
    %2 = vector.load %arg1[%c1, %c0_2, %c0_3] : memref<4x128x8xbf16, #tpu.memory_space<vmem>>, vector<1x128x8xbf16>
    %3 = vector.shape_cast %2 : vector<1x128x8xbf16> to vector<128x8xbf16>
    %4 = arith.maximumf %1, %3 : vector<128x8xbf16>
    %c2 = arith.constant 2 : index
    %c0_4 = arith.constant 0 : index
    %c0_5 = arith.constant 0 : index
    %5 = vector.load %arg1[%c2, %c0_4, %c0_5] : memref<4x128x8xbf16, #tpu.memory_space<vmem>>, vector<1x128x8xbf16>
    %6 = vector.shape_cast %5 : vector<1x128x8xbf16> to vector<128x8xbf16>
    %c3 = arith.constant 3 : index
    %c0_6 = arith.constant 0 : index
    %c0_7 = arith.constant 0 : index
    %7 = vector.load %arg1[%c3, %c0_6, %c0_7] : memref<4x128x8xbf16, #tpu.memory_space<vmem>>, vector<1x128x8xbf16>
    %8 = vector.shape_cast %7 : vector<1x128x8xbf16> to vector<128x8xbf16>
    %9 = arith.maximumf %6, %8 : vector<128x8xbf16>
    %10 = arith.maximumf %4, %9 : vector<128x8xbf16>
    %c0_8 = arith.constant 0 : index
    %c0_9 = arith.constant 0 : index
    %11 = vector.load %arg2[%c0_8, %c0_9] : memref<8x2xbf16, #tpu.memory_space<vmem>>, vector<8x2xbf16>
    %cst = arith.constant dense<0.000000e+00> : vector<128x2xf32>
    %12 = tpu.matmul %10, %11, %cst {dimension_numbers = #tpu.dot_dimension_numbers<[1], [0], [0], [1], [0, 0, 1, 1], [], []>} : vector<128x8xbf16>, vector<8x2xbf16>, vector<128x2xf32> -> vector<128x2xf32>
    %c0_10 = arith.constant 0 : index
    %c0_11 = arith.constant 0 : index
    %13 = vector.load %arg3[%c0_10, %c0_11] : memref<1x2xf32, #tpu.memory_space<vmem>>, vector<1x2xf32>
    %14 = vector.broadcast %13 : vector<1x2xf32> to vector<128x2xf32>
    %15 = arith.addf %12, %14 : vector<128x2xf32>
    %cst_12 = arith.constant 0.000000e+00 : f32
    %16 = vector.broadcast %cst_12 : f32 to vector<128x2xf32>
    %17 = arith.cmpf ogt, %15, %16 : vector<128x2xf32>
    %cst_13 = arith.constant 0.000000e+00 : f32
    %18 = vector.broadcast %cst_13 : f32 to vector<128x2xf32>
    %19 = arith.minimumf %15, %18 : vector<128x2xf32>
    %20 = math.exp %19 : vector<128x2xf32>
    %cst_14 = arith.constant 1.000000e+00 : f32
    %21 = vector.broadcast %cst_14 : f32 to vector<128x2xf32>
    %22 = arith.subf %20, %21 : vector<128x2xf32>
    %23 = arith.select %17, %15, %22 : vector<128x2xi1>, vector<128x2xf32>
    %24 = arith.truncf %23 : vector<128x2xf32> to vector<128x2xbf16>
    %c0_15 = arith.constant 0 : index
    %c0_16 = arith.constant 0 : index
    %25 = vector.load %arg4[%c0_15, %c0_16] : memref<128x2xbf16, #tpu.memory_space<vmem>>, vector<128x2xbf16>
    tpu.vector_store %arg4[%c0_15, %c0_16], %24 {strides = array<i32>} : memref<128x2xbf16, #tpu.memory_space<vmem>>, vector<128x2xbf16>,
    return
  }
  func.func @transform_0(%arg0: i32) -> (i32, i32, i32) {
    %c0_i32 = arith.constant 0 : i32
    %c0_i32_0 = arith.constant 0 : i32
    %c0_i32_1 = arith.constant 0 : i32
    return %c0_i32, %arg0, %c0_i32_0 : i32, i32, i32
  }
  func.func @transform_1(%arg0: i32) -> (i32, i32) {
    %c0_i32 = arith.constant 0 : i32
    %c0_i32_0 = arith.constant 0 : i32
    %c0_i32_1 = arith.constant 0 : i32
    return %c0_i32, %c0_i32_0 : i32, i32
  }
  func.func @transform_2(%arg0: i32) -> (i32, i32) {
    %c0_i32 = arith.constant 0 : i32
    %c0_i32_0 = arith.constant 0 : i32
    %c0_i32_1 = arith.constant 0 : i32
    return %c0_i32, %c0_i32_0 : i32, i32
  }
  func.func @transform_3(%arg0: i32) -> (i32, i32) {
    %c0_i32 = arith.constant 0 : i32
    %c0_i32_0 = arith.constant 0 : i32
    return %arg0, %c0_i32 : i32, i32
  }
}

module attributes {stable_mosaic.version = 11 : i64} {
  func.func @_mm_kernel(%arg0: i32, %arg1: memref<128x18xbf16, #tpu.memory_space<vmem>>, %arg2: memref<18x16xbf16, #tpu.memory_space<vmem>>, %arg3: memref<1x16xf32, #tpu.memory_space<vmem>>, %arg4: memref<128x16xbf16, #tpu.memory_space<vmem>>) attributes {dimension_semantics = [#tpu.dimension_semantics<parallel>], iteration_bounds = array<i64: 1>, scalar_prefetch = 0 : i64, scratch_operands = 0 : i64, tpu.core_type = #tpu.core_type<tc>, window_params = [{transform_indices = @transform_0, window_bounds = array<i64: 128, 18>}, {pipeline_mode = #tpu.pipeline_mode<synchronous>, transform_indices = @transform_1, window_bounds = array<i64: 18, 16>}, {pipeline_mode = #tpu.pipeline_mode<synchronous>, transform_indices = @transform_2, window_bounds = array<i64: 1, 16>}, {transform_indices = @transform_3, window_bounds = array<i64: 128, 16>}]} {
    %c0 = arith.constant 0 : index
    %c0_0 = arith.constant 0 : index
    %0 = vector.load %arg1[%c0, %c0_0] : memref<128x18xbf16, #tpu.memory_space<vmem>>, vector<128x18xbf16>
    %c0_1 = arith.constant 0 : index
    %c0_2 = arith.constant 0 : index
    %1 = vector.load %arg2[%c0_1, %c0_2] : memref<18x16xbf16, #tpu.memory_space<vmem>>, vector<18x16xbf16>
    %cst = arith.constant dense<0.000000e+00> : vector<128x16xf32>
    %2 = tpu.matmul %0, %1, %cst {dimension_numbers = #tpu.dot_dimension_numbers<[1], [0], [0], [1], [0, 0, 1, 1], [], []>} : vector<128x18xbf16>, vector<18x16xbf16>, vector<128x16xf32> -> vector<128x16xf32>
    %c0_3 = arith.constant 0 : index
    %c0_4 = arith.constant 0 : index
    %3 = vector.load %arg3[%c0_3, %c0_4] : memref<1x16xf32, #tpu.memory_space<vmem>>, vector<1x16xf32>
    %4 = vector.broadcast %3 : vector<1x16xf32> to vector<128x16xf32>
    %5 = arith.addf %2, %4 : vector<128x16xf32>
    %cst_5 = arith.constant 0.000000e+00 : f32
    %6 = vector.broadcast %cst_5 : f32 to vector<128x16xf32>
    %7 = arith.cmpf ogt, %5, %6 : vector<128x16xf32>
    %cst_6 = arith.constant 0.000000e+00 : f32
    %8 = vector.broadcast %cst_6 : f32 to vector<128x16xf32>
    %9 = arith.minimumf %5, %8 : vector<128x16xf32>
    %10 = math.exp %9 : vector<128x16xf32>
    %cst_7 = arith.constant 1.000000e+00 : f32
    %11 = vector.broadcast %cst_7 : f32 to vector<128x16xf32>
    %12 = arith.subf %10, %11 : vector<128x16xf32>
    %13 = arith.select %7, %5, %12 : vector<128x16xi1>, vector<128x16xf32>
    %14 = arith.truncf %13 : vector<128x16xf32> to vector<128x16xbf16>
    %c0_8 = arith.constant 0 : index
    %c0_9 = arith.constant 0 : index
    %15 = vector.load %arg4[%c0_8, %c0_9] : memref<128x16xbf16, #tpu.memory_space<vmem>>, vector<128x16xbf16>
    tpu.vector_store %arg4[%c0_8, %c0_9], %14 {strides = array<i32>} : memref<128x16xbf16, #tpu.memory_space<vmem>>, vector<128x16xbf16>,
    return
  }
  func.func @transform_0(%arg0: i32) -> (i32, i32) {
    %c0_i32 = arith.constant 0 : i32
    %c0_i32_0 = arith.constant 0 : i32
    return %arg0, %c0_i32 : i32, i32
  }
  func.func @transform_1(%arg0: i32) -> (i32, i32) {
    %c0_i32 = arith.constant 0 : i32
    %c0_i32_0 = arith.constant 0 : i32
    %c0_i32_1 = arith.constant 0 : i32
    return %c0_i32, %c0_i32_0 : i32, i32
  }
  func.func @transform_2(%arg0: i32) -> (i32, i32) {
    %c0_i32 = arith.constant 0 : i32
    %c0_i32_0 = arith.constant 0 : i32
    %c0_i32_1 = arith.constant 0 : i32
    return %c0_i32, %c0_i32_0 : i32, i32
  }
  func.func @transform_3(%arg0: i32) -> (i32, i32) {
    %c0_i32 = arith.constant 0 : i32
    %c0_i32_0 = arith.constant 0 : i32
    return %arg0, %c0_i32 : i32, i32
  }
}

module attributes {stable_mosaic.version = 11 : i64} {
  func.func @_pool_mm_kernel(%arg0: i32, %arg1: memref<4x32x16xbf16, #tpu.memory_space<vmem>>, %arg2: memref<16x4xbf16, #tpu.memory_space<vmem>>, %arg3: memref<1x4xf32, #tpu.memory_space<vmem>>, %arg4: memref<32x4xbf16, #tpu.memory_space<vmem>>) attributes {dimension_semantics = [#tpu.dimension_semantics<parallel>], iteration_bounds = array<i64: 1>, scalar_prefetch = 0 : i64, scratch_operands = 0 : i64, tpu.core_type = #tpu.core_type<tc>, window_params = [{transform_indices = @transform_0, window_bounds = array<i64: 4, 32, 16>}, {pipeline_mode = #tpu.pipeline_mode<synchronous>, transform_indices = @transform_1, window_bounds = array<i64: 16, 4>}, {pipeline_mode = #tpu.pipeline_mode<synchronous>, transform_indices = @transform_2, window_bounds = array<i64: 1, 4>}, {transform_indices = @transform_3, window_bounds = array<i64: 32, 4>}]} {
    %c0 = arith.constant 0 : index
    %c0_0 = arith.constant 0 : index
    %c0_1 = arith.constant 0 : index
    %0 = vector.load %arg1[%c0, %c0_0, %c0_1] : memref<4x32x16xbf16, #tpu.memory_space<vmem>>, vector<1x32x16xbf16>
    %1 = vector.shape_cast %0 : vector<1x32x16xbf16> to vector<32x16xbf16>
    %c1 = arith.constant 1 : index
    %c0_2 = arith.constant 0 : index
    %c0_3 = arith.constant 0 : index
    %2 = vector.load %arg1[%c1, %c0_2, %c0_3] : memref<4x32x16xbf16, #tpu.memory_space<vmem>>, vector<1x32x16xbf16>
    %3 = vector.shape_cast %2 : vector<1x32x16xbf16> to vector<32x16xbf16>
    %4 = arith.maximumf %1, %3 : vector<32x16xbf16>
    %c2 = arith.constant 2 : index
    %c0_4 = arith.constant 0 : index
    %c0_5 = arith.constant 0 : index
    %5 = vector.load %arg1[%c2, %c0_4, %c0_5] : memref<4x32x16xbf16, #tpu.memory_space<vmem>>, vector<1x32x16xbf16>
    %6 = vector.shape_cast %5 : vector<1x32x16xbf16> to vector<32x16xbf16>
    %c3 = arith.constant 3 : index
    %c0_6 = arith.constant 0 : index
    %c0_7 = arith.constant 0 : index
    %7 = vector.load %arg1[%c3, %c0_6, %c0_7] : memref<4x32x16xbf16, #tpu.memory_space<vmem>>, vector<1x32x16xbf16>
    %8 = vector.shape_cast %7 : vector<1x32x16xbf16> to vector<32x16xbf16>
    %9 = arith.maximumf %6, %8 : vector<32x16xbf16>
    %10 = arith.maximumf %4, %9 : vector<32x16xbf16>
    %c0_8 = arith.constant 0 : index
    %c0_9 = arith.constant 0 : index
    %11 = vector.load %arg2[%c0_8, %c0_9] : memref<16x4xbf16, #tpu.memory_space<vmem>>, vector<16x4xbf16>
    %cst = arith.constant dense<0.000000e+00> : vector<32x4xf32>
    %12 = tpu.matmul %10, %11, %cst {dimension_numbers = #tpu.dot_dimension_numbers<[1], [0], [0], [1], [0, 0, 1, 1], [], []>} : vector<32x16xbf16>, vector<16x4xbf16>, vector<32x4xf32> -> vector<32x4xf32>
    %c0_10 = arith.constant 0 : index
    %c0_11 = arith.constant 0 : index
    %13 = vector.load %arg3[%c0_10, %c0_11] : memref<1x4xf32, #tpu.memory_space<vmem>>, vector<1x4xf32>
    %14 = vector.broadcast %13 : vector<1x4xf32> to vector<32x4xf32>
    %15 = arith.addf %12, %14 : vector<32x4xf32>
    %cst_12 = arith.constant 0.000000e+00 : f32
    %16 = vector.broadcast %cst_12 : f32 to vector<32x4xf32>
    %17 = arith.cmpf ogt, %15, %16 : vector<32x4xf32>
    %cst_13 = arith.constant 0.000000e+00 : f32
    %18 = vector.broadcast %cst_13 : f32 to vector<32x4xf32>
    %19 = arith.minimumf %15, %18 : vector<32x4xf32>
    %20 = math.exp %19 : vector<32x4xf32>
    %cst_14 = arith.constant 1.000000e+00 : f32
    %21 = vector.broadcast %cst_14 : f32 to vector<32x4xf32>
    %22 = arith.subf %20, %21 : vector<32x4xf32>
    %23 = arith.select %17, %15, %22 : vector<32x4xi1>, vector<32x4xf32>
    %24 = arith.truncf %23 : vector<32x4xf32> to vector<32x4xbf16>
    %c0_15 = arith.constant 0 : index
    %c0_16 = arith.constant 0 : index
    %25 = vector.load %arg4[%c0_15, %c0_16] : memref<32x4xbf16, #tpu.memory_space<vmem>>, vector<32x4xbf16>
    tpu.vector_store %arg4[%c0_15, %c0_16], %24 {strides = array<i32>} : memref<32x4xbf16, #tpu.memory_space<vmem>>, vector<32x4xbf16>,
    return
  }
  func.func @transform_0(%arg0: i32) -> (i32, i32, i32) {
    %c0_i32 = arith.constant 0 : i32
    %c0_i32_0 = arith.constant 0 : i32
    %c0_i32_1 = arith.constant 0 : i32
    return %c0_i32, %arg0, %c0_i32_0 : i32, i32, i32
  }
  func.func @transform_1(%arg0: i32) -> (i32, i32) {
    %c0_i32 = arith.constant 0 : i32
    %c0_i32_0 = arith.constant 0 : i32
    %c0_i32_1 = arith.constant 0 : i32
    return %c0_i32, %c0_i32_0 : i32, i32
  }
  func.func @transform_2(%arg0: i32) -> (i32, i32) {
    %c0_i32 = arith.constant 0 : i32
    %c0_i32_0 = arith.constant 0 : i32
    %c0_i32_1 = arith.constant 0 : i32
    return %c0_i32, %c0_i32_0 : i32, i32
  }
  func.func @transform_3(%arg0: i32) -> (i32, i32) {
    %c0_i32 = arith.constant 0 : i32
    %c0_i32_0 = arith.constant 0 : i32
    return %arg0, %c0_i32 : i32, i32
  }
}

module attributes {stable_mosaic.version = 11 : i64} {
  func.func @_mm_kernel(%arg0: i32, %arg1: memref<32x36xbf16, #tpu.memory_space<vmem>>, %arg2: memref<36x32xbf16, #tpu.memory_space<vmem>>, %arg3: memref<1x32xf32, #tpu.memory_space<vmem>>, %arg4: memref<32x32xbf16, #tpu.memory_space<vmem>>) attributes {dimension_semantics = [#tpu.dimension_semantics<parallel>], iteration_bounds = array<i64: 1>, scalar_prefetch = 0 : i64, scratch_operands = 0 : i64, tpu.core_type = #tpu.core_type<tc>, window_params = [{transform_indices = @transform_0, window_bounds = array<i64: 32, 36>}, {pipeline_mode = #tpu.pipeline_mode<synchronous>, transform_indices = @transform_1, window_bounds = array<i64: 36, 32>}, {pipeline_mode = #tpu.pipeline_mode<synchronous>, transform_indices = @transform_2, window_bounds = array<i64: 1, 32>}, {transform_indices = @transform_3, window_bounds = array<i64: 32, 32>}]} {
    %c0 = arith.constant 0 : index
    %c0_0 = arith.constant 0 : index
    %0 = vector.load %arg1[%c0, %c0_0] : memref<32x36xbf16, #tpu.memory_space<vmem>>, vector<32x36xbf16>
    %c0_1 = arith.constant 0 : index
    %c0_2 = arith.constant 0 : index
    %1 = vector.load %arg2[%c0_1, %c0_2] : memref<36x32xbf16, #tpu.memory_space<vmem>>, vector<36x32xbf16>
    %cst = arith.constant dense<0.000000e+00> : vector<32x32xf32>
    %2 = tpu.matmul %0, %1, %cst {dimension_numbers = #tpu.dot_dimension_numbers<[1], [0], [0], [1], [0, 0, 1, 1], [], []>} : vector<32x36xbf16>, vector<36x32xbf16>, vector<32x32xf32> -> vector<32x32xf32>
    %c0_3 = arith.constant 0 : index
    %c0_4 = arith.constant 0 : index
    %3 = vector.load %arg3[%c0_3, %c0_4] : memref<1x32xf32, #tpu.memory_space<vmem>>, vector<1x32xf32>
    %4 = vector.broadcast %3 : vector<1x32xf32> to vector<32x32xf32>
    %5 = arith.addf %2, %4 : vector<32x32xf32>
    %cst_5 = arith.constant 0.000000e+00 : f32
    %6 = vector.broadcast %cst_5 : f32 to vector<32x32xf32>
    %7 = arith.cmpf ogt, %5, %6 : vector<32x32xf32>
    %cst_6 = arith.constant 0.000000e+00 : f32
    %8 = vector.broadcast %cst_6 : f32 to vector<32x32xf32>
    %9 = arith.minimumf %5, %8 : vector<32x32xf32>
    %10 = math.exp %9 : vector<32x32xf32>
    %cst_7 = arith.constant 1.000000e+00 : f32
    %11 = vector.broadcast %cst_7 : f32 to vector<32x32xf32>
    %12 = arith.subf %10, %11 : vector<32x32xf32>
    %13 = arith.select %7, %5, %12 : vector<32x32xi1>, vector<32x32xf32>
    %14 = arith.truncf %13 : vector<32x32xf32> to vector<32x32xbf16>
    %c0_8 = arith.constant 0 : index
    %c0_9 = arith.constant 0 : index
    %15 = vector.load %arg4[%c0_8, %c0_9] : memref<32x32xbf16, #tpu.memory_space<vmem>>, vector<32x32xbf16>
    tpu.vector_store %arg4[%c0_8, %c0_9], %14 {strides = array<i32>} : memref<32x32xbf16, #tpu.memory_space<vmem>>, vector<32x32xbf16>,
    return
  }
  func.func @transform_0(%arg0: i32) -> (i32, i32) {
    %c0_i32 = arith.constant 0 : i32
    %c0_i32_0 = arith.constant 0 : i32
    return %arg0, %c0_i32 : i32, i32
  }
  func.func @transform_1(%arg0: i32) -> (i32, i32) {
    %c0_i32 = arith.constant 0 : i32
    %c0_i32_0 = arith.constant 0 : i32
    %c0_i32_1 = arith.constant 0 : i32
    return %c0_i32, %c0_i32_0 : i32, i32
  }
  func.func @transform_2(%arg0: i32) -> (i32, i32) {
    %c0_i32 = arith.constant 0 : i32
    %c0_i32_0 = arith.constant 0 : i32
    %c0_i32_1 = arith.constant 0 : i32
    return %c0_i32, %c0_i32_0 : i32, i32
  }
  func.func @transform_3(%arg0: i32) -> (i32, i32) {
    %c0_i32 = arith.constant 0 : i32
    %c0_i32_0 = arith.constant 0 : i32
    return %arg0, %c0_i32 : i32, i32
  }
}

module attributes {stable_mosaic.version = 11 : i64} {
  func.func @_dilated_mm_kernel(%arg0: i32, %arg1: memref<4x32x288xbf16, #tpu.memory_space<vmem>>, %arg2: memref<4x288x32xbf16, #tpu.memory_space<vmem>>, %arg3: memref<4x1x32xf32, #tpu.memory_space<vmem>>, %arg4: memref<32x32xbf16, #tpu.memory_space<vmem>>) attributes {dimension_semantics = [#tpu.dimension_semantics<parallel>], iteration_bounds = array<i64: 1>, scalar_prefetch = 0 : i64, scratch_operands = 0 : i64, tpu.core_type = #tpu.core_type<tc>, window_params = [{transform_indices = @transform_0, window_bounds = array<i64: 4, 32, 288>}, {pipeline_mode = #tpu.pipeline_mode<synchronous>, transform_indices = @transform_1, window_bounds = array<i64: 4, 288, 32>}, {pipeline_mode = #tpu.pipeline_mode<synchronous>, transform_indices = @transform_2, window_bounds = array<i64: 4, 1, 32>}, {transform_indices = @transform_3, window_bounds = array<i64: 32, 32>}]} {
    %c0 = arith.constant 0 : index
    %c0_0 = arith.constant 0 : index
    %c0_1 = arith.constant 0 : index
    %0 = vector.load %arg1[%c0, %c0_0, %c0_1] : memref<4x32x288xbf16, #tpu.memory_space<vmem>>, vector<1x32x288xbf16>
    %1 = vector.shape_cast %0 : vector<1x32x288xbf16> to vector<32x288xbf16>
    %c0_2 = arith.constant 0 : index
    %c0_3 = arith.constant 0 : index
    %c0_4 = arith.constant 0 : index
    %2 = vector.load %arg2[%c0_2, %c0_3, %c0_4] : memref<4x288x32xbf16, #tpu.memory_space<vmem>>, vector<1x288x32xbf16>
    %3 = vector.shape_cast %2 : vector<1x288x32xbf16> to vector<288x32xbf16>
    %cst = arith.constant dense<0.000000e+00> : vector<32x32xf32>
    %4 = tpu.matmul %1, %3, %cst {dimension_numbers = #tpu.dot_dimension_numbers<[1], [0], [0], [1], [0, 0, 1, 1], [], []>} : vector<32x288xbf16>, vector<288x32xbf16>, vector<32x32xf32> -> vector<32x32xf32>
    %c0_5 = arith.constant 0 : index
    %c0_6 = arith.constant 0 : index
    %c0_7 = arith.constant 0 : index
    %5 = vector.load %arg3[%c0_5, %c0_6, %c0_7] : memref<4x1x32xf32, #tpu.memory_space<vmem>>, vector<1x1x32xf32>
    %6 = vector.shape_cast %5 : vector<1x1x32xf32> to vector<1x32xf32>
    %7 = vector.broadcast %6 : vector<1x32xf32> to vector<32x32xf32>
    %8 = arith.addf %4, %7 : vector<32x32xf32>
    %cst_8 = arith.constant 0.000000e+00 : f32
    %9 = vector.broadcast %cst_8 : f32 to vector<32x32xf32>
    %10 = arith.cmpf ogt, %8, %9 : vector<32x32xf32>
    %cst_9 = arith.constant 0.000000e+00 : f32
    %11 = vector.broadcast %cst_9 : f32 to vector<32x32xf32>
    %12 = arith.minimumf %8, %11 : vector<32x32xf32>
    %13 = math.exp %12 : vector<32x32xf32>
    %cst_10 = arith.constant 1.000000e+00 : f32
    %14 = vector.broadcast %cst_10 : f32 to vector<32x32xf32>
    %15 = arith.subf %13, %14 : vector<32x32xf32>
    %16 = arith.select %10, %8, %15 : vector<32x32xi1>, vector<32x32xf32>
    %c1 = arith.constant 1 : index
    %c0_11 = arith.constant 0 : index
    %c0_12 = arith.constant 0 : index
    %17 = vector.load %arg1[%c1, %c0_11, %c0_12] : memref<4x32x288xbf16, #tpu.memory_space<vmem>>, vector<1x32x288xbf16>
    %18 = vector.shape_cast %17 : vector<1x32x288xbf16> to vector<32x288xbf16>
    %c1_13 = arith.constant 1 : index
    %c0_14 = arith.constant 0 : index
    %c0_15 = arith.constant 0 : index
    %19 = vector.load %arg2[%c1_13, %c0_14, %c0_15] : memref<4x288x32xbf16, #tpu.memory_space<vmem>>, vector<1x288x32xbf16>
    %20 = vector.shape_cast %19 : vector<1x288x32xbf16> to vector<288x32xbf16>
    %cst_16 = arith.constant dense<0.000000e+00> : vector<32x32xf32>
    %21 = tpu.matmul %18, %20, %cst_16 {dimension_numbers = #tpu.dot_dimension_numbers<[1], [0], [0], [1], [0, 0, 1, 1], [], []>} : vector<32x288xbf16>, vector<288x32xbf16>, vector<32x32xf32> -> vector<32x32xf32>
    %c1_17 = arith.constant 1 : index
    %c0_18 = arith.constant 0 : index
    %c0_19 = arith.constant 0 : index
    %22 = vector.load %arg3[%c1_17, %c0_18, %c0_19] : memref<4x1x32xf32, #tpu.memory_space<vmem>>, vector<1x1x32xf32>
    %23 = vector.shape_cast %22 : vector<1x1x32xf32> to vector<1x32xf32>
    %24 = vector.broadcast %23 : vector<1x32xf32> to vector<32x32xf32>
    %25 = arith.addf %21, %24 : vector<32x32xf32>
    %cst_20 = arith.constant 0.000000e+00 : f32
    %26 = vector.broadcast %cst_20 : f32 to vector<32x32xf32>
    %27 = arith.cmpf ogt, %25, %26 : vector<32x32xf32>
    %cst_21 = arith.constant 0.000000e+00 : f32
    %28 = vector.broadcast %cst_21 : f32 to vector<32x32xf32>
    %29 = arith.minimumf %25, %28 : vector<32x32xf32>
    %30 = math.exp %29 : vector<32x32xf32>
    %cst_22 = arith.constant 1.000000e+00 : f32
    %31 = vector.broadcast %cst_22 : f32 to vector<32x32xf32>
    %32 = arith.subf %30, %31 : vector<32x32xf32>
    %33 = arith.select %27, %25, %32 : vector<32x32xi1>, vector<32x32xf32>
    %34 = arith.addf %16, %33 : vector<32x32xf32>
    %c2 = arith.constant 2 : index
    %c0_23 = arith.constant 0 : index
    %c0_24 = arith.constant 0 : index
    %35 = vector.load %arg1[%c2, %c0_23, %c0_24] : memref<4x32x288xbf16, #tpu.memory_space<vmem>>, vector<1x32x288xbf16>
    %36 = vector.shape_cast %35 : vector<1x32x288xbf16> to vector<32x288xbf16>
    %c2_25 = arith.constant 2 : index
    %c0_26 = arith.constant 0 : index
    %c0_27 = arith.constant 0 : index
    %37 = vector.load %arg2[%c2_25, %c0_26, %c0_27] : memref<4x288x32xbf16, #tpu.memory_space<vmem>>, vector<1x288x32xbf16>
    %38 = vector.shape_cast %37 : vector<1x288x32xbf16> to vector<288x32xbf16>
    %cst_28 = arith.constant dense<0.000000e+00> : vector<32x32xf32>
    %39 = tpu.matmul %36, %38, %cst_28 {dimension_numbers = #tpu.dot_dimension_numbers<[1], [0], [0], [1], [0, 0, 1, 1], [], []>} : vector<32x288xbf16>, vector<288x32xbf16>, vector<32x32xf32> -> vector<32x32xf32>
    %c2_29 = arith.constant 2 : index
    %c0_30 = arith.constant 0 : index
    %c0_31 = arith.constant 0 : index
    %40 = vector.load %arg3[%c2_29, %c0_30, %c0_31] : memref<4x1x32xf32, #tpu.memory_space<vmem>>, vector<1x1x32xf32>
    %41 = vector.shape_cast %40 : vector<1x1x32xf32> to vector<1x32xf32>
    %42 = vector.broadcast %41 : vector<1x32xf32> to vector<32x32xf32>
    %43 = arith.addf %39, %42 : vector<32x32xf32>
    %cst_32 = arith.constant 0.000000e+00 : f32
    %44 = vector.broadcast %cst_32 : f32 to vector<32x32xf32>
    %45 = arith.cmpf ogt, %43, %44 : vector<32x32xf32>
    %cst_33 = arith.constant 0.000000e+00 : f32
    %46 = vector.broadcast %cst_33 : f32 to vector<32x32xf32>
    %47 = arith.minimumf %43, %46 : vector<32x32xf32>
    %48 = math.exp %47 : vector<32x32xf32>
    %cst_34 = arith.constant 1.000000e+00 : f32
    %49 = vector.broadcast %cst_34 : f32 to vector<32x32xf32>
    %50 = arith.subf %48, %49 : vector<32x32xf32>
    %51 = arith.select %45, %43, %50 : vector<32x32xi1>, vector<32x32xf32>
    %52 = arith.addf %34, %51 : vector<32x32xf32>
    %c3 = arith.constant 3 : index
    %c0_35 = arith.constant 0 : index
    %c0_36 = arith.constant 0 : index
    %53 = vector.load %arg1[%c3, %c0_35, %c0_36] : memref<4x32x288xbf16, #tpu.memory_space<vmem>>, vector<1x32x288xbf16>
    %54 = vector.shape_cast %53 : vector<1x32x288xbf16> to vector<32x288xbf16>
    %c3_37 = arith.constant 3 : index
    %c0_38 = arith.constant 0 : index
    %c0_39 = arith.constant 0 : index
    %55 = vector.load %arg2[%c3_37, %c0_38, %c0_39] : memref<4x288x32xbf16, #tpu.memory_space<vmem>>, vector<1x288x32xbf16>
    %56 = vector.shape_cast %55 : vector<1x288x32xbf16> to vector<288x32xbf16>
    %cst_40 = arith.constant dense<0.000000e+00> : vector<32x32xf32>
    %57 = tpu.matmul %54, %56, %cst_40 {dimension_numbers = #tpu.dot_dimension_numbers<[1], [0], [0], [1], [0, 0, 1, 1], [], []>} : vector<32x288xbf16>, vector<288x32xbf16>, vector<32x32xf32> -> vector<32x32xf32>
    %c3_41 = arith.constant 3 : index
    %c0_42 = arith.constant 0 : index
    %c0_43 = arith.constant 0 : index
    %58 = vector.load %arg3[%c3_41, %c0_42, %c0_43] : memref<4x1x32xf32, #tpu.memory_space<vmem>>, vector<1x1x32xf32>
    %59 = vector.shape_cast %58 : vector<1x1x32xf32> to vector<1x32xf32>
    %60 = vector.broadcast %59 : vector<1x32xf32> to vector<32x32xf32>
    %61 = arith.addf %57, %60 : vector<32x32xf32>
    %cst_44 = arith.constant 0.000000e+00 : f32
    %62 = vector.broadcast %cst_44 : f32 to vector<32x32xf32>
    %63 = arith.cmpf ogt, %61, %62 : vector<32x32xf32>
    %cst_45 = arith.constant 0.000000e+00 : f32
    %64 = vector.broadcast %cst_45 : f32 to vector<32x32xf32>
    %65 = arith.minimumf %61, %64 : vector<32x32xf32>
    %66 = math.exp %65 : vector<32x32xf32>
    %cst_46 = arith.constant 1.000000e+00 : f32
    %67 = vector.broadcast %cst_46 : f32 to vector<32x32xf32>
    %68 = arith.subf %66, %67 : vector<32x32xf32>
    %69 = arith.select %63, %61, %68 : vector<32x32xi1>, vector<32x32xf32>
    %70 = arith.addf %52, %69 : vector<32x32xf32>
    %71 = arith.truncf %70 : vector<32x32xf32> to vector<32x32xbf16>
    %c0_47 = arith.constant 0 : index
    %c0_48 = arith.constant 0 : index
    %72 = vector.load %arg4[%c0_47, %c0_48] : memref<32x32xbf16, #tpu.memory_space<vmem>>, vector<32x32xbf16>
    tpu.vector_store %arg4[%c0_47, %c0_48], %71 {strides = array<i32>} : memref<32x32xbf16, #tpu.memory_space<vmem>>, vector<32x32xbf16>,
    return
  }
  func.func @transform_0(%arg0: i32) -> (i32, i32, i32) {
    %c0_i32 = arith.constant 0 : i32
    %c0_i32_0 = arith.constant 0 : i32
    %c0_i32_1 = arith.constant 0 : i32
    return %c0_i32, %arg0, %c0_i32_0 : i32, i32, i32
  }
  func.func @transform_1(%arg0: i32) -> (i32, i32, i32) {
    %c0_i32 = arith.constant 0 : i32
    %c0_i32_0 = arith.constant 0 : i32
    %c0_i32_1 = arith.constant 0 : i32
    %c0_i32_2 = arith.constant 0 : i32
    return %c0_i32, %c0_i32_0, %c0_i32_1 : i32, i32, i32
  }
  func.func @transform_2(%arg0: i32) -> (i32, i32, i32) {
    %c0_i32 = arith.constant 0 : i32
    %c0_i32_0 = arith.constant 0 : i32
    %c0_i32_1 = arith.constant 0 : i32
    %c0_i32_2 = arith.constant 0 : i32
    return %c0_i32, %c0_i32_0, %c0_i32_1 : i32, i32, i32
  }
  func.func @transform_3(%arg0: i32) -> (i32, i32) {
    %c0_i32 = arith.constant 0 : i32
    %c0_i32_0 = arith.constant 0 : i32
    return %arg0, %c0_i32 : i32, i32
  }
}

module attributes {stable_mosaic.version = 11 : i64} {
  func.func @_mm_kernel(%arg0: i32, %arg1: memref<32x128xbf16, #tpu.memory_space<vmem>>, %arg2: memref<128x64xbf16, #tpu.memory_space<vmem>>, %arg3: memref<1x64xf32, #tpu.memory_space<vmem>>, %arg4: memref<32x64xbf16, #tpu.memory_space<vmem>>) attributes {dimension_semantics = [#tpu.dimension_semantics<parallel>], iteration_bounds = array<i64: 1>, scalar_prefetch = 0 : i64, scratch_operands = 0 : i64, tpu.core_type = #tpu.core_type<tc>, window_params = [{transform_indices = @transform_0, window_bounds = array<i64: 32, 128>}, {pipeline_mode = #tpu.pipeline_mode<synchronous>, transform_indices = @transform_1, window_bounds = array<i64: 128, 64>}, {pipeline_mode = #tpu.pipeline_mode<synchronous>, transform_indices = @transform_2, window_bounds = array<i64: 1, 64>}, {transform_indices = @transform_3, window_bounds = array<i64: 32, 64>}]} {
    %c0 = arith.constant 0 : index
    %c0_0 = arith.constant 0 : index
    %0 = vector.load %arg1[%c0, %c0_0] : memref<32x128xbf16, #tpu.memory_space<vmem>>, vector<32x128xbf16>
    %c0_1 = arith.constant 0 : index
    %c0_2 = arith.constant 0 : index
    %1 = vector.load %arg2[%c0_1, %c0_2] : memref<128x64xbf16, #tpu.memory_space<vmem>>, vector<128x64xbf16>
    %cst = arith.constant dense<0.000000e+00> : vector<32x64xf32>
    %2 = tpu.matmul %0, %1, %cst {dimension_numbers = #tpu.dot_dimension_numbers<[1], [0], [0], [1], [0, 0, 1, 1], [], []>} : vector<32x128xbf16>, vector<128x64xbf16>, vector<32x64xf32> -> vector<32x64xf32>
    %c0_3 = arith.constant 0 : index
    %c0_4 = arith.constant 0 : index
    %3 = vector.load %arg3[%c0_3, %c0_4] : memref<1x64xf32, #tpu.memory_space<vmem>>, vector<1x64xf32>
    %4 = vector.broadcast %3 : vector<1x64xf32> to vector<32x64xf32>
    %5 = arith.addf %2, %4 : vector<32x64xf32>
    %cst_5 = arith.constant 0.000000e+00 : f32
    %6 = vector.broadcast %cst_5 : f32 to vector<32x64xf32>
    %7 = arith.cmpf ogt, %5, %6 : vector<32x64xf32>
    %cst_6 = arith.constant 0.000000e+00 : f32
    %8 = vector.broadcast %cst_6 : f32 to vector<32x64xf32>
    %9 = arith.minimumf %5, %8 : vector<32x64xf32>
    %10 = math.exp %9 : vector<32x64xf32>
    %cst_7 = arith.constant 1.000000e+00 : f32
    %11 = vector.broadcast %cst_7 : f32 to vector<32x64xf32>
    %12 = arith.subf %10, %11 : vector<32x64xf32>
    %13 = arith.select %7, %5, %12 : vector<32x64xi1>, vector<32x64xf32>
    %14 = arith.truncf %13 : vector<32x64xf32> to vector<32x64xbf16>
    %c0_8 = arith.constant 0 : index
    %c0_9 = arith.constant 0 : index
    %15 = vector.load %arg4[%c0_8, %c0_9] : memref<32x64xbf16, #tpu.memory_space<vmem>>, vector<32x64xbf16>
    tpu.vector_store %arg4[%c0_8, %c0_9], %14 {strides = array<i32>} : memref<32x64xbf16, #tpu.memory_space<vmem>>, vector<32x64xbf16>,
    return
  }
  func.func @transform_0(%arg0: i32) -> (i32, i32) {
    %c0_i32 = arith.constant 0 : i32
    %c0_i32_0 = arith.constant 0 : i32
    return %arg0, %c0_i32 : i32, i32
  }
  func.func @transform_1(%arg0: i32) -> (i32, i32) {
    %c0_i32 = arith.constant 0 : i32
    %c0_i32_0 = arith.constant 0 : i32
    %c0_i32_1 = arith.constant 0 : i32
    return %c0_i32, %c0_i32_0 : i32, i32
  }
  func.func @transform_2(%arg0: i32) -> (i32, i32) {
    %c0_i32 = arith.constant 0 : i32
    %c0_i32_0 = arith.constant 0 : i32
    %c0_i32_1 = arith.constant 0 : i32
    return %c0_i32, %c0_i32_0 : i32, i32
  }
  func.func @transform_3(%arg0: i32) -> (i32, i32) {
    %c0_i32 = arith.constant 0 : i32
    %c0_i32_0 = arith.constant 0 : i32
    return %arg0, %c0_i32 : i32, i32
  }
}

module attributes {stable_mosaic.version = 11 : i64} {
  func.func @_mm_kernel(%arg0: i32, %arg1: memref<128x144xbf16, #tpu.memory_space<vmem>>, %arg2: memref<144x16xbf16, #tpu.memory_space<vmem>>, %arg3: memref<1x16xf32, #tpu.memory_space<vmem>>, %arg4: memref<128x16xbf16, #tpu.memory_space<vmem>>) attributes {dimension_semantics = [#tpu.dimension_semantics<parallel>], iteration_bounds = array<i64: 1>, scalar_prefetch = 0 : i64, scratch_operands = 0 : i64, tpu.core_type = #tpu.core_type<tc>, window_params = [{transform_indices = @transform_0, window_bounds = array<i64: 128, 144>}, {pipeline_mode = #tpu.pipeline_mode<synchronous>, transform_indices = @transform_1, window_bounds = array<i64: 144, 16>}, {pipeline_mode = #tpu.pipeline_mode<synchronous>, transform_indices = @transform_2, window_bounds = array<i64: 1, 16>}, {transform_indices = @transform_3, window_bounds = array<i64: 128, 16>}]} {
    %c0 = arith.constant 0 : index
    %c0_0 = arith.constant 0 : index
    %0 = vector.load %arg1[%c0, %c0_0] : memref<128x144xbf16, #tpu.memory_space<vmem>>, vector<128x144xbf16>
    %c0_1 = arith.constant 0 : index
    %c0_2 = arith.constant 0 : index
    %1 = vector.load %arg2[%c0_1, %c0_2] : memref<144x16xbf16, #tpu.memory_space<vmem>>, vector<144x16xbf16>
    %cst = arith.constant dense<0.000000e+00> : vector<128x16xf32>
    %2 = tpu.matmul %0, %1, %cst {dimension_numbers = #tpu.dot_dimension_numbers<[1], [0], [0], [1], [0, 0, 1, 1], [], []>} : vector<128x144xbf16>, vector<144x16xbf16>, vector<128x16xf32> -> vector<128x16xf32>
    %c0_3 = arith.constant 0 : index
    %c0_4 = arith.constant 0 : index
    %3 = vector.load %arg3[%c0_3, %c0_4] : memref<1x16xf32, #tpu.memory_space<vmem>>, vector<1x16xf32>
    %4 = vector.broadcast %3 : vector<1x16xf32> to vector<128x16xf32>
    %5 = arith.addf %2, %4 : vector<128x16xf32>
    %cst_5 = arith.constant 0.000000e+00 : f32
    %6 = vector.broadcast %cst_5 : f32 to vector<128x16xf32>
    %7 = arith.cmpf ogt, %5, %6 : vector<128x16xf32>
    %cst_6 = arith.constant 0.000000e+00 : f32
    %8 = vector.broadcast %cst_6 : f32 to vector<128x16xf32>
    %9 = arith.minimumf %5, %8 : vector<128x16xf32>
    %10 = math.exp %9 : vector<128x16xf32>
    %cst_7 = arith.constant 1.000000e+00 : f32
    %11 = vector.broadcast %cst_7 : f32 to vector<128x16xf32>
    %12 = arith.subf %10, %11 : vector<128x16xf32>
    %13 = arith.select %7, %5, %12 : vector<128x16xi1>, vector<128x16xf32>
    %14 = arith.truncf %13 : vector<128x16xf32> to vector<128x16xbf16>
    %c0_8 = arith.constant 0 : index
    %c0_9 = arith.constant 0 : index
    %15 = vector.load %arg4[%c0_8, %c0_9] : memref<128x16xbf16, #tpu.memory_space<vmem>>, vector<128x16xbf16>
    tpu.vector_store %arg4[%c0_8, %c0_9], %14 {strides = array<i32>} : memref<128x16xbf16, #tpu.memory_space<vmem>>, vector<128x16xbf16>,
    return
  }
  func.func @transform_0(%arg0: i32) -> (i32, i32) {
    %c0_i32 = arith.constant 0 : i32
    %c0_i32_0 = arith.constant 0 : i32
    return %arg0, %c0_i32 : i32, i32
  }
  func.func @transform_1(%arg0: i32) -> (i32, i32) {
    %c0_i32 = arith.constant 0 : i32
    %c0_i32_0 = arith.constant 0 : i32
    %c0_i32_1 = arith.constant 0 : i32
    return %c0_i32, %c0_i32_0 : i32, i32
  }
  func.func @transform_2(%arg0: i32) -> (i32, i32) {
    %c0_i32 = arith.constant 0 : i32
    %c0_i32_0 = arith.constant 0 : i32
    %c0_i32_1 = arith.constant 0 : i32
    return %c0_i32, %c0_i32_0 : i32, i32
  }
  func.func @transform_3(%arg0: i32) -> (i32, i32) {
    %c0_i32 = arith.constant 0 : i32
    %c0_i32_0 = arith.constant 0 : i32
    return %arg0, %c0_i32 : i32, i32
  }
}

module attributes {stable_mosaic.version = 11 : i64} {
  func.func @_mm_kernel(%arg0: i32, %arg1: memref<128x288xbf16, #tpu.memory_space<vmem>>, %arg2: memref<288x32xbf16, #tpu.memory_space<vmem>>, %arg3: memref<1x32xf32, #tpu.memory_space<vmem>>, %arg4: memref<128x32xbf16, #tpu.memory_space<vmem>>) attributes {dimension_semantics = [#tpu.dimension_semantics<parallel>], iteration_bounds = array<i64: 1>, scalar_prefetch = 0 : i64, scratch_operands = 0 : i64, tpu.core_type = #tpu.core_type<tc>, window_params = [{transform_indices = @transform_0, window_bounds = array<i64: 128, 288>}, {pipeline_mode = #tpu.pipeline_mode<synchronous>, transform_indices = @transform_1, window_bounds = array<i64: 288, 32>}, {pipeline_mode = #tpu.pipeline_mode<synchronous>, transform_indices = @transform_2, window_bounds = array<i64: 1, 32>}, {transform_indices = @transform_3, window_bounds = array<i64: 128, 32>}]} {
    %c0 = arith.constant 0 : index
    %c0_0 = arith.constant 0 : index
    %0 = vector.load %arg1[%c0, %c0_0] : memref<128x288xbf16, #tpu.memory_space<vmem>>, vector<128x288xbf16>
    %c0_1 = arith.constant 0 : index
    %c0_2 = arith.constant 0 : index
    %1 = vector.load %arg2[%c0_1, %c0_2] : memref<288x32xbf16, #tpu.memory_space<vmem>>, vector<288x32xbf16>
    %cst = arith.constant dense<0.000000e+00> : vector<128x32xf32>
    %2 = tpu.matmul %0, %1, %cst {dimension_numbers = #tpu.dot_dimension_numbers<[1], [0], [0], [1], [0, 0, 1, 1], [], []>} : vector<128x288xbf16>, vector<288x32xbf16>, vector<128x32xf32> -> vector<128x32xf32>
    %c0_3 = arith.constant 0 : index
    %c0_4 = arith.constant 0 : index
    %3 = vector.load %arg3[%c0_3, %c0_4] : memref<1x32xf32, #tpu.memory_space<vmem>>, vector<1x32xf32>
    %4 = vector.broadcast %3 : vector<1x32xf32> to vector<128x32xf32>
    %5 = arith.addf %2, %4 : vector<128x32xf32>
    %cst_5 = arith.constant 0.000000e+00 : f32
    %6 = vector.broadcast %cst_5 : f32 to vector<128x32xf32>
    %7 = arith.cmpf ogt, %5, %6 : vector<128x32xf32>
    %cst_6 = arith.constant 0.000000e+00 : f32
    %8 = vector.broadcast %cst_6 : f32 to vector<128x32xf32>
    %9 = arith.minimumf %5, %8 : vector<128x32xf32>
    %10 = math.exp %9 : vector<128x32xf32>
    %cst_7 = arith.constant 1.000000e+00 : f32
    %11 = vector.broadcast %cst_7 : f32 to vector<128x32xf32>
    %12 = arith.subf %10, %11 : vector<128x32xf32>
    %13 = arith.select %7, %5, %12 : vector<128x32xi1>, vector<128x32xf32>
    %14 = arith.truncf %13 : vector<128x32xf32> to vector<128x32xbf16>
    %c0_8 = arith.constant 0 : index
    %c0_9 = arith.constant 0 : index
    %15 = vector.load %arg4[%c0_8, %c0_9] : memref<128x32xbf16, #tpu.memory_space<vmem>>, vector<128x32xbf16>
    tpu.vector_store %arg4[%c0_8, %c0_9], %14 {strides = array<i32>} : memref<128x32xbf16, #tpu.memory_space<vmem>>, vector<128x32xbf16>,
    return
  }
  func.func @transform_0(%arg0: i32) -> (i32, i32) {
    %c0_i32 = arith.constant 0 : i32
    %c0_i32_0 = arith.constant 0 : i32
    return %arg0, %c0_i32 : i32, i32
  }
  func.func @transform_1(%arg0: i32) -> (i32, i32) {
    %c0_i32 = arith.constant 0 : i32
    %c0_i32_0 = arith.constant 0 : i32
    %c0_i32_1 = arith.constant 0 : i32
    return %c0_i32, %c0_i32_0 : i32, i32
  }
  func.func @transform_2(%arg0: i32) -> (i32, i32) {
    %c0_i32 = arith.constant 0 : i32
    %c0_i32_0 = arith.constant 0 : i32
    %c0_i32_1 = arith.constant 0 : i32
    return %c0_i32, %c0_i32_0 : i32, i32
  }
  func.func @transform_3(%arg0: i32) -> (i32, i32) {
    %c0_i32 = arith.constant 0 : i32
    %c0_i32_0 = arith.constant 0 : i32
    return %arg0, %c0_i32 : i32, i32
  }
}

module attributes {stable_mosaic.version = 11 : i64} {
  func.func @_mm_kernel(%arg0: i32, %arg1: memref<128x128xbf16, #tpu.memory_space<vmem>>, %arg2: memref<128x32xbf16, #tpu.memory_space<vmem>>, %arg3: memref<1x32xf32, #tpu.memory_space<vmem>>, %arg4: memref<128x32xbf16, #tpu.memory_space<vmem>>) attributes {dimension_semantics = [#tpu.dimension_semantics<parallel>], iteration_bounds = array<i64: 1>, scalar_prefetch = 0 : i64, scratch_operands = 0 : i64, tpu.core_type = #tpu.core_type<tc>, window_params = [{transform_indices = @transform_0, window_bounds = array<i64: 128, 128>}, {pipeline_mode = #tpu.pipeline_mode<synchronous>, transform_indices = @transform_1, window_bounds = array<i64: 128, 32>}, {pipeline_mode = #tpu.pipeline_mode<synchronous>, transform_indices = @transform_2, window_bounds = array<i64: 1, 32>}, {transform_indices = @transform_3, window_bounds = array<i64: 128, 32>}]} {
    %c0 = arith.constant 0 : index
    %c0_0 = arith.constant 0 : index
    %0 = vector.load %arg1[%c0, %c0_0] : memref<128x128xbf16, #tpu.memory_space<vmem>>, vector<128x128xbf16>
    %c0_1 = arith.constant 0 : index
    %c0_2 = arith.constant 0 : index
    %1 = vector.load %arg2[%c0_1, %c0_2] : memref<128x32xbf16, #tpu.memory_space<vmem>>, vector<128x32xbf16>
    %cst = arith.constant dense<0.000000e+00> : vector<128x32xf32>
    %2 = tpu.matmul %0, %1, %cst {dimension_numbers = #tpu.dot_dimension_numbers<[1], [0], [0], [1], [0, 0, 1, 1], [], []>} : vector<128x128xbf16>, vector<128x32xbf16>, vector<128x32xf32> -> vector<128x32xf32>
    %c0_3 = arith.constant 0 : index
    %c0_4 = arith.constant 0 : index
    %3 = vector.load %arg3[%c0_3, %c0_4] : memref<1x32xf32, #tpu.memory_space<vmem>>, vector<1x32xf32>
    %4 = vector.broadcast %3 : vector<1x32xf32> to vector<128x32xf32>
    %5 = arith.addf %2, %4 : vector<128x32xf32>
    %cst_5 = arith.constant 0.000000e+00 : f32
    %6 = vector.broadcast %cst_5 : f32 to vector<128x32xf32>
    %7 = arith.cmpf ogt, %5, %6 : vector<128x32xf32>
    %cst_6 = arith.constant 0.000000e+00 : f32
    %8 = vector.broadcast %cst_6 : f32 to vector<128x32xf32>
    %9 = arith.minimumf %5, %8 : vector<128x32xf32>
    %10 = math.exp %9 : vector<128x32xf32>
    %cst_7 = arith.constant 1.000000e+00 : f32
    %11 = vector.broadcast %cst_7 : f32 to vector<128x32xf32>
    %12 = arith.subf %10, %11 : vector<128x32xf32>
    %13 = arith.select %7, %5, %12 : vector<128x32xi1>, vector<128x32xf32>
    %14 = arith.truncf %13 : vector<128x32xf32> to vector<128x32xbf16>
    %c0_8 = arith.constant 0 : index
    %c0_9 = arith.constant 0 : index
    %15 = vector.load %arg4[%c0_8, %c0_9] : memref<128x32xbf16, #tpu.memory_space<vmem>>, vector<128x32xbf16>
    tpu.vector_store %arg4[%c0_8, %c0_9], %14 {strides = array<i32>} : memref<128x32xbf16, #tpu.memory_space<vmem>>, vector<128x32xbf16>,
    return
  }
  func.func @transform_0(%arg0: i32) -> (i32, i32) {
    %c0_i32 = arith.constant 0 : i32
    %c0_i32_0 = arith.constant 0 : i32
    return %arg0, %c0_i32 : i32, i32
  }
  func.func @transform_1(%arg0: i32) -> (i32, i32) {
    %c0_i32 = arith.constant 0 : i32
    %c0_i32_0 = arith.constant 0 : i32
    %c0_i32_1 = arith.constant 0 : i32
    return %c0_i32, %c0_i32_0 : i32, i32
  }
  func.func @transform_2(%arg0: i32) -> (i32, i32) {
    %c0_i32 = arith.constant 0 : i32
    %c0_i32_0 = arith.constant 0 : i32
    %c0_i32_1 = arith.constant 0 : i32
    return %c0_i32, %c0_i32_0 : i32, i32
  }
  func.func @transform_3(%arg0: i32) -> (i32, i32) {
    %c0_i32 = arith.constant 0 : i32
    %c0_i32_0 = arith.constant 0 : i32
    return %arg0, %c0_i32 : i32, i32
  }
}

module attributes {stable_mosaic.version = 11 : i64} {
  func.func @_mm_kernel(%arg0: i32, %arg1: memref<512x72xbf16, #tpu.memory_space<vmem>>, %arg2: memref<72x8xbf16, #tpu.memory_space<vmem>>, %arg3: memref<1x8xf32, #tpu.memory_space<vmem>>, %arg4: memref<512x8xbf16, #tpu.memory_space<vmem>>) attributes {dimension_semantics = [#tpu.dimension_semantics<parallel>], iteration_bounds = array<i64: 1>, scalar_prefetch = 0 : i64, scratch_operands = 0 : i64, tpu.core_type = #tpu.core_type<tc>, window_params = [{transform_indices = @transform_0, window_bounds = array<i64: 512, 72>}, {pipeline_mode = #tpu.pipeline_mode<synchronous>, transform_indices = @transform_1, window_bounds = array<i64: 72, 8>}, {pipeline_mode = #tpu.pipeline_mode<synchronous>, transform_indices = @transform_2, window_bounds = array<i64: 1, 8>}, {transform_indices = @transform_3, window_bounds = array<i64: 512, 8>}]} {
    %c0 = arith.constant 0 : index
    %c0_0 = arith.constant 0 : index
    %0 = vector.load %arg1[%c0, %c0_0] : memref<512x72xbf16, #tpu.memory_space<vmem>>, vector<512x72xbf16>
    %c0_1 = arith.constant 0 : index
    %c0_2 = arith.constant 0 : index
    %1 = vector.load %arg2[%c0_1, %c0_2] : memref<72x8xbf16, #tpu.memory_space<vmem>>, vector<72x8xbf16>
    %cst = arith.constant dense<0.000000e+00> : vector<512x8xf32>
    %2 = tpu.matmul %0, %1, %cst {dimension_numbers = #tpu.dot_dimension_numbers<[1], [0], [0], [1], [0, 0, 1, 1], [], []>} : vector<512x72xbf16>, vector<72x8xbf16>, vector<512x8xf32> -> vector<512x8xf32>
    %c0_3 = arith.constant 0 : index
    %c0_4 = arith.constant 0 : index
    %3 = vector.load %arg3[%c0_3, %c0_4] : memref<1x8xf32, #tpu.memory_space<vmem>>, vector<1x8xf32>
    %4 = vector.broadcast %3 : vector<1x8xf32> to vector<512x8xf32>
    %5 = arith.addf %2, %4 : vector<512x8xf32>
    %cst_5 = arith.constant 0.000000e+00 : f32
    %6 = vector.broadcast %cst_5 : f32 to vector<512x8xf32>
    %7 = arith.cmpf ogt, %5, %6 : vector<512x8xf32>
    %cst_6 = arith.constant 0.000000e+00 : f32
    %8 = vector.broadcast %cst_6 : f32 to vector<512x8xf32>
    %9 = arith.minimumf %5, %8 : vector<512x8xf32>
    %10 = math.exp %9 : vector<512x8xf32>
    %cst_7 = arith.constant 1.000000e+00 : f32
    %11 = vector.broadcast %cst_7 : f32 to vector<512x8xf32>
    %12 = arith.subf %10, %11 : vector<512x8xf32>
    %13 = arith.select %7, %5, %12 : vector<512x8xi1>, vector<512x8xf32>
    %14 = arith.truncf %13 : vector<512x8xf32> to vector<512x8xbf16>
    %c0_8 = arith.constant 0 : index
    %c0_9 = arith.constant 0 : index
    %15 = vector.load %arg4[%c0_8, %c0_9] : memref<512x8xbf16, #tpu.memory_space<vmem>>, vector<512x8xbf16>
    tpu.vector_store %arg4[%c0_8, %c0_9], %14 {strides = array<i32>} : memref<512x8xbf16, #tpu.memory_space<vmem>>, vector<512x8xbf16>,
    return
  }
  func.func @transform_0(%arg0: i32) -> (i32, i32) {
    %c0_i32 = arith.constant 0 : i32
    %c0_i32_0 = arith.constant 0 : i32
    return %arg0, %c0_i32 : i32, i32
  }
  func.func @transform_1(%arg0: i32) -> (i32, i32) {
    %c0_i32 = arith.constant 0 : i32
    %c0_i32_0 = arith.constant 0 : i32
    %c0_i32_1 = arith.constant 0 : i32
    return %c0_i32, %c0_i32_0 : i32, i32
  }
  func.func @transform_2(%arg0: i32) -> (i32, i32) {
    %c0_i32 = arith.constant 0 : i32
    %c0_i32_0 = arith.constant 0 : i32
    %c0_i32_1 = arith.constant 0 : i32
    return %c0_i32, %c0_i32_0 : i32, i32
  }
  func.func @transform_3(%arg0: i32) -> (i32, i32) {
    %c0_i32 = arith.constant 0 : i32
    %c0_i32_0 = arith.constant 0 : i32
    return %arg0, %c0_i32 : i32, i32
  }
}

module attributes {stable_mosaic.version = 11 : i64} {
  func.func @_mm_kernel(%arg0: i32, %arg1: memref<512x144xbf16, #tpu.memory_space<vmem>>, %arg2: memref<144x16xbf16, #tpu.memory_space<vmem>>, %arg3: memref<1x16xf32, #tpu.memory_space<vmem>>, %arg4: memref<512x16xbf16, #tpu.memory_space<vmem>>) attributes {dimension_semantics = [#tpu.dimension_semantics<parallel>], iteration_bounds = array<i64: 1>, scalar_prefetch = 0 : i64, scratch_operands = 0 : i64, tpu.core_type = #tpu.core_type<tc>, window_params = [{transform_indices = @transform_0, window_bounds = array<i64: 512, 144>}, {pipeline_mode = #tpu.pipeline_mode<synchronous>, transform_indices = @transform_1, window_bounds = array<i64: 144, 16>}, {pipeline_mode = #tpu.pipeline_mode<synchronous>, transform_indices = @transform_2, window_bounds = array<i64: 1, 16>}, {transform_indices = @transform_3, window_bounds = array<i64: 512, 16>}]} {
    %c0 = arith.constant 0 : index
    %c0_0 = arith.constant 0 : index
    %0 = vector.load %arg1[%c0, %c0_0] : memref<512x144xbf16, #tpu.memory_space<vmem>>, vector<512x144xbf16>
    %c0_1 = arith.constant 0 : index
    %c0_2 = arith.constant 0 : index
    %1 = vector.load %arg2[%c0_1, %c0_2] : memref<144x16xbf16, #tpu.memory_space<vmem>>, vector<144x16xbf16>
    %cst = arith.constant dense<0.000000e+00> : vector<512x16xf32>
    %2 = tpu.matmul %0, %1, %cst {dimension_numbers = #tpu.dot_dimension_numbers<[1], [0], [0], [1], [0, 0, 1, 1], [], []>} : vector<512x144xbf16>, vector<144x16xbf16>, vector<512x16xf32> -> vector<512x16xf32>
    %c0_3 = arith.constant 0 : index
    %c0_4 = arith.constant 0 : index
    %3 = vector.load %arg3[%c0_3, %c0_4] : memref<1x16xf32, #tpu.memory_space<vmem>>, vector<1x16xf32>
    %4 = vector.broadcast %3 : vector<1x16xf32> to vector<512x16xf32>
    %5 = arith.addf %2, %4 : vector<512x16xf32>
    %cst_5 = arith.constant 0.000000e+00 : f32
    %6 = vector.broadcast %cst_5 : f32 to vector<512x16xf32>
    %7 = arith.cmpf ogt, %5, %6 : vector<512x16xf32>
    %cst_6 = arith.constant 0.000000e+00 : f32
    %8 = vector.broadcast %cst_6 : f32 to vector<512x16xf32>
    %9 = arith.minimumf %5, %8 : vector<512x16xf32>
    %10 = math.exp %9 : vector<512x16xf32>
    %cst_7 = arith.constant 1.000000e+00 : f32
    %11 = vector.broadcast %cst_7 : f32 to vector<512x16xf32>
    %12 = arith.subf %10, %11 : vector<512x16xf32>
    %13 = arith.select %7, %5, %12 : vector<512x16xi1>, vector<512x16xf32>
    %14 = arith.truncf %13 : vector<512x16xf32> to vector<512x16xbf16>
    %c0_8 = arith.constant 0 : index
    %c0_9 = arith.constant 0 : index
    %15 = vector.load %arg4[%c0_8, %c0_9] : memref<512x16xbf16, #tpu.memory_space<vmem>>, vector<512x16xbf16>
    tpu.vector_store %arg4[%c0_8, %c0_9], %14 {strides = array<i32>} : memref<512x16xbf16, #tpu.memory_space<vmem>>, vector<512x16xbf16>,
    return
  }
  func.func @transform_0(%arg0: i32) -> (i32, i32) {
    %c0_i32 = arith.constant 0 : i32
    %c0_i32_0 = arith.constant 0 : i32
    return %arg0, %c0_i32 : i32, i32
  }
  func.func @transform_1(%arg0: i32) -> (i32, i32) {
    %c0_i32 = arith.constant 0 : i32
    %c0_i32_0 = arith.constant 0 : i32
    %c0_i32_1 = arith.constant 0 : i32
    return %c0_i32, %c0_i32_0 : i32, i32
  }
  func.func @transform_2(%arg0: i32) -> (i32, i32) {
    %c0_i32 = arith.constant 0 : i32
    %c0_i32_0 = arith.constant 0 : i32
    %c0_i32_1 = arith.constant 0 : i32
    return %c0_i32, %c0_i32_0 : i32, i32
  }
  func.func @transform_3(%arg0: i32) -> (i32, i32) {
    %c0_i32 = arith.constant 0 : i32
    %c0_i32_0 = arith.constant 0 : i32
    return %arg0, %c0_i32 : i32, i32
  }
}

module attributes {stable_mosaic.version = 11 : i64} {
  func.func @_mm_kernel(%arg0: i32, %arg1: memref<512x64xbf16, #tpu.memory_space<vmem>>, %arg2: memref<64x16xbf16, #tpu.memory_space<vmem>>, %arg3: memref<1x16xf32, #tpu.memory_space<vmem>>, %arg4: memref<512x16xbf16, #tpu.memory_space<vmem>>) attributes {dimension_semantics = [#tpu.dimension_semantics<parallel>], iteration_bounds = array<i64: 1>, scalar_prefetch = 0 : i64, scratch_operands = 0 : i64, tpu.core_type = #tpu.core_type<tc>, window_params = [{transform_indices = @transform_0, window_bounds = array<i64: 512, 64>}, {pipeline_mode = #tpu.pipeline_mode<synchronous>, transform_indices = @transform_1, window_bounds = array<i64: 64, 16>}, {pipeline_mode = #tpu.pipeline_mode<synchronous>, transform_indices = @transform_2, window_bounds = array<i64: 1, 16>}, {transform_indices = @transform_3, window_bounds = array<i64: 512, 16>}]} {
    %c0 = arith.constant 0 : index
    %c0_0 = arith.constant 0 : index
    %0 = vector.load %arg1[%c0, %c0_0] : memref<512x64xbf16, #tpu.memory_space<vmem>>, vector<512x64xbf16>
    %c0_1 = arith.constant 0 : index
    %c0_2 = arith.constant 0 : index
    %1 = vector.load %arg2[%c0_1, %c0_2] : memref<64x16xbf16, #tpu.memory_space<vmem>>, vector<64x16xbf16>
    %cst = arith.constant dense<0.000000e+00> : vector<512x16xf32>
    %2 = tpu.matmul %0, %1, %cst {dimension_numbers = #tpu.dot_dimension_numbers<[1], [0], [0], [1], [0, 0, 1, 1], [], []>} : vector<512x64xbf16>, vector<64x16xbf16>, vector<512x16xf32> -> vector<512x16xf32>
    %c0_3 = arith.constant 0 : index
    %c0_4 = arith.constant 0 : index
    %3 = vector.load %arg3[%c0_3, %c0_4] : memref<1x16xf32, #tpu.memory_space<vmem>>, vector<1x16xf32>
    %4 = vector.broadcast %3 : vector<1x16xf32> to vector<512x16xf32>
    %5 = arith.addf %2, %4 : vector<512x16xf32>
    %cst_5 = arith.constant 0.000000e+00 : f32
    %6 = vector.broadcast %cst_5 : f32 to vector<512x16xf32>
    %7 = arith.cmpf ogt, %5, %6 : vector<512x16xf32>
    %cst_6 = arith.constant 0.000000e+00 : f32
    %8 = vector.broadcast %cst_6 : f32 to vector<512x16xf32>
    %9 = arith.minimumf %5, %8 : vector<512x16xf32>
    %10 = math.exp %9 : vector<512x16xf32>
    %cst_7 = arith.constant 1.000000e+00 : f32
    %11 = vector.broadcast %cst_7 : f32 to vector<512x16xf32>
    %12 = arith.subf %10, %11 : vector<512x16xf32>
    %13 = arith.select %7, %5, %12 : vector<512x16xi1>, vector<512x16xf32>
    %14 = arith.truncf %13 : vector<512x16xf32> to vector<512x16xbf16>
    %c0_8 = arith.constant 0 : index
    %c0_9 = arith.constant 0 : index
    %15 = vector.load %arg4[%c0_8, %c0_9] : memref<512x16xbf16, #tpu.memory_space<vmem>>, vector<512x16xbf16>
    tpu.vector_store %arg4[%c0_8, %c0_9], %14 {strides = array<i32>} : memref<512x16xbf16, #tpu.memory_space<vmem>>, vector<512x16xbf16>,
    return
  }
  func.func @transform_0(%arg0: i32) -> (i32, i32) {
    %c0_i32 = arith.constant 0 : i32
    %c0_i32_0 = arith.constant 0 : i32
    return %arg0, %c0_i32 : i32, i32
  }
  func.func @transform_1(%arg0: i32) -> (i32, i32) {
    %c0_i32 = arith.constant 0 : i32
    %c0_i32_0 = arith.constant 0 : i32
    %c0_i32_1 = arith.constant 0 : i32
    return %c0_i32, %c0_i32_0 : i32, i32
  }
  func.func @transform_2(%arg0: i32) -> (i32, i32) {
    %c0_i32 = arith.constant 0 : i32
    %c0_i32_0 = arith.constant 0 : i32
    %c0_i32_1 = arith.constant 0 : i32
    return %c0_i32, %c0_i32_0 : i32, i32
  }
  func.func @transform_3(%arg0: i32) -> (i32, i32) {
    %c0_i32 = arith.constant 0 : i32
    %c0_i32_0 = arith.constant 0 : i32
    return %arg0, %c0_i32 : i32, i32
  }
}

</mosaic_0001>

<llo_original>
// kernel: sqnet_forward.14
$region0: #{sqnet_forward.14}
  #allocation0 [shape = 'u32[]', space=smem, size = 0x4, offset = 0x4, fixed_abs, tag = 'smem constant byte address 0x4 - core index']
  #allocation1 [shape = 'u32[144,128]{1,0:T(1,128)}', space=vmem, size = 0x12000, scoped, tag = 'internal scratch']
  %s0 = inlined_call_operand.vmem [shape: bf16[4,128,8], index: 0, kind: input, shape index: {}]
  %s1 = inlined_call_operand.vmem [shape: bf16[8,2], index: 1, kind: input, shape index: {}]
  %s2 = inlined_call_operand.vmem [shape: f32[1,2], index: 2, kind: input, shape index: {}]
  %s3 = inlined_call_operand.vmem [shape: bf16[128,2], index: 3, kind: output, shape index: {}]
  %s4 = sld [smem:[#allocation0]]
  $region22: #{sqnet_forward.14} parent=0
    _
  %s6 = ssub.s32 1, %s4
  %s7 = scalar_select 0, %s6, %s4
  // Predicated region
  $region2: #{sqnet_forward.14} parent=0 // pred_check
    _
  $region3: #{sqnet_forward.14} parent=0 // pred_check_branch
    %9 = sbr.rel (0) target = $region5
  $region4: #{sqnet_forward.14} parent=0 // pred_region
    _
  $region5: #{sqnet_forward.14} parent=0 // pred_fallthru
    _
  // Predicated region
  $region6: #{sqnet_forward.14} parent=0 // pred_check
    _
  $region7: #{sqnet_forward.14} parent=0 // pred_check_branch
    %11 = sbr.rel (0) target = $region9
  $region8: #{sqnet_forward.14} parent=0 // pred_region
    _
  $region9: #{sqnet_forward.14} parent=0 // pred_fallthru
    _
  // Predicated region
  $region10: #{sqnet_forward.14} parent=0 // pred_check
    _
  $region11: #{sqnet_forward.14} parent=0 // pred_check_branch
    %13 = sbr.rel (0) target = $region13
  $region12: #{sqnet_forward.14} parent=0 // pred_region
    _
  $region13: #{sqnet_forward.14} parent=0 // pred_fallthru
    _
  %v15 = vld [vmem:[%s0] sm:$0xf]
  %v16 = vld [vmem:[%s0 + $0x4] sm:$0xf]
  %v17 = vld [vmem:[%s0 + $0x8] sm:$0xf]
  %v18 = vld [vmem:[%s0 + $0xc] sm:$0xf]
  %v19 = vld [vmem:[%s0 + $0x10] sm:$0xf]
  %v20 = vld [vmem:[%s0 + $0x14] sm:$0xf]
  %v21 = vld [vmem:[%s0 + $0x18] sm:$0xf]
  %v22 = vld [vmem:[%s0 + $0x1c] sm:$0xf]
  %v23 = vld [vmem:[%s0 + $0x20] sm:$0xf]
  %v24 = vld [vmem:[%s0 + $0x24] sm:$0xf]
  %v25 = vld [vmem:[%s0 + $0x28] sm:$0xf]
  %v26 = vld [vmem:[%s0 + $0x2c] sm:$0xf]
  %v27 = vld [vmem:[%s0 + $0x30] sm:$0xf]
  %v28 = vld [vmem:[%s0 + $0x34] sm:$0xf]
  %v29 = vld [vmem:[%s0 + $0x38] sm:$0xf]
  %v30 = vld [vmem:[%s0 + $0x3c] sm:$0xf]
  %s31 = scalar_lea.vmem %s0, 64
  %v32 = vld [vmem:[%s31] sm:$0xf]
  %v33 = vld [vmem:[%s31 + $0x4] sm:$0xf]
  %v34 = vld [vmem:[%s31 + $0x8] sm:$0xf]
  %v35 = vld [vmem:[%s31 + $0xc] sm:$0xf]
  %v36 = vld [vmem:[%s31 + $0x10] sm:$0xf]
  %v37 = vld [vmem:[%s31 + $0x14] sm:$0xf]
  %v38 = vld [vmem:[%s31 + $0x18] sm:$0xf]
  %v39 = vld [vmem:[%s31 + $0x1c] sm:$0xf]
  %v40 = vld [vmem:[%s31 + $0x20] sm:$0xf]
  %v41 = vld [vmem:[%s31 + $0x24] sm:$0xf]
  %v42 = vld [vmem:[%s31 + $0x28] sm:$0xf]
  %v43 = vld [vmem:[%s31 + $0x2c] sm:$0xf]
  %v44 = vld [vmem:[%s31 + $0x30] sm:$0xf]
  %v45 = vld [vmem:[%s31 + $0x34] sm:$0xf]
  %v46 = vld [vmem:[%s31 + $0x38] sm:$0xf]
  %v47 = vld [vmem:[%s31 + $0x3c] sm:$0xf]
  %v48 = vmax.bf16 %v15, %v32
  %v49 = vmax.bf16 %v16, %v33
  %v50 = vmax.bf16 %v17, %v34
  %v51 = vmax.bf16 %v18, %v35
  %v52 = vmax.bf16 %v19, %v36
  %v53 = vmax.bf16 %v20, %v37
  %v54 = vmax.bf16 %v21, %v38
  %v55 = vmax.bf16 %v22, %v39
  %v56 = vmax.bf16 %v23, %v40
  %v57 = vmax.bf16 %v24, %v41
  %v58 = vmax.bf16 %v25, %v42
  %v59 = vmax.bf16 %v26, %v43
  %v60 = vmax.bf16 %v27, %v44
  %v61 = vmax.bf16 %v28, %v45
  %v62 = vmax.bf16 %v29, %v46
  %v63 = vmax.bf16 %v30, %v47
  %s64 = scalar_lea.vmem %s0, 128
  %v65 = vld [vmem:[%s64] sm:$0xf]
  %v66 = vld [vmem:[%s64 + $0x4] sm:$0xf]
  %v67 = vld [vmem:[%s64 + $0x8] sm:$0xf]
  %v68 = vld [vmem:[%s64 + $0xc] sm:$0xf]
  %v69 = vld [vmem:[%s64 + $0x10] sm:$0xf]
  %v70 = vld [vmem:[%s64 + $0x14] sm:$0xf]
  %v71 = vld [vmem:[%s64 + $0x18] sm:$0xf]
  %v72 = vld [vmem:[%s64 + $0x1c] sm:$0xf]
  %v73 = vld [vmem:[%s64 + $0x20] sm:$0xf]
  %v74 = vld [vmem:[%s64 + $0x24] sm:$0xf]
  %v75 = vld [vmem:[%s64 + $0x28] sm:$0xf]
  %v76 = vld [vmem:[%s64 + $0x2c] sm:$0xf]
  %v77 = vld [vmem:[%s64 + $0x30] sm:$0xf]
  %v78 = vld [vmem:[%s64 + $0x34] sm:$0xf]
  %v79 = vld [vmem:[%s64 + $0x38] sm:$0xf]
  %v80 = vld [vmem:[%s64 + $0x3c] sm:$0xf]
  %s81 = scalar_lea.vmem %s0, 192
  %v82 = vld [vmem:[%s81] sm:$0xf]
  %v83 = vld [vmem:[%s81 + $0x4] sm:$0xf]
  %v84 = vld [vmem:[%s81 + $0x8] sm:$0xf]
  %v85 = vld [vmem:[%s81 + $0xc] sm:$0xf]
  %v86 = vld [vmem:[%s81 + $0x10] sm:$0xf]
  %v87 = vld [vmem:[%s81 + $0x14] sm:$0xf]
  %v88 = vld [vmem:[%s81 + $0x18] sm:$0xf]
  %v89 = vld [vmem:[%s81 + $0x1c] sm:$0xf]
  %v90 = vld [vmem:[%s81 + $0x20] sm:$0xf]
  %v91 = vld [vmem:[%s81 + $0x24] sm:$0xf]
  %v92 = vld [vmem:[%s81 + $0x28] sm:$0xf]
  %v93 = vld [vmem:[%s81 + $0x2c] sm:$0xf]
  %v94 = vld [vmem:[%s81 + $0x30] sm:$0xf]
  %v95 = vld [vmem:[%s81 + $0x34] sm:$0xf]
  %v96 = vld [vmem:[%s81 + $0x38] sm:$0xf]
  %v97 = vld [vmem:[%s81 + $0x3c] sm:$0xf]
  %v98 = vmax.bf16 %v65, %v82
  %v99 = vmax.bf16 %v66, %v83
  %v100 = vmax.bf16 %v67, %v84
  %v101 = vmax.bf16 %v68, %v85
  %v102 = vmax.bf16 %v69, %v86
  %v103 = vmax.bf16 %v70, %v87
  %v104 = vmax.bf16 %v71, %v88
  %v105 = vmax.bf16 %v72, %v89
  %v106 = vmax.bf16 %v73, %v90
  %v107 = vmax.bf16 %v74, %v91
  %v108 = vmax.bf16 %v75, %v92
  %v109 = vmax.bf16 %v76, %v93
  %v110 = vmax.bf16 %v77, %v94
  %v111 = vmax.bf16 %v78, %v95
  %v112 = vmax.bf16 %v79, %v96
  %v113 = vmax.bf16 %v80, %v97
  %v114 = vmax.bf16 %v48, %v98
  %v115 = vmax.bf16 %v49, %v99
  %v116 = vmax.bf16 %v50, %v100
  %v117 = vmax.bf16 %v51, %v101
  %v118 = vmax.bf16 %v52, %v102
  %v119 = vmax.bf16 %v53, %v103
  %v120 = vmax.bf16 %v54, %v104
  %v121 = vmax.bf16 %v55, %v105
  %v122 = vmax.bf16 %v56, %v106
  %v123 = vmax.bf16 %v57, %v107
  %v124 = vmax.bf16 %v58, %v108
  %v125 = vmax.bf16 %v59, %v109
  %v126 = vmax.bf16 %v60, %v110
  %v127 = vmax.bf16 %v61, %v111
  %v128 = vmax.bf16 %v62, %v112
  %v129 = vmax.bf16 %v63, %v113
  %v130 = vld [vmem:[%s1] sm:$0xf]
  %v131 = vld [vmem:[%s2] sm:$0x1]
  %v133 = vlaneseq
  %v134 = vshrl.u32 %v133, 7
  %v135 = vsub.s32 0, %v134
  %v136 = vrot.slane %v131, %v135
  %v154 = vunpack.c.l.b16 %v114
  %v155 = vunpack.c.l.b16 %v115
  %v156 = vunpack.c.l.b16 %v116
  %v157 = vunpack.c.l.b16 %v117
  %v158 = vunpack.c.l.b16 %v118
  %v159 = vunpack.c.l.b16 %v119
  %v160 = vunpack.c.l.b16 %v120
  %v161 = vunpack.c.l.b16 %v121
  %v162 = vunpack.c.l.b16 %v122
  %v163 = vunpack.c.l.b16 %v123
  %v164 = vunpack.c.l.b16 %v124
  %v165 = vunpack.c.l.b16 %v125
  %v166 = vunpack.c.l.b16 %v126
  %v167 = vunpack.c.l.b16 %v127
  %v168 = vunpack.c.l.b16 %v128
  %v169 = vunpack.c.l.b16 %v129
  %v170 = vpack.c.b16 %v155, %v154
  %v171 = vpack.c.b16 %v157, %v156
  %v172 = vpack.c.b16 %v159, %v158
  %v173 = vpack.c.b16 %v161, %v160
  %v174 = vpack.c.b16 %v163, %v162
  %v175 = vpack.c.b16 %v165, %v164
  %v176 = vpack.c.b16 %v167, %v166
  %v177 = vpack.c.b16 %v169, %v168
  %vm178 = vcmask 64512
  %v180 = vsel %vm178, %v170, 0
  %v183 = vsel %vm178, %v171, 0
  %v186 = vsel %vm178, %v172, 0
  %v189 = vsel %vm178, %v173, 0
  %v192 = vsel %vm178, %v174, 0
  %v195 = vsel %vm178, %v175, 0
  %v198 = vsel %vm178, %v176, 0
  %v201 = vsel %vm178, %v177, 0
  %vm203 = vcmask 1043456
  %v205 = vsel %vm203, %v130, 0
  %207 = vmatprep.subr.bf16.mxu0 0
  %208 = vmatpush1.bf16.msra.mxu0 %v205
  %209 = vmatprep.subr.bf16.mxu0 0
  %210 = vmatpush1.bf16.msra.mxu0 0
  %211 = vmatprep.subr.bf16.mxu0 0
  %212 = vmatpush1.bf16.msra.mxu0 0
  %213 = vmatprep.subr.bf16.mxu0 0
  %214 = vmatpush1.bf16.msra.mxu0 0
  %215 = vmatprep.subr.bf16.mxu0 0
  %216 = vmatpush1.bf16.msra.mxu0 0
  %217 = vmatprep.subr.bf16.mxu0 0
  %218 = vmatpush1.bf16.msra.mxu0 0
  %219 = vmatprep.subr.bf16.mxu0 0
  %220 = vmatpush1.bf16.msra.mxu0 0
  %221 = vmatprep.subr.bf16.mxu0 0
  %222 = vmatpush1.bf16.msra.mxu0 0
  %223 = vmatprep.subr.bf16.mxu0 0
  %224 = vmatpush1.bf16.msra.mxu0 0
  %225 = vmatprep.subr.bf16.mxu0 0
  %226 = vmatpush1.bf16.msra.mxu0 0
  %227 = vmatprep.subr.bf16.mxu0 0
  %228 = vmatpush1.bf16.msra.mxu0 0
  %229 = vmatprep.subr.bf16.mxu0 0
  %230 = vmatpush1.bf16.msra.mxu0 0
  %231 = vmatprep.subr.bf16.mxu0 0
  %232 = vmatpush1.bf16.msra.mxu0 0
  %233 = vmatprep.subr.bf16.mxu0 0
  %234 = vmatpush1.bf16.msra.mxu0 0
  %235 = vmatprep.subr.bf16.mxu0 0
  %236 = vmatpush1.bf16.msra.mxu0 0
  %237 = vmatprep.subr.bf16.mxu0 0
  %238 = vmatpush1.bf16.msra.mxu0 0
  %239 = vmatprep.mubr.bf16.mxu0 0
  %240 = vmatmul.mubr.bf16.gmra.mrb[0].mxu0 %v180
  %v241 = vpop.f32.mrb[0].mxu0
  %v242 = vadd.f32 %v136, %v241
  %v243 = vpop.f32.mrb[0].mxu0
  %v244 = vpop.f32.mrb[0].mxu0
  %v245 = vadd.f32 %v136, %v244
  %v246 = vpop.f32.mrb[0].mxu0
  %247 = vmatprep.mubr.bf16.mxu0 0
  %248 = vmatmul.mubr.bf16.gmra.mrb[0].mxu0 %v183
  %v249 = vpop.f32.mrb[0].mxu0
  %v250 = vadd.f32 %v136, %v249
  %v251 = vpop.f32.mrb[0].mxu0
  %v252 = vpop.f32.mrb[0].mxu0
  %v253 = vadd.f32 %v136, %v252
  %v254 = vpop.f32.mrb[0].mxu0
  %255 = vmatprep.mubr.bf16.mxu0 0
  %256 = vmatmul.mubr.bf16.gmra.mrb[0].mxu0 %v186
  %v257 = vpop.f32.mrb[0].mxu0
  %v258 = vadd.f32 %v136, %v257
  %v259 = vpop.f32.mrb[0].mxu0
  %v260 = vpop.f32.mrb[0].mxu0
  %v261 = vadd.f32 %v136, %v260
  %v262 = vpop.f32.mrb[0].mxu0
  %263 = vmatprep.mubr.bf16.mxu0 0
  %264 = vmatmul.mubr.bf16.gmra.mrb[0].mxu0 %v189
  %v265 = vpop.f32.mrb[0].mxu0
  %v266 = vadd.f32 %v136, %v265
  %v267 = vpop.f32.mrb[0].mxu0
  %v268 = vpop.f32.mrb[0].mxu0
  %v269 = vadd.f32 %v136, %v268
  %v270 = vpop.f32.mrb[0].mxu0
  %271 = vmatprep.mubr.bf16.mxu0 0
  %272 = vmatmul.mubr.bf16.gmra.mrb[0].mxu0 %v192
  %v273 = vpop.f32.mrb[0].mxu0
  %v274 = vadd.f32 %v136, %v273
  %v275 = vpop.f32.mrb[0].mxu0
  %v276 = vpop.f32.mrb[0].mxu0
  %v277 = vadd.f32 %v136, %v276
  %v278 = vpop.f32.mrb[0].mxu0
  %279 = vmatprep.mubr.bf16.mxu0 0
  %280 = vmatmul.mubr.bf16.gmra.mrb[0].mxu0 %v195
  %v281 = vpop.f32.mrb[0].mxu0
  %v282 = vadd.f32 %v136, %v281
  %v283 = vpop.f32.mrb[0].mxu0
  %v284 = vpop.f32.mrb[0].mxu0
  %v285 = vadd.f32 %v136, %v284
  %v286 = vpop.f32.mrb[0].mxu0
  %287 = vmatprep.mubr.bf16.mxu0 0
  %288 = vmatmul.mubr.bf16.gmra.mrb[0].mxu0 %v198
  %v289 = vpop.f32.mrb[0].mxu0
  %v290 = vadd.f32 %v136, %v289
  %v291 = vpop.f32.mrb[0].mxu0
  %v292 = vpop.f32.mrb[0].mxu0
  %v293 = vadd.f32 %v136, %v292
  %v294 = vpop.f32.mrb[0].mxu0
  %295 = vmatprep.mubr.bf16.mxu0 0
  %296 = vmatmul.mubr.bf16.gmra.mrb[0].mxu0 %v201
  %v297 = vpop.f32.mrb[0].mxu0
  %v298 = vadd.f32 %v136, %v297
  %v299 = vpop.f32.mrb[0].mxu0
  %v300 = vpop.f32.mrb[0].mxu0
  %v301 = vadd.f32 %v136, %v300
  %v302 = vpop.f32.mrb[0].mxu0
  %303 = vdwg.mxu0
  %vm304 = vcmp.gt.f32.partialorder %v242, 0.0
  %vm305 = vcmp.gt.f32.partialorder %v245, 0.0
  %vm306 = vcmp.gt.f32.partialorder %v250, 0.0
  %vm307 = vcmp.gt.f32.partialorder %v253, 0.0
  %vm308 = vcmp.gt.f32.partialorder %v258, 0.0
  %vm309 = vcmp.gt.f32.partialorder %v261, 0.0
  %vm310 = vcmp.gt.f32.partialorder %v266, 0.0
  %vm311 = vcmp.gt.f32.partialorder %v269, 0.0
  %vm312 = vcmp.gt.f32.partialorder %v274, 0.0
  %vm313 = vcmp.gt.f32.partialorder %v277, 0.0
  %vm314 = vcmp.gt.f32.partialorder %v282, 0.0
  %vm315 = vcmp.gt.f32.partialorder %v285, 0.0
  %vm316 = vcmp.gt.f32.partialorder %v290, 0.0
  %vm317 = vcmp.gt.f32.partialorder %v293, 0.0
  %vm318 = vcmp.gt.f32.partialorder %v298, 0.0
  %vm319 = vcmp.gt.f32.partialorder %v301, 0.0
  %v320 = vmin.f32 %v242, 0.0
  %v321 = vmin.f32 %v245, 0.0
  %v322 = vmin.f32 %v250, 0.0
  %v323 = vmin.f32 %v253, 0.0
  %v324 = vmin.f32 %v258, 0.0
  %v325 = vmin.f32 %v261, 0.0
  %v326 = vmin.f32 %v266, 0.0
  %v327 = vmin.f32 %v269, 0.0
  %v328 = vmin.f32 %v274, 0.0
  %v329 = vmin.f32 %v277, 0.0
  %v330 = vmin.f32 %v282, 0.0
  %v331 = vmin.f32 %v285, 0.0
  %v332 = vmin.f32 %v290, 0.0
  %v333 = vmin.f32 %v293, 0.0
  %v334 = vmin.f32 %v298, 0.0
  %v335 = vmin.f32 %v301, 0.0
  %v336 = vmul.f32 %v320, 1.442695
  %v337 = vpow.pop %v336
  %v338 = vmul.f32 %v321, 1.442695
  %v339 = vpow.pop %v338
  %v340 = vmul.f32 %v322, 1.442695
  %v341 = vpow.pop %v340
  %v342 = vmul.f32 %v323, 1.442695
  %v343 = vpow.pop %v342
  %v344 = vmul.f32 %v324, 1.442695
  %v345 = vpow.pop %v344
  %v346 = vmul.f32 %v325, 1.442695
  %v347 = vpow.pop %v346
  %v348 = vmul.f32 %v326, 1.442695
  %v349 = vpow.pop %v348
  %v350 = vmul.f32 %v327, 1.442695
  %v351 = vpow.pop %v350
  %v352 = vmul.f32 %v328, 1.442695
  %v353 = vpow.pop %v352
  %v354 = vmul.f32 %v329, 1.442695
  %v355 = vpow.pop %v354
  %v356 = vmul.f32 %v330, 1.442695
  %v357 = vpow.pop %v356
  %v358 = vmul.f32 %v331, 1.442695
  %v359 = vpow.pop %v358
  %v360 = vmul.f32 %v332, 1.442695
  %v361 = vpow.pop %v360
  %v362 = vmul.f32 %v333, 1.442695
  %v363 = vpow.pop %v362
  %v364 = vmul.f32 %v334, 1.442695
  %v365 = vpow.pop %v364
  %v366 = vmul.f32 %v335, 1.442695
  %v367 = vpow.pop %v366
  %v368 = vsub.f32 %v337, 1.0
  %v369 = vsub.f32 %v339, 1.0
  %v370 = vsub.f32 %v341, 1.0
  %v371 = vsub.f32 %v343, 1.0
  %v372 = vsub.f32 %v345, 1.0
  %v373 = vsub.f32 %v347, 1.0
  %v374 = vsub.f32 %v349, 1.0
  %v375 = vsub.f32 %v351, 1.0
  %v376 = vsub.f32 %v353, 1.0
  %v377 = vsub.f32 %v355, 1.0
  %v378 = vsub.f32 %v357, 1.0
  %v379 = vsub.f32 %v359, 1.0
  %v380 = vsub.f32 %v361, 1.0
  %v381 = vsub.f32 %v363, 1.0
  %v382 = vsub.f32 %v365, 1.0
  %v383 = vsub.f32 %v367, 1.0
  %v384 = vsel %vm304, %v242, %v368
  %v385 = vsel %vm305, %v245, %v369
  %v386 = vsel %vm306, %v250, %v370
  %v387 = vsel %vm307, %v253, %v371
  %v388 = vsel %vm308, %v258, %v372
  %v389 = vsel %vm309, %v261, %v373
  %v390 = vsel %vm310, %v266, %v374
  %v391 = vsel %vm311, %v269, %v375
  %v392 = vsel %vm312, %v274, %v376
  %v393 = vsel %vm313, %v277, %v377
  %v394 = vsel %vm314, %v282, %v378
  %v395 = vsel %vm315, %v285, %v379
  %v396 = vsel %vm316, %v290, %v380
  %v397 = vsel %vm317, %v293, %v381
  %v398 = vsel %vm318, %v298, %v382
  %v399 = vsel %vm319, %v301, %v383
  %v400 = vpack.c.bf16 %v385, %v384
  %v401 = vpack.c.bf16 %v387, %v386
  %v402 = vpack.c.bf16 %v389, %v388
  %v403 = vpack.c.bf16 %v391, %v390
  %v404 = vpack.c.bf16 %v393, %v392
  %v405 = vpack.c.bf16 %v395, %v394
  %v406 = vpack.c.bf16 %v397, %v396
  %v407 = vpack.c.bf16 %v399, %v398
  %v416 = vunpack.c.l.b16 %v400
  %v417 = vunpack.c.h.b16 %v400
  %v418 = vunpack.c.l.b16 %v401
  %v419 = vunpack.c.h.b16 %v401
  %v420 = vunpack.c.l.b16 %v402
  %v421 = vunpack.c.h.b16 %v402
  %v422 = vunpack.c.l.b16 %v403
  %v423 = vunpack.c.h.b16 %v403
  %v424 = vunpack.c.l.b16 %v404
  %v425 = vunpack.c.h.b16 %v404
  %v426 = vunpack.c.l.b16 %v405
  %v427 = vunpack.c.h.b16 %v405
  %v428 = vunpack.c.l.b16 %v406
  %v429 = vunpack.c.h.b16 %v406
  %v430 = vunpack.c.l.b16 %v407
  %v431 = vunpack.c.h.b16 %v407
  %v432 = vpack.c.b16 %v416, %v416
  %v433 = vpack.c.b16 %v417, %v417
  %v434 = vpack.c.b16 %v418, %v418
  %v435 = vpack.c.b16 %v419, %v419
  %v436 = vpack.c.b16 %v420, %v420
  %v437 = vpack.c.b16 %v421, %v421
  %v438 = vpack.c.b16 %v422, %v422
  %v439 = vpack.c.b16 %v423, %v423
  %v440 = vpack.c.b16 %v424, %v424
  %v441 = vpack.c.b16 %v425, %v425
  %v442 = vpack.c.b16 %v426, %v426
  %v443 = vpack.c.b16 %v427, %v427
  %v444 = vpack.c.b16 %v428, %v428
  %v445 = vpack.c.b16 %v429, %v429
  %v446 = vpack.c.b16 %v430, %v430
  %v447 = vpack.c.b16 %v431, %v431
  %vm464 = vcmask 11264
  %465 = vst.msk [vmem:[%s3] sm:$0xf] %vm464, %v432
  %466 = vst.msk [vmem:[%s3 + $0x4] sm:$0xf] %vm464, %v433
  %467 = vst.msk [vmem:[%s3 + $0x8] sm:$0xf] %vm464, %v434
  %468 = vst.msk [vmem:[%s3 + $0xc] sm:$0xf] %vm464, %v435
  %469 = vst.msk [vmem:[%s3 + $0x10] sm:$0xf] %vm464, %v436
  %470 = vst.msk [vmem:[%s3 + $0x14] sm:$0xf] %vm464, %v437
  %471 = vst.msk [vmem:[%s3 + $0x18] sm:$0xf] %vm464, %v438
  %472 = vst.msk [vmem:[%s3 + $0x1c] sm:$0xf] %vm464, %v439
  %473 = vst.msk [vmem:[%s3 + $0x20] sm:$0xf] %vm464, %v440
  %474 = vst.msk [vmem:[%s3 + $0x24] sm:$0xf] %vm464, %v441
  %475 = vst.msk [vmem:[%s3 + $0x28] sm:$0xf] %vm464, %v442
  %476 = vst.msk [vmem:[%s3 + $0x2c] sm:$0xf] %vm464, %v443
  %477 = vst.msk [vmem:[%s3 + $0x30] sm:$0xf] %vm464, %v444
  %478 = vst.msk [vmem:[%s3 + $0x34] sm:$0xf] %vm464, %v445
  %479 = vst.msk [vmem:[%s3 + $0x38] sm:$0xf] %vm464, %v446
  %480 = vst.msk [vmem:[%s3 + $0x3c] sm:$0xf] %vm464, %v447
  // Predicated region
  $region14: #{sqnet_forward.14} parent=0 // pred_check
    _
  $region15: #{sqnet_forward.14} parent=0 // pred_check_branch
    %482 = sbr.rel (0) target = $region17
  $region16: #{sqnet_forward.14} parent=0 // pred_region
    _
  $region17: #{sqnet_forward.14} parent=0 // pred_fallthru
    _
  // Predicated region
  $region18: #{sqnet_forward.14} parent=0 // pred_check
    _
  $region19: #{sqnet_forward.14} parent=0 // pred_check_branch
    %484 = sbr.rel (0) target = $region21
  $region20: #{sqnet_forward.14} parent=0 // pred_region
    _
  $region21: #{sqnet_forward.14} parent=0 // pred_fallthru
    _

// kernel: sqnet_forward.13
$region0: #{sqnet_forward.13}
  #allocation0 [shape = 'u32[]', space=smem, size = 0x4, offset = 0x4, fixed_abs, tag = 'smem constant byte address 0x4 - core index']
  #allocation1 [shape = 'u32[144,128]{1,0:T(1,128)}', space=vmem, size = 0x12000, scoped, tag = 'internal scratch']
  %s0 = inlined_call_operand.vmem [shape: bf16[512,27], index: 0, kind: input, shape index: {}]
  %s1 = inlined_call_operand.vmem [shape: bf16[27,8], index: 1, kind: input, shape index: {}]
  %s2 = inlined_call_operand.vmem [shape: f32[1,8], index: 2, kind: input, shape index: {}]
  %s3 = inlined_call_operand.vmem [shape: bf16[512,8], index: 3, kind: output, shape index: {}]
  %s4 = sld [smem:[#allocation0]]
  $region22: #{sqnet_forward.13} parent=0
    _
  %s6 = ssub.s32 1, %s4
  %s7 = scalar_select 0, %s6, %s4
  // Predicated region
  $region2: #{sqnet_forward.13} parent=0 // pred_check
    _
  $region3: #{sqnet_forward.13} parent=0 // pred_check_branch
    %9 = sbr.rel (0) target = $region5
  $region4: #{sqnet_forward.13} parent=0 // pred_region
    _
  $region5: #{sqnet_forward.13} parent=0 // pred_fallthru
    _
  // Predicated region
  $region6: #{sqnet_forward.13} parent=0 // pred_check
    _
  $region7: #{sqnet_forward.13} parent=0 // pred_check_branch
    %11 = sbr.rel (0) target = $region9
  $region8: #{sqnet_forward.13} parent=0 // pred_region
    _
  $region9: #{sqnet_forward.13} parent=0 // pred_fallthru
    _
  // Predicated region
  $region10: #{sqnet_forward.13} parent=0 // pred_check
    _
  $region11: #{sqnet_forward.13} parent=0 // pred_check_branch
    %13 = sbr.rel (0) target = $region13
  $region12: #{sqnet_forward.13} parent=0 // pred_region
    _
  $region13: #{sqnet_forward.13} parent=0 // pred_fallthru
    _
  %v15 = vld [vmem:[%s0] sm:$0xf]
  %v16 = vld [vmem:[%s0 + $0x4] sm:$0xf]
  %v17 = vld [vmem:[%s0 + $0x8] sm:$0xf]
  %v18 = vld [vmem:[%s0 + $0xc] sm:$0xf]
  %v19 = vld [vmem:[%s0 + $0x10] sm:$0xf]
  %v20 = vld [vmem:[%s0 + $0x14] sm:$0xf]
  %v21 = vld [vmem:[%s0 + $0x18] sm:$0xf]
  %v22 = vld [vmem:[%s0 + $0x1c] sm:$0xf]
  %v23 = vld [vmem:[%s0 + $0x20] sm:$0xf]
  %v24 = vld [vmem:[%s0 + $0x24] sm:$0xf]
  %v25 = vld [vmem:[%s0 + $0x28] sm:$0xf]
  %v26 = vld [vmem:[%s0 + $0x2c] sm:$0xf]
  %v27 = vld [vmem:[%s0 + $0x30] sm:$0xf]
  %v28 = vld [vmem:[%s0 + $0x34] sm:$0xf]
  %v29 = vld [vmem:[%s0 + $0x38] sm:$0xf]
  %v30 = vld [vmem:[%s0 + $0x3c] sm:$0xf]
  %v31 = vld [vmem:[%s0 + $0x40] sm:$0xf]
  %v32 = vld [vmem:[%s0 + $0x44] sm:$0xf]
  %v33 = vld [vmem:[%s0 + $0x48] sm:$0xf]
  %v34 = vld [vmem:[%s0 + $0x4c] sm:$0xf]
  %v35 = vld [vmem:[%s0 + $0x50] sm:$0xf]
  %v36 = vld [vmem:[%s0 + $0x54] sm:$0xf]
  %v37 = vld [vmem:[%s0 + $0x58] sm:$0xf]
  %v38 = vld [vmem:[%s0 + $0x5c] sm:$0xf]
  %v39 = vld [vmem:[%s0 + $0x60] sm:$0xf]
  %v40 = vld [vmem:[%s0 + $0x64] sm:$0xf]
  %v41 = vld [vmem:[%s0 + $0x68] sm:$0xf]
  %v42 = vld [vmem:[%s0 + $0x6c] sm:$0xf]
  %v43 = vld [vmem:[%s0 + $0x70] sm:$0xf]
  %v44 = vld [vmem:[%s0 + $0x74] sm:$0xf]
  %v45 = vld [vmem:[%s0 + $0x78] sm:$0xf]
  %v46 = vld [vmem:[%s0 + $0x7c] sm:$0xf]
  %v47 = vld [vmem:[%s0 + $0x80] sm:$0xf]
  %v48 = vld [vmem:[%s0 + $0x84] sm:$0xf]
  %v49 = vld [vmem:[%s0 + $0x88] sm:$0xf]
  %v50 = vld [vmem:[%s0 + $0x8c] sm:$0xf]
  %v51 = vld [vmem:[%s0 + $0x90] sm:$0xf]
  %v52 = vld [vmem:[%s0 + $0x94] sm:$0xf]
  %v53 = vld [vmem:[%s0 + $0x98] sm:$0xf]
  %v54 = vld [vmem:[%s0 + $0x9c] sm:$0xf]
  %v55 = vld [vmem:[%s0 + $0xa0] sm:$0xf]
  %v56 = vld [vmem:[%s0 + $0xa4] sm:$0xf]
  %v57 = vld [vmem:[%s0 + $0xa8] sm:$0xf]
  %v58 = vld [vmem:[%s0 + $0xac] sm:$0xf]
  %v59 = vld [vmem:[%s0 + $0xb0] sm:$0xf]
  %v60 = vld [vmem:[%s0 + $0xb4] sm:$0xf]
  %v61 = vld [vmem:[%s0 + $0xb8] sm:$0xf]
  %v62 = vld [vmem:[%s0 + $0xbc] sm:$0xf]
  %v63 = vld [vmem:[%s0 + $0xc0] sm:$0xf]
  %v64 = vld [vmem:[%s0 + $0xc4] sm:$0xf]
  %v65 = vld [vmem:[%s0 + $0xc8] sm:$0xf]
  %v66 = vld [vmem:[%s0 + $0xcc] sm:$0xf]
  %v67 = vld [vmem:[%s0 + $0xd0] sm:$0xf]
  %v68 = vld [vmem:[%s0 + $0xd4] sm:$0xf]
  %v69 = vld [vmem:[%s0 + $0xd8] sm:$0xf]
  %v70 = vld [vmem:[%s0 + $0xdc] sm:$0xf]
  %v71 = vld [vmem:[%s0 + $0xe0] sm:$0xf]
  %v72 = vld [vmem:[%s0 + $0xe4] sm:$0xf]
  %v73 = vld [vmem:[%s0 + $0xe8] sm:$0xf]
  %v74 = vld [vmem:[%s0 + $0xec] sm:$0xf]
  %v75 = vld [vmem:[%s0 + $0xf0] sm:$0xf]
  %v76 = vld [vmem:[%s0 + $0xf4] sm:$0xf]
  %v77 = vld [vmem:[%s0 + $0xf8] sm:$0xf]
  %v78 = vld [vmem:[%s0 + $0xfc] sm:$0xf]
  %v79 = vld [vmem:[%s1] sm:$0xf]
  %v80 = vld [vmem:[%s1 + $0x4] sm:$0xf]
  %v81 = vld [vmem:[%s1 + $0x8] sm:$0xf]
  %v82 = vld [vmem:[%s1 + $0xc] sm:$0x3]
  %v83 = vld [vmem:[%s2] sm:$0x1]
  %v85 = vlaneseq
  %v86 = vshrl.u32 %v85, 7
  %v87 = vsub.s32 0, %v86
  %v88 = vrot.slane %v83, %v87
  %v154 = vunpack.c.l.b16 %v15
  %v155 = vunpack.c.l.b16 %v16
  %v156 = vunpack.c.l.b16 %v17
  %v157 = vunpack.c.l.b16 %v18
  %v158 = vunpack.c.l.b16 %v19
  %v159 = vunpack.c.l.b16 %v20
  %v160 = vunpack.c.l.b16 %v21
  %v161 = vunpack.c.l.b16 %v22
  %v162 = vunpack.c.l.b16 %v23
  %v163 = vunpack.c.l.b16 %v24
  %v164 = vunpack.c.l.b16 %v25
  %v165 = vunpack.c.l.b16 %v26
  %v166 = vunpack.c.l.b16 %v27
  %v167 = vunpack.c.l.b16 %v28
  %v168 = vunpack.c.l.b16 %v29
  %v169 = vunpack.c.l.b16 %v30
  %v170 = vunpack.c.l.b16 %v31
  %v171 = vunpack.c.l.b16 %v32
  %v172 = vunpack.c.l.b16 %v33
  %v173 = vunpack.c.l.b16 %v34
  %v174 = vunpack.c.l.b16 %v35
  %v175 = vunpack.c.l.b16 %v36
  %v176 = vunpack.c.l.b16 %v37
  %v177 = vunpack.c.l.b16 %v38
  %v178 = vunpack.c.l.b16 %v39
  %v179 = vunpack.c.l.b16 %v40
  %v180 = vunpack.c.l.b16 %v41
  %v181 = vunpack.c.l.b16 %v42
  %v182 = vunpack.c.l.b16 %v43
  %v183 = vunpack.c.l.b16 %v44
  %v184 = vunpack.c.l.b16 %v45
  %v185 = vunpack.c.l.b16 %v46
  %v186 = vunpack.c.l.b16 %v47
  %v187 = vunpack.c.l.b16 %v48
  %v188 = vunpack.c.l.b16 %v49
  %v189 = vunpack.c.l.b16 %v50
  %v190 = vunpack.c.l.b16 %v51
  %v191 = vunpack.c.l.b16 %v52
  %v192 = vunpack.c.l.b16 %v53
  %v193 = vunpack.c.l.b16 %v54
  %v194 = vunpack.c.l.b16 %v55
  %v195 = vunpack.c.l.b16 %v56
  %v196 = vunpack.c.l.b16 %v57
  %v197 = vunpack.c.l.b16 %v58
  %v198 = vunpack.c.l.b16 %v59
  %v199 = vunpack.c.l.b16 %v60
  %v200 = vunpack.c.l.b16 %v61
  %v201 = vunpack.c.l.b16 %v62
  %v202 = vunpack.c.l.b16 %v63
  %v203 = vunpack.c.l.b16 %v64
  %v204 = vunpack.c.l.b16 %v65
  %v205 = vunpack.c.l.b16 %v66
  %v206 = vunpack.c.l.b16 %v67
  %v207 = vunpack.c.l.b16 %v68
  %v208 = vunpack.c.l.b16 %v69
  %v209 = vunpack.c.l.b16 %v70
  %v210 = vunpack.c.l.b16 %v71
  %v211 = vunpack.c.l.b16 %v72
  %v212 = vunpack.c.l.b16 %v73
  %v213 = vunpack.c.l.b16 %v74
  %v214 = vunpack.c.l.b16 %v75
  %v215 = vunpack.c.l.b16 %v76
  %v216 = vunpack.c.l.b16 %v77
  %v217 = vunpack.c.l.b16 %v78
  %v218 = vpack.c.b16 %v155, %v154
  %v219 = vpack.c.b16 %v157, %v156
  %v220 = vpack.c.b16 %v159, %v158
  %v221 = vpack.c.b16 %v161, %v160
  %v222 = vpack.c.b16 %v163, %v162
  %v223 = vpack.c.b16 %v165, %v164
  %v224 = vpack.c.b16 %v167, %v166
  %v225 = vpack.c.b16 %v169, %v168
  %v226 = vpack.c.b16 %v171, %v170
  %v227 = vpack.c.b16 %v173, %v172
  %v228 = vpack.c.b16 %v175, %v174
  %v229 = vpack.c.b16 %v177, %v176
  %v230 = vpack.c.b16 %v179, %v178
  %v231 = vpack.c.b16 %v181, %v180
  %v232 = vpack.c.b16 %v183, %v182
  %v233 = vpack.c.b16 %v185, %v184
  %v234 = vpack.c.b16 %v187, %v186
  %v235 = vpack.c.b16 %v189, %v188
  %v236 = vpack.c.b16 %v191, %v190
  %v237 = vpack.c.b16 %v193, %v192
  %v238 = vpack.c.b16 %v195, %v194
  %v239 = vpack.c.b16 %v197, %v196
  %v240 = vpack.c.b16 %v199, %v198
  %v241 = vpack.c.b16 %v201, %v200
  %v242 = vpack.c.b16 %v203, %v202
  %v243 = vpack.c.b16 %v205, %v204
  %v244 = vpack.c.b16 %v207, %v206
  %v245 = vpack.c.b16 %v209, %v208
  %v246 = vpack.c.b16 %v211, %v210
  %v247 = vpack.c.b16 %v213, %v212
  %v248 = vpack.c.b16 %v215, %v214
  %v249 = vpack.c.b16 %v217, %v216
  %v254 = vunpack.c.l.b16 %v79
  %v255 = vunpack.c.l.b16 %v80
  %v256 = vunpack.c.l.b16 %v81
  %v257 = vunpack.c.l.b16 %v82
  %v258 = vpack.c.b16 %v255, %v254
  %v259 = vpack.c.b16 %v257, %v256
  %vm261 = vcmask 220160
  %v263 = vsel %vm261, %v218, 0
  %v266 = vsel %vm261, %v219, 0
  %v269 = vsel %vm261, %v220, 0
  %v272 = vsel %vm261, %v221, 0
  %v275 = vsel %vm261, %v222, 0
  %v278 = vsel %vm261, %v223, 0
  %v281 = vsel %vm261, %v224, 0
  %v284 = vsel %vm261, %v225, 0
  %v287 = vsel %vm261, %v226, 0
  %v290 = vsel %vm261, %v227, 0
  %v293 = vsel %vm261, %v228, 0
  %v296 = vsel %vm261, %v229, 0
  %v299 = vsel %vm261, %v230, 0
  %v302 = vsel %vm261, %v231, 0
  %v305 = vsel %vm261, %v232, 0
  %v308 = vsel %vm261, %v233, 0
  %v311 = vsel %vm261, %v234, 0
  %v314 = vsel %vm261, %v235, 0
  %v317 = vsel %vm261, %v236, 0
  %v320 = vsel %vm261, %v237, 0
  %v323 = vsel %vm261, %v238, 0
  %v326 = vsel %vm261, %v239, 0
  %v329 = vsel %vm261, %v240, 0
  %v332 = vsel %vm261, %v241, 0
  %v335 = vsel %vm261, %v242, 0
  %v338 = vsel %vm261, %v243, 0
  %v341 = vsel %vm261, %v244, 0
  %v344 = vsel %vm261, %v245, 0
  %v347 = vsel %vm261, %v246, 0
  %v350 = vsel %vm261, %v247, 0
  %v353 = vsel %vm261, %v248, 0
  %v356 = vsel %vm261, %v249, 0
  %vm358 = vcmask 1044480
  %vm359 = vcmask 1045504
  %v360 = vsel %vm358, 4294967295, 65535
  %v361 = vsel %vm359, %v360, 0
  %v363 = vand.u32 %v259, %v361
  %365 = vmatprep.subr.bf16.mxu0 0
  %366 = vmatpush1.bf16.msra.mxu0 %v258
  %367 = vmatprep.subr.bf16.mxu0 0
  %368 = vmatpush1.bf16.msra.mxu0 %v363
  %369 = vmatprep.subr.bf16.mxu0 0
  %370 = vmatpush1.bf16.msra.mxu0 0
  %371 = vmatprep.subr.bf16.mxu0 0
  %372 = vmatpush1.bf16.msra.mxu0 0
  %373 = vmatprep.subr.bf16.mxu0 0
  %374 = vmatpush1.bf16.msra.mxu0 0
  %375 = vmatprep.subr.bf16.mxu0 0
  %376 = vmatpush1.bf16.msra.mxu0 0
  %377 = vmatprep.subr.bf16.mxu0 0
  %378 = vmatpush1.bf16.msra.mxu0 0
  %379 = vmatprep.subr.bf16.mxu0 0
  %380 = vmatpush1.bf16.msra.mxu0 0
  %381 = vmatprep.subr.bf16.mxu0 0
  %382 = vmatpush1.bf16.msra.mxu0 0
  %383 = vmatprep.subr.bf16.mxu0 0
  %384 = vmatpush1.bf16.msra.mxu0 0
  %385 = vmatprep.subr.bf16.mxu0 0
  %386 = vmatpush1.bf16.msra.mxu0 0
  %387 = vmatprep.subr.bf16.mxu0 0
  %388 = vmatpush1.bf16.msra.mxu0 0
  %389 = vmatprep.subr.bf16.mxu0 0
  %390 = vmatpush1.bf16.msra.mxu0 0
  %391 = vmatprep.subr.bf16.mxu0 0
  %392 = vmatpush1.bf16.msra.mxu0 0
  %393 = vmatprep.subr.bf16.mxu0 0
  %394 = vmatpush1.bf16.msra.mxu0 0
  %395 = vmatprep.subr.bf16.mxu0 0
  %396 = vmatpush1.bf16.msra.mxu0 0
  %397 = vmatprep.mubr.bf16.mxu0 0
  %398 = vmatmul.mubr.bf16.gmra.mrb[0].mxu0 %v263
  %v399 = vpop.f32.mrb[0].mxu0
  %v400 = vadd.f32 %v88, %v399
  %v401 = vpop.f32.mrb[0].mxu0
  %v402 = vpop.f32.mrb[0].mxu0
  %v403 = vadd.f32 %v88, %v402
  %v404 = vpop.f32.mrb[0].mxu0
  %405 = vmatprep.mubr.bf16.mxu0 0
  %406 = vmatmul.mubr.bf16.gmra.mrb[0].mxu0 %v266
  %v407 = vpop.f32.mrb[0].mxu0
  %v408 = vadd.f32 %v88, %v407
  %v409 = vpop.f32.mrb[0].mxu0
  %v410 = vpop.f32.mrb[0].mxu0
  %v411 = vadd.f32 %v88, %v410
  %v412 = vpop.f32.mrb[0].mxu0
  %413 = vmatprep.mubr.bf16.mxu0 0
  %414 = vmatmul.mubr.bf16.gmra.mrb[0].mxu0 %v269
  %v415 = vpop.f32.mrb[0].mxu0
  %v416 = vadd.f32 %v88, %v415
  %v417 = vpop.f32.mrb[0].mxu0
  %v418 = vpop.f32.mrb[0].mxu0
  %v419 = vadd.f32 %v88, %v418
  %v420 = vpop.f32.mrb[0].mxu0
  %421 = vmatprep.mubr.bf16.mxu0 0
  %422 = vmatmul.mubr.bf16.gmra.mrb[0].mxu0 %v272
  %v423 = vpop.f32.mrb[0].mxu0
  %v424 = vadd.f32 %v88, %v423
  %v425 = vpop.f32.mrb[0].mxu0
  %v426 = vpop.f32.mrb[0].mxu0
  %v427 = vadd.f32 %v88, %v426
  %v428 = vpop.f32.mrb[0].mxu0
  %429 = vmatprep.mubr.bf16.mxu0 0
  %430 = vmatmul.mubr.bf16.gmra.mrb[0].mxu0 %v275
  %v431 = vpop.f32.mrb[0].mxu0
  %v432 = vadd.f32 %v88, %v431
  %v433 = vpop.f32.mrb[0].mxu0
  %v434 = vpop.f32.mrb[0].mxu0
  %v435 = vadd.f32 %v88, %v434
  %v436 = vpop.f32.mrb[0].mxu0
  %437 = vmatprep.mubr.bf16.mxu0 0
  %438 = vmatmul.mubr.bf16.gmra.mrb[0].mxu0 %v278
  %v439 = vpop.f32.mrb[0].mxu0
  %v440 = vadd.f32 %v88, %v439
  %v441 = vpop.f32.mrb[0].mxu0
  %v442 = vpop.f32.mrb[0].mxu0
  %v443 = vadd.f32 %v88, %v442
  %v444 = vpop.f32.mrb[0].mxu0
  %445 = vmatprep.mubr.bf16.mxu0 0
  %446 = vmatmul.mubr.bf16.gmra.mrb[0].mxu0 %v281
  %v447 = vpop.f32.mrb[0].mxu0
  %v448 = vadd.f32 %v88, %v447
  %v449 = vpop.f32.mrb[0].mxu0
  %v450 = vpop.f32.mrb[0].mxu0
  %v451 = vadd.f32 %v88, %v450
  %v452 = vpop.f32.mrb[0].mxu0
  %453 = vmatprep.mubr.bf16.mxu0 0
  %454 = vmatmul.mubr.bf16.gmra.mrb[0].mxu0 %v284
  %v455 = vpop.f32.mrb[0].mxu0
  %v456 = vadd.f32 %v88, %v455
  %v457 = vpop.f32.mrb[0].mxu0
  %v458 = vpop.f32.mrb[0].mxu0
  %v459 = vadd.f32 %v88, %v458
  %v460 = vpop.f32.mrb[0].mxu0
  %461 = vmatprep.mubr.bf16.mxu0 0
  %462 = vmatmul.mubr.bf16.gmra.mrb[0].mxu0 %v287
  %v463 = vpop.f32.mrb[0].mxu0
  %v464 = vadd.f32 %v88, %v463
  %v465 = vpop.f32.mrb[0].mxu0
  %v466 = vpop.f32.mrb[0].mxu0
  %v467 = vadd.f32 %v88, %v466
  %v468 = vpop.f32.mrb[0].mxu0
  %469 = vmatprep.mubr.bf16.mxu0 0
  %470 = vmatmul.mubr.bf16.gmra.mrb[0].mxu0 %v290
  %v471 = vpop.f32.mrb[0].mxu0
  %v472 = vadd.f32 %v88, %v471
  %v473 = vpop.f32.mrb[0].mxu0
  %v474 = vpop.f32.mrb[0].mxu0
  %v475 = vadd.f32 %v88, %v474
  %v476 = vpop.f32.mrb[0].mxu0
  %477 = vmatprep.mubr.bf16.mxu0 0
  %478 = vmatmul.mubr.bf16.gmra.mrb[0].mxu0 %v293
  %v479 = vpop.f32.mrb[0].mxu0
  %v480 = vadd.f32 %v88, %v479
  %v481 = vpop.f32.mrb[0].mxu0
  %v482 = vpop.f32.mrb[0].mxu0
  %v483 = vadd.f32 %v88, %v482
  %v484 = vpop.f32.mrb[0].mxu0
  %485 = vmatprep.mubr.bf16.mxu0 0
  %486 = vmatmul.mubr.bf16.gmra.mrb[0].mxu0 %v296
  %v487 = vpop.f32.mrb[0].mxu0
  %v488 = vadd.f32 %v88, %v487
  %v489 = vpop.f32.mrb[0].mxu0
  %v490 = vpop.f32.mrb[0].mxu0
  %v491 = vadd.f32 %v88, %v490
  %v492 = vpop.f32.mrb[0].mxu0
  %493 = vmatprep.mubr.bf16.mxu0 0
  %494 = vmatmul.mubr.bf16.gmra.mrb[0].mxu0 %v299
  %v495 = vpop.f32.mrb[0].mxu0
  %v496 = vadd.f32 %v88, %v495
  %v497 = vpop.f32.mrb[0].mxu0
  %v498 = vpop.f32.mrb[0].mxu0
  %v499 = vadd.f32 %v88, %v498
  %v500 = vpop.f32.mrb[0].mxu0
  %501 = vmatprep.mubr.bf16.mxu0 0
  %502 = vmatmul.mubr.bf16.gmra.mrb[0].mxu0 %v302
  %v503 = vpop.f32.mrb[0].mxu0
  %v504 = vadd.f32 %v88, %v503
  %v505 = vpop.f32.mrb[0].mxu0
  %v506 = vpop.f32.mrb[0].mxu0
  %v507 = vadd.f32 %v88, %v506
  %v508 = vpop.f32.mrb[0].mxu0
  %509 = vmatprep.mubr.bf16.mxu0 0
  %510 = vmatmul.mubr.bf16.gmra.mrb[0].mxu0 %v305
  %v511 = vpop.f32.mrb[0].mxu0
  %v512 = vadd.f32 %v88, %v511
  %v513 = vpop.f32.mrb[0].mxu0
  %v514 = vpop.f32.mrb[0].mxu0
  %v515 = vadd.f32 %v88, %v514
  %v516 = vpop.f32.mrb[0].mxu0
  %517 = vmatprep.mubr.bf16.mxu0 0
  %518 = vmatmul.mubr.bf16.gmra.mrb[0].mxu0 %v308
  %v519 = vpop.f32.mrb[0].mxu0
  %v520 = vadd.f32 %v88, %v519
  %v521 = vpop.f32.mrb[0].mxu0
  %v522 = vpop.f32.mrb[0].mxu0
  %v523 = vadd.f32 %v88, %v522
  %v524 = vpop.f32.mrb[0].mxu0
  %525 = vmatprep.mubr.bf16.mxu0 0
  %526 = vmatmul.mubr.bf16.gmra.mrb[0].mxu0 %v311
  %v527 = vpop.f32.mrb[0].mxu0
  %v528 = vadd.f32 %v88, %v527
  %v529 = vpop.f32.mrb[0].mxu0
  %v530 = vpop.f32.mrb[0].mxu0
  %v531 = vadd.f32 %v88, %v530
  %v532 = vpop.f32.mrb[0].mxu0
  %533 = vmatprep.mubr.bf16.mxu0 0
  %534 = vmatmul.mubr.bf16.gmra.mrb[0].mxu0 %v314
  %v535 = vpop.f32.mrb[0].mxu0
  %v536 = vadd.f32 %v88, %v535
  %v537 = vpop.f32.mrb[0].mxu0
  %v538 = vpop.f32.mrb[0].mxu0
  %v539 = vadd.f32 %v88, %v538
  %v540 = vpop.f32.mrb[0].mxu0
  %541 = vmatprep.mubr.bf16.mxu0 0
  %542 = vmatmul.mubr.bf16.gmra.mrb[0].mxu0 %v317
  %v543 = vpop.f32.mrb[0].mxu0
  %v544 = vadd.f32 %v88, %v543
  %v545 = vpop.f32.mrb[0].mxu0
  %v546 = vpop.f32.mrb[0].mxu0
  %v547 = vadd.f32 %v88, %v546
  %v548 = vpop.f32.mrb[0].mxu0
  %549 = vmatprep.mubr.bf16.mxu0 0
  %550 = vmatmul.mubr.bf16.gmra.mrb[0].mxu0 %v320
  %v551 = vpop.f32.mrb[0].mxu0
  %v552 = vadd.f32 %v88, %v551
  %v553 = vpop.f32.mrb[0].mxu0
  %v554 = vpop.f32.mrb[0].mxu0
  %v555 = vadd.f32 %v88, %v554
  %v556 = vpop.f32.mrb[0].mxu0
  %557 = vmatprep.mubr.bf16.mxu0 0
  %558 = vmatmul.mubr.bf16.gmra.mrb[0].mxu0 %v323
  %v559 = vpop.f32.mrb[0].mxu0
  %v560 = vadd.f32 %v88, %v559
  %v561 = vpop.f32.mrb[0].mxu0
  %v562 = vpop.f32.mrb[0].mxu0
  %v563 = vadd.f32 %v88, %v562
  %v564 = vpop.f32.mrb[0].mxu0
  %565 = vmatprep.mubr.bf16.mxu0 0
  %566 = vmatmul.mubr.bf16.gmra.mrb[0].mxu0 %v326
  %v567 = vpop.f32.mrb[0].mxu0
  %v568 = vadd.f32 %v88, %v567
  %v569 = vpop.f32.mrb[0].mxu0
  %v570 = vpop.f32.mrb[0].mxu0
  %v571 = vadd.f32 %v88, %v570
  %v572 = vpop.f32.mrb[0].mxu0
  %573 = vmatprep.mubr.bf16.mxu0 0
  %574 = vmatmul.mubr.bf16.gmra.mrb[0].mxu0 %v329
  %v575 = vpop.f32.mrb[0].mxu0
  %v576 = vadd.f32 %v88, %v575
  %v577 = vpop.f32.mrb[0].mxu0
  %v578 = vpop.f32.mrb[0].mxu0
  %v579 = vadd.f32 %v88, %v578
  %v580 = vpop.f32.mrb[0].mxu0
  %581 = vmatprep.mubr.bf16.mxu0 0
  %582 = vmatmul.mubr.bf16.gmra.mrb[0].mxu0 %v332
  %v583 = vpop.f32.mrb[0].mxu0
  %v584 = vadd.f32 %v88, %v583
  %v585 = vpop.f32.mrb[0].mxu0
  %v586 = vpop.f32.mrb[0].mxu0
  %v587 = vadd.f32 %v88, %v586
  %v588 = vpop.f32.mrb[0].mxu0
  %589 = vmatprep.mubr.bf16.mxu0 0
  %590 = vmatmul.mubr.bf16.gmra.mrb[0].mxu0 %v335
  %v591 = vpop.f32.mrb[0].mxu0
  %v592 = vadd.f32 %v88, %v591
  %v593 = vpop.f32.mrb[0].mxu0
  %v594 = vpop.f32.mrb[0].mxu0
  %v595 = vadd.f32 %v88, %v594
  %v596 = vpop.f32.mrb[0].mxu0
  %597 = vmatprep.mubr.bf16.mxu0 0
  %598 = vmatmul.mubr.bf16.gmra.mrb[0].mxu0 %v338
  %v599 = vpop.f32.mrb[0].mxu0
  %v600 = vadd.f32 %v88, %v599
  %v601 = vpop.f32.mrb[0].mxu0
  %v602 = vpop.f32.mrb[0].mxu0
  %v603 = vadd.f32 %v88, %v602
  %v604 = vpop.f32.mrb[0].mxu0
  %605 = vmatprep.mubr.bf16.mxu0 0
  %606 = vmatmul.mubr.bf16.gmra.mrb[0].mxu0 %v341
  %v607 = vpop.f32.mrb[0].mxu0
  %v608 = vadd.f32 %v88, %v607
  %v609 = vpop.f32.mrb[0].mxu0
  %v610 = vpop.f32.mrb[0].mxu0
  %v611 = vadd.f32 %v88, %v610
  %v612 = vpop.f32.mrb[0].mxu0
  %613 = vmatprep.mubr.bf16.mxu0 0
  %614 = vmatmul.mubr.bf16.gmra.mrb[0].mxu0 %v344
  %v615 = vpop.f32.mrb[0].mxu0
  %v616 = vadd.f32 %v88, %v615
  %v617 = vpop.f32.mrb[0].mxu0
  %v618 = vpop.f32.mrb[0].mxu0
  %v619 = vadd.f32 %v88, %v618
  %v620 = vpop.f32.mrb[0].mxu0
  %621 = vmatprep.mubr.bf16.mxu0 0
  %622 = vmatmul.mubr.bf16.gmra.mrb[0].mxu0 %v347
  %v623 = vpop.f32.mrb[0].mxu0
  %v624 = vadd.f32 %v88, %v623
  %v625 = vpop.f32.mrb[0].mxu0
  %v626 = vpop.f32.mrb[0].mxu0
  %v627 = vadd.f32 %v88, %v626
  %v628 = vpop.f32.mrb[0].mxu0
  %629 = vmatprep.mubr.bf16.mxu0 0
  %630 = vmatmul.mubr.bf16.gmra.mrb[0].mxu0 %v350
  %v631 = vpop.f32.mrb[0].mxu0
  %v632 = vadd.f32 %v88, %v631
  %v633 = vpop.f32.mrb[0].mxu0
  %v634 = vpop.f32.mrb[0].mxu0
  %v635 = vadd.f32 %v88, %v634
  %v636 = vpop.f32.mrb[0].mxu0
  %637 = vmatprep.mubr.bf16.mxu0 0
  %638 = vmatmul.mubr.bf16.gmra.mrb[0].mxu0 %v353
  %v639 = vpop.f32.mrb[0].mxu0
  %v640 = vadd.f32 %v88, %v639
  %v641 = vpop.f32.mrb[0].mxu0
  %v642 = vpop.f32.mrb[0].mxu0
  %v643 = vadd.f32 %v88, %v642
  %v644 = vpop.f32.mrb[0].mxu0
  %645 = vmatprep.mubr.bf16.mxu0 0
  %646 = vmatmul.mubr.bf16.gmra.mrb[0].mxu0 %v356
  %v647 = vpop.f32.mrb[0].mxu0
  %v648 = vadd.f32 %v88, %v647
  %v649 = vpop.f32.mrb[0].mxu0
  %v650 = vpop.f32.mrb[0].mxu0
  %v651 = vadd.f32 %v88, %v650
  %v652 = vpop.f32.mrb[0].mxu0
  %653 = vdwg.mxu0
  %vm654 = vcmp.gt.f32.partialorder %v400, 0.0
  %vm655 = vcmp.gt.f32.partialorder %v403, 0.0
  %vm656 = vcmp.gt.f32.partialorder %v408, 0.0
  %vm657 = vcmp.gt.f32.partialorder %v411, 0.0
  %vm658 = vcmp.gt.f32.partialorder %v416, 0.0
  %vm659 = vcmp.gt.f32.partialorder %v419, 0.0
  %vm660 = vcmp.gt.f32.partialorder %v424, 0.0
  %vm661 = vcmp.gt.f32.partialorder %v427, 0.0
  %vm662 = vcmp.gt.f32.partialorder %v432, 0.0
  %vm663 = vcmp.gt.f32.partialorder %v435, 0.0
  %vm664 = vcmp.gt.f32.partialorder %v440, 0.0
  %vm665 = vcmp.gt.f32.partialorder %v443, 0.0
  %vm666 = vcmp.gt.f32.partialorder %v448, 0.0
  %vm667 = vcmp.gt.f32.partialorder %v451, 0.0
  %vm668 = vcmp.gt.f32.partialorder %v456, 0.0
  %vm669 = vcmp.gt.f32.partialorder %v459, 0.0
  %vm670 = vcmp.gt.f32.partialorder %v464, 0.0
  %vm671 = vcmp.gt.f32.partialorder %v467, 0.0
  %vm672 = vcmp.gt.f32.partialorder %v472, 0.0
  %vm673 = vcmp.gt.f32.partialorder %v475, 0.0
  %vm674 = vcmp.gt.f32.partialorder %v480, 0.0
  %vm675 = vcmp.gt.f32.partialorder %v483, 0.0
  %vm676 = vcmp.gt.f32.partialorder %v488, 0.0
  %vm677 = vcmp.gt.f32.partialorder %v491, 0.0
  %vm678 = vcmp.gt.f32.partialorder %v496, 0.0
  %vm679 = vcmp.gt.f32.partialorder %v499, 0.0
  %vm680 = vcmp.gt.f32.partialorder %v504, 0.0
  %vm681 = vcmp.gt.f32.partialorder %v507, 0.0
  %vm682 = vcmp.gt.f32.partialorder %v512, 0.0
  %vm683 = vcmp.gt.f32.partialorder %v515, 0.0
  %vm684 = vcmp.gt.f32.partialorder %v520, 0.0
  %vm685 = vcmp.gt.f32.partialorder %v523, 0.0
  %vm686 = vcmp.gt.f32.partialorder %v528, 0.0
  %vm687 = vcmp.gt.f32.partialorder %v531, 0.0
  %vm688 = vcmp.gt.f32.partialorder %v536, 0.0
  %vm689 = vcmp.gt.f32.partialorder %v539, 0.0
  %vm690 = vcmp.gt.f32.partialorder %v544, 0.0
  %vm691 = vcmp.gt.f32.partialorder %v547, 0.0
  %vm692 = vcmp.gt.f32.partialorder %v552, 0.0
  %vm693 = vcmp.gt.f32.partialorder %v555, 0.0
  %vm694 = vcmp.gt.f32.partialorder %v560, 0.0
  %vm695 = vcmp.gt.f32.partialorder %v563, 0.0
  %vm696 = vcmp.gt.f32.partialorder %v568, 0.0
  %vm697 = vcmp.gt.f32.partialorder %v571, 0.0
  %vm698 = vcmp.gt.f32.partialorder %v576, 0.0
  %vm699 = vcmp.gt.f32.partialorder %v579, 0.0
  %vm700 = vcmp.gt.f32.partialorder %v584, 0.0
  %vm701 = vcmp.gt.f32.partialorder %v587, 0.0
  %vm702 = vcmp.gt.f32.partialorder %v592, 0.0
  %vm703 = vcmp.gt.f32.partialorder %v595, 0.0
  %vm704 = vcmp.gt.f32.partialorder %v600, 0.0
  %vm705 = vcmp.gt.f32.partialorder %v603, 0.0
  %vm706 = vcmp.gt.f32.partialorder %v608, 0.0
  %vm707 = vcmp.gt.f32.partialorder %v611, 0.0
  %vm708 = vcmp.gt.f32.partialorder %v616, 0.0
  %vm709 = vcmp.gt.f32.partialorder %v619, 0.0
  %vm710 = vcmp.gt.f32.partialorder %v624, 0.0
  %vm711 = vcmp.gt.f32.partialorder %v627, 0.0
  %vm712 = vcmp.gt.f32.partialorder %v632, 0.0
  %vm713 = vcmp.gt.f32.partialorder %v635, 0.0
  %vm714 = vcmp.gt.f32.partialorder %v640, 0.0
  %vm715 = vcmp.gt.f32.partialorder %v643, 0.0
  %vm716 = vcmp.gt.f32.partialorder %v648, 0.0
  %vm717 = vcmp.gt.f32.partialorder %v651, 0.0
  %v718 = vmin.f32 %v400, 0.0
  %v719 = vmin.f32 %v403, 0.0
  %v720 = vmin.f32 %v408, 0.0
  %v721 = vmin.f32 %v411, 0.0
  %v722 = vmin.f32 %v416, 0.0
  %v723 = vmin.f32 %v419, 0.0
  %v724 = vmin.f32 %v424, 0.0
  %v725 = vmin.f32 %v427, 0.0
  %v726 = vmin.f32 %v432, 0.0
  %v727 = vmin.f32 %v435, 0.0
  %v728 = vmin.f32 %v440, 0.0
  %v729 = vmin.f32 %v443, 0.0
  %v730 = vmin.f32 %v448, 0.0
  %v731 = vmin.f32 %v451, 0.0
  %v732 = vmin.f32 %v456, 0.0
  %v733 = vmin.f32 %v459, 0.0
  %v734 = vmin.f32 %v464, 0.0
  %v735 = vmin.f32 %v467, 0.0
  %v736 = vmin.f32 %v472, 0.0
  %v737 = vmin.f32 %v475, 0.0
  %v738 = vmin.f32 %v480, 0.0
  %v739 = vmin.f32 %v483, 0.0
  %v740 = vmin.f32 %v488, 0.0
  %v741 = vmin.f32 %v491, 0.0
  %v742 = vmin.f32 %v496, 0.0
  %v743 = vmin.f32 %v499, 0.0
  %v744 = vmin.f32 %v504, 0.0
  %v745 = vmin.f32 %v507, 0.0
  %v746 = vmin.f32 %v512, 0.0
  %v747 = vmin.f32 %v515, 0.0
  %v748 = vmin.f32 %v520, 0.0
  %v749 = vmin.f32 %v523, 0.0
  %v750 = vmin.f32 %v528, 0.0
  %v751 = vmin.f32 %v531, 0.0
  %v752 = vmin.f32 %v536, 0.0
  %v753 = vmin.f32 %v539, 0.0
  %v754 = vmin.f32 %v544, 0.0
  %v755 = vmin.f32 %v547, 0.0
  %v756 = vmin.f32 %v552, 0.0
  %v757 = vmin.f32 %v555, 0.0
  %v758 = vmin.f32 %v560, 0.0
  %v759 = vmin.f32 %v563, 0.0
  %v760 = vmin.f32 %v568, 0.0
  %v761 = vmin.f32 %v571, 0.0
  %v762 = vmin.f32 %v576, 0.0
  %v763 = vmin.f32 %v579, 0.0
  %v764 = vmin.f32 %v584, 0.0
  %v765 = vmin.f32 %v587, 0.0
  %v766 = vmin.f32 %v592, 0.0
  %v767 = vmin.f32 %v595, 0.0
  %v768 = vmin.f32 %v600, 0.0
  %v769 = vmin.f32 %v603, 0.0
  %v770 = vmin.f32 %v608, 0.0
  %v771 = vmin.f32 %v611, 0.0
  %v772 = vmin.f32 %v616, 0.0
  %v773 = vmin.f32 %v619, 0.0
  %v774 = vmin.f32 %v624, 0.0
  %v775 = vmin.f32 %v627, 0.0
  %v776 = vmin.f32 %v632, 0.0
  %v777 = vmin.f32 %v635, 0.0
  %v778 = vmin.f32 %v640, 0.0
  %v779 = vmin.f32 %v643, 0.0
  %v780 = vmin.f32 %v648, 0.0
  %v781 = vmin.f32 %v651, 0.0
  %v782 = vmul.f32 %v718, 1.442695
  %v783 = vpow.pop %v782
  %v784 = vmul.f32 %v719, 1.442695
  %v785 = vpow.pop %v784
  %v786 = vmul.f32 %v720, 1.442695
  %v787 = vpow.pop %v786
  %v788 = vmul.f32 %v721, 1.442695
  %v789 = vpow.pop %v788
  %v790 = vmul.f32 %v722, 1.442695
  %v791 = vpow.pop %v790
  %v792 = vmul.f32 %v723, 1.442695
  %v793 = vpow.pop %v792
  %v794 = vmul.f32 %v724, 1.442695
  %v795 = vpow.pop %v794
  %v796 = vmul.f32 %v725, 1.442695
  %v797 = vpow.pop %v796
  %v798 = vmul.f32 %v726, 1.442695
  %v799 = vpow.pop %v798
  %v800 = vmul.f32 %v727, 1.442695
  %v801 = vpow.pop %v800
  %v802 = vmul.f32 %v728, 1.442695
  %v803 = vpow.pop %v802
  %v804 = vmul.f32 %v729, 1.442695
  %v805 = vpow.pop %v804
  %v806 = vmul.f32 %v730, 1.442695
  %v807 = vpow.pop %v806
  %v808 = vmul.f32 %v731, 1.442695
  %v809 = vpow.pop %v808
  %v810 = vmul.f32 %v732, 1.442695
  %v811 = vpow.pop %v810
  %v812 = vmul.f32 %v733, 1.442695
  %v813 = vpow.pop %v812
  %v814 = vmul.f32 %v734, 1.442695
  %v815 = vpow.pop %v814
  %v816 = vmul.f32 %v735, 1.442695
  %v817 = vpow.pop %v816
  %v818 = vmul.f32 %v736, 1.442695
  %v819 = vpow.pop %v818
  %v820 = vmul.f32 %v737, 1.442695
  %v821 = vpow.pop %v820
  %v822 = vmul.f32 %v738, 1.442695
  %v823 = vpow.pop %v822
  %v824 = vmul.f32 %v739, 1.442695
  %v825 = vpow.pop %v824
  %v826 = vmul.f32 %v740, 1.442695
  %v827 = vpow.pop %v826
  %v828 = vmul.f32 %v741, 1.442695
  %v829 = vpow.pop %v828
  %v830 = vmul.f32 %v742, 1.442695
  %v831 = vpow.pop %v830
  %v832 = vmul.f32 %v743, 1.442695
  %v833 = vpow.pop %v832
  %v834 = vmul.f32 %v744, 1.442695
  %v835 = vpow.pop %v834
  %v836 = vmul.f32 %v745, 1.442695
  %v837 = vpow.pop %v836
  %v838 = vmul.f32 %v746, 1.442695
  %v839 = vpow.pop %v838
  %v840 = vmul.f32 %v747, 1.442695
  %v841 = vpow.pop %v840
  %v842 = vmul.f32 %v748, 1.442695
  %v843 = vpow.pop %v842
  %v844 = vmul.f32 %v749, 1.442695
  %v845 = vpow.pop %v844
  %v846 = vmul.f32 %v750, 1.442695
  %v847 = vpow.pop %v846
  %v848 = vmul.f32 %v751, 1.442695
  %v849 = vpow.pop %v848
  %v850 = vmul.f32 %v752, 1.442695
  %v851 = vpow.pop %v850
  %v852 = vmul.f32 %v753, 1.442695
  %v853 = vpow.pop %v852
  %v854 = vmul.f32 %v754, 1.442695
  %v855 = vpow.pop %v854
  %v856 = vmul.f32 %v755, 1.442695
  %v857 = vpow.pop %v856
  %v858 = vmul.f32 %v756, 1.442695
  %v859 = vpow.pop %v858
  %v860 = vmul.f32 %v757, 1.442695
  %v861 = vpow.pop %v860
  %v862 = vmul.f32 %v758, 1.442695
  %v863 = vpow.pop %v862
  %v864 = vmul.f32 %v759, 1.442695
  %v865 = vpow.pop %v864
  %v866 = vmul.f32 %v760, 1.442695
  %v867 = vpow.pop %v866
  %v868 = vmul.f32 %v761, 1.442695
  %v869 = vpow.pop %v868
  %v870 = vmul.f32 %v762, 1.442695
  %v871 = vpow.pop %v870
  %v872 = vmul.f32 %v763, 1.442695
  %v873 = vpow.pop %v872
  %v874 = vmul.f32 %v764, 1.442695
  %v875 = vpow.pop %v874
  %v876 = vmul.f32 %v765, 1.442695
  %v877 = vpow.pop %v876
  %v878 = vmul.f32 %v766, 1.442695
  %v879 = vpow.pop %v878
  %v880 = vmul.f32 %v767, 1.442695
  %v881 = vpow.pop %v880
  %v882 = vmul.f32 %v768, 1.442695
  %v883 = vpow.pop %v882
  %v884 = vmul.f32 %v769, 1.442695
  %v885 = vpow.pop %v884
  %v886 = vmul.f32 %v770, 1.442695
  %v887 = vpow.pop %v886
  %v888 = vmul.f32 %v771, 1.442695
  %v889 = vpow.pop %v888
  %v890 = vmul.f32 %v772, 1.442695
  %v891 = vpow.pop %v890
  %v892 = vmul.f32 %v773, 1.442695
  %v893 = vpow.pop %v892
  %v894 = vmul.f32 %v774, 1.442695
  %v895 = vpow.pop %v894
  %v896 = vmul.f32 %v775, 1.442695
  %v897 = vpow.pop %v896
  %v898 = vmul.f32 %v776, 1.442695
  %v899 = vpow.pop %v898
  %v900 = vmul.f32 %v777, 1.442695
  %v901 = vpow.pop %v900
  %v902 = vmul.f32 %v778, 1.442695
  %v903 = vpow.pop %v902
  %v904 = vmul.f32 %v779, 1.442695
  %v905 = vpow.pop %v904
  %v906 = vmul.f32 %v780, 1.442695
  %v907 = vpow.pop %v906
  %v908 = vmul.f32 %v781, 1.442695
  %v909 = vpow.pop %v908
  %v910 = vsub.f32 %v783, 1.0
  %v911 = vsub.f32 %v785, 1.0
  %v912 = vsub.f32 %v787, 1.0
  %v913 = vsub.f32 %v789, 1.0
  %v914 = vsub.f32 %v791, 1.0
  %v915 = vsub.f32 %v793, 1.0
  %v916 = vsub.f32 %v795, 1.0
  %v917 = vsub.f32 %v797, 1.0
  %v918 = vsub.f32 %v799, 1.0
  %v919 = vsub.f32 %v801, 1.0
  %v920 = vsub.f32 %v803, 1.0
  %v921 = vsub.f32 %v805, 1.0
  %v922 = vsub.f32 %v807, 1.0
  %v923 = vsub.f32 %v809, 1.0
  %v924 = vsub.f32 %v811, 1.0
  %v925 = vsub.f32 %v813, 1.0
  %v926 = vsub.f32 %v815, 1.0
  %v927 = vsub.f32 %v817, 1.0
  %v928 = vsub.f32 %v819, 1.0
  %v929 = vsub.f32 %v821, 1.0
  %v930 = vsub.f32 %v823, 1.0
  %v931 = vsub.f32 %v825, 1.0
  %v932 = vsub.f32 %v827, 1.0
  %v933 = vsub.f32 %v829, 1.0
  %v934 = vsub.f32 %v831, 1.0
  %v935 = vsub.f32 %v833, 1.0
  %v936 = vsub.f32 %v835, 1.0
  %v937 = vsub.f32 %v837, 1.0
  %v938 = vsub.f32 %v839, 1.0
  %v939 = vsub.f32 %v841, 1.0
  %v940 = vsub.f32 %v843, 1.0
  %v941 = vsub.f32 %v845, 1.0
  %v942 = vsub.f32 %v847, 1.0
  %v943 = vsub.f32 %v849, 1.0
  %v944 = vsub.f32 %v851, 1.0
  %v945 = vsub.f32 %v853, 1.0
  %v946 = vsub.f32 %v855, 1.0
  %v947 = vsub.f32 %v857, 1.0
  %v948 = vsub.f32 %v859, 1.0
  %v949 = vsub.f32 %v861, 1.0
  %v950 = vsub.f32 %v863, 1.0
  %v951 = vsub.f32 %v865, 1.0
  %v952 = vsub.f32 %v867, 1.0
  %v953 = vsub.f32 %v869, 1.0
  %v954 = vsub.f32 %v871, 1.0
  %v955 = vsub.f32 %v873, 1.0
  %v956 = vsub.f32 %v875, 1.0
  %v957 = vsub.f32 %v877, 1.0
  %v958 = vsub.f32 %v879, 1.0
  %v959 = vsub.f32 %v881, 1.0
  %v960 = vsub.f32 %v883, 1.0
  %v961 = vsub.f32 %v885, 1.0
  %v962 = vsub.f32 %v887, 1.0
  %v963 = vsub.f32 %v889, 1.0
  %v964 = vsub.f32 %v891, 1.0
  %v965 = vsub.f32 %v893, 1.0
  %v966 = vsub.f32 %v895, 1.0
  %v967 = vsub.f32 %v897, 1.0
  %v968 = vsub.f32 %v899, 1.0
  %v969 = vsub.f32 %v901, 1.0
  %v970 = vsub.f32 %v903, 1.0
  %v971 = vsub.f32 %v905, 1.0
  %v972 = vsub.f32 %v907, 1.0
  %v973 = vsub.f32 %v909, 1.0
  %v974 = vsel %vm654, %v400, %v910
  %v975 = vsel %vm655, %v403, %v911
  %v976 = vsel %vm656, %v408, %v912
  %v977 = vsel %vm657, %v411, %v913
  %v978 = vsel %vm658, %v416, %v914
  %v979 = vsel %vm659, %v419, %v915
  %v980 = vsel %vm660, %v424, %v916
  %v981 = vsel %vm661, %v427, %v917
  %v982 = vsel %vm662, %v432, %v918
  %v983 = vsel %vm663, %v435, %v919
  %v984 = vsel %vm664, %v440, %v920
  %v985 = vsel %vm665, %v443, %v921
  %v986 = vsel %vm666, %v448, %v922
  %v987 = vsel %vm667, %v451, %v923
  %v988 = vsel %vm668, %v456, %v924
  %v989 = vsel %vm669, %v459, %v925
  %v990 = vsel %vm670, %v464, %v926
  %v991 = vsel %vm671, %v467, %v927
  %v992 = vsel %vm672, %v472, %v928
  %v993 = vsel %vm673, %v475, %v929
  %v994 = vsel %vm674, %v480, %v930
  %v995 = vsel %vm675, %v483, %v931
  %v996 = vsel %vm676, %v488, %v932
  %v997 = vsel %vm677, %v491, %v933
  %v998 = vsel %vm678, %v496, %v934
  %v999 = vsel %vm679, %v499, %v935
  %v1000 = vsel %vm680, %v504, %v936
  %v1001 = vsel %vm681, %v507, %v937
  %v1002 = vsel %vm682, %v512, %v938
  %v1003 = vsel %vm683, %v515, %v939
  %v1004 = vsel %vm684, %v520, %v940
  %v1005 = vsel %vm685, %v523, %v941
  %v1006 = vsel %vm686, %v528, %v942
  %v1007 = vsel %vm687, %v531, %v943
  %v1008 = vsel %vm688, %v536, %v944
  %v1009 = vsel %vm689, %v539, %v945
  %v1010 = vsel %vm690, %v544, %v946
  %v1011 = vsel %vm691, %v547, %v947
  %v1012 = vsel %vm692, %v552, %v948
  %v1013 = vsel %vm693, %v555, %v949
  %v1014 = vsel %vm694, %v560, %v950
  %v1015 = vsel %vm695, %v563, %v951
  %v1016 = vsel %vm696, %v568, %v952
  %v1017 = vsel %vm697, %v571, %v953
  %v1018 = vsel %vm698, %v576, %v954
  %v1019 = vsel %vm699, %v579, %v955
  %v1020 = vsel %vm700, %v584, %v956
  %v1021 = vsel %vm701, %v587, %v957
  %v1022 = vsel %vm702, %v592, %v958
  %v1023 = vsel %vm703, %v595, %v959
  %v1024 = vsel %vm704, %v600, %v960
  %v1025 = vsel %vm705, %v603, %v961
  %v1026 = vsel %vm706, %v608, %v962
  %v1027 = vsel %vm707, %v611, %v963
  %v1028 = vsel %vm708, %v616, %v964
  %v1029 = vsel %vm709, %v619, %v965
  %v1030 = vsel %vm710, %v624, %v966
  %v1031 = vsel %vm711, %v627, %v967
  %v1032 = vsel %vm712, %v632, %v968
  %v1033 = vsel %vm713, %v635, %v969
  %v1034 = vsel %vm714, %v640, %v970
  %v1035 = vsel %vm715, %v643, %v971
  %v1036 = vsel %vm716, %v648, %v972
  %v1037 = vsel %vm717, %v651, %v973
  %v1038 = vpack.c.bf16 %v975, %v974
  %v1039 = vpack.c.bf16 %v977, %v976
  %v1040 = vpack.c.bf16 %v979, %v978
  %v1041 = vpack.c.bf16 %v981, %v980
  %v1042 = vpack.c.bf16 %v983, %v982
  %v1043 = vpack.c.bf16 %v985, %v984
  %v1044 = vpack.c.bf16 %v987, %v986
  %v1045 = vpack.c.bf16 %v989, %v988
  %v1046 = vpack.c.bf16 %v991, %v990
  %v1047 = vpack.c.bf16 %v993, %v992
  %v1048 = vpack.c.bf16 %v995, %v994
  %v1049 = vpack.c.bf16 %v997, %v996
  %v1050 = vpack.c.bf16 %v999, %v998
  %v1051 = vpack.c.bf16 %v1001, %v1000
  %v1052 = vpack.c.bf16 %v1003, %v1002
  %v1053 = vpack.c.bf16 %v1005, %v1004
  %v1054 = vpack.c.bf16 %v1007, %v1006
  %v1055 = vpack.c.bf16 %v1009, %v1008
  %v1056 = vpack.c.bf16 %v1011, %v1010
  %v1057 = vpack.c.bf16 %v1013, %v1012
  %v1058 = vpack.c.bf16 %v1015, %v1014
  %v1059 = vpack.c.bf16 %v1017, %v1016
  %v1060 = vpack.c.bf16 %v1019, %v1018
  %v1061 = vpack.c.bf16 %v1021, %v1020
  %v1062 = vpack.c.bf16 %v1023, %v1022
  %v1063 = vpack.c.bf16 %v1025, %v1024
  %v1064 = vpack.c.bf16 %v1027, %v1026
  %v1065 = vpack.c.bf16 %v1029, %v1028
  %v1066 = vpack.c.bf16 %v1031, %v1030
  %v1067 = vpack.c.bf16 %v1033, %v1032
  %v1068 = vpack.c.bf16 %v1035, %v1034
  %v1069 = vpack.c.bf16 %v1037, %v1036
  %v1102 = vunpack.c.l.b16 %v1038
  %v1103 = vunpack.c.h.b16 %v1038
  %v1104 = vunpack.c.l.b16 %v1039
  %v1105 = vunpack.c.h.b16 %v1039
  %v1106 = vunpack.c.l.b16 %v1040
  %v1107 = vunpack.c.h.b16 %v1040
  %v1108 = vunpack.c.l.b16 %v1041
  %v1109 = vunpack.c.h.b16 %v1041
  %v1110 = vunpack.c.l.b16 %v1042
  %v1111 = vunpack.c.h.b16 %v1042
  %v1112 = vunpack.c.l.b16 %v1043
  %v1113 = vunpack.c.h.b16 %v1043
  %v1114 = vunpack.c.l.b16 %v1044
  %v1115 = vunpack.c.h.b16 %v1044
  %v1116 = vunpack.c.l.b16 %v1045
  %v1117 = vunpack.c.h.b16 %v1045
  %v1118 = vunpack.c.l.b16 %v1046
  %v1119 = vunpack.c.h.b16 %v1046
  %v1120 = vunpack.c.l.b16 %v1047
  %v1121 = vunpack.c.h.b16 %v1047
  %v1122 = vunpack.c.l.b16 %v1048
  %v1123 = vunpack.c.h.b16 %v1048
  %v1124 = vunpack.c.l.b16 %v1049
  %v1125 = vunpack.c.h.b16 %v1049
  %v1126 = vunpack.c.l.b16 %v1050
  %v1127 = vunpack.c.h.b16 %v1050
  %v1128 = vunpack.c.l.b16 %v1051
  %v1129 = vunpack.c.h.b16 %v1051
  %v1130 = vunpack.c.l.b16 %v1052
  %v1131 = vunpack.c.h.b16 %v1052
  %v1132 = vunpack.c.l.b16 %v1053
  %v1133 = vunpack.c.h.b16 %v1053
  %v1134 = vunpack.c.l.b16 %v1054
  %v1135 = vunpack.c.h.b16 %v1054
  %v1136 = vunpack.c.l.b16 %v1055
  %v1137 = vunpack.c.h.b16 %v1055
  %v1138 = vunpack.c.l.b16 %v1056
  %v1139 = vunpack.c.h.b16 %v1056
  %v1140 = vunpack.c.l.b16 %v1057
  %v1141 = vunpack.c.h.b16 %v1057
  %v1142 = vunpack.c.l.b16 %v1058
  %v1143 = vunpack.c.h.b16 %v1058
  %v1144 = vunpack.c.l.b16 %v1059
  %v1145 = vunpack.c.h.b16 %v1059
  %v1146 = vunpack.c.l.b16 %v1060
  %v1147 = vunpack.c.h.b16 %v1060
  %v1148 = vunpack.c.l.b16 %v1061
  %v1149 = vunpack.c.h.b16 %v1061
  %v1150 = vunpack.c.l.b16 %v1062
  %v1151 = vunpack.c.h.b16 %v1062
  %v1152 = vunpack.c.l.b16 %v1063
  %v1153 = vunpack.c.h.b16 %v1063
  %v1154 = vunpack.c.l.b16 %v1064
  %v1155 = vunpack.c.h.b16 %v1064
  %v1156 = vunpack.c.l.b16 %v1065
  %v1157 = vunpack.c.h.b16 %v1065
  %v1158 = vunpack.c.l.b16 %v1066
  %v1159 = vunpack.c.h.b16 %v1066
  %v1160 = vunpack.c.l.b16 %v1067
  %v1161 = vunpack.c.h.b16 %v1067
  %v1162 = vunpack.c.l.b16 %v1068
  %v1163 = vunpack.c.h.b16 %v1068
  %v1164 = vunpack.c.l.b16 %v1069
  %v1165 = vunpack.c.h.b16 %v1069
  %v1166 = vpack.c.b16 %v1102, %v1102
  %v1167 = vpack.c.b16 %v1103, %v1103
  %v1168 = vpack.c.b16 %v1104, %v1104
  %v1169 = vpack.c.b16 %v1105, %v1105
  %v1170 = vpack.c.b16 %v1106, %v1106
  %v1171 = vpack.c.b16 %v1107, %v1107
  %v1172 = vpack.c.b16 %v1108, %v1108
  %v1173 = vpack.c.b16 %v1109, %v1109
  %v1174 = vpack.c.b16 %v1110, %v1110
  %v1175 = vpack.c.b16 %v1111, %v1111
  %v1176 = vpack.c.b16 %v1112, %v1112
  %v1177 = vpack.c.b16 %v1113, %v1113
  %v1178 = vpack.c.b16 %v1114, %v1114
  %v1179 = vpack.c.b16 %v1115, %v1115
  %v1180 = vpack.c.b16 %v1116, %v1116
  %v1181 = vpack.c.b16 %v1117, %v1117
  %v1182 = vpack.c.b16 %v1118, %v1118
  %v1183 = vpack.c.b16 %v1119, %v1119
  %v1184 = vpack.c.b16 %v1120, %v1120
  %v1185 = vpack.c.b16 %v1121, %v1121
  %v1186 = vpack.c.b16 %v1122, %v1122
  %v1187 = vpack.c.b16 %v1123, %v1123
  %v1188 = vpack.c.b16 %v1124, %v1124
  %v1189 = vpack.c.b16 %v1125, %v1125
  %v1190 = vpack.c.b16 %v1126, %v1126
  %v1191 = vpack.c.b16 %v1127, %v1127
  %v1192 = vpack.c.b16 %v1128, %v1128
  %v1193 = vpack.c.b16 %v1129, %v1129
  %v1194 = vpack.c.b16 %v1130, %v1130
  %v1195 = vpack.c.b16 %v1131, %v1131
  %v1196 = vpack.c.b16 %v1132, %v1132
  %v1197 = vpack.c.b16 %v1133, %v1133
  %v1198 = vpack.c.b16 %v1134, %v1134
  %v1199 = vpack.c.b16 %v1135, %v1135
  %v1200 = vpack.c.b16 %v1136, %v1136
  %v1201 = vpack.c.b16 %v1137, %v1137
  %v1202 = vpack.c.b16 %v1138, %v1138
  %v1203 = vpack.c.b16 %v1139, %v1139
  %v1204 = vpack.c.b16 %v1140, %v1140
  %v1205 = vpack.c.b16 %v1141, %v1141
  %v1206 = vpack.c.b16 %v1142, %v1142
  %v1207 = vpack.c.b16 %v1143, %v1143
  %v1208 = vpack.c.b16 %v1144, %v1144
  %v1209 = vpack.c.b16 %v1145, %v1145
  %v1210 = vpack.c.b16 %v1146, %v1146
  %v1211 = vpack.c.b16 %v1147, %v1147
  %v1212 = vpack.c.b16 %v1148, %v1148
  %v1213 = vpack.c.b16 %v1149, %v1149
  %v1214 = vpack.c.b16 %v1150, %v1150
  %v1215 = vpack.c.b16 %v1151, %v1151
  %v1216 = vpack.c.b16 %v1152, %v1152
  %v1217 = vpack.c.b16 %v1153, %v1153
  %v1218 = vpack.c.b16 %v1154, %v1154
  %v1219 = vpack.c.b16 %v1155, %v1155
  %v1220 = vpack.c.b16 %v1156, %v1156
  %v1221 = vpack.c.b16 %v1157, %v1157
  %v1222 = vpack.c.b16 %v1158, %v1158
  %v1223 = vpack.c.b16 %v1159, %v1159
  %v1224 = vpack.c.b16 %v1160, %v1160
  %v1225 = vpack.c.b16 %v1161, %v1161
  %v1226 = vpack.c.b16 %v1162, %v1162
  %v1227 = vpack.c.b16 %v1163, %v1163
  %v1228 = vpack.c.b16 %v1164, %v1164
  %v1229 = vpack.c.b16 %v1165, %v1165
  %vm1294 = vcmask 60416
  %1295 = vst.msk [vmem:[%s3] sm:$0xf] %vm1294, %v1166
  %1296 = vst.msk [vmem:[%s3 + $0x4] sm:$0xf] %vm1294, %v1167
  %1297 = vst.msk [vmem:[%s3 + $0x8] sm:$0xf] %vm1294, %v1168
  %1298 = vst.msk [vmem:[%s3 + $0xc] sm:$0xf] %vm1294, %v1169
  %1299 = vst.msk [vmem:[%s3 + $0x10] sm:$0xf] %vm1294, %v1170
  %1300 = vst.msk [vmem:[%s3 + $0x14] sm:$0xf] %vm1294, %v1171
  %1301 = vst.msk [vmem:[%s3 + $0x18] sm:$0xf] %vm1294, %v1172
  %1302 = vst.msk [vmem:[%s3 + $0x1c] sm:$0xf] %vm1294, %v1173
  %1303 = vst.msk [vmem:[%s3 + $0x20] sm:$0xf] %vm1294, %v1174
  %1304 = vst.msk [vmem:[%s3 + $0x24] sm:$0xf] %vm1294, %v1175
  %1305 = vst.msk [vmem:[%s3 + $0x28] sm:$0xf] %vm1294, %v1176
  %1306 = vst.msk [vmem:[%s3 + $0x2c] sm:$0xf] %vm1294, %v1177
  %1307 = vst.msk [vmem:[%s3 + $0x30] sm:$0xf] %vm1294, %v1178
  %1308 = vst.msk [vmem:[%s3 + $0x34] sm:$0xf] %vm1294, %v1179
  %1309 = vst.msk [vmem:[%s3 + $0x38] sm:$0xf] %vm1294, %v1180
  %1310 = vst.msk [vmem:[%s3 + $0x3c] sm:$0xf] %vm1294, %v1181
  %1311 = vst.msk [vmem:[%s3 + $0x40] sm:$0xf] %vm1294, %v1182
  %1312 = vst.msk [vmem:[%s3 + $0x44] sm:$0xf] %vm1294, %v1183
  %1313 = vst.msk [vmem:[%s3 + $0x48] sm:$0xf] %vm1294, %v1184
  %1314 = vst.msk [vmem:[%s3 + $0x4c] sm:$0xf] %vm1294, %v1185
  %1315 = vst.msk [vmem:[%s3 + $0x50] sm:$0xf] %vm1294, %v1186
  %1316 = vst.msk [vmem:[%s3 + $0x54] sm:$0xf] %vm1294, %v1187
  %1317 = vst.msk [vmem:[%s3 + $0x58] sm:$0xf] %vm1294, %v1188
  %1318 = vst.msk [vmem:[%s3 + $0x5c] sm:$0xf] %vm1294, %v1189
  %1319 = vst.msk [vmem:[%s3 + $0x60] sm:$0xf] %vm1294, %v1190
  %1320 = vst.msk [vmem:[%s3 + $0x64] sm:$0xf] %vm1294, %v1191
  %1321 = vst.msk [vmem:[%s3 + $0x68] sm:$0xf] %vm1294, %v1192
  %1322 = vst.msk [vmem:[%s3 + $0x6c] sm:$0xf] %vm1294, %v1193
  %1323 = vst.msk [vmem:[%s3 + $0x70] sm:$0xf] %vm1294, %v1194
  %1324 = vst.msk [vmem:[%s3 + $0x74] sm:$0xf] %vm1294, %v1195
  %1325 = vst.msk [vmem:[%s3 + $0x78] sm:$0xf] %vm1294, %v1196
  %1326 = vst.msk [vmem:[%s3 + $0x7c] sm:$0xf] %vm1294, %v1197
  %1327 = vst.msk [vmem:[%s3 + $0x80] sm:$0xf] %vm1294, %v1198
  %1328 = vst.msk [vmem:[%s3 + $0x84] sm:$0xf] %vm1294, %v1199
  %1329 = vst.msk [vmem:[%s3 + $0x88] sm:$0xf] %vm1294, %v1200
  %1330 = vst.msk [vmem:[%s3 + $0x8c] sm:$0xf] %vm1294, %v1201
  %1331 = vst.msk [vmem:[%s3 + $0x90] sm:$0xf] %vm1294, %v1202
  %1332 = vst.msk [vmem:[%s3 + $0x94] sm:$0xf] %vm1294, %v1203
  %1333 = vst.msk [vmem:[%s3 + $0x98] sm:$0xf] %vm1294, %v1204
  %1334 = vst.msk [vmem:[%s3 + $0x9c] sm:$0xf] %vm1294, %v1205
  %1335 = vst.msk [vmem:[%s3 + $0xa0] sm:$0xf] %vm1294, %v1206
  %1336 = vst.msk [vmem:[%s3 + $0xa4] sm:$0xf] %vm1294, %v1207
  %1337 = vst.msk [vmem:[%s3 + $0xa8] sm:$0xf] %vm1294, %v1208
  %1338 = vst.msk [vmem:[%s3 + $0xac] sm:$0xf] %vm1294, %v1209
  %1339 = vst.msk [vmem:[%s3 + $0xb0] sm:$0xf] %vm1294, %v1210
  %1340 = vst.msk [vmem:[%s3 + $0xb4] sm:$0xf] %vm1294, %v1211
  %1341 = vst.msk [vmem:[%s3 + $0xb8] sm:$0xf] %vm1294, %v1212
  %1342 = vst.msk [vmem:[%s3 + $0xbc] sm:$0xf] %vm1294, %v1213
  %1343 = vst.msk [vmem:[%s3 + $0xc0] sm:$0xf] %vm1294, %v1214
  %1344 = vst.msk [vmem:[%s3 + $0xc4] sm:$0xf] %vm1294, %v1215
  %1345 = vst.msk [vmem:[%s3 + $0xc8] sm:$0xf] %vm1294, %v1216
  %1346 = vst.msk [vmem:[%s3 + $0xcc] sm:$0xf] %vm1294, %v1217
  %1347 = vst.msk [vmem:[%s3 + $0xd0] sm:$0xf] %vm1294, %v1218
  %1348 = vst.msk [vmem:[%s3 + $0xd4] sm:$0xf] %vm1294, %v1219
  %1349 = vst.msk [vmem:[%s3 + $0xd8] sm:$0xf] %vm1294, %v1220
  %1350 = vst.msk [vmem:[%s3 + $0xdc] sm:$0xf] %vm1294, %v1221
  %1351 = vst.msk [vmem:[%s3 + $0xe0] sm:$0xf] %vm1294, %v1222
  %1352 = vst.msk [vmem:[%s3 + $0xe4] sm:$0xf] %vm1294, %v1223
  %1353 = vst.msk [vmem:[%s3 + $0xe8] sm:$0xf] %vm1294, %v1224
  %1354 = vst.msk [vmem:[%s3 + $0xec] sm:$0xf] %vm1294, %v1225
  %1355 = vst.msk [vmem:[%s3 + $0xf0] sm:$0xf] %vm1294, %v1226
  %1356 = vst.msk [vmem:[%s3 + $0xf4] sm:$0xf] %vm1294, %v1227
  %1357 = vst.msk [vmem:[%s3 + $0xf8] sm:$0xf] %vm1294, %v1228
  %1358 = vst.msk [vmem:[%s3 + $0xfc] sm:$0xf] %vm1294, %v1229
  // Predicated region
  $region14: #{sqnet_forward.13} parent=0 // pred_check
    _
  $region15: #{sqnet_forward.13} parent=0 // pred_check_branch
    %1360 = sbr.rel (0) target = $region17
  $region16: #{sqnet_forward.13} parent=0 // pred_region
    _
  $region17: #{sqnet_forward.13} parent=0 // pred_fallthru
    _
  // Predicated region
  $region18: #{sqnet_forward.13} parent=0 // pred_check
    _
  $region19: #{sqnet_forward.13} parent=0 // pred_check_branch
    %1362 = sbr.rel (0) target = $region21
  $region20: #{sqnet_forward.13} parent=0 // pred_region
    _
  $region21: #{sqnet_forward.13} parent=0 // pred_fallthru
    _

// kernel: sqnet_forward.15
$region0: #{sqnet_forward.15}
  #allocation0 [shape = 'u32[]', space=smem, size = 0x4, offset = 0x4, fixed_abs, tag = 'smem constant byte address 0x4 - core index']
  #allocation1 [shape = 'u32[144,128]{1,0:T(1,128)}', space=vmem, size = 0x12000, scoped, tag = 'internal scratch']
  %s0 = inlined_call_operand.vmem [shape: bf16[128,18], index: 0, kind: input, shape index: {}]
  %s1 = inlined_call_operand.vmem [shape: bf16[18,16], index: 1, kind: input, shape index: {}]
  %s2 = inlined_call_operand.vmem [shape: f32[1,16], index: 2, kind: input, shape index: {}]
  %s3 = inlined_call_operand.vmem [shape: bf16[128,16], index: 3, kind: output, shape index: {}]
  %s4 = sld [smem:[#allocation0]]
  $region22: #{sqnet_forward.15} parent=0
    _
  %s6 = ssub.s32 1, %s4
  %s7 = scalar_select 0, %s6, %s4
  // Predicated region
  $region2: #{sqnet_forward.15} parent=0 // pred_check
    _
  $region3: #{sqnet_forward.15} parent=0 // pred_check_branch
    %9 = sbr.rel (0) target = $region5
  $region4: #{sqnet_forward.15} parent=0 // pred_region
    _
  $region5: #{sqnet_forward.15} parent=0 // pred_fallthru
    _
  // Predicated region
  $region6: #{sqnet_forward.15} parent=0 // pred_check
    _
  $region7: #{sqnet_forward.15} parent=0 // pred_check_branch
    %11 = sbr.rel (0) target = $region9
  $region8: #{sqnet_forward.15} parent=0 // pred_region
    _
  $region9: #{sqnet_forward.15} parent=0 // pred_fallthru
    _
  // Predicated region
  $region10: #{sqnet_forward.15} parent=0 // pred_check
    _
  $region11: #{sqnet_forward.15} parent=0 // pred_check_branch
    %13 = sbr.rel (0) target = $region13
  $region12: #{sqnet_forward.15} parent=0 // pred_region
    _
  $region13: #{sqnet_forward.15} parent=0 // pred_fallthru
    _
  %v15 = vld [vmem:[%s0] sm:$0xf]
  %v16 = vld [vmem:[%s0 + $0x4] sm:$0xf]
  %v17 = vld [vmem:[%s0 + $0x8] sm:$0xf]
  %v18 = vld [vmem:[%s0 + $0xc] sm:$0xf]
  %v19 = vld [vmem:[%s0 + $0x10] sm:$0xf]
  %v20 = vld [vmem:[%s0 + $0x14] sm:$0xf]
  %v21 = vld [vmem:[%s0 + $0x18] sm:$0xf]
  %v22 = vld [vmem:[%s0 + $0x1c] sm:$0xf]
  %v23 = vld [vmem:[%s0 + $0x20] sm:$0xf]
  %v24 = vld [vmem:[%s0 + $0x24] sm:$0xf]
  %v25 = vld [vmem:[%s0 + $0x28] sm:$0xf]
  %v26 = vld [vmem:[%s0 + $0x2c] sm:$0xf]
  %v27 = vld [vmem:[%s0 + $0x30] sm:$0xf]
  %v28 = vld [vmem:[%s0 + $0x34] sm:$0xf]
  %v29 = vld [vmem:[%s0 + $0x38] sm:$0xf]
  %v30 = vld [vmem:[%s0 + $0x3c] sm:$0xf]
  %v31 = vld [vmem:[%s1] sm:$0xf]
  %v32 = vld [vmem:[%s1 + $0x4] sm:$0xf]
  %v33 = vld [vmem:[%s1 + $0x8] sm:$0x1]
  %v34 = vld [vmem:[%s2] sm:$0x1]
  %v36 = vlaneseq
  %v37 = vshrl.u32 %v36, 7
  %v38 = vsub.s32 0, %v37
  %v39 = vrot.slane %v34, %v38
  %v57 = vunpack.c.l.b16 %v15
  %v58 = vunpack.c.l.b16 %v16
  %v59 = vunpack.c.l.b16 %v17
  %v60 = vunpack.c.l.b16 %v18
  %v61 = vunpack.c.l.b16 %v19
  %v62 = vunpack.c.l.b16 %v20
  %v63 = vunpack.c.l.b16 %v21
  %v64 = vunpack.c.l.b16 %v22
  %v65 = vunpack.c.l.b16 %v23
  %v66 = vunpack.c.l.b16 %v24
  %v67 = vunpack.c.l.b16 %v25
  %v68 = vunpack.c.l.b16 %v26
  %v69 = vunpack.c.l.b16 %v27
  %v70 = vunpack.c.l.b16 %v28
  %v71 = vunpack.c.l.b16 %v29
  %v72 = vunpack.c.l.b16 %v30
  %v73 = vpack.c.b16 %v58, %v57
  %v74 = vpack.c.b16 %v60, %v59
  %v75 = vpack.c.b16 %v62, %v61
  %v76 = vpack.c.b16 %v64, %v63
  %v77 = vpack.c.b16 %v66, %v65
  %v78 = vpack.c.b16 %v68, %v67
  %v79 = vpack.c.b16 %v70, %v69
  %v80 = vpack.c.b16 %v72, %v71
  %v84 = vunpack.c.l.b16 %v31
  %v85 = vunpack.c.l.b16 %v32
  %v86 = vunpack.c.l.b16 %v33
  %v87 = vpack.c.b16 %v85, %v84
  %v88 = vpack.c.b16 %v86, %v86
  %vm90 = vcmask 146432
  %v92 = vsel %vm90, %v73, 0
  %v95 = vsel %vm90, %v74, 0
  %v98 = vsel %vm90, %v75, 0
  %v101 = vsel %vm90, %v76, 0
  %v104 = vsel %vm90, %v77, 0
  %v107 = vsel %vm90, %v78, 0
  %v110 = vsel %vm90, %v79, 0
  %v113 = vsel %vm90, %v80, 0
  %vm115 = vcmask 1040384
  %v117 = vsel %vm115, %v88, 0
  %119 = vmatprep.subr.bf16.mxu0 0
  %120 = vmatpush1.bf16.msra.mxu0 %v87
  %121 = vmatprep.subr.bf16.mxu0 0
  %122 = vmatpush1.bf16.msra.mxu0 %v117
  %123 = vmatprep.subr.bf16.mxu0 0
  %124 = vmatpush1.bf16.msra.mxu0 0
  %125 = vmatprep.subr.bf16.mxu0 0
  %126 = vmatpush1.bf16.msra.mxu0 0
  %127 = vmatprep.subr.bf16.mxu0 0
  %128 = vmatpush1.bf16.msra.mxu0 0
  %129 = vmatprep.subr.bf16.mxu0 0
  %130 = vmatpush1.bf16.msra.mxu0 0
  %131 = vmatprep.subr.bf16.mxu0 0
  %132 = vmatpush1.bf16.msra.mxu0 0
  %133 = vmatprep.subr.bf16.mxu0 0
  %134 = vmatpush1.bf16.msra.mxu0 0
  %135 = vmatprep.subr.bf16.mxu0 0
  %136 = vmatpush1.bf16.msra.mxu0 0
  %137 = vmatprep.subr.bf16.mxu0 0
  %138 = vmatpush1.bf16.msra.mxu0 0
  %139 = vmatprep.subr.bf16.mxu0 0
  %140 = vmatpush1.bf16.msra.mxu0 0
  %141 = vmatprep.subr.bf16.mxu0 0
  %142 = vmatpush1.bf16.msra.mxu0 0
  %143 = vmatprep.subr.bf16.mxu0 0
  %144 = vmatpush1.bf16.msra.mxu0 0
  %145 = vmatprep.subr.bf16.mxu0 0
  %146 = vmatpush1.bf16.msra.mxu0 0
  %147 = vmatprep.subr.bf16.mxu0 0
  %148 = vmatpush1.bf16.msra.mxu0 0
  %149 = vmatprep.subr.bf16.mxu0 0
  %150 = vmatpush1.bf16.msra.mxu0 0
  %151 = vmatprep.mubr.bf16.mxu0 0
  %152 = vmatmul.mubr.bf16.gmra.mrb[0].mxu0 %v92
  %v153 = vpop.f32.mrb[0].mxu0
  %v154 = vadd.f32 %v39, %v153
  %v155 = vpop.f32.mrb[0].mxu0
  %v156 = vpop.f32.mrb[0].mxu0
  %v157 = vadd.f32 %v39, %v156
  %v158 = vpop.f32.mrb[0].mxu0
  %159 = vmatprep.mubr.bf16.mxu0 0
  %160 = vmatmul.mubr.bf16.gmra.mrb[0].mxu0 %v95
  %v161 = vpop.f32.mrb[0].mxu0
  %v162 = vadd.f32 %v39, %v161
  %v163 = vpop.f32.mrb[0].mxu0
  %v164 = vpop.f32.mrb[0].mxu0
  %v165 = vadd.f32 %v39, %v164
  %v166 = vpop.f32.mrb[0].mxu0
  %167 = vmatprep.mubr.bf16.mxu0 0
  %168 = vmatmul.mubr.bf16.gmra.mrb[0].mxu0 %v98
  %v169 = vpop.f32.mrb[0].mxu0
  %v170 = vadd.f32 %v39, %v169
  %v171 = vpop.f32.mrb[0].mxu0
  %v172 = vpop.f32.mrb[0].mxu0
  %v173 = vadd.f32 %v39, %v172
  %v174 = vpop.f32.mrb[0].mxu0
  %175 = vmatprep.mubr.bf16.mxu0 0
  %176 = vmatmul.mubr.bf16.gmra.mrb[0].mxu0 %v101
  %v177 = vpop.f32.mrb[0].mxu0
  %v178 = vadd.f32 %v39, %v177
  %v179 = vpop.f32.mrb[0].mxu0
  %v180 = vpop.f32.mrb[0].mxu0
  %v181 = vadd.f32 %v39, %v180
  %v182 = vpop.f32.mrb[0].mxu0
  %183 = vmatprep.mubr.bf16.mxu0 0
  %184 = vmatmul.mubr.bf16.gmra.mrb[0].mxu0 %v104
  %v185 = vpop.f32.mrb[0].mxu0
  %v186 = vadd.f32 %v39, %v185
  %v187 = vpop.f32.mrb[0].mxu0
  %v188 = vpop.f32.mrb[0].mxu0
  %v189 = vadd.f32 %v39, %v188
  %v190 = vpop.f32.mrb[0].mxu0
  %191 = vmatprep.mubr.bf16.mxu0 0
  %192 = vmatmul.mubr.bf16.gmra.mrb[0].mxu0 %v107
  %v193 = vpop.f32.mrb[0].mxu0
  %v194 = vadd.f32 %v39, %v193
  %v195 = vpop.f32.mrb[0].mxu0
  %v196 = vpop.f32.mrb[0].mxu0
  %v197 = vadd.f32 %v39, %v196
  %v198 = vpop.f32.mrb[0].mxu0
  %199 = vmatprep.mubr.bf16.mxu0 0
  %200 = vmatmul.mubr.bf16.gmra.mrb[0].mxu0 %v110
  %v201 = vpop.f32.mrb[0].mxu0
  %v202 = vadd.f32 %v39, %v201
  %v203 = vpop.f32.mrb[0].mxu0
  %v204 = vpop.f32.mrb[0].mxu0
  %v205 = vadd.f32 %v39, %v204
  %v206 = vpop.f32.mrb[0].mxu0
  %207 = vmatprep.mubr.bf16.mxu0 0
  %208 = vmatmul.mubr.bf16.gmra.mrb[0].mxu0 %v113
  %v209 = vpop.f32.mrb[0].mxu0
  %v210 = vadd.f32 %v39, %v209
  %v211 = vpop.f32.mrb[0].mxu0
  %v212 = vpop.f32.mrb[0].mxu0
  %v213 = vadd.f32 %v39, %v212
  %v214 = vpop.f32.mrb[0].mxu0
  %215 = vdwg.mxu0
  %vm216 = vcmp.gt.f32.partialorder %v154, 0.0
  %vm217 = vcmp.gt.f32.partialorder %v157, 0.0
  %vm218 = vcmp.gt.f32.partialorder %v162, 0.0
  %vm219 = vcmp.gt.f32.partialorder %v165, 0.0
  %vm220 = vcmp.gt.f32.partialorder %v170, 0.0
  %vm221 = vcmp.gt.f32.partialorder %v173, 0.0
  %vm222 = vcmp.gt.f32.partialorder %v178, 0.0
  %vm223 = vcmp.gt.f32.partialorder %v181, 0.0
  %vm224 = vcmp.gt.f32.partialorder %v186, 0.0
  %vm225 = vcmp.gt.f32.partialorder %v189, 0.0
  %vm226 = vcmp.gt.f32.partialorder %v194, 0.0
  %vm227 = vcmp.gt.f32.partialorder %v197, 0.0
  %vm228 = vcmp.gt.f32.partialorder %v202, 0.0
  %vm229 = vcmp.gt.f32.partialorder %v205, 0.0
  %vm230 = vcmp.gt.f32.partialorder %v210, 0.0
  %vm231 = vcmp.gt.f32.partialorder %v213, 0.0
  %v232 = vmin.f32 %v154, 0.0
  %v233 = vmin.f32 %v157, 0.0
  %v234 = vmin.f32 %v162, 0.0
  %v235 = vmin.f32 %v165, 0.0
  %v236 = vmin.f32 %v170, 0.0
  %v237 = vmin.f32 %v173, 0.0
  %v238 = vmin.f32 %v178, 0.0
  %v239 = vmin.f32 %v181, 0.0
  %v240 = vmin.f32 %v186, 0.0
  %v241 = vmin.f32 %v189, 0.0
  %v242 = vmin.f32 %v194, 0.0
  %v243 = vmin.f32 %v197, 0.0
  %v244 = vmin.f32 %v202, 0.0
  %v245 = vmin.f32 %v205, 0.0
  %v246 = vmin.f32 %v210, 0.0
  %v247 = vmin.f32 %v213, 0.0
  %v248 = vmul.f32 %v232, 1.442695
  %v249 = vpow.pop %v248
  %v250 = vmul.f32 %v233, 1.442695
  %v251 = vpow.pop %v250
  %v252 = vmul.f32 %v234, 1.442695
  %v253 = vpow.pop %v252
  %v254 = vmul.f32 %v235, 1.442695
  %v255 = vpow.pop %v254
  %v256 = vmul.f32 %v236, 1.442695
  %v257 = vpow.pop %v256
  %v258 = vmul.f32 %v237, 1.442695
  %v259 = vpow.pop %v258
  %v260 = vmul.f32 %v238, 1.442695
  %v261 = vpow.pop %v260
  %v262 = vmul.f32 %v239, 1.442695
  %v263 = vpow.pop %v262
  %v264 = vmul.f32 %v240, 1.442695
  %v265 = vpow.pop %v264
  %v266 = vmul.f32 %v241, 1.442695
  %v267 = vpow.pop %v266
  %v268 = vmul.f32 %v242, 1.442695
  %v269 = vpow.pop %v268
  %v270 = vmul.f32 %v243, 1.442695
  %v271 = vpow.pop %v270
  %v272 = vmul.f32 %v244, 1.442695
  %v273 = vpow.pop %v272
  %v274 = vmul.f32 %v245, 1.442695
  %v275 = vpow.pop %v274
  %v276 = vmul.f32 %v246, 1.442695
  %v277 = vpow.pop %v276
  %v278 = vmul.f32 %v247, 1.442695
  %v279 = vpow.pop %v278
  %v280 = vsub.f32 %v249, 1.0
  %v281 = vsub.f32 %v251, 1.0
  %v282 = vsub.f32 %v253, 1.0
  %v283 = vsub.f32 %v255, 1.0
  %v284 = vsub.f32 %v257, 1.0
  %v285 = vsub.f32 %v259, 1.0
  %v286 = vsub.f32 %v261, 1.0
  %v287 = vsub.f32 %v263, 1.0
  %v288 = vsub.f32 %v265, 1.0
  %v289 = vsub.f32 %v267, 1.0
  %v290 = vsub.f32 %v269, 1.0
  %v291 = vsub.f32 %v271, 1.0
  %v292 = vsub.f32 %v273, 1.0
  %v293 = vsub.f32 %v275, 1.0
  %v294 = vsub.f32 %v277, 1.0
  %v295 = vsub.f32 %v279, 1.0
  %v296 = vsel %vm216, %v154, %v280
  %v297 = vsel %vm217, %v157, %v281
  %v298 = vsel %vm218, %v162, %v282
  %v299 = vsel %vm219, %v165, %v283
  %v300 = vsel %vm220, %v170, %v284
  %v301 = vsel %vm221, %v173, %v285
  %v302 = vsel %vm222, %v178, %v286
  %v303 = vsel %vm223, %v181, %v287
  %v304 = vsel %vm224, %v186, %v288
  %v305 = vsel %vm225, %v189, %v289
  %v306 = vsel %vm226, %v194, %v290
  %v307 = vsel %vm227, %v197, %v291
  %v308 = vsel %vm228, %v202, %v292
  %v309 = vsel %vm229, %v205, %v293
  %v310 = vsel %vm230, %v210, %v294
  %v311 = vsel %vm231, %v213, %v295
  %v312 = vpack.c.bf16 %v297, %v296
  %v313 = vpack.c.bf16 %v299, %v298
  %v314 = vpack.c.bf16 %v301, %v300
  %v315 = vpack.c.bf16 %v303, %v302
  %v316 = vpack.c.bf16 %v305, %v304
  %v317 = vpack.c.bf16 %v307, %v306
  %v318 = vpack.c.bf16 %v309, %v308
  %v319 = vpack.c.bf16 %v311, %v310
  %v328 = vunpack.c.l.b16 %v312
  %v329 = vunpack.c.h.b16 %v312
  %v330 = vunpack.c.l.b16 %v313
  %v331 = vunpack.c.h.b16 %v313
  %v332 = vunpack.c.l.b16 %v314
  %v333 = vunpack.c.h.b16 %v314
  %v334 = vunpack.c.l.b16 %v315
  %v335 = vunpack.c.h.b16 %v315
  %v336 = vunpack.c.l.b16 %v316
  %v337 = vunpack.c.h.b16 %v316
  %v338 = vunpack.c.l.b16 %v317
  %v339 = vunpack.c.h.b16 %v317
  %v340 = vunpack.c.l.b16 %v318
  %v341 = vunpack.c.h.b16 %v318
  %v342 = vunpack.c.l.b16 %v319
  %v343 = vunpack.c.h.b16 %v319
  %v344 = vpack.c.b16 %v328, %v328
  %v345 = vpack.c.b16 %v329, %v329
  %v346 = vpack.c.b16 %v330, %v330
  %v347 = vpack.c.b16 %v331, %v331
  %v348 = vpack.c.b16 %v332, %v332
  %v349 = vpack.c.b16 %v333, %v333
  %v350 = vpack.c.b16 %v334, %v334
  %v351 = vpack.c.b16 %v335, %v335
  %v352 = vpack.c.b16 %v336, %v336
  %v353 = vpack.c.b16 %v337, %v337
  %v354 = vpack.c.b16 %v338, %v338
  %v355 = vpack.c.b16 %v339, %v339
  %v356 = vpack.c.b16 %v340, %v340
  %v357 = vpack.c.b16 %v341, %v341
  %v358 = vpack.c.b16 %v342, %v342
  %v359 = vpack.c.b16 %v343, %v343
  %vm376 = vcmask 125952
  %377 = vst.msk [vmem:[%s3] sm:$0xf] %vm376, %v344
  %378 = vst.msk [vmem:[%s3 + $0x4] sm:$0xf] %vm376, %v345
  %379 = vst.msk [vmem:[%s3 + $0x8] sm:$0xf] %vm376, %v346
  %380 = vst.msk [vmem:[%s3 + $0xc] sm:$0xf] %vm376, %v347
  %381 = vst.msk [vmem:[%s3 + $0x10] sm:$0xf] %vm376, %v348
  %382 = vst.msk [vmem:[%s3 + $0x14] sm:$0xf] %vm376, %v349
  %383 = vst.msk [vmem:[%s3 + $0x18] sm:$0xf] %vm376, %v350
  %384 = vst.msk [vmem:[%s3 + $0x1c] sm:$0xf] %vm376, %v351
  %385 = vst.msk [vmem:[%s3 + $0x20] sm:$0xf] %vm376, %v352
  %386 = vst.msk [vmem:[%s3 + $0x24] sm:$0xf] %vm376, %v353
  %387 = vst.msk [vmem:[%s3 + $0x28] sm:$0xf] %vm376, %v354
  %388 = vst.msk [vmem:[%s3 + $0x2c] sm:$0xf] %vm376, %v355
  %389 = vst.msk [vmem:[%s3 + $0x30] sm:$0xf] %vm376, %v356
  %390 = vst.msk [vmem:[%s3 + $0x34] sm:$0xf] %vm376, %v357
  %391 = vst.msk [vmem:[%s3 + $0x38] sm:$0xf] %vm376, %v358
  %392 = vst.msk [vmem:[%s3 + $0x3c] sm:$0xf] %vm376, %v359
  // Predicated region
  $region14: #{sqnet_forward.15} parent=0 // pred_check
    _
  $region15: #{sqnet_forward.15} parent=0 // pred_check_branch
    %394 = sbr.rel (0) target = $region17
  $region16: #{sqnet_forward.15} parent=0 // pred_region
    _
  $region17: #{sqnet_forward.15} parent=0 // pred_fallthru
    _
  // Predicated region
  $region18: #{sqnet_forward.15} parent=0 // pred_check
    _
  $region19: #{sqnet_forward.15} parent=0 // pred_check_branch
    %396 = sbr.rel (0) target = $region21
  $region20: #{sqnet_forward.15} parent=0 // pred_region
    _
  $region21: #{sqnet_forward.15} parent=0 // pred_fallthru
    _

// kernel: sqnet_forward.16
$region0: #{sqnet_forward.16}
  #allocation0 [shape = 'u32[]', space=smem, size = 0x4, offset = 0x4, fixed_abs, tag = 'smem constant byte address 0x4 - core index']
  #allocation1 [shape = 'u32[144,128]{1,0:T(1,128)}', space=vmem, size = 0x12000, scoped, tag = 'internal scratch']
  %s0 = inlined_call_operand.vmem [shape: bf16[4,32,16], index: 0, kind: input, shape index: {}]
  %s1 = inlined_call_operand.vmem [shape: bf16[16,4], index: 1, kind: input, shape index: {}]
  %s2 = inlined_call_operand.vmem [shape: f32[1,4], index: 2, kind: input, shape index: {}]
  %s3 = inlined_call_operand.vmem [shape: bf16[32,4], index: 3, kind: output, shape index: {}]
  %s4 = sld [smem:[#allocation0]]
  $region22: #{sqnet_forward.16} parent=0
    _
  %s6 = ssub.s32 1, %s4
  %s7 = scalar_select 0, %s6, %s4
  // Predicated region
  $region2: #{sqnet_forward.16} parent=0 // pred_check
    _
  $region3: #{sqnet_forward.16} parent=0 // pred_check_branch
    %9 = sbr.rel (0) target = $region5
  $region4: #{sqnet_forward.16} parent=0 // pred_region
    _
  $region5: #{sqnet_forward.16} parent=0 // pred_fallthru
    _
  // Predicated region
  $region6: #{sqnet_forward.16} parent=0 // pred_check
    _
  $region7: #{sqnet_forward.16} parent=0 // pred_check_branch
    %11 = sbr.rel (0) target = $region9
  $region8: #{sqnet_forward.16} parent=0 // pred_region
    _
  $region9: #{sqnet_forward.16} parent=0 // pred_fallthru
    _
  // Predicated region
  $region10: #{sqnet_forward.16} parent=0 // pred_check
    _
  $region11: #{sqnet_forward.16} parent=0 // pred_check_branch
    %13 = sbr.rel (0) target = $region13
  $region12: #{sqnet_forward.16} parent=0 // pred_region
    _
  $region13: #{sqnet_forward.16} parent=0 // pred_fallthru
    _
  %v15 = vld [vmem:[%s0] sm:$0xf]
  %v16 = vld [vmem:[%s0 + $0x4] sm:$0xf]
  %v17 = vld [vmem:[%s0 + $0x8] sm:$0xf]
  %v18 = vld [vmem:[%s0 + $0xc] sm:$0xf]
  %s19 = scalar_lea.vmem %s0, 16
  %v20 = vld [vmem:[%s19] sm:$0xf]
  %v21 = vld [vmem:[%s19 + $0x4] sm:$0xf]
  %v22 = vld [vmem:[%s19 + $0x8] sm:$0xf]
  %v23 = vld [vmem:[%s19 + $0xc] sm:$0xf]
  %v24 = vmax.bf16 %v15, %v20
  %v25 = vmax.bf16 %v16, %v21
  %v26 = vmax.bf16 %v17, %v22
  %v27 = vmax.bf16 %v18, %v23
  %s28 = scalar_lea.vmem %s0, 32
  %v29 = vld [vmem:[%s28] sm:$0xf]
  %v30 = vld [vmem:[%s28 + $0x4] sm:$0xf]
  %v31 = vld [vmem:[%s28 + $0x8] sm:$0xf]
  %v32 = vld [vmem:[%s28 + $0xc] sm:$0xf]
  %s33 = scalar_lea.vmem %s0, 48
  %v34 = vld [vmem:[%s33] sm:$0xf]
  %v35 = vld [vmem:[%s33 + $0x4] sm:$0xf]
  %v36 = vld [vmem:[%s33 + $0x8] sm:$0xf]
  %v37 = vld [vmem:[%s33 + $0xc] sm:$0xf]
  %v38 = vmax.bf16 %v29, %v34
  %v39 = vmax.bf16 %v30, %v35
  %v40 = vmax.bf16 %v31, %v36
  %v41 = vmax.bf16 %v32, %v37
  %v42 = vmax.bf16 %v24, %v38
  %v43 = vmax.bf16 %v25, %v39
  %v44 = vmax.bf16 %v26, %v40
  %v45 = vmax.bf16 %v27, %v41
  %v46 = vld [vmem:[%s1] sm:$0xf]
  %v47 = vld [vmem:[%s1 + $0x4] sm:$0xf]
  %v48 = vld [vmem:[%s2] sm:$0x1]
  %v50 = vlaneseq
  %v51 = vshrl.u32 %v50, 7
  %v52 = vsub.s32 0, %v51
  %v53 = vrot.slane %v48, %v52
  %v59 = vunpack.c.l.b16 %v42
  %v60 = vunpack.c.l.b16 %v43
  %v61 = vunpack.c.l.b16 %v44
  %v62 = vunpack.c.l.b16 %v45
  %v63 = vpack.c.b16 %v60, %v59
  %v64 = vpack.c.b16 %v62, %v61
  %v67 = vunpack.c.l.b16 %v46
  %v68 = vunpack.c.l.b16 %v47
  %v69 = vpack.c.b16 %v68, %v67
  %vm71 = vcmask 130048
  %v73 = vsel %vm71, %v63, 0
  %v76 = vsel %vm71, %v64, 0
  %78 = vmatprep.subr.bf16.mxu0 0
  %79 = vmatpush1.bf16.msra.mxu0 %v69
  %80 = vmatprep.subr.bf16.mxu0 0
  %81 = vmatpush1.bf16.msra.mxu0 0
  %82 = vmatprep.subr.bf16.mxu0 0
  %83 = vmatpush1.bf16.msra.mxu0 0
  %84 = vmatprep.subr.bf16.mxu0 0
  %85 = vmatpush1.bf16.msra.mxu0 0
  %86 = vmatprep.subr.bf16.mxu0 0
  %87 = vmatpush1.bf16.msra.mxu0 0
  %88 = vmatprep.subr.bf16.mxu0 0
  %89 = vmatpush1.bf16.msra.mxu0 0
  %90 = vmatprep.subr.bf16.mxu0 0
  %91 = vmatpush1.bf16.msra.mxu0 0
  %92 = vmatprep.subr.bf16.mxu0 0
  %93 = vmatpush1.bf16.msra.mxu0 0
  %94 = vmatprep.subr.bf16.mxu0 0
  %95 = vmatpush1.bf16.msra.mxu0 0
  %96 = vmatprep.subr.bf16.mxu0 0
  %97 = vmatpush1.bf16.msra.mxu0 0
  %98 = vmatprep.subr.bf16.mxu0 0
  %99 = vmatpush1.bf16.msra.mxu0 0
  %100 = vmatprep.subr.bf16.mxu0 0
  %101 = vmatpush1.bf16.msra.mxu0 0
  %102 = vmatprep.subr.bf16.mxu0 0
  %103 = vmatpush1.bf16.msra.mxu0 0
  %104 = vmatprep.subr.bf16.mxu0 0
  %105 = vmatpush1.bf16.msra.mxu0 0
  %106 = vmatprep.subr.bf16.mxu0 0
  %107 = vmatpush1.bf16.msra.mxu0 0
  %108 = vmatprep.subr.bf16.mxu0 0
  %109 = vmatpush1.bf16.msra.mxu0 0
  %110 = vmatprep.mubr.bf16.mxu0 0
  %111 = vmatmul.mubr.bf16.gmra.mrb[0].mxu0 %v73
  %v112 = vpop.f32.mrb[0].mxu0
  %v113 = vadd.f32 %v53, %v112
  %v114 = vpop.f32.mrb[0].mxu0
  %v115 = vpop.f32.mrb[0].mxu0
  %v116 = vadd.f32 %v53, %v115
  %v117 = vpop.f32.mrb[0].mxu0
  %118 = vmatprep.mubr.bf16.mxu0 0
  %119 = vmatmul.mubr.bf16.gmra.mrb[0].mxu0 %v76
  %v120 = vpop.f32.mrb[0].mxu0
  %v121 = vadd.f32 %v53, %v120
  %v122 = vpop.f32.mrb[0].mxu0
  %v123 = vpop.f32.mrb[0].mxu0
  %v124 = vadd.f32 %v53, %v123
  %v125 = vpop.f32.mrb[0].mxu0
  %126 = vdwg.mxu0
  %vm127 = vcmp.gt.f32.partialorder %v113, 0.0
  %vm128 = vcmp.gt.f32.partialorder %v116, 0.0
  %vm129 = vcmp.gt.f32.partialorder %v121, 0.0
  %vm130 = vcmp.gt.f32.partialorder %v124, 0.0
  %v131 = vmin.f32 %v113, 0.0
  %v132 = vmin.f32 %v116, 0.0
  %v133 = vmin.f32 %v121, 0.0
  %v134 = vmin.f32 %v124, 0.0
  %v135 = vmul.f32 %v131, 1.442695
  %v136 = vpow.pop %v135
  %v137 = vmul.f32 %v132, 1.442695
  %v138 = vpow.pop %v137
  %v139 = vmul.f32 %v133, 1.442695
  %v140 = vpow.pop %v139
  %v141 = vmul.f32 %v134, 1.442695
  %v142 = vpow.pop %v141
  %v143 = vsub.f32 %v136, 1.0
  %v144 = vsub.f32 %v138, 1.0
  %v145 = vsub.f32 %v140, 1.0
  %v146 = vsub.f32 %v142, 1.0
  %v147 = vsel %vm127, %v113, %v143
  %v148 = vsel %vm128, %v116, %v144
  %v149 = vsel %vm129, %v121, %v145
  %v150 = vsel %vm130, %v124, %v146
  %v151 = vpack.c.bf16 %v148, %v147
  %v152 = vpack.c.bf16 %v150, %v149
  %v155 = vunpack.c.l.b16 %v151
  %v156 = vunpack.c.h.b16 %v151
  %v157 = vunpack.c.l.b16 %v152
  %v158 = vunpack.c.h.b16 %v152
  %v159 = vpack.c.b16 %v155, %v155
  %v160 = vpack.c.b16 %v156, %v156
  %v161 = vpack.c.b16 %v157, %v157
  %v162 = vpack.c.b16 %v158, %v158
  %vm167 = vcmask 27648
  %168 = vst.msk [vmem:[%s3] sm:$0xf] %vm167, %v159
  %169 = vst.msk [vmem:[%s3 + $0x4] sm:$0xf] %vm167, %v160
  %170 = vst.msk [vmem:[%s3 + $0x8] sm:$0xf] %vm167, %v161
  %171 = vst.msk [vmem:[%s3 + $0xc] sm:$0xf] %vm167, %v162
  // Predicated region
  $region14: #{sqnet_forward.16} parent=0 // pred_check
    _
  $region15: #{sqnet_forward.16} parent=0 // pred_check_branch
    %173 = sbr.rel (0) target = $region17
  $region16: #{sqnet_forward.16} parent=0 // pred_region
    _
  $region17: #{sqnet_forward.16} parent=0 // pred_fallthru
    _
  // Predicated region
  $region18: #{sqnet_forward.16} parent=0 // pred_check
    _
  $region19: #{sqnet_forward.16} parent=0 // pred_check_branch
    %175 = sbr.rel (0) target = $region21
  $region20: #{sqnet_forward.16} parent=0 // pred_region
    _
  $region21: #{sqnet_forward.16} parent=0 // pred_fallthru
    _

// kernel: sqnet_forward.17
$region0: #{sqnet_forward.17}
  #allocation0 [shape = 'u32[]', space=smem, size = 0x4, offset = 0x4, fixed_abs, tag = 'smem constant byte address 0x4 - core index']
  #allocation1 [shape = 'u32[144,128]{1,0:T(1,128)}', space=vmem, size = 0x12000, scoped, tag = 'internal scratch']
  %s0 = inlined_call_operand.vmem [shape: bf16[32,36], index: 0, kind: input, shape index: {}]
  %s1 = inlined_call_operand.vmem [shape: bf16[36,32], index: 1, kind: input, shape index: {}]
  %s2 = inlined_call_operand.vmem [shape: f32[1,32], index: 2, kind: input, shape index: {}]
  %s3 = inlined_call_operand.vmem [shape: bf16[32,32], index: 3, kind: output, shape index: {}]
  %s4 = sld [smem:[#allocation0]]
  $region22: #{sqnet_forward.17} parent=0
    _
  %s6 = ssub.s32 1, %s4
  %s7 = scalar_select 0, %s6, %s4
  // Predicated region
  $region2: #{sqnet_forward.17} parent=0 // pred_check
    _
  $region3: #{sqnet_forward.17} parent=0 // pred_check_branch
    %9 = sbr.rel (0) target = $region5
  $region4: #{sqnet_forward.17} parent=0 // pred_region
    _
  $region5: #{sqnet_forward.17} parent=0 // pred_fallthru
    _
  // Predicated region
  $region6: #{sqnet_forward.17} parent=0 // pred_check
    _
  $region7: #{sqnet_forward.17} parent=0 // pred_check_branch
    %11 = sbr.rel (0) target = $region9
  $region8: #{sqnet_forward.17} parent=0 // pred_region
    _
  $region9: #{sqnet_forward.17} parent=0 // pred_fallthru
    _
  // Predicated region
  $region10: #{sqnet_forward.17} parent=0 // pred_check
    _
  $region11: #{sqnet_forward.17} parent=0 // pred_check_branch
    %13 = sbr.rel (0) target = $region13
  $region12: #{sqnet_forward.17} parent=0 // pred_region
    _
  $region13: #{sqnet_forward.17} parent=0 // pred_fallthru
    _
  %v15 = vld [vmem:[%s0] sm:$0xf]
  %v16 = vld [vmem:[%s0 + $0x4] sm:$0xf]
  %v17 = vld [vmem:[%s0 + $0x8] sm:$0xf]
  %v18 = vld [vmem:[%s0 + $0xc] sm:$0xf]
  %v19 = vld [vmem:[%s1] sm:$0xf]
  %v20 = vld [vmem:[%s1 + $0x4] sm:$0xf]
  %v21 = vld [vmem:[%s1 + $0x8] sm:$0xf]
  %v22 = vld [vmem:[%s1 + $0xc] sm:$0xf]
  %v23 = vld [vmem:[%s1 + $0x10] sm:$0x3]
  %v24 = vld [vmem:[%s2] sm:$0x1]
  %v26 = vlaneseq
  %v27 = vshrl.u32 %v26, 7
  %v28 = vsub.s32 0, %v27
  %v29 = vrot.slane %v24, %v28
  %v35 = vunpack.c.l.b16 %v15
  %v36 = vunpack.c.l.b16 %v16
  %v37 = vunpack.c.l.b16 %v17
  %v38 = vunpack.c.l.b16 %v18
  %v39 = vpack.c.b16 %v36, %v35
  %v40 = vpack.c.b16 %v38, %v37
  %v46 = vunpack.c.l.b16 %v19
  %v47 = vunpack.c.l.b16 %v20
  %v48 = vunpack.c.l.b16 %v21
  %v49 = vunpack.c.l.b16 %v22
  %v50 = vunpack.c.l.b16 %v23
  %v51 = vpack.c.b16 %v47, %v46
  %v52 = vpack.c.b16 %v49, %v48
  %v53 = vpack.c.b16 %v50, %v50
  %vm56 = vcmask 293888
  %v58 = vsel %vm56, %v39, 0
  %v61 = vsel %vm56, %v40, 0
  %vm63 = vcmask 1041408
  %v65 = vsel %vm63, %v53, 0
  %67 = vmatprep.subr.bf16.mxu0 0
  %68 = vmatpush1.bf16.msra.mxu0 %v51
  %69 = vmatprep.subr.bf16.mxu0 0
  %70 = vmatpush1.bf16.msra.mxu0 %v52
  %71 = vmatprep.subr.bf16.mxu0 0
  %72 = vmatpush1.bf16.msra.mxu0 %v65
  %73 = vmatprep.subr.bf16.mxu0 0
  %74 = vmatpush1.bf16.msra.mxu0 0
  %75 = vmatprep.subr.bf16.mxu0 0
  %76 = vmatpush1.bf16.msra.mxu0 0
  %77 = vmatprep.subr.bf16.mxu0 0
  %78 = vmatpush1.bf16.msra.mxu0 0
  %79 = vmatprep.subr.bf16.mxu0 0
  %80 = vmatpush1.bf16.msra.mxu0 0
  %81 = vmatprep.subr.bf16.mxu0 0
  %82 = vmatpush1.bf16.msra.mxu0 0
  %83 = vmatprep.subr.bf16.mxu0 0
  %84 = vmatpush1.bf16.msra.mxu0 0
  %85 = vmatprep.subr.bf16.mxu0 0
  %86 = vmatpush1.bf16.msra.mxu0 0
  %87 = vmatprep.subr.bf16.mxu0 0
  %88 = vmatpush1.bf16.msra.mxu0 0
  %89 = vmatprep.subr.bf16.mxu0 0
  %90 = vmatpush1.bf16.msra.mxu0 0
  %91 = vmatprep.subr.bf16.mxu0 0
  %92 = vmatpush1.bf16.msra.mxu0 0
  %93 = vmatprep.subr.bf16.mxu0 0
  %94 = vmatpush1.bf16.msra.mxu0 0
  %95 = vmatprep.subr.bf16.mxu0 0
  %96 = vmatpush1.bf16.msra.mxu0 0
  %97 = vmatprep.subr.bf16.mxu0 0
  %98 = vmatpush1.bf16.msra.mxu0 0
  %99 = vmatprep.mubr.bf16.mxu0 0
  %100 = vmatmul.mubr.bf16.gmra.mrb[0].mxu0 %v58
  %v101 = vpop.f32.mrb[0].mxu0
  %v102 = vadd.f32 %v29, %v101
  %v103 = vpop.f32.mrb[0].mxu0
  %v104 = vpop.f32.mrb[0].mxu0
  %v105 = vadd.f32 %v29, %v104
  %v106 = vpop.f32.mrb[0].mxu0
  %107 = vmatprep.mubr.bf16.mxu0 0
  %108 = vmatmul.mubr.bf16.gmra.mrb[0].mxu0 %v61
  %v109 = vpop.f32.mrb[0].mxu0
  %v110 = vadd.f32 %v29, %v109
  %v111 = vpop.f32.mrb[0].mxu0
  %v112 = vpop.f32.mrb[0].mxu0
  %v113 = vadd.f32 %v29, %v112
  %v114 = vpop.f32.mrb[0].mxu0
  %115 = vdwg.mxu0
  %vm116 = vcmp.gt.f32.partialorder %v102, 0.0
  %vm117 = vcmp.gt.f32.partialorder %v105, 0.0
  %vm118 = vcmp.gt.f32.partialorder %v110, 0.0
  %vm119 = vcmp.gt.f32.partialorder %v113, 0.0
  %v120 = vmin.f32 %v102, 0.0
  %v121 = vmin.f32 %v105, 0.0
  %v122 = vmin.f32 %v110, 0.0
  %v123 = vmin.f32 %v113, 0.0
  %v124 = vmul.f32 %v120, 1.442695
  %v125 = vpow.pop %v124
  %v126 = vmul.f32 %v121, 1.442695
  %v127 = vpow.pop %v126
  %v128 = vmul.f32 %v122, 1.442695
  %v129 = vpow.pop %v128
  %v130 = vmul.f32 %v123, 1.442695
  %v131 = vpow.pop %v130
  %v132 = vsub.f32 %v125, 1.0
  %v133 = vsub.f32 %v127, 1.0
  %v134 = vsub.f32 %v129, 1.0
  %v135 = vsub.f32 %v131, 1.0
  %v136 = vsel %vm116, %v102, %v132
  %v137 = vsel %vm117, %v105, %v133
  %v138 = vsel %vm118, %v110, %v134
  %v139 = vsel %vm119, %v113, %v135
  %v140 = vpack.c.bf16 %v137, %v136
  %v141 = vpack.c.bf16 %v139, %v138
  %v144 = vunpack.c.l.b16 %v140
  %v145 = vunpack.c.h.b16 %v140
  %v146 = vunpack.c.l.b16 %v141
  %v147 = vunpack.c.h.b16 %v141
  %v148 = vpack.c.b16 %v144, %v144
  %v149 = vpack.c.b16 %v145, %v145
  %v150 = vpack.c.b16 %v146, %v146
  %v151 = vpack.c.b16 %v147, %v147
  %vm156 = vcmask 257024
  %157 = vst.msk [vmem:[%s3] sm:$0xf] %vm156, %v148
  %158 = vst.msk [vmem:[%s3 + $0x4] sm:$0xf] %vm156, %v149
  %159 = vst.msk [vmem:[%s3 + $0x8] sm:$0xf] %vm156, %v150
  %160 = vst.msk [vmem:[%s3 + $0xc] sm:$0xf] %vm156, %v151
  // Predicated region
  $region14: #{sqnet_forward.17} parent=0 // pred_check
    _
  $region15: #{sqnet_forward.17} parent=0 // pred_check_branch
    %162 = sbr.rel (0) target = $region17
  $region16: #{sqnet_forward.17} parent=0 // pred_region
    _
  $region17: #{sqnet_forward.17} parent=0 // pred_fallthru
    _
  // Predicated region
  $region18: #{sqnet_forward.17} parent=0 // pred_check
    _
  $region19: #{sqnet_forward.17} parent=0 // pred_check_branch
    %164 = sbr.rel (0) target = $region21
  $region20: #{sqnet_forward.17} parent=0 // pred_region
    _
  $region21: #{sqnet_forward.17} parent=0 // pred_fallthru
    _

// kernel: sqnet_forward.18
$region0: #{sqnet_forward.18}
  #allocation0 [shape = 'u32[]', space=smem, size = 0x4, offset = 0x4, fixed_abs, tag = 'smem constant byte address 0x4 - core index']
  #allocation1 [shape = 'u32[144,128]{1,0:T(1,128)}', space=vmem, size = 0x12000, scoped, tag = 'internal scratch']
  %s0 = inlined_call_operand.vmem [shape: bf16[4,32,288], index: 0, kind: input, shape index: {}]
  %s1 = inlined_call_operand.vmem [shape: bf16[4,288,32], index: 1, kind: input, shape index: {}]
  %s2 = inlined_call_operand.vmem [shape: f32[4,1,32], index: 2, kind: input, shape index: {}]
  %s3 = inlined_call_operand.vmem [shape: bf16[32,32], index: 3, kind: output, shape index: {}]
  %s4 = sld [smem:[#allocation0]]
  $region22: #{sqnet_forward.18} parent=0
    _
  %s6 = ssub.s32 1, %s4
  %s7 = scalar_select 0, %s6, %s4
  // Predicated region
  $region2: #{sqnet_forward.18} parent=0 // pred_check
    _
  $region3: #{sqnet_forward.18} parent=0 // pred_check_branch
    %9 = sbr.rel (0) target = $region5
  $region4: #{sqnet_forward.18} parent=0 // pred_region
    _
  $region5: #{sqnet_forward.18} parent=0 // pred_fallthru
    _
  // Predicated region
  $region6: #{sqnet_forward.18} parent=0 // pred_check
    _
  $region7: #{sqnet_forward.18} parent=0 // pred_check_branch
    %11 = sbr.rel (0) target = $region9
  $region8: #{sqnet_forward.18} parent=0 // pred_region
    _
  $region9: #{sqnet_forward.18} parent=0 // pred_fallthru
    _
  // Predicated region
  $region10: #{sqnet_forward.18} parent=0 // pred_check
    _
  $region11: #{sqnet_forward.18} parent=0 // pred_check_branch
    %13 = sbr.rel (0) target = $region13
  $region12: #{sqnet_forward.18} parent=0 // pred_region
    _
  $region13: #{sqnet_forward.18} parent=0 // pred_fallthru
    _
  %v15 = vld [vmem:[%s0] sm:$0xff]
  %v16 = vld [vmem:[%s0 + $0x8] sm:$0xf]
  %v17 = vld [vmem:[%s0 + $0xc] sm:$0xff]
  %v18 = vld [vmem:[%s0 + $0x14] sm:$0xf]
  %v19 = vld [vmem:[%s0 + $0x18] sm:$0xff]
  %v20 = vld [vmem:[%s0 + $0x20] sm:$0xf]
  %v21 = vld [vmem:[%s0 + $0x24] sm:$0xff]
  %v22 = vld [vmem:[%s0 + $0x2c] sm:$0xf]
  %v23 = vld [vmem:[%s1] sm:$0xf]
  %v24 = vld [vmem:[%s1 + $0x4] sm:$0xf]
  %v25 = vld [vmem:[%s1 + $0x8] sm:$0xf]
  %v26 = vld [vmem:[%s1 + $0xc] sm:$0xf]
  %v27 = vld [vmem:[%s1 + $0x10] sm:$0xf]
  %v28 = vld [vmem:[%s1 + $0x14] sm:$0xf]
  %v29 = vld [vmem:[%s1 + $0x18] sm:$0xf]
  %v30 = vld [vmem:[%s1 + $0x1c] sm:$0xf]
  %v31 = vld [vmem:[%s1 + $0x20] sm:$0xf]
  %v32 = vld [vmem:[%s1 + $0x24] sm:$0xf]
  %v33 = vld [vmem:[%s1 + $0x28] sm:$0xf]
  %v34 = vld [vmem:[%s1 + $0x2c] sm:$0xf]
  %v35 = vld [vmem:[%s1 + $0x30] sm:$0xf]
  %v36 = vld [vmem:[%s1 + $0x34] sm:$0xf]
  %v37 = vld [vmem:[%s1 + $0x38] sm:$0xf]
  %v38 = vld [vmem:[%s1 + $0x3c] sm:$0xf]
  %v39 = vld [vmem:[%s1 + $0x40] sm:$0xf]
  %v40 = vld [vmem:[%s1 + $0x44] sm:$0xf]
  %v41 = vld [vmem:[%s1 + $0x48] sm:$0xf]
  %v42 = vld [vmem:[%s1 + $0x4c] sm:$0xf]
  %v43 = vld [vmem:[%s1 + $0x50] sm:$0xf]
  %v44 = vld [vmem:[%s1 + $0x54] sm:$0xf]
  %v45 = vld [vmem:[%s1 + $0x58] sm:$0xf]
  %v46 = vld [vmem:[%s1 + $0x5c] sm:$0xf]
  %v47 = vld [vmem:[%s1 + $0x60] sm:$0xf]
  %v48 = vld [vmem:[%s1 + $0x64] sm:$0xf]
  %v49 = vld [vmem:[%s1 + $0x68] sm:$0xf]
  %v50 = vld [vmem:[%s1 + $0x6c] sm:$0xf]
  %v51 = vld [vmem:[%s1 + $0x70] sm:$0xf]
  %v52 = vld [vmem:[%s1 + $0x74] sm:$0xf]
  %v53 = vld [vmem:[%s1 + $0x78] sm:$0xf]
  %v54 = vld [vmem:[%s1 + $0x7c] sm:$0xf]
  %v55 = vld [vmem:[%s1 + $0x80] sm:$0xf]
  %v56 = vld [vmem:[%s1 + $0x84] sm:$0xf]
  %v57 = vld [vmem:[%s1 + $0x88] sm:$0xf]
  %v58 = vld [vmem:[%s1 + $0x8c] sm:$0xf]
  %v59 = vld [vmem:[%s2] sm:$0x1]
  %v61 = vlaneseq
  %v62 = vshrl.u32 %v61, 7
  %v63 = vsub.s32 0, %v62
  %v64 = vrot.slane %v59, %v63
  %v74 = vunpack.c.l.b16 %v15
  %v75 = vunpack.c.h.b16 %v15
  %v76 = vunpack.c.l.b16 %v16
  %v77 = vunpack.c.l.b16 %v17
  %v78 = vunpack.c.h.b16 %v17
  %v79 = vunpack.c.l.b16 %v18
  %v80 = vunpack.c.l.b16 %v19
  %v81 = vunpack.c.h.b16 %v19
  %v82 = vunpack.c.l.b16 %v20
  %v83 = vunpack.c.l.b16 %v21
  %v84 = vunpack.c.h.b16 %v21
  %v85 = vunpack.c.l.b16 %v22
  %v86 = vpack.c.b16 %v77, %v74
  %v87 = vpack.c.b16 %v78, %v75
  %v88 = vpack.c.b16 %v79, %v76
  %v89 = vpack.c.b16 %v83, %v80
  %v90 = vpack.c.b16 %v84, %v81
  %v91 = vpack.c.b16 %v85, %v82
  %v132 = vunpack.c.l.b16 %v23
  %v133 = vunpack.c.l.b16 %v24
  %v134 = vunpack.c.l.b16 %v25
  %v135 = vunpack.c.l.b16 %v26
  %v136 = vunpack.c.l.b16 %v27
  %v137 = vunpack.c.l.b16 %v28
  %v138 = vunpack.c.l.b16 %v29
  %v139 = vunpack.c.l.b16 %v30
  %v140 = vunpack.c.l.b16 %v31
  %v141 = vunpack.c.l.b16 %v32
  %v142 = vunpack.c.l.b16 %v33
  %v143 = vunpack.c.l.b16 %v34
  %v144 = vunpack.c.l.b16 %v35
  %v145 = vunpack.c.l.b16 %v36
  %v146 = vunpack.c.l.b16 %v37
  %v147 = vunpack.c.l.b16 %v38
  %v148 = vunpack.c.l.b16 %v39
  %v149 = vunpack.c.l.b16 %v40
  %v150 = vunpack.c.l.b16 %v41
  %v151 = vunpack.c.l.b16 %v42
  %v152 = vunpack.c.l.b16 %v43
  %v153 = vunpack.c.l.b16 %v44
  %v154 = vunpack.c.l.b16 %v45
  %v155 = vunpack.c.l.b16 %v46
  %v156 = vunpack.c.l.b16 %v47
  %v157 = vunpack.c.l.b16 %v48
  %v158 = vunpack.c.l.b16 %v49
  %v159 = vunpack.c.l.b16 %v50
  %v160 = vunpack.c.l.b16 %v51
  %v161 = vunpack.c.l.b16 %v52
  %v162 = vunpack.c.l.b16 %v53
  %v163 = vunpack.c.l.b16 %v54
  %v164 = vunpack.c.l.b16 %v55
  %v165 = vunpack.c.l.b16 %v56
  %v166 = vunpack.c.l.b16 %v57
  %v167 = vunpack.c.l.b16 %v58
  %v168 = vpack.c.b16 %v133, %v132
  %v169 = vpack.c.b16 %v135, %v134
  %v170 = vpack.c.b16 %v137, %v136
  %v171 = vpack.c.b16 %v139, %v138
  %v172 = vpack.c.b16 %v141, %v140
  %v173 = vpack.c.b16 %v143, %v142
  %v174 = vpack.c.b16 %v145, %v144
  %v175 = vpack.c.b16 %v147, %v146
  %v176 = vpack.c.b16 %v149, %v148
  %v177 = vpack.c.b16 %v151, %v150
  %v178 = vpack.c.b16 %v153, %v152
  %v179 = vpack.c.b16 %v155, %v154
  %v180 = vpack.c.b16 %v157, %v156
  %v181 = vpack.c.b16 %v159, %v158
  %v182 = vpack.c.b16 %v161, %v160
  %v183 = vpack.c.b16 %v163, %v162
  %v184 = vpack.c.b16 %v165, %v164
  %v185 = vpack.c.b16 %v167, %v166
  %vm204 = vcmask 261120
  %v206 = vsel %vm204, %v88, 0
  %v209 = vsel %vm204, %v91, 0
  %211 = vmatprep.subr.bf16.mxu0 0
  %212 = vmatpush1.bf16.msra.mxu0 %v168
  %213 = vmatprep.subr.bf16.mxu0 0
  %214 = vmatpush1.bf16.msra.mxu0 %v169
  %215 = vmatprep.subr.bf16.mxu0 0
  %216 = vmatpush1.bf16.msra.mxu0 %v170
  %217 = vmatprep.subr.bf16.mxu0 0
  %218 = vmatpush1.bf16.msra.mxu0 %v171
  %219 = vmatprep.subr.bf16.mxu0 0
  %220 = vmatpush1.bf16.msra.mxu0 %v172
  %221 = vmatprep.subr.bf16.mxu0 0
  %222 = vmatpush1.bf16.msra.mxu0 %v173
  %223 = vmatprep.subr.bf16.mxu0 0
  %224 = vmatpush1.bf16.msra.mxu0 %v174
  %225 = vmatprep.subr.bf16.mxu0 0
  %226 = vmatpush1.bf16.msra.mxu0 %v175
  %227 = vmatprep.subr.bf16.mxu0 0
  %228 = vmatpush1.bf16.msra.mxu0 %v176
  %229 = vmatprep.subr.bf16.mxu0 0
  %230 = vmatpush1.bf16.msra.mxu0 %v177
  %231 = vmatprep.subr.bf16.mxu0 0
  %232 = vmatpush1.bf16.msra.mxu0 %v178
  %233 = vmatprep.subr.bf16.mxu0 0
  %234 = vmatpush1.bf16.msra.mxu0 %v179
  %235 = vmatprep.subr.bf16.mxu0 0
  %236 = vmatpush1.bf16.msra.mxu0 %v180
  %237 = vmatprep.subr.bf16.mxu0 0
  %238 = vmatpush1.bf16.msra.mxu0 %v181
  %239 = vmatprep.subr.bf16.mxu0 0
  %240 = vmatpush1.bf16.msra.mxu0 %v182
  %241 = vmatprep.subr.bf16.mxu0 0
  %242 = vmatpush1.bf16.msra.mxu0 %v183
  %243 = vmatprep.mubr.bf16.mxu0 %v87
  %244 = vmatmul.mubr.bf16.gmra.mrb[0].mxu0 %v86
  %v245 = vpop.f32.mrb[0].mxu0
  %v246 = vadd.f32 %v64, %v245
  %v247 = vpop.f32.mrb[0].mxu0
  %v248 = vpop.f32.mrb[0].mxu0
  %v249 = vadd.f32 %v64, %v248
  %v250 = vpop.f32.mrb[0].mxu0
  %251 = vmatprep.mubr.bf16.mxu0 %v90
  %252 = vmatmul.mubr.bf16.gmra.mrb[0].mxu0 %v89
  %v253 = vpop.f32.mrb[0].mxu0
  %v254 = vadd.f32 %v64, %v253
  %v255 = vpop.f32.mrb[0].mxu0
  %v256 = vpop.f32.mrb[0].mxu0
  %v257 = vadd.f32 %v64, %v256
  %v258 = vpop.f32.mrb[0].mxu0
  %259 = vdwg.mxu0
  %260 = vmatprep.subr.bf16.mxu0 0
  %261 = vmatpush1.bf16.msra.mxu0 %v184
  %262 = vmatprep.subr.bf16.mxu0 0
  %263 = vmatpush1.bf16.msra.mxu0 %v185
  %264 = vmatprep.subr.bf16.mxu0 0
  %265 = vmatpush1.bf16.msra.mxu0 0
  %266 = vmatprep.subr.bf16.mxu0 0
  %267 = vmatpush1.bf16.msra.mxu0 0
  %268 = vmatprep.subr.bf16.mxu0 0
  %269 = vmatpush1.bf16.msra.mxu0 0
  %270 = vmatprep.subr.bf16.mxu0 0
  %271 = vmatpush1.bf16.msra.mxu0 0
  %272 = vmatprep.subr.bf16.mxu0 0
  %273 = vmatpush1.bf16.msra.mxu0 0
  %274 = vmatprep.subr.bf16.mxu0 0
  %275 = vmatpush1.bf16.msra.mxu0 0
  %276 = vmatprep.subr.bf16.mxu0 0
  %277 = vmatpush1.bf16.msra.mxu0 0
  %278 = vmatprep.subr.bf16.mxu0 0
  %279 = vmatpush1.bf16.msra.mxu0 0
  %280 = vmatprep.subr.bf16.mxu0 0
  %281 = vmatpush1.bf16.msra.mxu0 0
  %282 = vmatprep.subr.bf16.mxu0 0
  %283 = vmatpush1.bf16.msra.mxu0 0
  %284 = vmatprep.subr.bf16.mxu0 0
  %285 = vmatpush1.bf16.msra.mxu0 0
  %286 = vmatprep.subr.bf16.mxu0 0
  %287 = vmatpush1.bf16.msra.mxu0 0
  %288 = vmatprep.subr.bf16.mxu0 0
  %289 = vmatpush1.bf16.msra.mxu0 0
  %290 = vmatprep.subr.bf16.mxu0 0
  %291 = vmatpush1.bf16.msra.mxu0 0
  %292 = vmatprep.mubr.bf16.mxu0 0
  %293 = vmatmul.mubr.bf16.gmra.mrb[0].mxu0 %v206
  %v294 = vpop.f32.mrb[0].mxu0
  %v295 = vadd.f32 %v246, %v294
  %v296 = vpop.f32.mrb[0].mxu0
  %v297 = vpop.f32.mrb[0].mxu0
  %v298 = vadd.f32 %v249, %v297
  %v299 = vpop.f32.mrb[0].mxu0
  %300 = vmatprep.mubr.bf16.mxu0 0
  %301 = vmatmul.mubr.bf16.gmra.mrb[0].mxu0 %v209
  %v302 = vpop.f32.mrb[0].mxu0
  %v303 = vadd.f32 %v254, %v302
  %v304 = vpop.f32.mrb[0].mxu0
  %v305 = vpop.f32.mrb[0].mxu0
  %v306 = vadd.f32 %v257, %v305
  %v307 = vpop.f32.mrb[0].mxu0
  %308 = vdwg.mxu0
  %vm309 = vcmp.gt.f32.partialorder %v295, 0.0
  %vm310 = vcmp.gt.f32.partialorder %v298, 0.0
  %vm311 = vcmp.gt.f32.partialorder %v303, 0.0
  %vm312 = vcmp.gt.f32.partialorder %v306, 0.0
  %v313 = vmin.f32 %v295, 0.0
  %v314 = vmin.f32 %v298, 0.0
  %v315 = vmin.f32 %v303, 0.0
  %v316 = vmin.f32 %v306, 0.0
  %v317 = vmul.f32 %v313, 1.442695
  %v318 = vpow.pop %v317
  %v319 = vmul.f32 %v314, 1.442695
  %v320 = vpow.pop %v319
  %v321 = vmul.f32 %v315, 1.442695
  %v322 = vpow.pop %v321
  %v323 = vmul.f32 %v316, 1.442695
  %v324 = vpow.pop %v323
  %v325 = vsub.f32 %v318, 1.0
  %v326 = vsub.f32 %v320, 1.0
  %v327 = vsub.f32 %v322, 1.0
  %v328 = vsub.f32 %v324, 1.0
  %v329 = vsel %vm309, %v295, %v325
  %v330 = vsel %vm310, %v298, %v326
  %v331 = vsel %vm311, %v303, %v327
  %v332 = vsel %vm312, %v306, %v328
  %s333 = scalar_lea.vmem %s0, 48
  %v334 = vld [vmem:[%s333] sm:$0xff]
  %v335 = vld [vmem:[%s333 + $0x8] sm:$0xf]
  %v336 = vld [vmem:[%s333 + $0xc] sm:$0xff]
  %v337 = vld [vmem:[%s333 + $0x14] sm:$0xf]
  %v338 = vld [vmem:[%s333 + $0x18] sm:$0xff]
  %v339 = vld [vmem:[%s333 + $0x20] sm:$0xf]
  %v340 = vld [vmem:[%s333 + $0x24] sm:$0xff]
  %v341 = vld [vmem:[%s333 + $0x2c] sm:$0xf]
  %s342 = scalar_lea.vmem %s1, 144
  %v343 = vld [vmem:[%s342] sm:$0xf]
  %v344 = vld [vmem:[%s342 + $0x4] sm:$0xf]
  %v345 = vld [vmem:[%s342 + $0x8] sm:$0xf]
  %v346 = vld [vmem:[%s342 + $0xc] sm:$0xf]
  %v347 = vld [vmem:[%s342 + $0x10] sm:$0xf]
  %v348 = vld [vmem:[%s342 + $0x14] sm:$0xf]
  %v349 = vld [vmem:[%s342 + $0x18] sm:$0xf]
  %v350 = vld [vmem:[%s342 + $0x1c] sm:$0xf]
  %v351 = vld [vmem:[%s342 + $0x20] sm:$0xf]
  %v352 = vld [vmem:[%s342 + $0x24] sm:$0xf]
  %v353 = vld [vmem:[%s342 + $0x28] sm:$0xf]
  %v354 = vld [vmem:[%s342 + $0x2c] sm:$0xf]
  %v355 = vld [vmem:[%s342 + $0x30] sm:$0xf]
  %v356 = vld [vmem:[%s342 + $0x34] sm:$0xf]
  %v357 = vld [vmem:[%s342 + $0x38] sm:$0xf]
  %v358 = vld [vmem:[%s342 + $0x3c] sm:$0xf]
  %v359 = vld [vmem:[%s342 + $0x40] sm:$0xf]
  %v360 = vld [vmem:[%s342 + $0x44] sm:$0xf]
  %v361 = vld [vmem:[%s342 + $0x48] sm:$0xf]
  %v362 = vld [vmem:[%s342 + $0x4c] sm:$0xf]
  %v363 = vld [vmem:[%s342 + $0x50] sm:$0xf]
  %v364 = vld [vmem:[%s342 + $0x54] sm:$0xf]
  %v365 = vld [vmem:[%s342 + $0x58] sm:$0xf]
  %v366 = vld [vmem:[%s342 + $0x5c] sm:$0xf]
  %v367 = vld [vmem:[%s342 + $0x60] sm:$0xf]
  %v368 = vld [vmem:[%s342 + $0x64] sm:$0xf]
  %v369 = vld [vmem:[%s342 + $0x68] sm:$0xf]
  %v370 = vld [vmem:[%s342 + $0x6c] sm:$0xf]
  %v371 = vld [vmem:[%s342 + $0x70] sm:$0xf]
  %v372 = vld [vmem:[%s342 + $0x74] sm:$0xf]
  %v373 = vld [vmem:[%s342 + $0x78] sm:$0xf]
  %v374 = vld [vmem:[%s342 + $0x7c] sm:$0xf]
  %v375 = vld [vmem:[%s342 + $0x80] sm:$0xf]
  %v376 = vld [vmem:[%s342 + $0x84] sm:$0xf]
  %v377 = vld [vmem:[%s342 + $0x88] sm:$0xf]
  %v378 = vld [vmem:[%s342 + $0x8c] sm:$0xf]
  %s379 = scalar_lea.vmem %s2, 1
  %v380 = vld [vmem:[%s379] sm:$0x1]
  %v382 = vlaneseq
  %v383 = vshrl.u32 %v382, 7
  %v384 = vsub.s32 0, %v383
  %v385 = vrot.slane %v380, %v384
  %v395 = vunpack.c.l.b16 %v334
  %v396 = vunpack.c.h.b16 %v334
  %v397 = vunpack.c.l.b16 %v335
  %v398 = vunpack.c.l.b16 %v336
  %v399 = vunpack.c.h.b16 %v336
  %v400 = vunpack.c.l.b16 %v337
  %v401 = vunpack.c.l.b16 %v338
  %v402 = vunpack.c.h.b16 %v338
  %v403 = vunpack.c.l.b16 %v339
  %v404 = vunpack.c.l.b16 %v340
  %v405 = vunpack.c.h.b16 %v340
  %v406 = vunpack.c.l.b16 %v341
  %v407 = vpack.c.b16 %v398, %v395
  %v408 = vpack.c.b16 %v399, %v396
  %v409 = vpack.c.b16 %v400, %v397
  %v410 = vpack.c.b16 %v404, %v401
  %v411 = vpack.c.b16 %v405, %v402
  %v412 = vpack.c.b16 %v406, %v403
  %v453 = vunpack.c.l.b16 %v343
  %v454 = vunpack.c.l.b16 %v344
  %v455 = vunpack.c.l.b16 %v345
  %v456 = vunpack.c.l.b16 %v346
  %v457 = vunpack.c.l.b16 %v347
  %v458 = vunpack.c.l.b16 %v348
  %v459 = vunpack.c.l.b16 %v349
  %v460 = vunpack.c.l.b16 %v350
  %v461 = vunpack.c.l.b16 %v351
  %v462 = vunpack.c.l.b16 %v352
  %v463 = vunpack.c.l.b16 %v353
  %v464 = vunpack.c.l.b16 %v354
  %v465 = vunpack.c.l.b16 %v355
  %v466 = vunpack.c.l.b16 %v356
  %v467 = vunpack.c.l.b16 %v357
  %v468 = vunpack.c.l.b16 %v358
  %v469 = vunpack.c.l.b16 %v359
  %v470 = vunpack.c.l.b16 %v360
  %v471 = vunpack.c.l.b16 %v361
  %v472 = vunpack.c.l.b16 %v362
  %v473 = vunpack.c.l.b16 %v363
  %v474 = vunpack.c.l.b16 %v364
  %v475 = vunpack.c.l.b16 %v365
  %v476 = vunpack.c.l.b16 %v366
  %v477 = vunpack.c.l.b16 %v367
  %v478 = vunpack.c.l.b16 %v368
  %v479 = vunpack.c.l.b16 %v369
  %v480 = vunpack.c.l.b16 %v370
  %v481 = vunpack.c.l.b16 %v371
  %v482 = vunpack.c.l.b16 %v372
  %v483 = vunpack.c.l.b16 %v373
  %v484 = vunpack.c.l.b16 %v374
  %v485 = vunpack.c.l.b16 %v375
  %v486 = vunpack.c.l.b16 %v376
  %v487 = vunpack.c.l.b16 %v377
  %v488 = vunpack.c.l.b16 %v378
  %v489 = vpack.c.b16 %v454, %v453
  %v490 = vpack.c.b16 %v456, %v455
  %v491 = vpack.c.b16 %v458, %v457
  %v492 = vpack.c.b16 %v460, %v459
  %v493 = vpack.c.b16 %v462, %v461
  %v494 = vpack.c.b16 %v464, %v463
  %v495 = vpack.c.b16 %v466, %v465
  %v496 = vpack.c.b16 %v468, %v467
  %v497 = vpack.c.b16 %v470, %v469
  %v498 = vpack.c.b16 %v472, %v471
  %v499 = vpack.c.b16 %v474, %v473
  %v500 = vpack.c.b16 %v476, %v475
  %v501 = vpack.c.b16 %v478, %v477
  %v502 = vpack.c.b16 %v480, %v479
  %v503 = vpack.c.b16 %v482, %v481
  %v504 = vpack.c.b16 %v484, %v483
  %v505 = vpack.c.b16 %v486, %v485
  %v506 = vpack.c.b16 %v488, %v487
  %v526 = vsel %vm204, %v409, 0
  %v529 = vsel %vm204, %v412, 0
  %531 = vmatprep.subr.bf16.mxu0 0
  %532 = vmatpush1.bf16.msra.mxu0 %v489
  %533 = vmatprep.subr.bf16.mxu0 0
  %534 = vmatpush1.bf16.msra.mxu0 %v490
  %535 = vmatprep.subr.bf16.mxu0 0
  %536 = vmatpush1.bf16.msra.mxu0 %v491
  %537 = vmatprep.subr.bf16.mxu0 0
  %538 = vmatpush1.bf16.msra.mxu0 %v492
  %539 = vmatprep.subr.bf16.mxu0 0
  %540 = vmatpush1.bf16.msra.mxu0 %v493
  %541 = vmatprep.subr.bf16.mxu0 0
  %542 = vmatpush1.bf16.msra.mxu0 %v494
  %543 = vmatprep.subr.bf16.mxu0 0
  %544 = vmatpush1.bf16.msra.mxu0 %v495
  %545 = vmatprep.subr.bf16.mxu0 0
  %546 = vmatpush1.bf16.msra.mxu0 %v496
  %547 = vmatprep.subr.bf16.mxu0 0
  %548 = vmatpush1.bf16.msra.mxu0 %v497
  %549 = vmatprep.subr.bf16.mxu0 0
  %550 = vmatpush1.bf16.msra.mxu0 %v498
  %551 = vmatprep.subr.bf16.mxu0 0
  %552 = vmatpush1.bf16.msra.mxu0 %v499
  %553 = vmatprep.subr.bf16.mxu0 0
  %554 = vmatpush1.bf16.msra.mxu0 %v500
  %555 = vmatprep.subr.bf16.mxu0 0
  %556 = vmatpush1.bf16.msra.mxu0 %v501
  %557 = vmatprep.subr.bf16.mxu0 0
  %558 = vmatpush1.bf16.msra.mxu0 %v502
  %559 = vmatprep.subr.bf16.mxu0 0
  %560 = vmatpush1.bf16.msra.mxu0 %v503
  %561 = vmatprep.subr.bf16.mxu0 0
  %562 = vmatpush1.bf16.msra.mxu0 %v504
  %563 = vmatprep.mubr.bf16.mxu0 %v408
  %564 = vmatmul.mubr.bf16.gmra.mrb[0].mxu0 %v407
  %v565 = vpop.f32.mrb[0].mxu0
  %v566 = vadd.f32 %v385, %v565
  %v567 = vpop.f32.mrb[0].mxu0
  %v568 = vpop.f32.mrb[0].mxu0
  %v569 = vadd.f32 %v385, %v568
  %v570 = vpop.f32.mrb[0].mxu0
  %571 = vmatprep.mubr.bf16.mxu0 %v411
  %572 = vmatmul.mubr.bf16.gmra.mrb[0].mxu0 %v410
  %v573 = vpop.f32.mrb[0].mxu0
  %v574 = vadd.f32 %v385, %v573
  %v575 = vpop.f32.mrb[0].mxu0
  %v576 = vpop.f32.mrb[0].mxu0
  %v577 = vadd.f32 %v385, %v576
  %v578 = vpop.f32.mrb[0].mxu0
  %579 = vdwg.mxu0
  %580 = vmatprep.subr.bf16.mxu0 0
  %581 = vmatpush1.bf16.msra.mxu0 %v505
  %582 = vmatprep.subr.bf16.mxu0 0
  %583 = vmatpush1.bf16.msra.mxu0 %v506
  %584 = vmatprep.subr.bf16.mxu0 0
  %585 = vmatpush1.bf16.msra.mxu0 0
  %586 = vmatprep.subr.bf16.mxu0 0
  %587 = vmatpush1.bf16.msra.mxu0 0
  %588 = vmatprep.subr.bf16.mxu0 0
  %589 = vmatpush1.bf16.msra.mxu0 0
  %590 = vmatprep.subr.bf16.mxu0 0
  %591 = vmatpush1.bf16.msra.mxu0 0
  %592 = vmatprep.subr.bf16.mxu0 0
  %593 = vmatpush1.bf16.msra.mxu0 0
  %594 = vmatprep.subr.bf16.mxu0 0
  %595 = vmatpush1.bf16.msra.mxu0 0
  %596 = vmatprep.subr.bf16.mxu0 0
  %597 = vmatpush1.bf16.msra.mxu0 0
  %598 = vmatprep.subr.bf16.mxu0 0
  %599 = vmatpush1.bf16.msra.mxu0 0
  %600 = vmatprep.subr.bf16.mxu0 0
  %601 = vmatpush1.bf16.msra.mxu0 0
  %602 = vmatprep.subr.bf16.mxu0 0
  %603 = vmatpush1.bf16.msra.mxu0 0
  %604 = vmatprep.subr.bf16.mxu0 0
  %605 = vmatpush1.bf16.msra.mxu0 0
  %606 = vmatprep.subr.bf16.mxu0 0
  %607 = vmatpush1.bf16.msra.mxu0 0
  %608 = vmatprep.subr.bf16.mxu0 0
  %609 = vmatpush1.bf16.msra.mxu0 0
  %610 = vmatprep.subr.bf16.mxu0 0
  %611 = vmatpush1.bf16.msra.mxu0 0
  %612 = vmatprep.mubr.bf16.mxu0 0
  %613 = vmatmul.mubr.bf16.gmra.mrb[0].mxu0 %v526
  %v614 = vpop.f32.mrb[0].mxu0
  %v615 = vadd.f32 %v566, %v614
  %v616 = vpop.f32.mrb[0].mxu0
  %v617 = vpop.f32.mrb[0].mxu0
  %v618 = vadd.f32 %v569, %v617
  %v619 = vpop.f32.mrb[0].mxu0
  %620 = vmatprep.mubr.bf16.mxu0 0
  %621 = vmatmul.mubr.bf16.gmra.mrb[0].mxu0 %v529
  %v622 = vpop.f32.mrb[0].mxu0
  %v623 = vadd.f32 %v574, %v622
  %v624 = vpop.f32.mrb[0].mxu0
  %v625 = vpop.f32.mrb[0].mxu0
  %v626 = vadd.f32 %v577, %v625
  %v627 = vpop.f32.mrb[0].mxu0
  %628 = vdwg.mxu0
  %vm629 = vcmp.gt.f32.partialorder %v615, 0.0
  %vm630 = vcmp.gt.f32.partialorder %v618, 0.0
  %vm631 = vcmp.gt.f32.partialorder %v623, 0.0
  %vm632 = vcmp.gt.f32.partialorder %v626, 0.0
  %v633 = vmin.f32 %v615, 0.0
  %v634 = vmin.f32 %v618, 0.0
  %v635 = vmin.f32 %v623, 0.0
  %v636 = vmin.f32 %v626, 0.0
  %v637 = vmul.f32 %v633, 1.442695
  %v638 = vpow.pop %v637
  %v639 = vmul.f32 %v634, 1.442695
  %v640 = vpow.pop %v639
  %v641 = vmul.f32 %v635, 1.442695
  %v642 = vpow.pop %v641
  %v643 = vmul.f32 %v636, 1.442695
  %v644 = vpow.pop %v643
  %v645 = vsub.f32 %v638, 1.0
  %v646 = vsub.f32 %v640, 1.0
  %v647 = vsub.f32 %v642, 1.0
  %v648 = vsub.f32 %v644, 1.0
  %v649 = vsel %vm629, %v615, %v645
  %v650 = vsel %vm630, %v618, %v646
  %v651 = vsel %vm631, %v623, %v647
  %v652 = vsel %vm632, %v626, %v648
  %v653 = vadd.f32 %v329, %v649
  %v654 = vadd.f32 %v330, %v650
  %v655 = vadd.f32 %v331, %v651
  %v656 = vadd.f32 %v332, %v652
  %s657 = scalar_lea.vmem %s0, 96
  %v658 = vld [vmem:[%s657] sm:$0xff]
  %v659 = vld [vmem:[%s657 + $0x8] sm:$0xf]
  %v660 = vld [vmem:[%s657 + $0xc] sm:$0xff]
  %v661 = vld [vmem:[%s657 + $0x14] sm:$0xf]
  %v662 = vld [vmem:[%s657 + $0x18] sm:$0xff]
  %v663 = vld [vmem:[%s657 + $0x20] sm:$0xf]
  %v664 = vld [vmem:[%s657 + $0x24] sm:$0xff]
  %v665 = vld [vmem:[%s657 + $0x2c] sm:$0xf]
  %s666 = scalar_lea.vmem %s1, 288
  %v667 = vld [vmem:[%s666] sm:$0xf]
  %v668 = vld [vmem:[%s666 + $0x4] sm:$0xf]
  %v669 = vld [vmem:[%s666 + $0x8] sm:$0xf]
  %v670 = vld [vmem:[%s666 + $0xc] sm:$0xf]
  %v671 = vld [vmem:[%s666 + $0x10] sm:$0xf]
  %v672 = vld [vmem:[%s666 + $0x14] sm:$0xf]
  %v673 = vld [vmem:[%s666 + $0x18] sm:$0xf]
  %v674 = vld [vmem:[%s666 + $0x1c] sm:$0xf]
  %v675 = vld [vmem:[%s666 + $0x20] sm:$0xf]
  %v676 = vld [vmem:[%s666 + $0x24] sm:$0xf]
  %v677 = vld [vmem:[%s666 + $0x28] sm:$0xf]
  %v678 = vld [vmem:[%s666 + $0x2c] sm:$0xf]
  %v679 = vld [vmem:[%s666 + $0x30] sm:$0xf]
  %v680 = vld [vmem:[%s666 + $0x34] sm:$0xf]
  %v681 = vld [vmem:[%s666 + $0x38] sm:$0xf]
  %v682 = vld [vmem:[%s666 + $0x3c] sm:$0xf]
  %v683 = vld [vmem:[%s666 + $0x40] sm:$0xf]
  %v684 = vld [vmem:[%s666 + $0x44] sm:$0xf]
  %v685 = vld [vmem:[%s666 + $0x48] sm:$0xf]
  %v686 = vld [vmem:[%s666 + $0x4c] sm:$0xf]
  %v687 = vld [vmem:[%s666 + $0x50] sm:$0xf]
  %v688 = vld [vmem:[%s666 + $0x54] sm:$0xf]
  %v689 = vld [vmem:[%s666 + $0x58] sm:$0xf]
  %v690 = vld [vmem:[%s666 + $0x5c] sm:$0xf]
  %v691 = vld [vmem:[%s666 + $0x60] sm:$0xf]
  %v692 = vld [vmem:[%s666 + $0x64] sm:$0xf]
  %v693 = vld [vmem:[%s666 + $0x68] sm:$0xf]
  %v694 = vld [vmem:[%s666 + $0x6c] sm:$0xf]
  %v695 = vld [vmem:[%s666 + $0x70] sm:$0xf]
  %v696 = vld [vmem:[%s666 + $0x74] sm:$0xf]
  %v697 = vld [vmem:[%s666 + $0x78] sm:$0xf]
  %v698 = vld [vmem:[%s666 + $0x7c] sm:$0xf]
  %v699 = vld [vmem:[%s666 + $0x80] sm:$0xf]
  %v700 = vld [vmem:[%s666 + $0x84] sm:$0xf]
  %v701 = vld [vmem:[%s666 + $0x88] sm:$0xf]
  %v702 = vld [vmem:[%s666 + $0x8c] sm:$0xf]
  %s703 = scalar_lea.vmem %s2, 2
  %v704 = vld [vmem:[%s703] sm:$0x1]
  %v706 = vlaneseq
  %v707 = vshrl.u32 %v706, 7
  %v708 = vsub.s32 0, %v707
  %v709 = vrot.slane %v704, %v708
  %v719 = vunpack.c.l.b16 %v658
  %v720 = vunpack.c.h.b16 %v658
  %v721 = vunpack.c.l.b16 %v659
  %v722 = vunpack.c.l.b16 %v660
  %v723 = vunpack.c.h.b16 %v660
  %v724 = vunpack.c.l.b16 %v661
  %v725 = vunpack.c.l.b16 %v662
  %v726 = vunpack.c.h.b16 %v662
  %v727 = vunpack.c.l.b16 %v663
  %v728 = vunpack.c.l.b16 %v664
  %v729 = vunpack.c.h.b16 %v664
  %v730 = vunpack.c.l.b16 %v665
  %v731 = vpack.c.b16 %v722, %v719
  %v732 = vpack.c.b16 %v723, %v720
  %v733 = vpack.c.b16 %v724, %v721
  %v734 = vpack.c.b16 %v728, %v725
  %v735 = vpack.c.b16 %v729, %v726
  %v736 = vpack.c.b16 %v730, %v727
  %v777 = vunpack.c.l.b16 %v667
  %v778 = vunpack.c.l.b16 %v668
  %v779 = vunpack.c.l.b16 %v669
  %v780 = vunpack.c.l.b16 %v670
  %v781 = vunpack.c.l.b16 %v671
  %v782 = vunpack.c.l.b16 %v672
  %v783 = vunpack.c.l.b16 %v673
  %v784 = vunpack.c.l.b16 %v674
  %v785 = vunpack.c.l.b16 %v675
  %v786 = vunpack.c.l.b16 %v676
  %v787 = vunpack.c.l.b16 %v677
  %v788 = vunpack.c.l.b16 %v678
  %v789 = vunpack.c.l.b16 %v679
  %v790 = vunpack.c.l.b16 %v680
  %v791 = vunpack.c.l.b16 %v681
  %v792 = vunpack.c.l.b16 %v682
  %v793 = vunpack.c.l.b16 %v683
  %v794 = vunpack.c.l.b16 %v684
  %v795 = vunpack.c.l.b16 %v685
  %v796 = vunpack.c.l.b16 %v686
  %v797 = vunpack.c.l.b16 %v687
  %v798 = vunpack.c.l.b16 %v688
  %v799 = vunpack.c.l.b16 %v689
  %v800 = vunpack.c.l.b16 %v690
  %v801 = vunpack.c.l.b16 %v691
  %v802 = vunpack.c.l.b16 %v692
  %v803 = vunpack.c.l.b16 %v693
  %v804 = vunpack.c.l.b16 %v694
  %v805 = vunpack.c.l.b16 %v695
  %v806 = vunpack.c.l.b16 %v696
  %v807 = vunpack.c.l.b16 %v697
  %v808 = vunpack.c.l.b16 %v698
  %v809 = vunpack.c.l.b16 %v699
  %v810 = vunpack.c.l.b16 %v700
  %v811 = vunpack.c.l.b16 %v701
  %v812 = vunpack.c.l.b16 %v702
  %v813 = vpack.c.b16 %v778, %v777
  %v814 = vpack.c.b16 %v780, %v779
  %v815 = vpack.c.b16 %v782, %v781
  %v816 = vpack.c.b16 %v784, %v783
  %v817 = vpack.c.b16 %v786, %v785
  %v818 = vpack.c.b16 %v788, %v787
  %v819 = vpack.c.b16 %v790, %v789
  %v820 = vpack.c.b16 %v792, %v791
  %v821 = vpack.c.b16 %v794, %v793
  %v822 = vpack.c.b16 %v796, %v795
  %v823 = vpack.c.b16 %v798, %v797
  %v824 = vpack.c.b16 %v800, %v799
  %v825 = vpack.c.b16 %v802, %v801
  %v826 = vpack.c.b16 %v804, %v803
  %v827 = vpack.c.b16 %v806, %v805
  %v828 = vpack.c.b16 %v808, %v807
  %v829 = vpack.c.b16 %v810, %v809
  %v830 = vpack.c.b16 %v812, %v811
  %v850 = vsel %vm204, %v733, 0
  %v853 = vsel %vm204, %v736, 0
  %855 = vmatprep.subr.bf16.mxu0 0
  %856 = vmatpush1.bf16.msra.mxu0 %v813
  %857 = vmatprep.subr.bf16.mxu0 0
  %858 = vmatpush1.bf16.msra.mxu0 %v814
  %859 = vmatprep.subr.bf16.mxu0 0
  %860 = vmatpush1.bf16.msra.mxu0 %v815
  %861 = vmatprep.subr.bf16.mxu0 0
  %862 = vmatpush1.bf16.msra.mxu0 %v816
  %863 = vmatprep.subr.bf16.mxu0 0
  %864 = vmatpush1.bf16.msra.mxu0 %v817
  %865 = vmatprep.subr.bf16.mxu0 0
  %866 = vmatpush1.bf16.msra.mxu0 %v818
  %867 = vmatprep.subr.bf16.mxu0 0
  %868 = vmatpush1.bf16.msra.mxu0 %v819
  %869 = vmatprep.subr.bf16.mxu0 0
  %870 = vmatpush1.bf16.msra.mxu0 %v820
  %871 = vmatprep.subr.bf16.mxu0 0
  %872 = vmatpush1.bf16.msra.mxu0 %v821
  %873 = vmatprep.subr.bf16.mxu0 0
  %874 = vmatpush1.bf16.msra.mxu0 %v822
  %875 = vmatprep.subr.bf16.mxu0 0
  %876 = vmatpush1.bf16.msra.mxu0 %v823
  %877 = vmatprep.subr.bf16.mxu0 0
  %878 = vmatpush1.bf16.msra.mxu0 %v824
  %879 = vmatprep.subr.bf16.mxu0 0
  %880 = vmatpush1.bf16.msra.mxu0 %v825
  %881 = vmatprep.subr.bf16.mxu0 0
  %882 = vmatpush1.bf16.msra.mxu0 %v826
  %883 = vmatprep.subr.bf16.mxu0 0
  %884 = vmatpush1.bf16.msra.mxu0 %v827
  %885 = vmatprep.subr.bf16.mxu0 0
  %886 = vmatpush1.bf16.msra.mxu0 %v828
  %887 = vmatprep.mubr.bf16.mxu0 %v732
  %888 = vmatmul.mubr.bf16.gmra.mrb[0].mxu0 %v731
  %v889 = vpop.f32.mrb[0].mxu0
  %v890 = vadd.f32 %v709, %v889
  %v891 = vpop.f32.mrb[0].mxu0
  %v892 = vpop.f32.mrb[0].mxu0
  %v893 = vadd.f32 %v709, %v892
  %v894 = vpop.f32.mrb[0].mxu0
  %895 = vmatprep.mubr.bf16.mxu0 %v735
  %896 = vmatmul.mubr.bf16.gmra.mrb[0].mxu0 %v734
  %v897 = vpop.f32.mrb[0].mxu0
  %v898 = vadd.f32 %v709, %v897
  %v899 = vpop.f32.mrb[0].mxu0
  %v900 = vpop.f32.mrb[0].mxu0
  %v901 = vadd.f32 %v709, %v900
  %v902 = vpop.f32.mrb[0].mxu0
  %903 = vdwg.mxu0
  %904 = vmatprep.subr.bf16.mxu0 0
  %905 = vmatpush1.bf16.msra.mxu0 %v829
  %906 = vmatprep.subr.bf16.mxu0 0
  %907 = vmatpush1.bf16.msra.mxu0 %v830
  %908 = vmatprep.subr.bf16.mxu0 0
  %909 = vmatpush1.bf16.msra.mxu0 0
  %910 = vmatprep.subr.bf16.mxu0 0
  %911 = vmatpush1.bf16.msra.mxu0 0
  %912 = vmatprep.subr.bf16.mxu0 0
  %913 = vmatpush1.bf16.msra.mxu0 0
  %914 = vmatprep.subr.bf16.mxu0 0
  %915 = vmatpush1.bf16.msra.mxu0 0
  %916 = vmatprep.subr.bf16.mxu0 0
  %917 = vmatpush1.bf16.msra.mxu0 0
  %918 = vmatprep.subr.bf16.mxu0 0
  %919 = vmatpush1.bf16.msra.mxu0 0
  %920 = vmatprep.subr.bf16.mxu0 0
  %921 = vmatpush1.bf16.msra.mxu0 0
  %922 = vmatprep.subr.bf16.mxu0 0
  %923 = vmatpush1.bf16.msra.mxu0 0
  %924 = vmatprep.subr.bf16.mxu0 0
  %925 = vmatpush1.bf16.msra.mxu0 0
  %926 = vmatprep.subr.bf16.mxu0 0
  %927 = vmatpush1.bf16.msra.mxu0 0
  %928 = vmatprep.subr.bf16.mxu0 0
  %929 = vmatpush1.bf16.msra.mxu0 0
  %930 = vmatprep.subr.bf16.mxu0 0
  %931 = vmatpush1.bf16.msra.mxu0 0
  %932 = vmatprep.subr.bf16.mxu0 0
  %933 = vmatpush1.bf16.msra.mxu0 0
  %934 = vmatprep.subr.bf16.mxu0 0
  %935 = vmatpush1.bf16.msra.mxu0 0
  %936 = vmatprep.mubr.bf16.mxu0 0
  %937 = vmatmul.mubr.bf16.gmra.mrb[0].mxu0 %v850
  %v938 = vpop.f32.mrb[0].mxu0
  %v939 = vadd.f32 %v890, %v938
  %v940 = vpop.f32.mrb[0].mxu0
  %v941 = vpop.f32.mrb[0].mxu0
  %v942 = vadd.f32 %v893, %v941
  %v943 = vpop.f32.mrb[0].mxu0
  %944 = vmatprep.mubr.bf16.mxu0 0
  %945 = vmatmul.mubr.bf16.gmra.mrb[0].mxu0 %v853
  %v946 = vpop.f32.mrb[0].mxu0
  %v947 = vadd.f32 %v898, %v946
  %v948 = vpop.f32.mrb[0].mxu0
  %v949 = vpop.f32.mrb[0].mxu0
  %v950 = vadd.f32 %v901, %v949
  %v951 = vpop.f32.mrb[0].mxu0
  %952 = vdwg.mxu0
  %vm953 = vcmp.gt.f32.partialorder %v939, 0.0
  %vm954 = vcmp.gt.f32.partialorder %v942, 0.0
  %vm955 = vcmp.gt.f32.partialorder %v947, 0.0
  %vm956 = vcmp.gt.f32.partialorder %v950, 0.0
  %v957 = vmin.f32 %v939, 0.0
  %v958 = vmin.f32 %v942, 0.0
  %v959 = vmin.f32 %v947, 0.0
  %v960 = vmin.f32 %v950, 0.0
  %v961 = vmul.f32 %v957, 1.442695
  %v962 = vpow.pop %v961
  %v963 = vmul.f32 %v958, 1.442695
  %v964 = vpow.pop %v963
  %v965 = vmul.f32 %v959, 1.442695
  %v966 = vpow.pop %v965
  %v967 = vmul.f32 %v960, 1.442695
  %v968 = vpow.pop %v967
  %v969 = vsub.f32 %v962, 1.0
  %v970 = vsub.f32 %v964, 1.0
  %v971 = vsub.f32 %v966, 1.0
  %v972 = vsub.f32 %v968, 1.0
  %v973 = vsel %vm953, %v939, %v969
  %v974 = vsel %vm954, %v942, %v970
  %v975 = vsel %vm955, %v947, %v971
  %v976 = vsel %vm956, %v950, %v972
  %v977 = vadd.f32 %v653, %v973
  %v978 = vadd.f32 %v654, %v974
  %v979 = vadd.f32 %v655, %v975
  %v980 = vadd.f32 %v656, %v976
  %s981 = scalar_lea.vmem %s0, 144
  %v982 = vld [vmem:[%s981] sm:$0xff]
  %v983 = vld [vmem:[%s981 + $0x8] sm:$0xf]
  %v984 = vld [vmem:[%s981 + $0xc] sm:$0xff]
  %v985 = vld [vmem:[%s981 + $0x14] sm:$0xf]
  %v986 = vld [vmem:[%s981 + $0x18] sm:$0xff]
  %v987 = vld [vmem:[%s981 + $0x20] sm:$0xf]
  %v988 = vld [vmem:[%s981 + $0x24] sm:$0xff]
  %v989 = vld [vmem:[%s981 + $0x2c] sm:$0xf]
  %s990 = scalar_lea.vmem %s1, 432
  %v991 = vld [vmem:[%s990] sm:$0xf]
  %v992 = vld [vmem:[%s990 + $0x4] sm:$0xf]
  %v993 = vld [vmem:[%s990 + $0x8] sm:$0xf]
  %v994 = vld [vmem:[%s990 + $0xc] sm:$0xf]
  %v995 = vld [vmem:[%s990 + $0x10] sm:$0xf]
  %v996 = vld [vmem:[%s990 + $0x14] sm:$0xf]
  %v997 = vld [vmem:[%s990 + $0x18] sm:$0xf]
  %v998 = vld [vmem:[%s990 + $0x1c] sm:$0xf]
  %v999 = vld [vmem:[%s990 + $0x20] sm:$0xf]
  %v1000 = vld [vmem:[%s990 + $0x24] sm:$0xf]
  %v1001 = vld [vmem:[%s990 + $0x28] sm:$0xf]
  %v1002 = vld [vmem:[%s990 + $0x2c] sm:$0xf]
  %v1003 = vld [vmem:[%s990 + $0x30] sm:$0xf]
  %v1004 = vld [vmem:[%s990 + $0x34] sm:$0xf]
  %v1005 = vld [vmem:[%s990 + $0x38] sm:$0xf]
  %v1006 = vld [vmem:[%s990 + $0x3c] sm:$0xf]
  %v1007 = vld [vmem:[%s990 + $0x40] sm:$0xf]
  %v1008 = vld [vmem:[%s990 + $0x44] sm:$0xf]
  %v1009 = vld [vmem:[%s990 + $0x48] sm:$0xf]
  %v1010 = vld [vmem:[%s990 + $0x4c] sm:$0xf]
  %v1011 = vld [vmem:[%s990 + $0x50] sm:$0xf]
  %v1012 = vld [vmem:[%s990 + $0x54] sm:$0xf]
  %v1013 = vld [vmem:[%s990 + $0x58] sm:$0xf]
  %v1014 = vld [vmem:[%s990 + $0x5c] sm:$0xf]
  %v1015 = vld [vmem:[%s990 + $0x60] sm:$0xf]
  %v1016 = vld [vmem:[%s990 + $0x64] sm:$0xf]
  %v1017 = vld [vmem:[%s990 + $0x68] sm:$0xf]
  %v1018 = vld [vmem:[%s990 + $0x6c] sm:$0xf]
  %v1019 = vld [vmem:[%s990 + $0x70] sm:$0xf]
  %v1020 = vld [vmem:[%s990 + $0x74] sm:$0xf]
  %v1021 = vld [vmem:[%s990 + $0x78] sm:$0xf]
  %v1022 = vld [vmem:[%s990 + $0x7c] sm:$0xf]
  %v1023 = vld [vmem:[%s990 + $0x80] sm:$0xf]
  %v1024 = vld [vmem:[%s990 + $0x84] sm:$0xf]
  %v1025 = vld [vmem:[%s990 + $0x88] sm:$0xf]
  %v1026 = vld [vmem:[%s990 + $0x8c] sm:$0xf]
  %s1027 = scalar_lea.vmem %s2, 3
  %v1028 = vld [vmem:[%s1027] sm:$0x1]
  %v1030 = vlaneseq
  %v1031 = vshrl.u32 %v1030, 7
  %v1032 = vsub.s32 0, %v1031
  %v1033 = vrot.slane %v1028, %v1032
  %v1043 = vunpack.c.l.b16 %v982
  %v1044 = vunpack.c.h.b16 %v982
  %v1045 = vunpack.c.l.b16 %v983
  %v1046 = vunpack.c.l.b16 %v984
  %v1047 = vunpack.c.h.b16 %v984
  %v1048 = vunpack.c.l.b16 %v985
  %v1049 = vunpack.c.l.b16 %v986
  %v1050 = vunpack.c.h.b16 %v986
  %v1051 = vunpack.c.l.b16 %v987
  %v1052 = vunpack.c.l.b16 %v988
  %v1053 = vunpack.c.h.b16 %v988
  %v1054 = vunpack.c.l.b16 %v989
  %v1055 = vpack.c.b16 %v1046, %v1043
  %v1056 = vpack.c.b16 %v1047, %v1044
  %v1057 = vpack.c.b16 %v1048, %v1045
  %v1058 = vpack.c.b16 %v1052, %v1049
  %v1059 = vpack.c.b16 %v1053, %v1050
  %v1060 = vpack.c.b16 %v1054, %v1051
  %v1101 = vunpack.c.l.b16 %v991
  %v1102 = vunpack.c.l.b16 %v992
  %v1103 = vunpack.c.l.b16 %v993
  %v1104 = vunpack.c.l.b16 %v994
  %v1105 = vunpack.c.l.b16 %v995
  %v1106 = vunpack.c.l.b16 %v996
  %v1107 = vunpack.c.l.b16 %v997
  %v1108 = vunpack.c.l.b16 %v998
  %v1109 = vunpack.c.l.b16 %v999
  %v1110 = vunpack.c.l.b16 %v1000
  %v1111 = vunpack.c.l.b16 %v1001
  %v1112 = vunpack.c.l.b16 %v1002
  %v1113 = vunpack.c.l.b16 %v1003
  %v1114 = vunpack.c.l.b16 %v1004
  %v1115 = vunpack.c.l.b16 %v1005
  %v1116 = vunpack.c.l.b16 %v1006
  %v1117 = vunpack.c.l.b16 %v1007
  %v1118 = vunpack.c.l.b16 %v1008
  %v1119 = vunpack.c.l.b16 %v1009
  %v1120 = vunpack.c.l.b16 %v1010
  %v1121 = vunpack.c.l.b16 %v1011
  %v1122 = vunpack.c.l.b16 %v1012
  %v1123 = vunpack.c.l.b16 %v1013
  %v1124 = vunpack.c.l.b16 %v1014
  %v1125 = vunpack.c.l.b16 %v1015
  %v1126 = vunpack.c.l.b16 %v1016
  %v1127 = vunpack.c.l.b16 %v1017
  %v1128 = vunpack.c.l.b16 %v1018
  %v1129 = vunpack.c.l.b16 %v1019
  %v1130 = vunpack.c.l.b16 %v1020
  %v1131 = vunpack.c.l.b16 %v1021
  %v1132 = vunpack.c.l.b16 %v1022
  %v1133 = vunpack.c.l.b16 %v1023
  %v1134 = vunpack.c.l.b16 %v1024
  %v1135 = vunpack.c.l.b16 %v1025
  %v1136 = vunpack.c.l.b16 %v1026
  %v1137 = vpack.c.b16 %v1102, %v1101
  %v1138 = vpack.c.b16 %v1104, %v1103
  %v1139 = vpack.c.b16 %v1106, %v1105
  %v1140 = vpack.c.b16 %v1108, %v1107
  %v1141 = vpack.c.b16 %v1110, %v1109
  %v1142 = vpack.c.b16 %v1112, %v1111
  %v1143 = vpack.c.b16 %v1114, %v1113
  %v1144 = vpack.c.b16 %v1116, %v1115
  %v1145 = vpack.c.b16 %v1118, %v1117
  %v1146 = vpack.c.b16 %v1120, %v1119
  %v1147 = vpack.c.b16 %v1122, %v1121
  %v1148 = vpack.c.b16 %v1124, %v1123
  %v1149 = vpack.c.b16 %v1126, %v1125
  %v1150 = vpack.c.b16 %v1128, %v1127
  %v1151 = vpack.c.b16 %v1130, %v1129
  %v1152 = vpack.c.b16 %v1132, %v1131
  %v1153 = vpack.c.b16 %v1134, %v1133
  %v1154 = vpack.c.b16 %v1136, %v1135
  %v1174 = vsel %vm204, %v1057, 0
  %v1177 = vsel %vm204, %v1060, 0
  %1179 = vmatprep.subr.bf16.mxu0 0
  %1180 = vmatpush1.bf16.msra.mxu0 %v1137
  %1181 = vmatprep.subr.bf16.mxu0 0
  %1182 = vmatpush1.bf16.msra.mxu0 %v1138
  %1183 = vmatprep.subr.bf16.mxu0 0
  %1184 = vmatpush1.bf16.msra.mxu0 %v1139
  %1185 = vmatprep.subr.bf16.mxu0 0
  %1186 = vmatpush1.bf16.msra.mxu0 %v1140
  %1187 = vmatprep.subr.bf16.mxu0 0
  %1188 = vmatpush1.bf16.msra.mxu0 %v1141
  %1189 = vmatprep.subr.bf16.mxu0 0
  %1190 = vmatpush1.bf16.msra.mxu0 %v1142
  %1191 = vmatprep.subr.bf16.mxu0 0
  %1192 = vmatpush1.bf16.msra.mxu0 %v1143
  %1193 = vmatprep.subr.bf16.mxu0 0
  %1194 = vmatpush1.bf16.msra.mxu0 %v1144
  %1195 = vmatprep.subr.bf16.mxu0 0
  %1196 = vmatpush1.bf16.msra.mxu0 %v1145
  %1197 = vmatprep.subr.bf16.mxu0 0
  %1198 = vmatpush1.bf16.msra.mxu0 %v1146
  %1199 = vmatprep.subr.bf16.mxu0 0
  %1200 = vmatpush1.bf16.msra.mxu0 %v1147
  %1201 = vmatprep.subr.bf16.mxu0 0
  %1202 = vmatpush1.bf16.msra.mxu0 %v1148
  %1203 = vmatprep.subr.bf16.mxu0 0
  %1204 = vmatpush1.bf16.msra.mxu0 %v1149
  %1205 = vmatprep.subr.bf16.mxu0 0
  %1206 = vmatpush1.bf16.msra.mxu0 %v1150
  %1207 = vmatprep.subr.bf16.mxu0 0
  %1208 = vmatpush1.bf16.msra.mxu0 %v1151
  %1209 = vmatprep.subr.bf16.mxu0 0
  %1210 = vmatpush1.bf16.msra.mxu0 %v1152
  %1211 = vmatprep.mubr.bf16.mxu0 %v1056
  %1212 = vmatmul.mubr.bf16.gmra.mrb[0].mxu0 %v1055
  %v1213 = vpop.f32.mrb[0].mxu0
  %v1214 = vadd.f32 %v1033, %v1213
  %v1215 = vpop.f32.mrb[0].mxu0
  %v1216 = vpop.f32.mrb[0].mxu0
  %v1217 = vadd.f32 %v1033, %v1216
  %v1218 = vpop.f32.mrb[0].mxu0
  %1219 = vmatprep.mubr.bf16.mxu0 %v1059
  %1220 = vmatmul.mubr.bf16.gmra.mrb[0].mxu0 %v1058
  %v1221 = vpop.f32.mrb[0].mxu0
  %v1222 = vadd.f32 %v1033, %v1221
  %v1223 = vpop.f32.mrb[0].mxu0
  %v1224 = vpop.f32.mrb[0].mxu0
  %v1225 = vadd.f32 %v1033, %v1224
  %v1226 = vpop.f32.mrb[0].mxu0
  %1227 = vdwg.mxu0
  %1228 = vmatprep.subr.bf16.mxu0 0
  %1229 = vmatpush1.bf16.msra.mxu0 %v1153
  %1230 = vmatprep.subr.bf16.mxu0 0
  %1231 = vmatpush1.bf16.msra.mxu0 %v1154
  %1232 = vmatprep.subr.bf16.mxu0 0
  %1233 = vmatpush1.bf16.msra.mxu0 0
  %1234 = vmatprep.subr.bf16.mxu0 0
  %1235 = vmatpush1.bf16.msra.mxu0 0
  %1236 = vmatprep.subr.bf16.mxu0 0
  %1237 = vmatpush1.bf16.msra.mxu0 0
  %1238 = vmatprep.subr.bf16.mxu0 0
  %1239 = vmatpush1.bf16.msra.mxu0 0
  %1240 = vmatprep.subr.bf16.mxu0 0
  %1241 = vmatpush1.bf16.msra.mxu0 0
  %1242 = vmatprep.subr.bf16.mxu0 0
  %1243 = vmatpush1.bf16.msra.mxu0 0
  %1244 = vmatprep.subr.bf16.mxu0 0
  %1245 = vmatpush1.bf16.msra.mxu0 0
  %1246 = vmatprep.subr.bf16.mxu0 0
  %1247 = vmatpush1.bf16.msra.mxu0 0
  %1248 = vmatprep.subr.bf16.mxu0 0
  %1249 = vmatpush1.bf16.msra.mxu0 0
  %1250 = vmatprep.subr.bf16.mxu0 0
  %1251 = vmatpush1.bf16.msra.mxu0 0
  %1252 = vmatprep.subr.bf16.mxu0 0
  %1253 = vmatpush1.bf16.msra.mxu0 0
  %1254 = vmatprep.subr.bf16.mxu0 0
  %1255 = vmatpush1.bf16.msra.mxu0 0
  %1256 = vmatprep.subr.bf16.mxu0 0
  %1257 = vmatpush1.bf16.msra.mxu0 0
  %1258 = vmatprep.subr.bf16.mxu0 0
  %1259 = vmatpush1.bf16.msra.mxu0 0
  %1260 = vmatprep.mubr.bf16.mxu0 0
  %1261 = vmatmul.mubr.bf16.gmra.mrb[0].mxu0 %v1174
  %v1262 = vpop.f32.mrb[0].mxu0
  %v1263 = vadd.f32 %v1214, %v1262
  %v1264 = vpop.f32.mrb[0].mxu0
  %v1265 = vpop.f32.mrb[0].mxu0
  %v1266 = vadd.f32 %v1217, %v1265
  %v1267 = vpop.f32.mrb[0].mxu0
  %1268 = vmatprep.mubr.bf16.mxu0 0
  %1269 = vmatmul.mubr.bf16.gmra.mrb[0].mxu0 %v1177
  %v1270 = vpop.f32.mrb[0].mxu0
  %v1271 = vadd.f32 %v1222, %v1270
  %v1272 = vpop.f32.mrb[0].mxu0
  %v1273 = vpop.f32.mrb[0].mxu0
  %v1274 = vadd.f32 %v1225, %v1273
  %v1275 = vpop.f32.mrb[0].mxu0
  %1276 = vdwg.mxu0
  %vm1277 = vcmp.gt.f32.partialorder %v1263, 0.0
  %vm1278 = vcmp.gt.f32.partialorder %v1266, 0.0
  %vm1279 = vcmp.gt.f32.partialorder %v1271, 0.0
  %vm1280 = vcmp.gt.f32.partialorder %v1274, 0.0
  %v1281 = vmin.f32 %v1263, 0.0
  %v1282 = vmin.f32 %v1266, 0.0
  %v1283 = vmin.f32 %v1271, 0.0
  %v1284 = vmin.f32 %v1274, 0.0
  %v1285 = vmul.f32 %v1281, 1.442695
  %v1286 = vpow.pop %v1285
  %v1287 = vmul.f32 %v1282, 1.442695
  %v1288 = vpow.pop %v1287
  %v1289 = vmul.f32 %v1283, 1.442695
  %v1290 = vpow.pop %v1289
  %v1291 = vmul.f32 %v1284, 1.442695
  %v1292 = vpow.pop %v1291
  %v1293 = vsub.f32 %v1286, 1.0
  %v1294 = vsub.f32 %v1288, 1.0
  %v1295 = vsub.f32 %v1290, 1.0
  %v1296 = vsub.f32 %v1292, 1.0
  %v1297 = vsel %vm1277, %v1263, %v1293
  %v1298 = vsel %vm1278, %v1266, %v1294
  %v1299 = vsel %vm1279, %v1271, %v1295
  %v1300 = vsel %vm1280, %v1274, %v1296
  %v1301 = vadd.f32 %v977, %v1297
  %v1302 = vadd.f32 %v978, %v1298
  %v1303 = vadd.f32 %v979, %v1299
  %v1304 = vadd.f32 %v980, %v1300
  %v1305 = vpack.c.bf16 %v1302, %v1301
  %v1306 = vpack.c.bf16 %v1304, %v1303
  %v1309 = vunpack.c.l.b16 %v1305
  %v1310 = vunpack.c.h.b16 %v1305
  %v1311 = vunpack.c.l.b16 %v1306
  %v1312 = vunpack.c.h.b16 %v1306
  %v1313 = vpack.c.b16 %v1309, %v1309
  %v1314 = vpack.c.b16 %v1310, %v1310
  %v1315 = vpack.c.b16 %v1311, %v1311
  %v1316 = vpack.c.b16 %v1312, %v1312
  %vm1321 = vcmask 257024
  %1322 = vst.msk [vmem:[%s3] sm:$0xf] %vm1321, %v1313
  %1323 = vst.msk [vmem:[%s3 + $0x4] sm:$0xf] %vm1321, %v1314
  %1324 = vst.msk [vmem:[%s3 + $0x8] sm:$0xf] %vm1321, %v1315
  %1325 = vst.msk [vmem:[%s3 + $0xc] sm:$0xf] %vm1321, %v1316
  // Predicated region
  $region14: #{sqnet_forward.18} parent=0 // pred_check
    _
  $region15: #{sqnet_forward.18} parent=0 // pred_check_branch
    %1327 = sbr.rel (0) target = $region17
  $region16: #{sqnet_forward.18} parent=0 // pred_region
    _
  $region17: #{sqnet_forward.18} parent=0 // pred_fallthru
    _
  // Predicated region
  $region18: #{sqnet_forward.18} parent=0 // pred_check
    _
  $region19: #{sqnet_forward.18} parent=0 // pred_check_branch
    %1329 = sbr.rel (0) target = $region21
  $region20: #{sqnet_forward.18} parent=0 // pred_region
    _
  $region21: #{sqnet_forward.18} parent=0 // pred_fallthru
    _

// kernel: tile.18
$region0: #{tile.18}
  #allocation0 [shape = 's32[1]{0}', space=sflag, size = 0x4, scoped, tag = 'scoped memory for tile.18']
  %s0 = inlined_call_operand.vmem [shape: f32[16], index: 0, kind: input, shape index: {}]
  %s1 = inlined_call_operand.vmem [shape: f32[4,16], index: 1, kind: output, shape index: {}]
  // Predicated region
  $region2: #{tile.18} parent=0 // pred_check
    _
  $region3: #{tile.18} parent=0 // pred_check_branch
    %3 = sbr.rel (0) target = $region5
  $region4: #{tile.18} parent=0 // pred_region
    _
  $region5: #{tile.18} parent=0 // pred_fallthru
    _
  %v4 = vld [vmem:[%s0] ss:$0 sm:$0xff]
  %5 = vst [vmem:[%s1] sm:$0xf] %v4

// kernel: tile.19
$region0: #{tile.19}
  %s0 = inlined_call_operand.vmem [shape: f32[4,16], index: 0, kind: input, shape index: {}]
  %s1 = inlined_call_operand.vmem [shape: f32[1,64], index: 1, kind: output, shape index: {}]
  $region1: #{tile.19} parent=0
    #allocation0 [shape = 'u8[4096]{0}', space=vmem, size = 0x1000, scoped, tag = 'scoped mem for output reshape']
    #allocation1 [shape = 'u8[4096]{0}', space=vmem, size = 0x1000, scoped, tag = 'scoped mem for input reshape']
    %s3 = sshllo.u32 0, 4
    %v4 = vld [vmem:[%s0] sm:%s3]
    %5 = vst [vmem:[#allocation1] sm:%s3] %v4
    %v6 = vld [vmem:[#allocation1] sm:$0x1]
    %vm7 = vcmask 130048
    %8 = vst.msk [vmem:[#allocation0] sm:$0x1] %vm7, %v6
    %s9 = scalar_lea.vmem [#allocation1], 3
    %v10 = vld [vmem:[%s9] sm:$0x1]
    %11 = vrot.lane.b32.xlu0 %v10, 48
    %v12 = vpop.permute.xlu0 %11
    %vm13 = vcmask 523648
    %14 = vst.msk [vmem:[#allocation0] sm:$0x1] %vm13, %v12
    %s15 = scalar_lea.vmem [#allocation1], 2
    %v16 = vld [vmem:[%s15] sm:$0x1]
    %17 = vrot.lane.b32.xlu0 %v16, 32
    %v18 = vpop.permute.xlu0 %17
    %vm19 = vcmask 392448
    %20 = vst.msk [vmem:[#allocation0] sm:$0x1] %vm19, %v18
    %s21 = scalar_lea.vmem [#allocation1], 1
    %v22 = vld [vmem:[%s21] sm:$0x1]
    %23 = vrot.lane.b32.xlu0 %v22, 16
    %v24 = vpop.permute.xlu0 %23
    %vm25 = vcmask 261248
    %26 = vst.msk [vmem:[#allocation0] sm:$0x1] %vm25, %v24
    %s28 = sshllo.u32 0, 1
    %v30 = vld [vmem:[#allocation0] sm:%s28]
    %s31 = sshllo.u32 0, 1
    %32 = vst [vmem:[%s1] sm:%s31] %v30

// kernel: sqnet_forward.19
$region0: #{sqnet_forward.19}
  #allocation0 [shape = 'u32[]', space=smem, size = 0x4, offset = 0x4, fixed_abs, tag = 'smem constant byte address 0x4 - core index']
  #allocation1 [shape = 'u32[144,128]{1,0:T(1,128)}', space=vmem, size = 0x12000, scoped, tag = 'internal scratch']
  %s0 = inlined_call_operand.vmem [shape: bf16[32,128], index: 0, kind: input, shape index: {}]
  %s1 = inlined_call_operand.vmem [shape: bf16[128,64], index: 1, kind: input, shape index: {}]
  %s2 = inlined_call_operand.vmem [shape: f32[1,64], index: 2, kind: input, shape index: {}]
  %s3 = inlined_call_operand.vmem [shape: bf16[32,64], index: 3, kind: output, shape index: {}]
  %s4 = sld [smem:[#allocation0]]
  $region22: #{sqnet_forward.19} parent=0
    _
  %s6 = ssub.s32 1, %s4
  %s7 = scalar_select 0, %s6, %s4
  // Predicated region
  $region2: #{sqnet_forward.19} parent=0 // pred_check
    _
  $region3: #{sqnet_forward.19} parent=0 // pred_check_branch
    %9 = sbr.rel (0) target = $region5
  $region4: #{sqnet_forward.19} parent=0 // pred_region
    _
  $region5: #{sqnet_forward.19} parent=0 // pred_fallthru
    _
  // Predicated region
  $region6: #{sqnet_forward.19} parent=0 // pred_check
    _
  $region7: #{sqnet_forward.19} parent=0 // pred_check_branch
    %11 = sbr.rel (0) target = $region9
  $region8: #{sqnet_forward.19} parent=0 // pred_region
    _
  $region9: #{sqnet_forward.19} parent=0 // pred_fallthru
    _
  // Predicated region
  $region10: #{sqnet_forward.19} parent=0 // pred_check
    _
  $region11: #{sqnet_forward.19} parent=0 // pred_check_branch
    %13 = sbr.rel (0) target = $region13
  $region12: #{sqnet_forward.19} parent=0 // pred_region
    _
  $region13: #{sqnet_forward.19} parent=0 // pred_fallthru
    _
  %v15 = vld [vmem:[%s0] sm:$0xf]
  %v16 = vld [vmem:[%s0 + $0x4] sm:$0xf]
  %v17 = vld [vmem:[%s0 + $0x8] sm:$0xf]
  %v18 = vld [vmem:[%s0 + $0xc] sm:$0xf]
  %v19 = vld [vmem:[%s1] sm:$0xf]
  %v20 = vld [vmem:[%s1 + $0x4] sm:$0xf]
  %v21 = vld [vmem:[%s1 + $0x8] sm:$0xf]
  %v22 = vld [vmem:[%s1 + $0xc] sm:$0xf]
  %v23 = vld [vmem:[%s1 + $0x10] sm:$0xf]
  %v24 = vld [vmem:[%s1 + $0x14] sm:$0xf]
  %v25 = vld [vmem:[%s1 + $0x18] sm:$0xf]
  %v26 = vld [vmem:[%s1 + $0x1c] sm:$0xf]
  %v27 = vld [vmem:[%s1 + $0x20] sm:$0xf]
  %v28 = vld [vmem:[%s1 + $0x24] sm:$0xf]
  %v29 = vld [vmem:[%s1 + $0x28] sm:$0xf]
  %v30 = vld [vmem:[%s1 + $0x2c] sm:$0xf]
  %v31 = vld [vmem:[%s1 + $0x30] sm:$0xf]
  %v32 = vld [vmem:[%s1 + $0x34] sm:$0xf]
  %v33 = vld [vmem:[%s1 + $0x38] sm:$0xf]
  %v34 = vld [vmem:[%s1 + $0x3c] sm:$0xf]
  %v35 = vld [vmem:[%s2] sm:$0x1]
  %v37 = vlaneseq
  %v38 = vshrl.u32 %v37, 7
  %v39 = vsub.s32 0, %v38
  %v40 = vrot.slane %v35, %v39
  %v46 = vunpack.c.l.b16 %v15
  %v47 = vunpack.c.l.b16 %v16
  %v48 = vunpack.c.l.b16 %v17
  %v49 = vunpack.c.l.b16 %v18
  %v50 = vpack.c.b16 %v47, %v46
  %v51 = vpack.c.b16 %v49, %v48
  %v70 = vunpack.c.l.b16 %v19
  %v71 = vunpack.c.l.b16 %v20
  %v72 = vunpack.c.l.b16 %v21
  %v73 = vunpack.c.l.b16 %v22
  %v74 = vunpack.c.l.b16 %v23
  %v75 = vunpack.c.l.b16 %v24
  %v76 = vunpack.c.l.b16 %v25
  %v77 = vunpack.c.l.b16 %v26
  %v78 = vunpack.c.l.b16 %v27
  %v79 = vunpack.c.l.b16 %v28
  %v80 = vunpack.c.l.b16 %v29
  %v81 = vunpack.c.l.b16 %v30
  %v82 = vunpack.c.l.b16 %v31
  %v83 = vunpack.c.l.b16 %v32
  %v84 = vunpack.c.l.b16 %v33
  %v85 = vunpack.c.l.b16 %v34
  %v86 = vpack.c.b16 %v71, %v70
  %v87 = vpack.c.b16 %v73, %v72
  %v88 = vpack.c.b16 %v75, %v74
  %v89 = vpack.c.b16 %v77, %v76
  %v90 = vpack.c.b16 %v79, %v78
  %v91 = vpack.c.b16 %v81, %v80
  %v92 = vpack.c.b16 %v83, %v82
  %v93 = vpack.c.b16 %v85, %v84
  %102 = vmatprep.subr.bf16.mxu0 0
  %103 = vmatpush1.bf16.msra.mxu0 %v86
  %104 = vmatprep.subr.bf16.mxu0 0
  %105 = vmatpush1.bf16.msra.mxu0 %v87
  %106 = vmatprep.subr.bf16.mxu0 0
  %107 = vmatpush1.bf16.msra.mxu0 %v88
  %108 = vmatprep.subr.bf16.mxu0 0
  %109 = vmatpush1.bf16.msra.mxu0 %v89
  %110 = vmatprep.subr.bf16.mxu0 0
  %111 = vmatpush1.bf16.msra.mxu0 %v90
  %112 = vmatprep.subr.bf16.mxu0 0
  %113 = vmatpush1.bf16.msra.mxu0 %v91
  %114 = vmatprep.subr.bf16.mxu0 0
  %115 = vmatpush1.bf16.msra.mxu0 %v92
  %116 = vmatprep.subr.bf16.mxu0 0
  %117 = vmatpush1.bf16.msra.mxu0 %v93
  %118 = vmatprep.subr.bf16.mxu0 0
  %119 = vmatpush1.bf16.msra.mxu0 0
  %120 = vmatprep.subr.bf16.mxu0 0
  %121 = vmatpush1.bf16.msra.mxu0 0
  %122 = vmatprep.subr.bf16.mxu0 0
  %123 = vmatpush1.bf16.msra.mxu0 0
  %124 = vmatprep.subr.bf16.mxu0 0
  %125 = vmatpush1.bf16.msra.mxu0 0
  %126 = vmatprep.subr.bf16.mxu0 0
  %127 = vmatpush1.bf16.msra.mxu0 0
  %128 = vmatprep.subr.bf16.mxu0 0
  %129 = vmatpush1.bf16.msra.mxu0 0
  %130 = vmatprep.subr.bf16.mxu0 0
  %131 = vmatpush1.bf16.msra.mxu0 0
  %132 = vmatprep.subr.bf16.mxu0 0
  %133 = vmatpush1.bf16.msra.mxu0 0
  %134 = vmatprep.mubr.bf16.mxu0 0
  %135 = vmatmul.mubr.bf16.gmra.mrb[0].mxu0 %v50
  %v136 = vpop.f32.mrb[0].mxu0
  %v137 = vadd.f32 %v40, %v136
  %v138 = vpop.f32.mrb[0].mxu0
  %v139 = vpop.f32.mrb[0].mxu0
  %v140 = vadd.f32 %v40, %v139
  %v141 = vpop.f32.mrb[0].mxu0
  %142 = vmatprep.mubr.bf16.mxu0 0
  %143 = vmatmul.mubr.bf16.gmra.mrb[0].mxu0 %v51
  %v144 = vpop.f32.mrb[0].mxu0
  %v145 = vadd.f32 %v40, %v144
  %v146 = vpop.f32.mrb[0].mxu0
  %v147 = vpop.f32.mrb[0].mxu0
  %v148 = vadd.f32 %v40, %v147
  %v149 = vpop.f32.mrb[0].mxu0
  %150 = vdwg.mxu0
  %vm151 = vcmp.gt.f32.partialorder %v137, 0.0
  %vm152 = vcmp.gt.f32.partialorder %v140, 0.0
  %vm153 = vcmp.gt.f32.partialorder %v145, 0.0
  %vm154 = vcmp.gt.f32.partialorder %v148, 0.0
  %v155 = vmin.f32 %v137, 0.0
  %v156 = vmin.f32 %v140, 0.0
  %v157 = vmin.f32 %v145, 0.0
  %v158 = vmin.f32 %v148, 0.0
  %v159 = vmul.f32 %v155, 1.442695
  %v160 = vpow.pop %v159
  %v161 = vmul.f32 %v156, 1.442695
  %v162 = vpow.pop %v161
  %v163 = vmul.f32 %v157, 1.442695
  %v164 = vpow.pop %v163
  %v165 = vmul.f32 %v158, 1.442695
  %v166 = vpow.pop %v165
  %v167 = vsub.f32 %v160, 1.0
  %v168 = vsub.f32 %v162, 1.0
  %v169 = vsub.f32 %v164, 1.0
  %v170 = vsub.f32 %v166, 1.0
  %v171 = vsel %vm151, %v137, %v167
  %v172 = vsel %vm152, %v140, %v168
  %v173 = vsel %vm153, %v145, %v169
  %v174 = vsel %vm154, %v148, %v170
  %v175 = vpack.c.bf16 %v172, %v171
  %v176 = vpack.c.bf16 %v174, %v173
  %v179 = vunpack.c.l.b16 %v175
  %v180 = vunpack.c.h.b16 %v175
  %v181 = vunpack.c.l.b16 %v176
  %v182 = vunpack.c.h.b16 %v176
  %v183 = vpack.c.b16 %v179, %v179
  %v184 = vpack.c.b16 %v180, %v180
  %v185 = vpack.c.b16 %v181, %v181
  %v186 = vpack.c.b16 %v182, %v182
  %vm191 = vcmask 519168
  %192 = vst.msk [vmem:[%s3] sm:$0xf] %vm191, %v183
  %193 = vst.msk [vmem:[%s3 + $0x4] sm:$0xf] %vm191, %v184
  %194 = vst.msk [vmem:[%s3 + $0x8] sm:$0xf] %vm191, %v185
  %195 = vst.msk [vmem:[%s3 + $0xc] sm:$0xf] %vm191, %v186
  // Predicated region
  $region14: #{sqnet_forward.19} parent=0 // pred_check
    _
  $region15: #{sqnet_forward.19} parent=0 // pred_check_branch
    %197 = sbr.rel (0) target = $region17
  $region16: #{sqnet_forward.19} parent=0 // pred_region
    _
  $region17: #{sqnet_forward.19} parent=0 // pred_fallthru
    _
  // Predicated region
  $region18: #{sqnet_forward.19} parent=0 // pred_check
    _
  $region19: #{sqnet_forward.19} parent=0 // pred_check_branch
    %199 = sbr.rel (0) target = $region21
  $region20: #{sqnet_forward.19} parent=0 // pred_region
    _
  $region21: #{sqnet_forward.19} parent=0 // pred_fallthru
    _

// kernel: sqnet_forward.20
$region0: #{sqnet_forward.20}
  #allocation0 [shape = 'u32[]', space=smem, size = 0x4, offset = 0x4, fixed_abs, tag = 'smem constant byte address 0x4 - core index']
  #allocation1 [shape = 'u32[144,128]{1,0:T(1,128)}', space=vmem, size = 0x12000, scoped, tag = 'internal scratch']
  %s0 = inlined_call_operand.vmem [shape: bf16[128,144], index: 0, kind: input, shape index: {}]
  %s1 = inlined_call_operand.vmem [shape: bf16[144,16], index: 1, kind: input, shape index: {}]
  %s2 = inlined_call_operand.vmem [shape: f32[1,16], index: 2, kind: input, shape index: {}]
  %s3 = inlined_call_operand.vmem [shape: bf16[128,16], index: 3, kind: output, shape index: {}]
  %s4 = sld [smem:[#allocation0]]
  $region22: #{sqnet_forward.20} parent=0
    _
  %s6 = ssub.s32 1, %s4
  %s7 = scalar_select 0, %s6, %s4
  // Predicated region
  $region2: #{sqnet_forward.20} parent=0 // pred_check
    _
  $region3: #{sqnet_forward.20} parent=0 // pred_check_branch
    %9 = sbr.rel (0) target = $region5
  $region4: #{sqnet_forward.20} parent=0 // pred_region
    _
  $region5: #{sqnet_forward.20} parent=0 // pred_fallthru
    _
  // Predicated region
  $region6: #{sqnet_forward.20} parent=0 // pred_check
    _
  $region7: #{sqnet_forward.20} parent=0 // pred_check_branch
    %11 = sbr.rel (0) target = $region9
  $region8: #{sqnet_forward.20} parent=0 // pred_region
    _
  $region9: #{sqnet_forward.20} parent=0 // pred_fallthru
    _
  // Predicated region
  $region10: #{sqnet_forward.20} parent=0 // pred_check
    _
  $region11: #{sqnet_forward.20} parent=0 // pred_check_branch
    %13 = sbr.rel (0) target = $region13
  $region12: #{sqnet_forward.20} parent=0 // pred_region
    _
  $region13: #{sqnet_forward.20} parent=0 // pred_fallthru
    _
  %v15 = vld [vmem:[%s0] sm:$0xff]
  %v16 = vld [vmem:[%s0 + $0x8] sm:$0xff]
  %v17 = vld [vmem:[%s0 + $0x10] sm:$0xff]
  %v18 = vld [vmem:[%s0 + $0x18] sm:$0xff]
  %v19 = vld [vmem:[%s0 + $0x20] sm:$0xff]
  %v20 = vld [vmem:[%s0 + $0x28] sm:$0xff]
  %v21 = vld [vmem:[%s0 + $0x30] sm:$0xff]
  %v22 = vld [vmem:[%s0 + $0x38] sm:$0xff]
  %v23 = vld [vmem:[%s0 + $0x40] sm:$0xff]
  %v24 = vld [vmem:[%s0 + $0x48] sm:$0xff]
  %v25 = vld [vmem:[%s0 + $0x50] sm:$0xff]
  %v26 = vld [vmem:[%s0 + $0x58] sm:$0xff]
  %v27 = vld [vmem:[%s0 + $0x60] sm:$0xff]
  %v28 = vld [vmem:[%s0 + $0x68] sm:$0xff]
  %v29 = vld [vmem:[%s0 + $0x70] sm:$0xff]
  %v30 = vld [vmem:[%s0 + $0x78] sm:$0xff]
  %v31 = vld [vmem:[%s1] sm:$0xf]
  %v32 = vld [vmem:[%s1 + $0x4] sm:$0xf]
  %v33 = vld [vmem:[%s1 + $0x8] sm:$0xf]
  %v34 = vld [vmem:[%s1 + $0xc] sm:$0xf]
  %v35 = vld [vmem:[%s1 + $0x10] sm:$0xf]
  %v36 = vld [vmem:[%s1 + $0x14] sm:$0xf]
  %v37 = vld [vmem:[%s1 + $0x18] sm:$0xf]
  %v38 = vld [vmem:[%s1 + $0x1c] sm:$0xf]
  %v39 = vld [vmem:[%s1 + $0x20] sm:$0xf]
  %v40 = vld [vmem:[%s1 + $0x24] sm:$0xf]
  %v41 = vld [vmem:[%s1 + $0x28] sm:$0xf]
  %v42 = vld [vmem:[%s1 + $0x2c] sm:$0xf]
  %v43 = vld [vmem:[%s1 + $0x30] sm:$0xf]
  %v44 = vld [vmem:[%s1 + $0x34] sm:$0xf]
  %v45 = vld [vmem:[%s1 + $0x38] sm:$0xf]
  %v46 = vld [vmem:[%s1 + $0x3c] sm:$0xf]
  %v47 = vld [vmem:[%s1 + $0x40] sm:$0xf]
  %v48 = vld [vmem:[%s1 + $0x44] sm:$0xf]
  %v49 = vld [vmem:[%s2] sm:$0x1]
  %v51 = vlaneseq
  %v52 = vshrl.u32 %v51, 7
  %v53 = vsub.s32 0, %v52
  %v54 = vrot.slane %v49, %v53
  %v72 = vunpack.c.l.b16 %v15
  %v73 = vunpack.c.h.b16 %v15
  %v74 = vunpack.c.l.b16 %v16
  %v75 = vunpack.c.h.b16 %v16
  %v76 = vunpack.c.l.b16 %v17
  %v77 = vunpack.c.h.b16 %v17
  %v78 = vunpack.c.l.b16 %v18
  %v79 = vunpack.c.h.b16 %v18
  %v80 = vunpack.c.l.b16 %v19
  %v81 = vunpack.c.h.b16 %v19
  %v82 = vunpack.c.l.b16 %v20
  %v83 = vunpack.c.h.b16 %v20
  %v84 = vunpack.c.l.b16 %v21
  %v85 = vunpack.c.h.b16 %v21
  %v86 = vunpack.c.l.b16 %v22
  %v87 = vunpack.c.h.b16 %v22
  %v88 = vunpack.c.l.b16 %v23
  %v89 = vunpack.c.h.b16 %v23
  %v90 = vunpack.c.l.b16 %v24
  %v91 = vunpack.c.h.b16 %v24
  %v92 = vunpack.c.l.b16 %v25
  %v93 = vunpack.c.h.b16 %v25
  %v94 = vunpack.c.l.b16 %v26
  %v95 = vunpack.c.h.b16 %v26
  %v96 = vunpack.c.l.b16 %v27
  %v97 = vunpack.c.h.b16 %v27
  %v98 = vunpack.c.l.b16 %v28
  %v99 = vunpack.c.h.b16 %v28
  %v100 = vunpack.c.l.b16 %v29
  %v101 = vunpack.c.h.b16 %v29
  %v102 = vunpack.c.l.b16 %v30
  %v103 = vunpack.c.h.b16 %v30
  %v104 = vpack.c.b16 %v74, %v72
  %v105 = vpack.c.b16 %v75, %v73
  %v106 = vpack.c.b16 %v78, %v76
  %v107 = vpack.c.b16 %v79, %v77
  %v108 = vpack.c.b16 %v82, %v80
  %v109 = vpack.c.b16 %v83, %v81
  %v110 = vpack.c.b16 %v86, %v84
  %v111 = vpack.c.b16 %v87, %v85
  %v112 = vpack.c.b16 %v90, %v88
  %v113 = vpack.c.b16 %v91, %v89
  %v114 = vpack.c.b16 %v94, %v92
  %v115 = vpack.c.b16 %v95, %v93
  %v116 = vpack.c.b16 %v98, %v96
  %v117 = vpack.c.b16 %v99, %v97
  %v118 = vpack.c.b16 %v102, %v100
  %v119 = vpack.c.b16 %v103, %v101
  %v146 = vunpack.c.l.b16 %v31
  %v147 = vunpack.c.l.b16 %v32
  %v148 = vunpack.c.l.b16 %v33
  %v149 = vunpack.c.l.b16 %v34
  %v150 = vunpack.c.l.b16 %v35
  %v151 = vunpack.c.l.b16 %v36
  %v152 = vunpack.c.l.b16 %v37
  %v153 = vunpack.c.l.b16 %v38
  %v154 = vunpack.c.l.b16 %v39
  %v155 = vunpack.c.l.b16 %v40
  %v156 = vunpack.c.l.b16 %v41
  %v157 = vunpack.c.l.b16 %v42
  %v158 = vunpack.c.l.b16 %v43
  %v159 = vunpack.c.l.b16 %v44
  %v160 = vunpack.c.l.b16 %v45
  %v161 = vunpack.c.l.b16 %v46
  %v162 = vunpack.c.l.b16 %v47
  %v163 = vunpack.c.l.b16 %v48
  %v164 = vpack.c.b16 %v147, %v146
  %v165 = vpack.c.b16 %v149, %v148
  %v166 = vpack.c.b16 %v151, %v150
  %v167 = vpack.c.b16 %v153, %v152
  %v168 = vpack.c.b16 %v155, %v154
  %v169 = vpack.c.b16 %v157, %v156
  %v170 = vpack.c.b16 %v159, %v158
  %v171 = vpack.c.b16 %v161, %v160
  %v172 = vpack.c.b16 %v163, %v162
  %vm182 = vcmask 130048
  %v184 = vsel %vm182, %v105, 0
  %v187 = vsel %vm182, %v107, 0
  %v190 = vsel %vm182, %v109, 0
  %v193 = vsel %vm182, %v111, 0
  %v196 = vsel %vm182, %v113, 0
  %v199 = vsel %vm182, %v115, 0
  %v202 = vsel %vm182, %v117, 0
  %v205 = vsel %vm182, %v119, 0
  %207 = vmatprep.subr.bf16.mxu0 0
  %208 = vmatpush1.bf16.msra.mxu0 %v164
  %209 = vmatprep.subr.bf16.mxu0 0
  %210 = vmatpush1.bf16.msra.mxu0 %v165
  %211 = vmatprep.subr.bf16.mxu0 0
  %212 = vmatpush1.bf16.msra.mxu0 %v166
  %213 = vmatprep.subr.bf16.mxu0 0
  %214 = vmatpush1.bf16.msra.mxu0 %v167
  %215 = vmatprep.subr.bf16.mxu0 0
  %216 = vmatpush1.bf16.msra.mxu0 %v168
  %217 = vmatprep.subr.bf16.mxu0 0
  %218 = vmatpush1.bf16.msra.mxu0 %v169
  %219 = vmatprep.subr.bf16.mxu0 0
  %220 = vmatpush1.bf16.msra.mxu0 %v170
  %221 = vmatprep.subr.bf16.mxu0 0
  %222 = vmatpush1.bf16.msra.mxu0 %v171
  %223 = vmatprep.subr.bf16.mxu0 0
  %224 = vmatpush1.bf16.msra.mxu0 %v172
  %225 = vmatprep.subr.bf16.mxu0 0
  %226 = vmatpush1.bf16.msra.mxu0 0
  %227 = vmatprep.subr.bf16.mxu0 0
  %228 = vmatpush1.bf16.msra.mxu0 0
  %229 = vmatprep.subr.bf16.mxu0 0
  %230 = vmatpush1.bf16.msra.mxu0 0
  %231 = vmatprep.subr.bf16.mxu0 0
  %232 = vmatpush1.bf16.msra.mxu0 0
  %233 = vmatprep.subr.bf16.mxu0 0
  %234 = vmatpush1.bf16.msra.mxu0 0
  %235 = vmatprep.subr.bf16.mxu0 0
  %236 = vmatpush1.bf16.msra.mxu0 0
  %237 = vmatprep.subr.bf16.mxu0 0
  %238 = vmatpush1.bf16.msra.mxu0 0
  %239 = vmatprep.mubr.bf16.mxu0 %v184
  %240 = vmatmul.mubr.bf16.gmra.mrb[0].mxu0 %v104
  %v241 = vpop.f32.mrb[0].mxu0
  %v242 = vadd.f32 %v54, %v241
  %v243 = vpop.f32.mrb[0].mxu0
  %v244 = vpop.f32.mrb[0].mxu0
  %v245 = vadd.f32 %v54, %v244
  %v246 = vpop.f32.mrb[0].mxu0
  %247 = vmatprep.mubr.bf16.mxu0 %v187
  %248 = vmatmul.mubr.bf16.gmra.mrb[0].mxu0 %v106
  %v249 = vpop.f32.mrb[0].mxu0
  %v250 = vadd.f32 %v54, %v249
  %v251 = vpop.f32.mrb[0].mxu0
  %v252 = vpop.f32.mrb[0].mxu0
  %v253 = vadd.f32 %v54, %v252
  %v254 = vpop.f32.mrb[0].mxu0
  %255 = vmatprep.mubr.bf16.mxu0 %v190
  %256 = vmatmul.mubr.bf16.gmra.mrb[0].mxu0 %v108
  %v257 = vpop.f32.mrb[0].mxu0
  %v258 = vadd.f32 %v54, %v257
  %v259 = vpop.f32.mrb[0].mxu0
  %v260 = vpop.f32.mrb[0].mxu0
  %v261 = vadd.f32 %v54, %v260
  %v262 = vpop.f32.mrb[0].mxu0
  %263 = vmatprep.mubr.bf16.mxu0 %v193
  %264 = vmatmul.mubr.bf16.gmra.mrb[0].mxu0 %v110
  %v265 = vpop.f32.mrb[0].mxu0
  %v266 = vadd.f32 %v54, %v265
  %v267 = vpop.f32.mrb[0].mxu0
  %v268 = vpop.f32.mrb[0].mxu0
  %v269 = vadd.f32 %v54, %v268
  %v270 = vpop.f32.mrb[0].mxu0
  %271 = vmatprep.mubr.bf16.mxu0 %v196
  %272 = vmatmul.mubr.bf16.gmra.mrb[0].mxu0 %v112
  %v273 = vpop.f32.mrb[0].mxu0
  %v274 = vadd.f32 %v54, %v273
  %v275 = vpop.f32.mrb[0].mxu0
  %v276 = vpop.f32.mrb[0].mxu0
  %v277 = vadd.f32 %v54, %v276
  %v278 = vpop.f32.mrb[0].mxu0
  %279 = vmatprep.mubr.bf16.mxu0 %v199
  %280 = vmatmul.mubr.bf16.gmra.mrb[0].mxu0 %v114
  %v281 = vpop.f32.mrb[0].mxu0
  %v282 = vadd.f32 %v54, %v281
  %v283 = vpop.f32.mrb[0].mxu0
  %v284 = vpop.f32.mrb[0].mxu0
  %v285 = vadd.f32 %v54, %v284
  %v286 = vpop.f32.mrb[0].mxu0
  %287 = vmatprep.mubr.bf16.mxu0 %v202
  %288 = vmatmul.mubr.bf16.gmra.mrb[0].mxu0 %v116
  %v289 = vpop.f32.mrb[0].mxu0
  %v290 = vadd.f32 %v54, %v289
  %v291 = vpop.f32.mrb[0].mxu0
  %v292 = vpop.f32.mrb[0].mxu0
  %v293 = vadd.f32 %v54, %v292
  %v294 = vpop.f32.mrb[0].mxu0
  %295 = vmatprep.mubr.bf16.mxu0 %v205
  %296 = vmatmul.mubr.bf16.gmra.mrb[0].mxu0 %v118
  %v297 = vpop.f32.mrb[0].mxu0
  %v298 = vadd.f32 %v54, %v297
  %v299 = vpop.f32.mrb[0].mxu0
  %v300 = vpop.f32.mrb[0].mxu0
  %v301 = vadd.f32 %v54, %v300
  %v302 = vpop.f32.mrb[0].mxu0
  %303 = vdwg.mxu0
  %vm304 = vcmp.gt.f32.partialorder %v242, 0.0
  %vm305 = vcmp.gt.f32.partialorder %v245, 0.0
  %vm306 = vcmp.gt.f32.partialorder %v250, 0.0
  %vm307 = vcmp.gt.f32.partialorder %v253, 0.0
  %vm308 = vcmp.gt.f32.partialorder %v258, 0.0
  %vm309 = vcmp.gt.f32.partialorder %v261, 0.0
  %vm310 = vcmp.gt.f32.partialorder %v266, 0.0
  %vm311 = vcmp.gt.f32.partialorder %v269, 0.0
  %vm312 = vcmp.gt.f32.partialorder %v274, 0.0
  %vm313 = vcmp.gt.f32.partialorder %v277, 0.0
  %vm314 = vcmp.gt.f32.partialorder %v282, 0.0
  %vm315 = vcmp.gt.f32.partialorder %v285, 0.0
  %vm316 = vcmp.gt.f32.partialorder %v290, 0.0
  %vm317 = vcmp.gt.f32.partialorder %v293, 0.0
  %vm318 = vcmp.gt.f32.partialorder %v298, 0.0
  %vm319 = vcmp.gt.f32.partialorder %v301, 0.0
  %v320 = vmin.f32 %v242, 0.0
  %v321 = vmin.f32 %v245, 0.0
  %v322 = vmin.f32 %v250, 0.0
  %v323 = vmin.f32 %v253, 0.0
  %v324 = vmin.f32 %v258, 0.0
  %v325 = vmin.f32 %v261, 0.0
  %v326 = vmin.f32 %v266, 0.0
  %v327 = vmin.f32 %v269, 0.0
  %v328 = vmin.f32 %v274, 0.0
  %v329 = vmin.f32 %v277, 0.0
  %v330 = vmin.f32 %v282, 0.0
  %v331 = vmin.f32 %v285, 0.0
  %v332 = vmin.f32 %v290, 0.0
  %v333 = vmin.f32 %v293, 0.0
  %v334 = vmin.f32 %v298, 0.0
  %v335 = vmin.f32 %v301, 0.0
  %v336 = vmul.f32 %v320, 1.442695
  %v337 = vpow.pop %v336
  %v338 = vmul.f32 %v321, 1.442695
  %v339 = vpow.pop %v338
  %v340 = vmul.f32 %v322, 1.442695
  %v341 = vpow.pop %v340
  %v342 = vmul.f32 %v323, 1.442695
  %v343 = vpow.pop %v342
  %v344 = vmul.f32 %v324, 1.442695
  %v345 = vpow.pop %v344
  %v346 = vmul.f32 %v325, 1.442695
  %v347 = vpow.pop %v346
  %v348 = vmul.f32 %v326, 1.442695
  %v349 = vpow.pop %v348
  %v350 = vmul.f32 %v327, 1.442695
  %v351 = vpow.pop %v350
  %v352 = vmul.f32 %v328, 1.442695
  %v353 = vpow.pop %v352
  %v354 = vmul.f32 %v329, 1.442695
  %v355 = vpow.pop %v354
  %v356 = vmul.f32 %v330, 1.442695
  %v357 = vpow.pop %v356
  %v358 = vmul.f32 %v331, 1.442695
  %v359 = vpow.pop %v358
  %v360 = vmul.f32 %v332, 1.442695
  %v361 = vpow.pop %v360
  %v362 = vmul.f32 %v333, 1.442695
  %v363 = vpow.pop %v362
  %v364 = vmul.f32 %v334, 1.442695
  %v365 = vpow.pop %v364
  %v366 = vmul.f32 %v335, 1.442695
  %v367 = vpow.pop %v366
  %v368 = vsub.f32 %v337, 1.0
  %v369 = vsub.f32 %v339, 1.0
  %v370 = vsub.f32 %v341, 1.0
  %v371 = vsub.f32 %v343, 1.0
  %v372 = vsub.f32 %v345, 1.0
  %v373 = vsub.f32 %v347, 1.0
  %v374 = vsub.f32 %v349, 1.0
  %v375 = vsub.f32 %v351, 1.0
  %v376 = vsub.f32 %v353, 1.0
  %v377 = vsub.f32 %v355, 1.0
  %v378 = vsub.f32 %v357, 1.0
  %v379 = vsub.f32 %v359, 1.0
  %v380 = vsub.f32 %v361, 1.0
  %v381 = vsub.f32 %v363, 1.0
  %v382 = vsub.f32 %v365, 1.0
  %v383 = vsub.f32 %v367, 1.0
  %v384 = vsel %vm304, %v242, %v368
  %v385 = vsel %vm305, %v245, %v369
  %v386 = vsel %vm306, %v250, %v370
  %v387 = vsel %vm307, %v253, %v371
  %v388 = vsel %vm308, %v258, %v372
  %v389 = vsel %vm309, %v261, %v373
  %v390 = vsel %vm310, %v266, %v374
  %v391 = vsel %vm311, %v269, %v375
  %v392 = vsel %vm312, %v274, %v376
  %v393 = vsel %vm313, %v277, %v377
  %v394 = vsel %vm314, %v282, %v378
  %v395 = vsel %vm315, %v285, %v379
  %v396 = vsel %vm316, %v290, %v380
  %v397 = vsel %vm317, %v293, %v381
  %v398 = vsel %vm318, %v298, %v382
  %v399 = vsel %vm319, %v301, %v383
  %v400 = vpack.c.bf16 %v385, %v384
  %v401 = vpack.c.bf16 %v387, %v386
  %v402 = vpack.c.bf16 %v389, %v388
  %v403 = vpack.c.bf16 %v391, %v390
  %v404 = vpack.c.bf16 %v393, %v392
  %v405 = vpack.c.bf16 %v395, %v394
  %v406 = vpack.c.bf16 %v397, %v396
  %v407 = vpack.c.bf16 %v399, %v398
  %v416 = vunpack.c.l.b16 %v400
  %v417 = vunpack.c.h.b16 %v400
  %v418 = vunpack.c.l.b16 %v401
  %v419 = vunpack.c.h.b16 %v401
  %v420 = vunpack.c.l.b16 %v402
  %v421 = vunpack.c.h.b16 %v402
  %v422 = vunpack.c.l.b16 %v403
  %v423 = vunpack.c.h.b16 %v403
  %v424 = vunpack.c.l.b16 %v404
  %v425 = vunpack.c.h.b16 %v404
  %v426 = vunpack.c.l.b16 %v405
  %v427 = vunpack.c.h.b16 %v405
  %v428 = vunpack.c.l.b16 %v406
  %v429 = vunpack.c.h.b16 %v406
  %v430 = vunpack.c.l.b16 %v407
  %v431 = vunpack.c.h.b16 %v407
  %v432 = vpack.c.b16 %v416, %v416
  %v433 = vpack.c.b16 %v417, %v417
  %v434 = vpack.c.b16 %v418, %v418
  %v435 = vpack.c.b16 %v419, %v419
  %v436 = vpack.c.b16 %v420, %v420
  %v437 = vpack.c.b16 %v421, %v421
  %v438 = vpack.c.b16 %v422, %v422
  %v439 = vpack.c.b16 %v423, %v423
  %v440 = vpack.c.b16 %v424, %v424
  %v441 = vpack.c.b16 %v425, %v425
  %v442 = vpack.c.b16 %v426, %v426
  %v443 = vpack.c.b16 %v427, %v427
  %v444 = vpack.c.b16 %v428, %v428
  %v445 = vpack.c.b16 %v429, %v429
  %v446 = vpack.c.b16 %v430, %v430
  %v447 = vpack.c.b16 %v431, %v431
  %vm464 = vcmask 125952
  %465 = vst.msk [vmem:[%s3] sm:$0xf] %vm464, %v432
  %466 = vst.msk [vmem:[%s3 + $0x4] sm:$0xf] %vm464, %v433
  %467 = vst.msk [vmem:[%s3 + $0x8] sm:$0xf] %vm464, %v434
  %468 = vst.msk [vmem:[%s3 + $0xc] sm:$0xf] %vm464, %v435
  %469 = vst.msk [vmem:[%s3 + $0x10] sm:$0xf] %vm464, %v436
  %470 = vst.msk [vmem:[%s3 + $0x14] sm:$0xf] %vm464, %v437
  %471 = vst.msk [vmem:[%s3 + $0x18] sm:$0xf] %vm464, %v438
  %472 = vst.msk [vmem:[%s3 + $0x1c] sm:$0xf] %vm464, %v439
  %473 = vst.msk [vmem:[%s3 + $0x20] sm:$0xf] %vm464, %v440
  %474 = vst.msk [vmem:[%s3 + $0x24] sm:$0xf] %vm464, %v441
  %475 = vst.msk [vmem:[%s3 + $0x28] sm:$0xf] %vm464, %v442
  %476 = vst.msk [vmem:[%s3 + $0x2c] sm:$0xf] %vm464, %v443
  %477 = vst.msk [vmem:[%s3 + $0x30] sm:$0xf] %vm464, %v444
  %478 = vst.msk [vmem:[%s3 + $0x34] sm:$0xf] %vm464, %v445
  %479 = vst.msk [vmem:[%s3 + $0x38] sm:$0xf] %vm464, %v446
  %480 = vst.msk [vmem:[%s3 + $0x3c] sm:$0xf] %vm464, %v447
  // Predicated region
  $region14: #{sqnet_forward.20} parent=0 // pred_check
    _
  $region15: #{sqnet_forward.20} parent=0 // pred_check_branch
    %482 = sbr.rel (0) target = $region17
  $region16: #{sqnet_forward.20} parent=0 // pred_region
    _
  $region17: #{sqnet_forward.20} parent=0 // pred_fallthru
    _
  // Predicated region
  $region18: #{sqnet_forward.20} parent=0 // pred_check
    _
  $region19: #{sqnet_forward.20} parent=0 // pred_check_branch
    %484 = sbr.rel (0) target = $region21
  $region20: #{sqnet_forward.20} parent=0 // pred_region
    _
  $region21: #{sqnet_forward.20} parent=0 // pred_fallthru
    _

// kernel: sqnet_forward.21
$region0: #{sqnet_forward.21}
  #allocation0 [shape = 'u32[]', space=smem, size = 0x4, offset = 0x4, fixed_abs, tag = 'smem constant byte address 0x4 - core index']
  #allocation1 [shape = 'u32[144,128]{1,0:T(1,128)}', space=vmem, size = 0x12000, scoped, tag = 'internal scratch']
  %s0 = inlined_call_operand.vmem [shape: bf16[128,288], index: 0, kind: input, shape index: {}]
  %s1 = inlined_call_operand.vmem [shape: bf16[288,32], index: 1, kind: input, shape index: {}]
  %s2 = inlined_call_operand.vmem [shape: f32[1,32], index: 2, kind: input, shape index: {}]
  %s3 = inlined_call_operand.vmem [shape: bf16[128,32], index: 3, kind: output, shape index: {}]
  %s4 = sld [smem:[#allocation0]]
  $region22: #{sqnet_forward.21} parent=0
    _
  %s6 = ssub.s32 1, %s4
  %s7 = scalar_select 0, %s6, %s4
  // Predicated region
  $region2: #{sqnet_forward.21} parent=0 // pred_check
    _
  $region3: #{sqnet_forward.21} parent=0 // pred_check_branch
    %9 = sbr.rel (0) target = $region5
  $region4: #{sqnet_forward.21} parent=0 // pred_region
    _
  $region5: #{sqnet_forward.21} parent=0 // pred_fallthru
    _
  // Predicated region
  $region6: #{sqnet_forward.21} parent=0 // pred_check
    _
  $region7: #{sqnet_forward.21} parent=0 // pred_check_branch
    %11 = sbr.rel (0) target = $region9
  $region8: #{sqnet_forward.21} parent=0 // pred_region
    _
  $region9: #{sqnet_forward.21} parent=0 // pred_fallthru
    _
  // Predicated region
  $region10: #{sqnet_forward.21} parent=0 // pred_check
    _
  $region11: #{sqnet_forward.21} parent=0 // pred_check_branch
    %13 = sbr.rel (0) target = $region13
  $region12: #{sqnet_forward.21} parent=0 // pred_region
    _
  $region13: #{sqnet_forward.21} parent=0 // pred_fallthru
    _
  %v15 = vld [vmem:[%s0] sm:$0xff]
  %v16 = vld [vmem:[%s0 + $0x8] sm:$0xf]
  %v17 = vld [vmem:[%s0 + $0xc] sm:$0xff]
  %v18 = vld [vmem:[%s0 + $0x14] sm:$0xf]
  %v19 = vld [vmem:[%s0 + $0x18] sm:$0xff]
  %v20 = vld [vmem:[%s0 + $0x20] sm:$0xf]
  %v21 = vld [vmem:[%s0 + $0x24] sm:$0xff]
  %v22 = vld [vmem:[%s0 + $0x2c] sm:$0xf]
  %v23 = vld [vmem:[%s0 + $0x30] sm:$0xff]
  %v24 = vld [vmem:[%s0 + $0x38] sm:$0xf]
  %v25 = vld [vmem:[%s0 + $0x3c] sm:$0xff]
  %v26 = vld [vmem:[%s0 + $0x44] sm:$0xf]
  %v27 = vld [vmem:[%s0 + $0x48] sm:$0xff]
  %v28 = vld [vmem:[%s0 + $0x50] sm:$0xf]
  %v29 = vld [vmem:[%s0 + $0x54] sm:$0xff]
  %v30 = vld [vmem:[%s0 + $0x5c] sm:$0xf]
  %v31 = vld [vmem:[%s0 + $0x60] sm:$0xff]
  %v32 = vld [vmem:[%s0 + $0x68] sm:$0xf]
  %v33 = vld [vmem:[%s0 + $0x6c] sm:$0xff]
  %v34 = vld [vmem:[%s0 + $0x74] sm:$0xf]
  %v35 = vld [vmem:[%s0 + $0x78] sm:$0xff]
  %v36 = vld [vmem:[%s0 + $0x80] sm:$0xf]
  %v37 = vld [vmem:[%s0 + $0x84] sm:$0xff]
  %v38 = vld [vmem:[%s0 + $0x8c] sm:$0xf]
  %v39 = vld [vmem:[%s0 + $0x90] sm:$0xff]
  %v40 = vld [vmem:[%s0 + $0x98] sm:$0xf]
  %v41 = vld [vmem:[%s0 + $0x9c] sm:$0xff]
  %v42 = vld [vmem:[%s0 + $0xa4] sm:$0xf]
  %v43 = vld [vmem:[%s0 + $0xa8] sm:$0xff]
  %v44 = vld [vmem:[%s0 + $0xb0] sm:$0xf]
  %v45 = vld [vmem:[%s0 + $0xb4] sm:$0xff]
  %v46 = vld [vmem:[%s0 + $0xbc] sm:$0xf]
  %v47 = vld [vmem:[%s1] sm:$0xf]
  %v48 = vld [vmem:[%s1 + $0x4] sm:$0xf]
  %v49 = vld [vmem:[%s1 + $0x8] sm:$0xf]
  %v50 = vld [vmem:[%s1 + $0xc] sm:$0xf]
  %v51 = vld [vmem:[%s1 + $0x10] sm:$0xf]
  %v52 = vld [vmem:[%s1 + $0x14] sm:$0xf]
  %v53 = vld [vmem:[%s1 + $0x18] sm:$0xf]
  %v54 = vld [vmem:[%s1 + $0x1c] sm:$0xf]
  %v55 = vld [vmem:[%s1 + $0x20] sm:$0xf]
  %v56 = vld [vmem:[%s1 + $0x24] sm:$0xf]
  %v57 = vld [vmem:[%s1 + $0x28] sm:$0xf]
  %v58 = vld [vmem:[%s1 + $0x2c] sm:$0xf]
  %v59 = vld [vmem:[%s1 + $0x30] sm:$0xf]
  %v60 = vld [vmem:[%s1 + $0x34] sm:$0xf]
  %v61 = vld [vmem:[%s1 + $0x38] sm:$0xf]
  %v62 = vld [vmem:[%s1 + $0x3c] sm:$0xf]
  %v63 = vld [vmem:[%s1 + $0x40] sm:$0xf]
  %v64 = vld [vmem:[%s1 + $0x44] sm:$0xf]
  %v65 = vld [vmem:[%s1 + $0x48] sm:$0xf]
  %v66 = vld [vmem:[%s1 + $0x4c] sm:$0xf]
  %v67 = vld [vmem:[%s1 + $0x50] sm:$0xf]
  %v68 = vld [vmem:[%s1 + $0x54] sm:$0xf]
  %v69 = vld [vmem:[%s1 + $0x58] sm:$0xf]
  %v70 = vld [vmem:[%s1 + $0x5c] sm:$0xf]
  %v71 = vld [vmem:[%s1 + $0x60] sm:$0xf]
  %v72 = vld [vmem:[%s1 + $0x64] sm:$0xf]
  %v73 = vld [vmem:[%s1 + $0x68] sm:$0xf]
  %v74 = vld [vmem:[%s1 + $0x6c] sm:$0xf]
  %v75 = vld [vmem:[%s1 + $0x70] sm:$0xf]
  %v76 = vld [vmem:[%s1 + $0x74] sm:$0xf]
  %v77 = vld [vmem:[%s1 + $0x78] sm:$0xf]
  %v78 = vld [vmem:[%s1 + $0x7c] sm:$0xf]
  %v79 = vld [vmem:[%s1 + $0x80] sm:$0xf]
  %v80 = vld [vmem:[%s1 + $0x84] sm:$0xf]
  %v81 = vld [vmem:[%s1 + $0x88] sm:$0xf]
  %v82 = vld [vmem:[%s1 + $0x8c] sm:$0xf]
  %v83 = vld [vmem:[%s2] sm:$0x1]
  %v85 = vlaneseq
  %v86 = vshrl.u32 %v85, 7
  %v87 = vsub.s32 0, %v86
  %v88 = vrot.slane %v83, %v87
  %v122 = vunpack.c.l.b16 %v15
  %v123 = vunpack.c.h.b16 %v15
  %v124 = vunpack.c.l.b16 %v16
  %v125 = vunpack.c.l.b16 %v17
  %v126 = vunpack.c.h.b16 %v17
  %v127 = vunpack.c.l.b16 %v18
  %v128 = vunpack.c.l.b16 %v19
  %v129 = vunpack.c.h.b16 %v19
  %v130 = vunpack.c.l.b16 %v20
  %v131 = vunpack.c.l.b16 %v21
  %v132 = vunpack.c.h.b16 %v21
  %v133 = vunpack.c.l.b16 %v22
  %v134 = vunpack.c.l.b16 %v23
  %v135 = vunpack.c.h.b16 %v23
  %v136 = vunpack.c.l.b16 %v24
  %v137 = vunpack.c.l.b16 %v25
  %v138 = vunpack.c.h.b16 %v25
  %v139 = vunpack.c.l.b16 %v26
  %v140 = vunpack.c.l.b16 %v27
  %v141 = vunpack.c.h.b16 %v27
  %v142 = vunpack.c.l.b16 %v28
  %v143 = vunpack.c.l.b16 %v29
  %v144 = vunpack.c.h.b16 %v29
  %v145 = vunpack.c.l.b16 %v30
  %v146 = vunpack.c.l.b16 %v31
  %v147 = vunpack.c.h.b16 %v31
  %v148 = vunpack.c.l.b16 %v32
  %v149 = vunpack.c.l.b16 %v33
  %v150 = vunpack.c.h.b16 %v33
  %v151 = vunpack.c.l.b16 %v34
  %v152 = vunpack.c.l.b16 %v35
  %v153 = vunpack.c.h.b16 %v35
  %v154 = vunpack.c.l.b16 %v36
  %v155 = vunpack.c.l.b16 %v37
  %v156 = vunpack.c.h.b16 %v37
  %v157 = vunpack.c.l.b16 %v38
  %v158 = vunpack.c.l.b16 %v39
  %v159 = vunpack.c.h.b16 %v39
  %v160 = vunpack.c.l.b16 %v40
  %v161 = vunpack.c.l.b16 %v41
  %v162 = vunpack.c.h.b16 %v41
  %v163 = vunpack.c.l.b16 %v42
  %v164 = vunpack.c.l.b16 %v43
  %v165 = vunpack.c.h.b16 %v43
  %v166 = vunpack.c.l.b16 %v44
  %v167 = vunpack.c.l.b16 %v45
  %v168 = vunpack.c.h.b16 %v45
  %v169 = vunpack.c.l.b16 %v46
  %v170 = vpack.c.b16 %v125, %v122
  %v171 = vpack.c.b16 %v126, %v123
  %v172 = vpack.c.b16 %v127, %v124
  %v173 = vpack.c.b16 %v131, %v128
  %v174 = vpack.c.b16 %v132, %v129
  %v175 = vpack.c.b16 %v133, %v130
  %v176 = vpack.c.b16 %v137, %v134
  %v177 = vpack.c.b16 %v138, %v135
  %v178 = vpack.c.b16 %v139, %v136
  %v179 = vpack.c.b16 %v143, %v140
  %v180 = vpack.c.b16 %v144, %v141
  %v181 = vpack.c.b16 %v145, %v142
  %v182 = vpack.c.b16 %v149, %v146
  %v183 = vpack.c.b16 %v150, %v147
  %v184 = vpack.c.b16 %v151, %v148
  %v185 = vpack.c.b16 %v155, %v152
  %v186 = vpack.c.b16 %v156, %v153
  %v187 = vpack.c.b16 %v157, %v154
  %v188 = vpack.c.b16 %v161, %v158
  %v189 = vpack.c.b16 %v162, %v159
  %v190 = vpack.c.b16 %v163, %v160
  %v191 = vpack.c.b16 %v167, %v164
  %v192 = vpack.c.b16 %v168, %v165
  %v193 = vpack.c.b16 %v169, %v166
  %v246 = vunpack.c.l.b16 %v47
  %v247 = vunpack.c.l.b16 %v48
  %v248 = vunpack.c.l.b16 %v49
  %v249 = vunpack.c.l.b16 %v50
  %v250 = vunpack.c.l.b16 %v51
  %v251 = vunpack.c.l.b16 %v52
  %v252 = vunpack.c.l.b16 %v53
  %v253 = vunpack.c.l.b16 %v54
  %v254 = vunpack.c.l.b16 %v55
  %v255 = vunpack.c.l.b16 %v56
  %v256 = vunpack.c.l.b16 %v57
  %v257 = vunpack.c.l.b16 %v58
  %v258 = vunpack.c.l.b16 %v59
  %v259 = vunpack.c.l.b16 %v60
  %v260 = vunpack.c.l.b16 %v61
  %v261 = vunpack.c.l.b16 %v62
  %v262 = vunpack.c.l.b16 %v63
  %v263 = vunpack.c.l.b16 %v64
  %v264 = vunpack.c.l.b16 %v65
  %v265 = vunpack.c.l.b16 %v66
  %v266 = vunpack.c.l.b16 %v67
  %v267 = vunpack.c.l.b16 %v68
  %v268 = vunpack.c.l.b16 %v69
  %v269 = vunpack.c.l.b16 %v70
  %v270 = vunpack.c.l.b16 %v71
  %v271 = vunpack.c.l.b16 %v72
  %v272 = vunpack.c.l.b16 %v73
  %v273 = vunpack.c.l.b16 %v74
  %v274 = vunpack.c.l.b16 %v75
  %v275 = vunpack.c.l.b16 %v76
  %v276 = vunpack.c.l.b16 %v77
  %v277 = vunpack.c.l.b16 %v78
  %v278 = vunpack.c.l.b16 %v79
  %v279 = vunpack.c.l.b16 %v80
  %v280 = vunpack.c.l.b16 %v81
  %v281 = vunpack.c.l.b16 %v82
  %v282 = vpack.c.b16 %v247, %v246
  %v283 = vpack.c.b16 %v249, %v248
  %v284 = vpack.c.b16 %v251, %v250
  %v285 = vpack.c.b16 %v253, %v252
  %v286 = vpack.c.b16 %v255, %v254
  %v287 = vpack.c.b16 %v257, %v256
  %v288 = vpack.c.b16 %v259, %v258
  %v289 = vpack.c.b16 %v261, %v260
  %v290 = vpack.c.b16 %v263, %v262
  %v291 = vpack.c.b16 %v265, %v264
  %v292 = vpack.c.b16 %v267, %v266
  %v293 = vpack.c.b16 %v269, %v268
  %v294 = vpack.c.b16 %v271, %v270
  %v295 = vpack.c.b16 %v273, %v272
  %v296 = vpack.c.b16 %v275, %v274
  %v297 = vpack.c.b16 %v277, %v276
  %v298 = vpack.c.b16 %v279, %v278
  %v299 = vpack.c.b16 %v281, %v280
  %vm318 = vcmask 261120
  %v320 = vsel %vm318, %v172, 0
  %v323 = vsel %vm318, %v175, 0
  %v326 = vsel %vm318, %v178, 0
  %v329 = vsel %vm318, %v181, 0
  %v332 = vsel %vm318, %v184, 0
  %v335 = vsel %vm318, %v187, 0
  %v338 = vsel %vm318, %v190, 0
  %v341 = vsel %vm318, %v193, 0
  %343 = vmatprep.subr.bf16.mxu0 0
  %344 = vmatpush1.bf16.msra.mxu0 %v282
  %345 = vmatprep.subr.bf16.mxu0 0
  %346 = vmatpush1.bf16.msra.mxu0 %v283
  %347 = vmatprep.subr.bf16.mxu0 0
  %348 = vmatpush1.bf16.msra.mxu0 %v284
  %349 = vmatprep.subr.bf16.mxu0 0
  %350 = vmatpush1.bf16.msra.mxu0 %v285
  %351 = vmatprep.subr.bf16.mxu0 0
  %352 = vmatpush1.bf16.msra.mxu0 %v286
  %353 = vmatprep.subr.bf16.mxu0 0
  %354 = vmatpush1.bf16.msra.mxu0 %v287
  %355 = vmatprep.subr.bf16.mxu0 0
  %356 = vmatpush1.bf16.msra.mxu0 %v288
  %357 = vmatprep.subr.bf16.mxu0 0
  %358 = vmatpush1.bf16.msra.mxu0 %v289
  %359 = vmatprep.subr.bf16.mxu0 0
  %360 = vmatpush1.bf16.msra.mxu0 %v290
  %361 = vmatprep.subr.bf16.mxu0 0
  %362 = vmatpush1.bf16.msra.mxu0 %v291
  %363 = vmatprep.subr.bf16.mxu0 0
  %364 = vmatpush1.bf16.msra.mxu0 %v292
  %365 = vmatprep.subr.bf16.mxu0 0
  %366 = vmatpush1.bf16.msra.mxu0 %v293
  %367 = vmatprep.subr.bf16.mxu0 0
  %368 = vmatpush1.bf16.msra.mxu0 %v294
  %369 = vmatprep.subr.bf16.mxu0 0
  %370 = vmatpush1.bf16.msra.mxu0 %v295
  %371 = vmatprep.subr.bf16.mxu0 0
  %372 = vmatpush1.bf16.msra.mxu0 %v296
  %373 = vmatprep.subr.bf16.mxu0 0
  %374 = vmatpush1.bf16.msra.mxu0 %v297
  %375 = vmatprep.mubr.bf16.mxu0 %v171
  %376 = vmatmul.mubr.bf16.gmra.mrb[0].mxu0 %v170
  %v377 = vpop.f32.mrb[0].mxu0
  %v378 = vadd.f32 %v88, %v377
  %v379 = vpop.f32.mrb[0].mxu0
  %v380 = vpop.f32.mrb[0].mxu0
  %v381 = vadd.f32 %v88, %v380
  %v382 = vpop.f32.mrb[0].mxu0
  %383 = vmatprep.mubr.bf16.mxu0 %v174
  %384 = vmatmul.mubr.bf16.gmra.mrb[0].mxu0 %v173
  %v385 = vpop.f32.mrb[0].mxu0
  %v386 = vadd.f32 %v88, %v385
  %v387 = vpop.f32.mrb[0].mxu0
  %v388 = vpop.f32.mrb[0].mxu0
  %v389 = vadd.f32 %v88, %v388
  %v390 = vpop.f32.mrb[0].mxu0
  %391 = vmatprep.mubr.bf16.mxu0 %v177
  %392 = vmatmul.mubr.bf16.gmra.mrb[0].mxu0 %v176
  %v393 = vpop.f32.mrb[0].mxu0
  %v394 = vadd.f32 %v88, %v393
  %v395 = vpop.f32.mrb[0].mxu0
  %v396 = vpop.f32.mrb[0].mxu0
  %v397 = vadd.f32 %v88, %v396
  %v398 = vpop.f32.mrb[0].mxu0
  %399 = vmatprep.mubr.bf16.mxu0 %v180
  %400 = vmatmul.mubr.bf16.gmra.mrb[0].mxu0 %v179
  %v401 = vpop.f32.mrb[0].mxu0
  %v402 = vadd.f32 %v88, %v401
  %v403 = vpop.f32.mrb[0].mxu0
  %v404 = vpop.f32.mrb[0].mxu0
  %v405 = vadd.f32 %v88, %v404
  %v406 = vpop.f32.mrb[0].mxu0
  %407 = vmatprep.mubr.bf16.mxu0 %v183
  %408 = vmatmul.mubr.bf16.gmra.mrb[0].mxu0 %v182
  %v409 = vpop.f32.mrb[0].mxu0
  %v410 = vadd.f32 %v88, %v409
  %v411 = vpop.f32.mrb[0].mxu0
  %v412 = vpop.f32.mrb[0].mxu0
  %v413 = vadd.f32 %v88, %v412
  %v414 = vpop.f32.mrb[0].mxu0
  %415 = vmatprep.mubr.bf16.mxu0 %v186
  %416 = vmatmul.mubr.bf16.gmra.mrb[0].mxu0 %v185
  %v417 = vpop.f32.mrb[0].mxu0
  %v418 = vadd.f32 %v88, %v417
  %v419 = vpop.f32.mrb[0].mxu0
  %v420 = vpop.f32.mrb[0].mxu0
  %v421 = vadd.f32 %v88, %v420
  %v422 = vpop.f32.mrb[0].mxu0
  %423 = vmatprep.mubr.bf16.mxu0 %v189
  %424 = vmatmul.mubr.bf16.gmra.mrb[0].mxu0 %v188
  %v425 = vpop.f32.mrb[0].mxu0
  %v426 = vadd.f32 %v88, %v425
  %v427 = vpop.f32.mrb[0].mxu0
  %v428 = vpop.f32.mrb[0].mxu0
  %v429 = vadd.f32 %v88, %v428
  %v430 = vpop.f32.mrb[0].mxu0
  %431 = vmatprep.mubr.bf16.mxu0 %v192
  %432 = vmatmul.mubr.bf16.gmra.mrb[0].mxu0 %v191
  %v433 = vpop.f32.mrb[0].mxu0
  %v434 = vadd.f32 %v88, %v433
  %v435 = vpop.f32.mrb[0].mxu0
  %v436 = vpop.f32.mrb[0].mxu0
  %v437 = vadd.f32 %v88, %v436
  %v438 = vpop.f32.mrb[0].mxu0
  %439 = vdwg.mxu0
  %440 = vmatprep.subr.bf16.mxu0 0
  %441 = vmatpush1.bf16.msra.mxu0 %v298
  %442 = vmatprep.subr.bf16.mxu0 0
  %443 = vmatpush1.bf16.msra.mxu0 %v299
  %444 = vmatprep.subr.bf16.mxu0 0
  %445 = vmatpush1.bf16.msra.mxu0 0
  %446 = vmatprep.subr.bf16.mxu0 0
  %447 = vmatpush1.bf16.msra.mxu0 0
  %448 = vmatprep.subr.bf16.mxu0 0
  %449 = vmatpush1.bf16.msra.mxu0 0
  %450 = vmatprep.subr.bf16.mxu0 0
  %451 = vmatpush1.bf16.msra.mxu0 0
  %452 = vmatprep.subr.bf16.mxu0 0
  %453 = vmatpush1.bf16.msra.mxu0 0
  %454 = vmatprep.subr.bf16.mxu0 0
  %455 = vmatpush1.bf16.msra.mxu0 0
  %456 = vmatprep.subr.bf16.mxu0 0
  %457 = vmatpush1.bf16.msra.mxu0 0
  %458 = vmatprep.subr.bf16.mxu0 0
  %459 = vmatpush1.bf16.msra.mxu0 0
  %460 = vmatprep.subr.bf16.mxu0 0
  %461 = vmatpush1.bf16.msra.mxu0 0
  %462 = vmatprep.subr.bf16.mxu0 0
  %463 = vmatpush1.bf16.msra.mxu0 0
  %464 = vmatprep.subr.bf16.mxu0 0
  %465 = vmatpush1.bf16.msra.mxu0 0
  %466 = vmatprep.subr.bf16.mxu0 0
  %467 = vmatpush1.bf16.msra.mxu0 0
  %468 = vmatprep.subr.bf16.mxu0 0
  %469 = vmatpush1.bf16.msra.mxu0 0
  %470 = vmatprep.subr.bf16.mxu0 0
  %471 = vmatpush1.bf16.msra.mxu0 0
  %472 = vmatprep.mubr.bf16.mxu0 0
  %473 = vmatmul.mubr.bf16.gmra.mrb[0].mxu0 %v320
  %v474 = vpop.f32.mrb[0].mxu0
  %v475 = vadd.f32 %v378, %v474
  %v476 = vpop.f32.mrb[0].mxu0
  %v477 = vpop.f32.mrb[0].mxu0
  %v478 = vadd.f32 %v381, %v477
  %v479 = vpop.f32.mrb[0].mxu0
  %480 = vmatprep.mubr.bf16.mxu0 0
  %481 = vmatmul.mubr.bf16.gmra.mrb[0].mxu0 %v323
  %v482 = vpop.f32.mrb[0].mxu0
  %v483 = vadd.f32 %v386, %v482
  %v484 = vpop.f32.mrb[0].mxu0
  %v485 = vpop.f32.mrb[0].mxu0
  %v486 = vadd.f32 %v389, %v485
  %v487 = vpop.f32.mrb[0].mxu0
  %488 = vmatprep.mubr.bf16.mxu0 0
  %489 = vmatmul.mubr.bf16.gmra.mrb[0].mxu0 %v326
  %v490 = vpop.f32.mrb[0].mxu0
  %v491 = vadd.f32 %v394, %v490
  %v492 = vpop.f32.mrb[0].mxu0
  %v493 = vpop.f32.mrb[0].mxu0
  %v494 = vadd.f32 %v397, %v493
  %v495 = vpop.f32.mrb[0].mxu0
  %496 = vmatprep.mubr.bf16.mxu0 0
  %497 = vmatmul.mubr.bf16.gmra.mrb[0].mxu0 %v329
  %v498 = vpop.f32.mrb[0].mxu0
  %v499 = vadd.f32 %v402, %v498
  %v500 = vpop.f32.mrb[0].mxu0
  %v501 = vpop.f32.mrb[0].mxu0
  %v502 = vadd.f32 %v405, %v501
  %v503 = vpop.f32.mrb[0].mxu0
  %504 = vmatprep.mubr.bf16.mxu0 0
  %505 = vmatmul.mubr.bf16.gmra.mrb[0].mxu0 %v332
  %v506 = vpop.f32.mrb[0].mxu0
  %v507 = vadd.f32 %v410, %v506
  %v508 = vpop.f32.mrb[0].mxu0
  %v509 = vpop.f32.mrb[0].mxu0
  %v510 = vadd.f32 %v413, %v509
  %v511 = vpop.f32.mrb[0].mxu0
  %512 = vmatprep.mubr.bf16.mxu0 0
  %513 = vmatmul.mubr.bf16.gmra.mrb[0].mxu0 %v335
  %v514 = vpop.f32.mrb[0].mxu0
  %v515 = vadd.f32 %v418, %v514
  %v516 = vpop.f32.mrb[0].mxu0
  %v517 = vpop.f32.mrb[0].mxu0
  %v518 = vadd.f32 %v421, %v517
  %v519 = vpop.f32.mrb[0].mxu0
  %520 = vmatprep.mubr.bf16.mxu0 0
  %521 = vmatmul.mubr.bf16.gmra.mrb[0].mxu0 %v338
  %v522 = vpop.f32.mrb[0].mxu0
  %v523 = vadd.f32 %v426, %v522
  %v524 = vpop.f32.mrb[0].mxu0
  %v525 = vpop.f32.mrb[0].mxu0
  %v526 = vadd.f32 %v429, %v525
  %v527 = vpop.f32.mrb[0].mxu0
  %528 = vmatprep.mubr.bf16.mxu0 0
  %529 = vmatmul.mubr.bf16.gmra.mrb[0].mxu0 %v341
  %v530 = vpop.f32.mrb[0].mxu0
  %v531 = vadd.f32 %v434, %v530
  %v532 = vpop.f32.mrb[0].mxu0
  %v533 = vpop.f32.mrb[0].mxu0
  %v534 = vadd.f32 %v437, %v533
  %v535 = vpop.f32.mrb[0].mxu0
  %536 = vdwg.mxu0
  %vm537 = vcmp.gt.f32.partialorder %v475, 0.0
  %vm538 = vcmp.gt.f32.partialorder %v478, 0.0
  %vm539 = vcmp.gt.f32.partialorder %v483, 0.0
  %vm540 = vcmp.gt.f32.partialorder %v486, 0.0
  %vm541 = vcmp.gt.f32.partialorder %v491, 0.0
  %vm542 = vcmp.gt.f32.partialorder %v494, 0.0
  %vm543 = vcmp.gt.f32.partialorder %v499, 0.0
  %vm544 = vcmp.gt.f32.partialorder %v502, 0.0
  %vm545 = vcmp.gt.f32.partialorder %v507, 0.0
  %vm546 = vcmp.gt.f32.partialorder %v510, 0.0
  %vm547 = vcmp.gt.f32.partialorder %v515, 0.0
  %vm548 = vcmp.gt.f32.partialorder %v518, 0.0
  %vm549 = vcmp.gt.f32.partialorder %v523, 0.0
  %vm550 = vcmp.gt.f32.partialorder %v526, 0.0
  %vm551 = vcmp.gt.f32.partialorder %v531, 0.0
  %vm552 = vcmp.gt.f32.partialorder %v534, 0.0
  %v553 = vmin.f32 %v475, 0.0
  %v554 = vmin.f32 %v478, 0.0
  %v555 = vmin.f32 %v483, 0.0
  %v556 = vmin.f32 %v486, 0.0
  %v557 = vmin.f32 %v491, 0.0
  %v558 = vmin.f32 %v494, 0.0
  %v559 = vmin.f32 %v499, 0.0
  %v560 = vmin.f32 %v502, 0.0
  %v561 = vmin.f32 %v507, 0.0
  %v562 = vmin.f32 %v510, 0.0
  %v563 = vmin.f32 %v515, 0.0
  %v564 = vmin.f32 %v518, 0.0
  %v565 = vmin.f32 %v523, 0.0
  %v566 = vmin.f32 %v526, 0.0
  %v567 = vmin.f32 %v531, 0.0
  %v568 = vmin.f32 %v534, 0.0
  %v569 = vmul.f32 %v553, 1.442695
  %v570 = vpow.pop %v569
  %v571 = vmul.f32 %v554, 1.442695
  %v572 = vpow.pop %v571
  %v573 = vmul.f32 %v555, 1.442695
  %v574 = vpow.pop %v573
  %v575 = vmul.f32 %v556, 1.442695
  %v576 = vpow.pop %v575
  %v577 = vmul.f32 %v557, 1.442695
  %v578 = vpow.pop %v577
  %v579 = vmul.f32 %v558, 1.442695
  %v580 = vpow.pop %v579
  %v581 = vmul.f32 %v559, 1.442695
  %v582 = vpow.pop %v581
  %v583 = vmul.f32 %v560, 1.442695
  %v584 = vpow.pop %v583
  %v585 = vmul.f32 %v561, 1.442695
  %v586 = vpow.pop %v585
  %v587 = vmul.f32 %v562, 1.442695
  %v588 = vpow.pop %v587
  %v589 = vmul.f32 %v563, 1.442695
  %v590 = vpow.pop %v589
  %v591 = vmul.f32 %v564, 1.442695
  %v592 = vpow.pop %v591
  %v593 = vmul.f32 %v565, 1.442695
  %v594 = vpow.pop %v593
  %v595 = vmul.f32 %v566, 1.442695
  %v596 = vpow.pop %v595
  %v597 = vmul.f32 %v567, 1.442695
  %v598 = vpow.pop %v597
  %v599 = vmul.f32 %v568, 1.442695
  %v600 = vpow.pop %v599
  %v601 = vsub.f32 %v570, 1.0
  %v602 = vsub.f32 %v572, 1.0
  %v603 = vsub.f32 %v574, 1.0
  %v604 = vsub.f32 %v576, 1.0
  %v605 = vsub.f32 %v578, 1.0
  %v606 = vsub.f32 %v580, 1.0
  %v607 = vsub.f32 %v582, 1.0
  %v608 = vsub.f32 %v584, 1.0
  %v609 = vsub.f32 %v586, 1.0
  %v610 = vsub.f32 %v588, 1.0
  %v611 = vsub.f32 %v590, 1.0
  %v612 = vsub.f32 %v592, 1.0
  %v613 = vsub.f32 %v594, 1.0
  %v614 = vsub.f32 %v596, 1.0
  %v615 = vsub.f32 %v598, 1.0
  %v616 = vsub.f32 %v600, 1.0
  %v617 = vsel %vm537, %v475, %v601
  %v618 = vsel %vm538, %v478, %v602
  %v619 = vsel %vm539, %v483, %v603
  %v620 = vsel %vm540, %v486, %v604
  %v621 = vsel %vm541, %v491, %v605
  %v622 = vsel %vm542, %v494, %v606
  %v623 = vsel %vm543, %v499, %v607
  %v624 = vsel %vm544, %v502, %v608
  %v625 = vsel %vm545, %v507, %v609
  %v626 = vsel %vm546, %v510, %v610
  %v627 = vsel %vm547, %v515, %v611
  %v628 = vsel %vm548, %v518, %v612
  %v629 = vsel %vm549, %v523, %v613
  %v630 = vsel %vm550, %v526, %v614
  %v631 = vsel %vm551, %v531, %v615
  %v632 = vsel %vm552, %v534, %v616
  %v633 = vpack.c.bf16 %v618, %v617
  %v634 = vpack.c.bf16 %v620, %v619
  %v635 = vpack.c.bf16 %v622, %v621
  %v636 = vpack.c.bf16 %v624, %v623
  %v637 = vpack.c.bf16 %v626, %v625
  %v638 = vpack.c.bf16 %v628, %v627
  %v639 = vpack.c.bf16 %v630, %v629
  %v640 = vpack.c.bf16 %v632, %v631
  %v649 = vunpack.c.l.b16 %v633
  %v650 = vunpack.c.h.b16 %v633
  %v651 = vunpack.c.l.b16 %v634
  %v652 = vunpack.c.h.b16 %v634
  %v653 = vunpack.c.l.b16 %v635
  %v654 = vunpack.c.h.b16 %v635
  %v655 = vunpack.c.l.b16 %v636
  %v656 = vunpack.c.h.b16 %v636
  %v657 = vunpack.c.l.b16 %v637
  %v658 = vunpack.c.h.b16 %v637
  %v659 = vunpack.c.l.b16 %v638
  %v660 = vunpack.c.h.b16 %v638
  %v661 = vunpack.c.l.b16 %v639
  %v662 = vunpack.c.h.b16 %v639
  %v663 = vunpack.c.l.b16 %v640
  %v664 = vunpack.c.h.b16 %v640
  %v665 = vpack.c.b16 %v649, %v649
  %v666 = vpack.c.b16 %v650, %v650
  %v667 = vpack.c.b16 %v651, %v651
  %v668 = vpack.c.b16 %v652, %v652
  %v669 = vpack.c.b16 %v653, %v653
  %v670 = vpack.c.b16 %v654, %v654
  %v671 = vpack.c.b16 %v655, %v655
  %v672 = vpack.c.b16 %v656, %v656
  %v673 = vpack.c.b16 %v657, %v657
  %v674 = vpack.c.b16 %v658, %v658
  %v675 = vpack.c.b16 %v659, %v659
  %v676 = vpack.c.b16 %v660, %v660
  %v677 = vpack.c.b16 %v661, %v661
  %v678 = vpack.c.b16 %v662, %v662
  %v679 = vpack.c.b16 %v663, %v663
  %v680 = vpack.c.b16 %v664, %v664
  %vm697 = vcmask 257024
  %698 = vst.msk [vmem:[%s3] sm:$0xf] %vm697, %v665
  %699 = vst.msk [vmem:[%s3 + $0x4] sm:$0xf] %vm697, %v666
  %700 = vst.msk [vmem:[%s3 + $0x8] sm:$0xf] %vm697, %v667
  %701 = vst.msk [vmem:[%s3 + $0xc] sm:$0xf] %vm697, %v668
  %702 = vst.msk [vmem:[%s3 + $0x10] sm:$0xf] %vm697, %v669
  %703 = vst.msk [vmem:[%s3 + $0x14] sm:$0xf] %vm697, %v670
  %704 = vst.msk [vmem:[%s3 + $0x18] sm:$0xf] %vm697, %v671
  %705 = vst.msk [vmem:[%s3 + $0x1c] sm:$0xf] %vm697, %v672
  %706 = vst.msk [vmem:[%s3 + $0x20] sm:$0xf] %vm697, %v673
  %707 = vst.msk [vmem:[%s3 + $0x24] sm:$0xf] %vm697, %v674
  %708 = vst.msk [vmem:[%s3 + $0x28] sm:$0xf] %vm697, %v675
  %709 = vst.msk [vmem:[%s3 + $0x2c] sm:$0xf] %vm697, %v676
  %710 = vst.msk [vmem:[%s3 + $0x30] sm:$0xf] %vm697, %v677
  %711 = vst.msk [vmem:[%s3 + $0x34] sm:$0xf] %vm697, %v678
  %712 = vst.msk [vmem:[%s3 + $0x38] sm:$0xf] %vm697, %v679
  %713 = vst.msk [vmem:[%s3 + $0x3c] sm:$0xf] %vm697, %v680
  // Predicated region
  $region14: #{sqnet_forward.21} parent=0 // pred_check
    _
  $region15: #{sqnet_forward.21} parent=0 // pred_check_branch
    %715 = sbr.rel (0) target = $region17
  $region16: #{sqnet_forward.21} parent=0 // pred_region
    _
  $region17: #{sqnet_forward.21} parent=0 // pred_fallthru
    _
  // Predicated region
  $region18: #{sqnet_forward.21} parent=0 // pred_check
    _
  $region19: #{sqnet_forward.21} parent=0 // pred_check_branch
    %717 = sbr.rel (0) target = $region21
  $region20: #{sqnet_forward.21} parent=0 // pred_region
    _
  $region21: #{sqnet_forward.21} parent=0 // pred_fallthru
    _

// kernel: tile.23
$region0: #{tile.23}
  #allocation0 [shape = 's32[1]{0}', space=sflag, size = 0x4, scoped, tag = 'scoped memory for tile.23']
  %s0 = inlined_call_operand.vmem [shape: f32[8], index: 0, kind: input, shape index: {}]
  %s1 = inlined_call_operand.vmem [shape: f32[4,8], index: 1, kind: output, shape index: {}]
  // Predicated region
  $region2: #{tile.23} parent=0 // pred_check
    _
  $region3: #{tile.23} parent=0 // pred_check_branch
    %3 = sbr.rel (0) target = $region5
  $region4: #{tile.23} parent=0 // pred_region
    _
  $region5: #{tile.23} parent=0 // pred_fallthru
    _
  %v4 = vld [vmem:[%s0] ss:$0 sm:$0xff]
  %5 = vst [vmem:[%s1] sm:$0xf] %v4

// kernel: tile.24
$region0: #{tile.24}
  %s0 = inlined_call_operand.vmem [shape: f32[4,8], index: 0, kind: input, shape index: {}]
  %s1 = inlined_call_operand.vmem [shape: f32[1,32], index: 1, kind: output, shape index: {}]
  $region1: #{tile.24} parent=0
    #allocation0 [shape = 'u8[4096]{0}', space=vmem, size = 0x1000, scoped, tag = 'scoped mem for output reshape']
    #allocation1 [shape = 'u8[4096]{0}', space=vmem, size = 0x1000, scoped, tag = 'scoped mem for input reshape']
    %s3 = sshllo.u32 0, 4
    %v4 = vld [vmem:[%s0] sm:%s3]
    %5 = vst [vmem:[#allocation1] sm:%s3] %v4
    %v6 = vld [vmem:[#allocation1] sm:$0x1]
    %vm7 = vcmask 64512
    %8 = vst.msk [vmem:[#allocation0] sm:$0x1] %vm7, %v6
    %s9 = scalar_lea.vmem [#allocation1], 3
    %v10 = vld [vmem:[%s9] sm:$0x1]
    %11 = vrot.lane.b32.xlu0 %v10, 24
    %v12 = vpop.permute.xlu0 %11
    %vm13 = vcmask 261312
    %14 = vst.msk [vmem:[#allocation0] sm:$0x1] %vm13, %v12
    %s15 = scalar_lea.vmem [#allocation1], 2
    %v16 = vld [vmem:[%s15] sm:$0x1]
    %17 = vrot.lane.b32.xlu0 %v16, 16
    %v18 = vpop.permute.xlu0 %17
    %vm19 = vcmask 195712
    %20 = vst.msk [vmem:[#allocation0] sm:$0x1] %vm19, %v18
    %s21 = scalar_lea.vmem [#allocation1], 1
    %v22 = vld [vmem:[%s21] sm:$0x1]
    %23 = vrot.lane.b32.xlu0 %v22, 8
    %v24 = vpop.permute.xlu0 %23
    %vm25 = vcmask 130112
    %26 = vst.msk [vmem:[#allocation0] sm:$0x1] %vm25, %v24
    %s28 = sshllo.u32 0, 1
    %v30 = vld [vmem:[#allocation0] sm:%s28]
    %s31 = sshllo.u32 0, 1
    %32 = vst [vmem:[%s1] sm:%s31] %v30

// kernel: sqnet_forward.22
$region0: #{sqnet_forward.22}
  #allocation0 [shape = 'u32[]', space=smem, size = 0x4, offset = 0x4, fixed_abs, tag = 'smem constant byte address 0x4 - core index']
  #allocation1 [shape = 'u32[144,128]{1,0:T(1,128)}', space=vmem, size = 0x12000, scoped, tag = 'internal scratch']
  %s0 = inlined_call_operand.vmem [shape: bf16[128,128], index: 0, kind: input, shape index: {}]
  %s1 = inlined_call_operand.vmem [shape: bf16[128,32], index: 1, kind: input, shape index: {}]
  %s2 = inlined_call_operand.vmem [shape: f32[1,32], index: 2, kind: input, shape index: {}]
  %s3 = inlined_call_operand.vmem [shape: bf16[128,32], index: 3, kind: output, shape index: {}]
  %s4 = sld [smem:[#allocation0]]
  $region22: #{sqnet_forward.22} parent=0
    _
  %s6 = ssub.s32 1, %s4
  %s7 = scalar_select 0, %s6, %s4
  // Predicated region
  $region2: #{sqnet_forward.22} parent=0 // pred_check
    _
  $region3: #{sqnet_forward.22} parent=0 // pred_check_branch
    %9 = sbr.rel (0) target = $region5
  $region4: #{sqnet_forward.22} parent=0 // pred_region
    _
  $region5: #{sqnet_forward.22} parent=0 // pred_fallthru
    _
  // Predicated region
  $region6: #{sqnet_forward.22} parent=0 // pred_check
    _
  $region7: #{sqnet_forward.22} parent=0 // pred_check_branch
    %11 = sbr.rel (0) target = $region9
  $region8: #{sqnet_forward.22} parent=0 // pred_region
    _
  $region9: #{sqnet_forward.22} parent=0 // pred_fallthru
    _
  // Predicated region
  $region10: #{sqnet_forward.22} parent=0 // pred_check
    _
  $region11: #{sqnet_forward.22} parent=0 // pred_check_branch
    %13 = sbr.rel (0) target = $region13
  $region12: #{sqnet_forward.22} parent=0 // pred_region
    _
  $region13: #{sqnet_forward.22} parent=0 // pred_fallthru
    _
  %v15 = vld [vmem:[%s0] sm:$0xf]
  %v16 = vld [vmem:[%s0 + $0x4] sm:$0xf]
  %v17 = vld [vmem:[%s0 + $0x8] sm:$0xf]
  %v18 = vld [vmem:[%s0 + $0xc] sm:$0xf]
  %v19 = vld [vmem:[%s0 + $0x10] sm:$0xf]
  %v20 = vld [vmem:[%s0 + $0x14] sm:$0xf]
  %v21 = vld [vmem:[%s0 + $0x18] sm:$0xf]
  %v22 = vld [vmem:[%s0 + $0x1c] sm:$0xf]
  %v23 = vld [vmem:[%s0 + $0x20] sm:$0xf]
  %v24 = vld [vmem:[%s0 + $0x24] sm:$0xf]
  %v25 = vld [vmem:[%s0 + $0x28] sm:$0xf]
  %v26 = vld [vmem:[%s0 + $0x2c] sm:$0xf]
  %v27 = vld [vmem:[%s0 + $0x30] sm:$0xf]
  %v28 = vld [vmem:[%s0 + $0x34] sm:$0xf]
  %v29 = vld [vmem:[%s0 + $0x38] sm:$0xf]
  %v30 = vld [vmem:[%s0 + $0x3c] sm:$0xf]
  %v31 = vld [vmem:[%s1] sm:$0xf]
  %v32 = vld [vmem:[%s1 + $0x4] sm:$0xf]
  %v33 = vld [vmem:[%s1 + $0x8] sm:$0xf]
  %v34 = vld [vmem:[%s1 + $0xc] sm:$0xf]
  %v35 = vld [vmem:[%s1 + $0x10] sm:$0xf]
  %v36 = vld [vmem:[%s1 + $0x14] sm:$0xf]
  %v37 = vld [vmem:[%s1 + $0x18] sm:$0xf]
  %v38 = vld [vmem:[%s1 + $0x1c] sm:$0xf]
  %v39 = vld [vmem:[%s1 + $0x20] sm:$0xf]
  %v40 = vld [vmem:[%s1 + $0x24] sm:$0xf]
  %v41 = vld [vmem:[%s1 + $0x28] sm:$0xf]
  %v42 = vld [vmem:[%s1 + $0x2c] sm:$0xf]
  %v43 = vld [vmem:[%s1 + $0x30] sm:$0xf]
  %v44 = vld [vmem:[%s1 + $0x34] sm:$0xf]
  %v45 = vld [vmem:[%s1 + $0x38] sm:$0xf]
  %v46 = vld [vmem:[%s1 + $0x3c] sm:$0xf]
  %v47 = vld [vmem:[%s2] sm:$0x1]
  %v49 = vlaneseq
  %v50 = vshrl.u32 %v49, 7
  %v51 = vsub.s32 0, %v50
  %v52 = vrot.slane %v47, %v51
  %v70 = vunpack.c.l.b16 %v15
  %v71 = vunpack.c.l.b16 %v16
  %v72 = vunpack.c.l.b16 %v17
  %v73 = vunpack.c.l.b16 %v18
  %v74 = vunpack.c.l.b16 %v19
  %v75 = vunpack.c.l.b16 %v20
  %v76 = vunpack.c.l.b16 %v21
  %v77 = vunpack.c.l.b16 %v22
  %v78 = vunpack.c.l.b16 %v23
  %v79 = vunpack.c.l.b16 %v24
  %v80 = vunpack.c.l.b16 %v25
  %v81 = vunpack.c.l.b16 %v26
  %v82 = vunpack.c.l.b16 %v27
  %v83 = vunpack.c.l.b16 %v28
  %v84 = vunpack.c.l.b16 %v29
  %v85 = vunpack.c.l.b16 %v30
  %v86 = vpack.c.b16 %v71, %v70
  %v87 = vpack.c.b16 %v73, %v72
  %v88 = vpack.c.b16 %v75, %v74
  %v89 = vpack.c.b16 %v77, %v76
  %v90 = vpack.c.b16 %v79, %v78
  %v91 = vpack.c.b16 %v81, %v80
  %v92 = vpack.c.b16 %v83, %v82
  %v93 = vpack.c.b16 %v85, %v84
  %v118 = vunpack.c.l.b16 %v31
  %v119 = vunpack.c.l.b16 %v32
  %v120 = vunpack.c.l.b16 %v33
  %v121 = vunpack.c.l.b16 %v34
  %v122 = vunpack.c.l.b16 %v35
  %v123 = vunpack.c.l.b16 %v36
  %v124 = vunpack.c.l.b16 %v37
  %v125 = vunpack.c.l.b16 %v38
  %v126 = vunpack.c.l.b16 %v39
  %v127 = vunpack.c.l.b16 %v40
  %v128 = vunpack.c.l.b16 %v41
  %v129 = vunpack.c.l.b16 %v42
  %v130 = vunpack.c.l.b16 %v43
  %v131 = vunpack.c.l.b16 %v44
  %v132 = vunpack.c.l.b16 %v45
  %v133 = vunpack.c.l.b16 %v46
  %v134 = vpack.c.b16 %v119, %v118
  %v135 = vpack.c.b16 %v121, %v120
  %v136 = vpack.c.b16 %v123, %v122
  %v137 = vpack.c.b16 %v125, %v124
  %v138 = vpack.c.b16 %v127, %v126
  %v139 = vpack.c.b16 %v129, %v128
  %v140 = vpack.c.b16 %v131, %v130
  %v141 = vpack.c.b16 %v133, %v132
  %150 = vmatprep.subr.bf16.mxu0 0
  %151 = vmatpush1.bf16.msra.mxu0 %v134
  %152 = vmatprep.subr.bf16.mxu0 0
  %153 = vmatpush1.bf16.msra.mxu0 %v135
  %154 = vmatprep.subr.bf16.mxu0 0
  %155 = vmatpush1.bf16.msra.mxu0 %v136
  %156 = vmatprep.subr.bf16.mxu0 0
  %157 = vmatpush1.bf16.msra.mxu0 %v137
  %158 = vmatprep.subr.bf16.mxu0 0
  %159 = vmatpush1.bf16.msra.mxu0 %v138
  %160 = vmatprep.subr.bf16.mxu0 0
  %161 = vmatpush1.bf16.msra.mxu0 %v139
  %162 = vmatprep.subr.bf16.mxu0 0
  %163 = vmatpush1.bf16.msra.mxu0 %v140
  %164 = vmatprep.subr.bf16.mxu0 0
  %165 = vmatpush1.bf16.msra.mxu0 %v141
  %166 = vmatprep.subr.bf16.mxu0 0
  %167 = vmatpush1.bf16.msra.mxu0 0
  %168 = vmatprep.subr.bf16.mxu0 0
  %169 = vmatpush1.bf16.msra.mxu0 0
  %170 = vmatprep.subr.bf16.mxu0 0
  %171 = vmatpush1.bf16.msra.mxu0 0
  %172 = vmatprep.subr.bf16.mxu0 0
  %173 = vmatpush1.bf16.msra.mxu0 0
  %174 = vmatprep.subr.bf16.mxu0 0
  %175 = vmatpush1.bf16.msra.mxu0 0
  %176 = vmatprep.subr.bf16.mxu0 0
  %177 = vmatpush1.bf16.msra.mxu0 0
  %178 = vmatprep.subr.bf16.mxu0 0
  %179 = vmatpush1.bf16.msra.mxu0 0
  %180 = vmatprep.subr.bf16.mxu0 0
  %181 = vmatpush1.bf16.msra.mxu0 0
  %182 = vmatprep.mubr.bf16.mxu0 0
  %183 = vmatmul.mubr.bf16.gmra.mrb[0].mxu0 %v86
  %v184 = vpop.f32.mrb[0].mxu0
  %v185 = vadd.f32 %v52, %v184
  %v186 = vpop.f32.mrb[0].mxu0
  %v187 = vpop.f32.mrb[0].mxu0
  %v188 = vadd.f32 %v52, %v187
  %v189 = vpop.f32.mrb[0].mxu0
  %190 = vmatprep.mubr.bf16.mxu0 0
  %191 = vmatmul.mubr.bf16.gmra.mrb[0].mxu0 %v87
  %v192 = vpop.f32.mrb[0].mxu0
  %v193 = vadd.f32 %v52, %v192
  %v194 = vpop.f32.mrb[0].mxu0
  %v195 = vpop.f32.mrb[0].mxu0
  %v196 = vadd.f32 %v52, %v195
  %v197 = vpop.f32.mrb[0].mxu0
  %198 = vmatprep.mubr.bf16.mxu0 0
  %199 = vmatmul.mubr.bf16.gmra.mrb[0].mxu0 %v88
  %v200 = vpop.f32.mrb[0].mxu0
  %v201 = vadd.f32 %v52, %v200
  %v202 = vpop.f32.mrb[0].mxu0
  %v203 = vpop.f32.mrb[0].mxu0
  %v204 = vadd.f32 %v52, %v203
  %v205 = vpop.f32.mrb[0].mxu0
  %206 = vmatprep.mubr.bf16.mxu0 0
  %207 = vmatmul.mubr.bf16.gmra.mrb[0].mxu0 %v89
  %v208 = vpop.f32.mrb[0].mxu0
  %v209 = vadd.f32 %v52, %v208
  %v210 = vpop.f32.mrb[0].mxu0
  %v211 = vpop.f32.mrb[0].mxu0
  %v212 = vadd.f32 %v52, %v211
  %v213 = vpop.f32.mrb[0].mxu0
  %214 = vmatprep.mubr.bf16.mxu0 0
  %215 = vmatmul.mubr.bf16.gmra.mrb[0].mxu0 %v90
  %v216 = vpop.f32.mrb[0].mxu0
  %v217 = vadd.f32 %v52, %v216
  %v218 = vpop.f32.mrb[0].mxu0
  %v219 = vpop.f32.mrb[0].mxu0
  %v220 = vadd.f32 %v52, %v219
  %v221 = vpop.f32.mrb[0].mxu0
  %222 = vmatprep.mubr.bf16.mxu0 0
  %223 = vmatmul.mubr.bf16.gmra.mrb[0].mxu0 %v91
  %v224 = vpop.f32.mrb[0].mxu0
  %v225 = vadd.f32 %v52, %v224
  %v226 = vpop.f32.mrb[0].mxu0
  %v227 = vpop.f32.mrb[0].mxu0
  %v228 = vadd.f32 %v52, %v227
  %v229 = vpop.f32.mrb[0].mxu0
  %230 = vmatprep.mubr.bf16.mxu0 0
  %231 = vmatmul.mubr.bf16.gmra.mrb[0].mxu0 %v92
  %v232 = vpop.f32.mrb[0].mxu0
  %v233 = vadd.f32 %v52, %v232
  %v234 = vpop.f32.mrb[0].mxu0
  %v235 = vpop.f32.mrb[0].mxu0
  %v236 = vadd.f32 %v52, %v235
  %v237 = vpop.f32.mrb[0].mxu0
  %238 = vmatprep.mubr.bf16.mxu0 0
  %239 = vmatmul.mubr.bf16.gmra.mrb[0].mxu0 %v93
  %v240 = vpop.f32.mrb[0].mxu0
  %v241 = vadd.f32 %v52, %v240
  %v242 = vpop.f32.mrb[0].mxu0
  %v243 = vpop.f32.mrb[0].mxu0
  %v244 = vadd.f32 %v52, %v243
  %v245 = vpop.f32.mrb[0].mxu0
  %246 = vdwg.mxu0
  %vm247 = vcmp.gt.f32.partialorder %v185, 0.0
  %vm248 = vcmp.gt.f32.partialorder %v188, 0.0
  %vm249 = vcmp.gt.f32.partialorder %v193, 0.0
  %vm250 = vcmp.gt.f32.partialorder %v196, 0.0
  %vm251 = vcmp.gt.f32.partialorder %v201, 0.0
  %vm252 = vcmp.gt.f32.partialorder %v204, 0.0
  %vm253 = vcmp.gt.f32.partialorder %v209, 0.0
  %vm254 = vcmp.gt.f32.partialorder %v212, 0.0
  %vm255 = vcmp.gt.f32.partialorder %v217, 0.0
  %vm256 = vcmp.gt.f32.partialorder %v220, 0.0
  %vm257 = vcmp.gt.f32.partialorder %v225, 0.0
  %vm258 = vcmp.gt.f32.partialorder %v228, 0.0
  %vm259 = vcmp.gt.f32.partialorder %v233, 0.0
  %vm260 = vcmp.gt.f32.partialorder %v236, 0.0
  %vm261 = vcmp.gt.f32.partialorder %v241, 0.0
  %vm262 = vcmp.gt.f32.partialorder %v244, 0.0
  %v263 = vmin.f32 %v185, 0.0
  %v264 = vmin.f32 %v188, 0.0
  %v265 = vmin.f32 %v193, 0.0
  %v266 = vmin.f32 %v196, 0.0
  %v267 = vmin.f32 %v201, 0.0
  %v268 = vmin.f32 %v204, 0.0
  %v269 = vmin.f32 %v209, 0.0
  %v270 = vmin.f32 %v212, 0.0
  %v271 = vmin.f32 %v217, 0.0
  %v272 = vmin.f32 %v220, 0.0
  %v273 = vmin.f32 %v225, 0.0
  %v274 = vmin.f32 %v228, 0.0
  %v275 = vmin.f32 %v233, 0.0
  %v276 = vmin.f32 %v236, 0.0
  %v277 = vmin.f32 %v241, 0.0
  %v278 = vmin.f32 %v244, 0.0
  %v279 = vmul.f32 %v263, 1.442695
  %v280 = vpow.pop %v279
  %v281 = vmul.f32 %v264, 1.442695
  %v282 = vpow.pop %v281
  %v283 = vmul.f32 %v265, 1.442695
  %v284 = vpow.pop %v283
  %v285 = vmul.f32 %v266, 1.442695
  %v286 = vpow.pop %v285
  %v287 = vmul.f32 %v267, 1.442695
  %v288 = vpow.pop %v287
  %v289 = vmul.f32 %v268, 1.442695
  %v290 = vpow.pop %v289
  %v291 = vmul.f32 %v269, 1.442695
  %v292 = vpow.pop %v291
  %v293 = vmul.f32 %v270, 1.442695
  %v294 = vpow.pop %v293
  %v295 = vmul.f32 %v271, 1.442695
  %v296 = vpow.pop %v295
  %v297 = vmul.f32 %v272, 1.442695
  %v298 = vpow.pop %v297
  %v299 = vmul.f32 %v273, 1.442695
  %v300 = vpow.pop %v299
  %v301 = vmul.f32 %v274, 1.442695
  %v302 = vpow.pop %v301
  %v303 = vmul.f32 %v275, 1.442695
  %v304 = vpow.pop %v303
  %v305 = vmul.f32 %v276, 1.442695
  %v306 = vpow.pop %v305
  %v307 = vmul.f32 %v277, 1.442695
  %v308 = vpow.pop %v307
  %v309 = vmul.f32 %v278, 1.442695
  %v310 = vpow.pop %v309
  %v311 = vsub.f32 %v280, 1.0
  %v312 = vsub.f32 %v282, 1.0
  %v313 = vsub.f32 %v284, 1.0
  %v314 = vsub.f32 %v286, 1.0
  %v315 = vsub.f32 %v288, 1.0
  %v316 = vsub.f32 %v290, 1.0
  %v317 = vsub.f32 %v292, 1.0
  %v318 = vsub.f32 %v294, 1.0
  %v319 = vsub.f32 %v296, 1.0
  %v320 = vsub.f32 %v298, 1.0
  %v321 = vsub.f32 %v300, 1.0
  %v322 = vsub.f32 %v302, 1.0
  %v323 = vsub.f32 %v304, 1.0
  %v324 = vsub.f32 %v306, 1.0
  %v325 = vsub.f32 %v308, 1.0
  %v326 = vsub.f32 %v310, 1.0
  %v327 = vsel %vm247, %v185, %v311
  %v328 = vsel %vm248, %v188, %v312
  %v329 = vsel %vm249, %v193, %v313
  %v330 = vsel %vm250, %v196, %v314
  %v331 = vsel %vm251, %v201, %v315
  %v332 = vsel %vm252, %v204, %v316
  %v333 = vsel %vm253, %v209, %v317
  %v334 = vsel %vm254, %v212, %v318
  %v335 = vsel %vm255, %v217, %v319
  %v336 = vsel %vm256, %v220, %v320
  %v337 = vsel %vm257, %v225, %v321
  %v338 = vsel %vm258, %v228, %v322
  %v339 = vsel %vm259, %v233, %v323
  %v340 = vsel %vm260, %v236, %v324
  %v341 = vsel %vm261, %v241, %v325
  %v342 = vsel %vm262, %v244, %v326
  %v343 = vpack.c.bf16 %v328, %v327
  %v344 = vpack.c.bf16 %v330, %v329
  %v345 = vpack.c.bf16 %v332, %v331
  %v346 = vpack.c.bf16 %v334, %v333
  %v347 = vpack.c.bf16 %v336, %v335
  %v348 = vpack.c.bf16 %v338, %v337
  %v349 = vpack.c.bf16 %v340, %v339
  %v350 = vpack.c.bf16 %v342, %v341
  %v359 = vunpack.c.l.b16 %v343
  %v360 = vunpack.c.h.b16 %v343
  %v361 = vunpack.c.l.b16 %v344
  %v362 = vunpack.c.h.b16 %v344
  %v363 = vunpack.c.l.b16 %v345
  %v364 = vunpack.c.h.b16 %v345
  %v365 = vunpack.c.l.b16 %v346
  %v366 = vunpack.c.h.b16 %v346
  %v367 = vunpack.c.l.b16 %v347
  %v368 = vunpack.c.h.b16 %v347
  %v369 = vunpack.c.l.b16 %v348
  %v370 = vunpack.c.h.b16 %v348
  %v371 = vunpack.c.l.b16 %v349
  %v372 = vunpack.c.h.b16 %v349
  %v373 = vunpack.c.l.b16 %v350
  %v374 = vunpack.c.h.b16 %v350
  %v375 = vpack.c.b16 %v359, %v359
  %v376 = vpack.c.b16 %v360, %v360
  %v377 = vpack.c.b16 %v361, %v361
  %v378 = vpack.c.b16 %v362, %v362
  %v379 = vpack.c.b16 %v363, %v363
  %v380 = vpack.c.b16 %v364, %v364
  %v381 = vpack.c.b16 %v365, %v365
  %v382 = vpack.c.b16 %v366, %v366
  %v383 = vpack.c.b16 %v367, %v367
  %v384 = vpack.c.b16 %v368, %v368
  %v385 = vpack.c.b16 %v369, %v369
  %v386 = vpack.c.b16 %v370, %v370
  %v387 = vpack.c.b16 %v371, %v371
  %v388 = vpack.c.b16 %v372, %v372
  %v389 = vpack.c.b16 %v373, %v373
  %v390 = vpack.c.b16 %v374, %v374
  %vm407 = vcmask 257024
  %408 = vst.msk [vmem:[%s3] sm:$0xf] %vm407, %v375
  %409 = vst.msk [vmem:[%s3 + $0x4] sm:$0xf] %vm407, %v376
  %410 = vst.msk [vmem:[%s3 + $0x8] sm:$0xf] %vm407, %v377
  %411 = vst.msk [vmem:[%s3 + $0xc] sm:$0xf] %vm407, %v378
  %412 = vst.msk [vmem:[%s3 + $0x10] sm:$0xf] %vm407, %v379
  %413 = vst.msk [vmem:[%s3 + $0x14] sm:$0xf] %vm407, %v380
  %414 = vst.msk [vmem:[%s3 + $0x18] sm:$0xf] %vm407, %v381
  %415 = vst.msk [vmem:[%s3 + $0x1c] sm:$0xf] %vm407, %v382
  %416 = vst.msk [vmem:[%s3 + $0x20] sm:$0xf] %vm407, %v383
  %417 = vst.msk [vmem:[%s3 + $0x24] sm:$0xf] %vm407, %v384
  %418 = vst.msk [vmem:[%s3 + $0x28] sm:$0xf] %vm407, %v385
  %419 = vst.msk [vmem:[%s3 + $0x2c] sm:$0xf] %vm407, %v386
  %420 = vst.msk [vmem:[%s3 + $0x30] sm:$0xf] %vm407, %v387
  %421 = vst.msk [vmem:[%s3 + $0x34] sm:$0xf] %vm407, %v388
  %422 = vst.msk [vmem:[%s3 + $0x38] sm:$0xf] %vm407, %v389
  %423 = vst.msk [vmem:[%s3 + $0x3c] sm:$0xf] %vm407, %v390
  // Predicated region
  $region14: #{sqnet_forward.22} parent=0 // pred_check
    _
  $region15: #{sqnet_forward.22} parent=0 // pred_check_branch
    %425 = sbr.rel (0) target = $region17
  $region16: #{sqnet_forward.22} parent=0 // pred_region
    _
  $region17: #{sqnet_forward.22} parent=0 // pred_fallthru
    _
  // Predicated region
  $region18: #{sqnet_forward.22} parent=0 // pred_check
    _
  $region19: #{sqnet_forward.22} parent=0 // pred_check_branch
    %427 = sbr.rel (0) target = $region21
  $region20: #{sqnet_forward.22} parent=0 // pred_region
    _
  $region21: #{sqnet_forward.22} parent=0 // pred_fallthru
    _

// kernel: sqnet_forward.23
$region0: #{sqnet_forward.23}
  #allocation0 [shape = 'u32[]', space=smem, size = 0x4, offset = 0x4, fixed_abs, tag = 'smem constant byte address 0x4 - core index']
  #allocation1 [shape = 'u32[144,128]{1,0:T(1,128)}', space=vmem, size = 0x12000, scoped, tag = 'internal scratch']
  %s0 = inlined_call_operand.vmem [shape: bf16[512,72], index: 0, kind: input, shape index: {}]
  %s1 = inlined_call_operand.vmem [shape: bf16[72,8], index: 1, kind: input, shape index: {}]
  %s2 = inlined_call_operand.vmem [shape: f32[1,8], index: 2, kind: input, shape index: {}]
  %s3 = inlined_call_operand.vmem [shape: bf16[512,8], index: 3, kind: output, shape index: {}]
  %s4 = sld [smem:[#allocation0]]
  $region22: #{sqnet_forward.23} parent=0
    _
  %s6 = ssub.s32 1, %s4
  %s7 = scalar_select 0, %s6, %s4
  // Predicated region
  $region2: #{sqnet_forward.23} parent=0 // pred_check
    _
  $region3: #{sqnet_forward.23} parent=0 // pred_check_branch
    %9 = sbr.rel (0) target = $region5
  $region4: #{sqnet_forward.23} parent=0 // pred_region
    _
  $region5: #{sqnet_forward.23} parent=0 // pred_fallthru
    _
  // Predicated region
  $region6: #{sqnet_forward.23} parent=0 // pred_check
    _
  $region7: #{sqnet_forward.23} parent=0 // pred_check_branch
    %11 = sbr.rel (0) target = $region9
  $region8: #{sqnet_forward.23} parent=0 // pred_region
    _
  $region9: #{sqnet_forward.23} parent=0 // pred_fallthru
    _
  // Predicated region
  $region10: #{sqnet_forward.23} parent=0 // pred_check
    _
  $region11: #{sqnet_forward.23} parent=0 // pred_check_branch
    %13 = sbr.rel (0) target = $region13
  $region12: #{sqnet_forward.23} parent=0 // pred_region
    _
  $region13: #{sqnet_forward.23} parent=0 // pred_fallthru
    _
  %v15 = vld [vmem:[%s0] sm:$0xf]
  %v16 = vld [vmem:[%s0 + $0x4] sm:$0xf]
  %v17 = vld [vmem:[%s0 + $0x8] sm:$0xf]
  %v18 = vld [vmem:[%s0 + $0xc] sm:$0xf]
  %v19 = vld [vmem:[%s0 + $0x10] sm:$0xf]
  %v20 = vld [vmem:[%s0 + $0x14] sm:$0xf]
  %v21 = vld [vmem:[%s0 + $0x18] sm:$0xf]
  %v22 = vld [vmem:[%s0 + $0x1c] sm:$0xf]
  %v23 = vld [vmem:[%s0 + $0x20] sm:$0xf]
  %v24 = vld [vmem:[%s0 + $0x24] sm:$0xf]
  %v25 = vld [vmem:[%s0 + $0x28] sm:$0xf]
  %v26 = vld [vmem:[%s0 + $0x2c] sm:$0xf]
  %v27 = vld [vmem:[%s0 + $0x30] sm:$0xf]
  %v28 = vld [vmem:[%s0 + $0x34] sm:$0xf]
  %v29 = vld [vmem:[%s0 + $0x38] sm:$0xf]
  %v30 = vld [vmem:[%s0 + $0x3c] sm:$0xf]
  %v31 = vld [vmem:[%s0 + $0x40] sm:$0xf]
  %v32 = vld [vmem:[%s0 + $0x44] sm:$0xf]
  %v33 = vld [vmem:[%s0 + $0x48] sm:$0xf]
  %v34 = vld [vmem:[%s0 + $0x4c] sm:$0xf]
  %v35 = vld [vmem:[%s0 + $0x50] sm:$0xf]
  %v36 = vld [vmem:[%s0 + $0x54] sm:$0xf]
  %v37 = vld [vmem:[%s0 + $0x58] sm:$0xf]
  %v38 = vld [vmem:[%s0 + $0x5c] sm:$0xf]
  %v39 = vld [vmem:[%s0 + $0x60] sm:$0xf]
  %v40 = vld [vmem:[%s0 + $0x64] sm:$0xf]
  %v41 = vld [vmem:[%s0 + $0x68] sm:$0xf]
  %v42 = vld [vmem:[%s0 + $0x6c] sm:$0xf]
  %v43 = vld [vmem:[%s0 + $0x70] sm:$0xf]
  %v44 = vld [vmem:[%s0 + $0x74] sm:$0xf]
  %v45 = vld [vmem:[%s0 + $0x78] sm:$0xf]
  %v46 = vld [vmem:[%s0 + $0x7c] sm:$0xf]
  %v47 = vld [vmem:[%s0 + $0x80] sm:$0xf]
  %v48 = vld [vmem:[%s0 + $0x84] sm:$0xf]
  %v49 = vld [vmem:[%s0 + $0x88] sm:$0xf]
  %v50 = vld [vmem:[%s0 + $0x8c] sm:$0xf]
  %v51 = vld [vmem:[%s0 + $0x90] sm:$0xf]
  %v52 = vld [vmem:[%s0 + $0x94] sm:$0xf]
  %v53 = vld [vmem:[%s0 + $0x98] sm:$0xf]
  %v54 = vld [vmem:[%s0 + $0x9c] sm:$0xf]
  %v55 = vld [vmem:[%s0 + $0xa0] sm:$0xf]
  %v56 = vld [vmem:[%s0 + $0xa4] sm:$0xf]
  %v57 = vld [vmem:[%s0 + $0xa8] sm:$0xf]
  %v58 = vld [vmem:[%s0 + $0xac] sm:$0xf]
  %v59 = vld [vmem:[%s0 + $0xb0] sm:$0xf]
  %v60 = vld [vmem:[%s0 + $0xb4] sm:$0xf]
  %v61 = vld [vmem:[%s0 + $0xb8] sm:$0xf]
  %v62 = vld [vmem:[%s0 + $0xbc] sm:$0xf]
  %v63 = vld [vmem:[%s0 + $0xc0] sm:$0xf]
  %v64 = vld [vmem:[%s0 + $0xc4] sm:$0xf]
  %v65 = vld [vmem:[%s0 + $0xc8] sm:$0xf]
  %v66 = vld [vmem:[%s0 + $0xcc] sm:$0xf]
  %v67 = vld [vmem:[%s0 + $0xd0] sm:$0xf]
  %v68 = vld [vmem:[%s0 + $0xd4] sm:$0xf]
  %v69 = vld [vmem:[%s0 + $0xd8] sm:$0xf]
  %v70 = vld [vmem:[%s0 + $0xdc] sm:$0xf]
  %v71 = vld [vmem:[%s0 + $0xe0] sm:$0xf]
  %v72 = vld [vmem:[%s0 + $0xe4] sm:$0xf]
  %v73 = vld [vmem:[%s0 + $0xe8] sm:$0xf]
  %v74 = vld [vmem:[%s0 + $0xec] sm:$0xf]
  %v75 = vld [vmem:[%s0 + $0xf0] sm:$0xf]
  %v76 = vld [vmem:[%s0 + $0xf4] sm:$0xf]
  %v77 = vld [vmem:[%s0 + $0xf8] sm:$0xf]
  %v78 = vld [vmem:[%s0 + $0xfc] sm:$0xf]
  %v79 = vld [vmem:[%s1] sm:$0xf]
  %v80 = vld [vmem:[%s1 + $0x4] sm:$0xf]
  %v81 = vld [vmem:[%s1 + $0x8] sm:$0xf]
  %v82 = vld [vmem:[%s1 + $0xc] sm:$0xf]
  %v83 = vld [vmem:[%s1 + $0x10] sm:$0xf]
  %v84 = vld [vmem:[%s1 + $0x14] sm:$0xf]
  %v85 = vld [vmem:[%s1 + $0x18] sm:$0xf]
  %v86 = vld [vmem:[%s1 + $0x1c] sm:$0xf]
  %v87 = vld [vmem:[%s1 + $0x20] sm:$0xf]
  %v88 = vld [vmem:[%s2] sm:$0x1]
  %v90 = vlaneseq
  %v91 = vshrl.u32 %v90, 7
  %v92 = vsub.s32 0, %v91
  %v93 = vrot.slane %v88, %v92
  %v159 = vunpack.c.l.b16 %v15
  %v160 = vunpack.c.l.b16 %v16
  %v161 = vunpack.c.l.b16 %v17
  %v162 = vunpack.c.l.b16 %v18
  %v163 = vunpack.c.l.b16 %v19
  %v164 = vunpack.c.l.b16 %v20
  %v165 = vunpack.c.l.b16 %v21
  %v166 = vunpack.c.l.b16 %v22
  %v167 = vunpack.c.l.b16 %v23
  %v168 = vunpack.c.l.b16 %v24
  %v169 = vunpack.c.l.b16 %v25
  %v170 = vunpack.c.l.b16 %v26
  %v171 = vunpack.c.l.b16 %v27
  %v172 = vunpack.c.l.b16 %v28
  %v173 = vunpack.c.l.b16 %v29
  %v174 = vunpack.c.l.b16 %v30
  %v175 = vunpack.c.l.b16 %v31
  %v176 = vunpack.c.l.b16 %v32
  %v177 = vunpack.c.l.b16 %v33
  %v178 = vunpack.c.l.b16 %v34
  %v179 = vunpack.c.l.b16 %v35
  %v180 = vunpack.c.l.b16 %v36
  %v181 = vunpack.c.l.b16 %v37
  %v182 = vunpack.c.l.b16 %v38
  %v183 = vunpack.c.l.b16 %v39
  %v184 = vunpack.c.l.b16 %v40
  %v185 = vunpack.c.l.b16 %v41
  %v186 = vunpack.c.l.b16 %v42
  %v187 = vunpack.c.l.b16 %v43
  %v188 = vunpack.c.l.b16 %v44
  %v189 = vunpack.c.l.b16 %v45
  %v190 = vunpack.c.l.b16 %v46
  %v191 = vunpack.c.l.b16 %v47
  %v192 = vunpack.c.l.b16 %v48
  %v193 = vunpack.c.l.b16 %v49
  %v194 = vunpack.c.l.b16 %v50
  %v195 = vunpack.c.l.b16 %v51
  %v196 = vunpack.c.l.b16 %v52
  %v197 = vunpack.c.l.b16 %v53
  %v198 = vunpack.c.l.b16 %v54
  %v199 = vunpack.c.l.b16 %v55
  %v200 = vunpack.c.l.b16 %v56
  %v201 = vunpack.c.l.b16 %v57
  %v202 = vunpack.c.l.b16 %v58
  %v203 = vunpack.c.l.b16 %v59
  %v204 = vunpack.c.l.b16 %v60
  %v205 = vunpack.c.l.b16 %v61
  %v206 = vunpack.c.l.b16 %v62
  %v207 = vunpack.c.l.b16 %v63
  %v208 = vunpack.c.l.b16 %v64
  %v209 = vunpack.c.l.b16 %v65
  %v210 = vunpack.c.l.b16 %v66
  %v211 = vunpack.c.l.b16 %v67
  %v212 = vunpack.c.l.b16 %v68
  %v213 = vunpack.c.l.b16 %v69
  %v214 = vunpack.c.l.b16 %v70
  %v215 = vunpack.c.l.b16 %v71
  %v216 = vunpack.c.l.b16 %v72
  %v217 = vunpack.c.l.b16 %v73
  %v218 = vunpack.c.l.b16 %v74
  %v219 = vunpack.c.l.b16 %v75
  %v220 = vunpack.c.l.b16 %v76
  %v221 = vunpack.c.l.b16 %v77
  %v222 = vunpack.c.l.b16 %v78
  %v223 = vpack.c.b16 %v160, %v159
  %v224 = vpack.c.b16 %v162, %v161
  %v225 = vpack.c.b16 %v164, %v163
  %v226 = vpack.c.b16 %v166, %v165
  %v227 = vpack.c.b16 %v168, %v167
  %v228 = vpack.c.b16 %v170, %v169
  %v229 = vpack.c.b16 %v172, %v171
  %v230 = vpack.c.b16 %v174, %v173
  %v231 = vpack.c.b16 %v176, %v175
  %v232 = vpack.c.b16 %v178, %v177
  %v233 = vpack.c.b16 %v180, %v179
  %v234 = vpack.c.b16 %v182, %v181
  %v235 = vpack.c.b16 %v184, %v183
  %v236 = vpack.c.b16 %v186, %v185
  %v237 = vpack.c.b16 %v188, %v187
  %v238 = vpack.c.b16 %v190, %v189
  %v239 = vpack.c.b16 %v192, %v191
  %v240 = vpack.c.b16 %v194, %v193
  %v241 = vpack.c.b16 %v196, %v195
  %v242 = vpack.c.b16 %v198, %v197
  %v243 = vpack.c.b16 %v200, %v199
  %v244 = vpack.c.b16 %v202, %v201
  %v245 = vpack.c.b16 %v204, %v203
  %v246 = vpack.c.b16 %v206, %v205
  %v247 = vpack.c.b16 %v208, %v207
  %v248 = vpack.c.b16 %v210, %v209
  %v249 = vpack.c.b16 %v212, %v211
  %v250 = vpack.c.b16 %v214, %v213
  %v251 = vpack.c.b16 %v216, %v215
  %v252 = vpack.c.b16 %v218, %v217
  %v253 = vpack.c.b16 %v220, %v219
  %v254 = vpack.c.b16 %v222, %v221
  %v264 = vunpack.c.l.b16 %v79
  %v265 = vunpack.c.l.b16 %v80
  %v266 = vunpack.c.l.b16 %v81
  %v267 = vunpack.c.l.b16 %v82
  %v268 = vunpack.c.l.b16 %v83
  %v269 = vunpack.c.l.b16 %v84
  %v270 = vunpack.c.l.b16 %v85
  %v271 = vunpack.c.l.b16 %v86
  %v272 = vunpack.c.l.b16 %v87
  %v273 = vpack.c.b16 %v265, %v264
  %v274 = vpack.c.b16 %v267, %v266
  %v275 = vpack.c.b16 %v269, %v268
  %v276 = vpack.c.b16 %v271, %v270
  %v277 = vpack.c.b16 %v272, %v272
  %vm282 = vcmask 588800
  %v284 = vsel %vm282, %v223, 0
  %v287 = vsel %vm282, %v224, 0
  %v290 = vsel %vm282, %v225, 0
  %v293 = vsel %vm282, %v226, 0
  %v296 = vsel %vm282, %v227, 0
  %v299 = vsel %vm282, %v228, 0
  %v302 = vsel %vm282, %v229, 0
  %v305 = vsel %vm282, %v230, 0
  %v308 = vsel %vm282, %v231, 0
  %v311 = vsel %vm282, %v232, 0
  %v314 = vsel %vm282, %v233, 0
  %v317 = vsel %vm282, %v234, 0
  %v320 = vsel %vm282, %v235, 0
  %v323 = vsel %vm282, %v236, 0
  %v326 = vsel %vm282, %v237, 0
  %v329 = vsel %vm282, %v238, 0
  %v332 = vsel %vm282, %v239, 0
  %v335 = vsel %vm282, %v240, 0
  %v338 = vsel %vm282, %v241, 0
  %v341 = vsel %vm282, %v242, 0
  %v344 = vsel %vm282, %v243, 0
  %v347 = vsel %vm282, %v244, 0
  %v350 = vsel %vm282, %v245, 0
  %v353 = vsel %vm282, %v246, 0
  %v356 = vsel %vm282, %v247, 0
  %v359 = vsel %vm282, %v248, 0
  %v362 = vsel %vm282, %v249, 0
  %v365 = vsel %vm282, %v250, 0
  %v368 = vsel %vm282, %v251, 0
  %v371 = vsel %vm282, %v252, 0
  %v374 = vsel %vm282, %v253, 0
  %v377 = vsel %vm282, %v254, 0
  %vm379 = vcmask 1043456
  %v381 = vsel %vm379, %v277, 0
  %383 = vmatprep.subr.bf16.mxu0 0
  %384 = vmatpush1.bf16.msra.mxu0 %v273
  %385 = vmatprep.subr.bf16.mxu0 0
  %386 = vmatpush1.bf16.msra.mxu0 %v274
  %387 = vmatprep.subr.bf16.mxu0 0
  %388 = vmatpush1.bf16.msra.mxu0 %v275
  %389 = vmatprep.subr.bf16.mxu0 0
  %390 = vmatpush1.bf16.msra.mxu0 %v276
  %391 = vmatprep.subr.bf16.mxu0 0
  %392 = vmatpush1.bf16.msra.mxu0 %v381
  %393 = vmatprep.subr.bf16.mxu0 0
  %394 = vmatpush1.bf16.msra.mxu0 0
  %395 = vmatprep.subr.bf16.mxu0 0
  %396 = vmatpush1.bf16.msra.mxu0 0
  %397 = vmatprep.subr.bf16.mxu0 0
  %398 = vmatpush1.bf16.msra.mxu0 0
  %399 = vmatprep.subr.bf16.mxu0 0
  %400 = vmatpush1.bf16.msra.mxu0 0
  %401 = vmatprep.subr.bf16.mxu0 0
  %402 = vmatpush1.bf16.msra.mxu0 0
  %403 = vmatprep.subr.bf16.mxu0 0
  %404 = vmatpush1.bf16.msra.mxu0 0
  %405 = vmatprep.subr.bf16.mxu0 0
  %406 = vmatpush1.bf16.msra.mxu0 0
  %407 = vmatprep.subr.bf16.mxu0 0
  %408 = vmatpush1.bf16.msra.mxu0 0
  %409 = vmatprep.subr.bf16.mxu0 0
  %410 = vmatpush1.bf16.msra.mxu0 0
  %411 = vmatprep.subr.bf16.mxu0 0
  %412 = vmatpush1.bf16.msra.mxu0 0
  %413 = vmatprep.subr.bf16.mxu0 0
  %414 = vmatpush1.bf16.msra.mxu0 0
  %415 = vmatprep.mubr.bf16.mxu0 0
  %416 = vmatmul.mubr.bf16.gmra.mrb[0].mxu0 %v284
  %v417 = vpop.f32.mrb[0].mxu0
  %v418 = vadd.f32 %v93, %v417
  %v419 = vpop.f32.mrb[0].mxu0
  %v420 = vpop.f32.mrb[0].mxu0
  %v421 = vadd.f32 %v93, %v420
  %v422 = vpop.f32.mrb[0].mxu0
  %423 = vmatprep.mubr.bf16.mxu0 0
  %424 = vmatmul.mubr.bf16.gmra.mrb[0].mxu0 %v287
  %v425 = vpop.f32.mrb[0].mxu0
  %v426 = vadd.f32 %v93, %v425
  %v427 = vpop.f32.mrb[0].mxu0
  %v428 = vpop.f32.mrb[0].mxu0
  %v429 = vadd.f32 %v93, %v428
  %v430 = vpop.f32.mrb[0].mxu0
  %431 = vmatprep.mubr.bf16.mxu0 0
  %432 = vmatmul.mubr.bf16.gmra.mrb[0].mxu0 %v290
  %v433 = vpop.f32.mrb[0].mxu0
  %v434 = vadd.f32 %v93, %v433
  %v435 = vpop.f32.mrb[0].mxu0
  %v436 = vpop.f32.mrb[0].mxu0
  %v437 = vadd.f32 %v93, %v436
  %v438 = vpop.f32.mrb[0].mxu0
  %439 = vmatprep.mubr.bf16.mxu0 0
  %440 = vmatmul.mubr.bf16.gmra.mrb[0].mxu0 %v293
  %v441 = vpop.f32.mrb[0].mxu0
  %v442 = vadd.f32 %v93, %v441
  %v443 = vpop.f32.mrb[0].mxu0
  %v444 = vpop.f32.mrb[0].mxu0
  %v445 = vadd.f32 %v93, %v444
  %v446 = vpop.f32.mrb[0].mxu0
  %447 = vmatprep.mubr.bf16.mxu0 0
  %448 = vmatmul.mubr.bf16.gmra.mrb[0].mxu0 %v296
  %v449 = vpop.f32.mrb[0].mxu0
  %v450 = vadd.f32 %v93, %v449
  %v451 = vpop.f32.mrb[0].mxu0
  %v452 = vpop.f32.mrb[0].mxu0
  %v453 = vadd.f32 %v93, %v452
  %v454 = vpop.f32.mrb[0].mxu0
  %455 = vmatprep.mubr.bf16.mxu0 0
  %456 = vmatmul.mubr.bf16.gmra.mrb[0].mxu0 %v299
  %v457 = vpop.f32.mrb[0].mxu0
  %v458 = vadd.f32 %v93, %v457
  %v459 = vpop.f32.mrb[0].mxu0
  %v460 = vpop.f32.mrb[0].mxu0
  %v461 = vadd.f32 %v93, %v460
  %v462 = vpop.f32.mrb[0].mxu0
  %463 = vmatprep.mubr.bf16.mxu0 0
  %464 = vmatmul.mubr.bf16.gmra.mrb[0].mxu0 %v302
  %v465 = vpop.f32.mrb[0].mxu0
  %v466 = vadd.f32 %v93, %v465
  %v467 = vpop.f32.mrb[0].mxu0
  %v468 = vpop.f32.mrb[0].mxu0
  %v469 = vadd.f32 %v93, %v468
  %v470 = vpop.f32.mrb[0].mxu0
  %471 = vmatprep.mubr.bf16.mxu0 0
  %472 = vmatmul.mubr.bf16.gmra.mrb[0].mxu0 %v305
  %v473 = vpop.f32.mrb[0].mxu0
  %v474 = vadd.f32 %v93, %v473
  %v475 = vpop.f32.mrb[0].mxu0
  %v476 = vpop.f32.mrb[0].mxu0
  %v477 = vadd.f32 %v93, %v476
  %v478 = vpop.f32.mrb[0].mxu0
  %479 = vmatprep.mubr.bf16.mxu0 0
  %480 = vmatmul.mubr.bf16.gmra.mrb[0].mxu0 %v308
  %v481 = vpop.f32.mrb[0].mxu0
  %v482 = vadd.f32 %v93, %v481
  %v483 = vpop.f32.mrb[0].mxu0
  %v484 = vpop.f32.mrb[0].mxu0
  %v485 = vadd.f32 %v93, %v484
  %v486 = vpop.f32.mrb[0].mxu0
  %487 = vmatprep.mubr.bf16.mxu0 0
  %488 = vmatmul.mubr.bf16.gmra.mrb[0].mxu0 %v311
  %v489 = vpop.f32.mrb[0].mxu0
  %v490 = vadd.f32 %v93, %v489
  %v491 = vpop.f32.mrb[0].mxu0
  %v492 = vpop.f32.mrb[0].mxu0
  %v493 = vadd.f32 %v93, %v492
  %v494 = vpop.f32.mrb[0].mxu0
  %495 = vmatprep.mubr.bf16.mxu0 0
  %496 = vmatmul.mubr.bf16.gmra.mrb[0].mxu0 %v314
  %v497 = vpop.f32.mrb[0].mxu0
  %v498 = vadd.f32 %v93, %v497
  %v499 = vpop.f32.mrb[0].mxu0
  %v500 = vpop.f32.mrb[0].mxu0
  %v501 = vadd.f32 %v93, %v500
  %v502 = vpop.f32.mrb[0].mxu0
  %503 = vmatprep.mubr.bf16.mxu0 0
  %504 = vmatmul.mubr.bf16.gmra.mrb[0].mxu0 %v317
  %v505 = vpop.f32.mrb[0].mxu0
  %v506 = vadd.f32 %v93, %v505
  %v507 = vpop.f32.mrb[0].mxu0
  %v508 = vpop.f32.mrb[0].mxu0
  %v509 = vadd.f32 %v93, %v508
  %v510 = vpop.f32.mrb[0].mxu0
  %511 = vmatprep.mubr.bf16.mxu0 0
  %512 = vmatmul.mubr.bf16.gmra.mrb[0].mxu0 %v320
  %v513 = vpop.f32.mrb[0].mxu0
  %v514 = vadd.f32 %v93, %v513
  %v515 = vpop.f32.mrb[0].mxu0
  %v516 = vpop.f32.mrb[0].mxu0
  %v517 = vadd.f32 %v93, %v516
  %v518 = vpop.f32.mrb[0].mxu0
  %519 = vmatprep.mubr.bf16.mxu0 0
  %520 = vmatmul.mubr.bf16.gmra.mrb[0].mxu0 %v323
  %v521 = vpop.f32.mrb[0].mxu0
  %v522 = vadd.f32 %v93, %v521
  %v523 = vpop.f32.mrb[0].mxu0
  %v524 = vpop.f32.mrb[0].mxu0
  %v525 = vadd.f32 %v93, %v524
  %v526 = vpop.f32.mrb[0].mxu0
  %527 = vmatprep.mubr.bf16.mxu0 0
  %528 = vmatmul.mubr.bf16.gmra.mrb[0].mxu0 %v326
  %v529 = vpop.f32.mrb[0].mxu0
  %v530 = vadd.f32 %v93, %v529
  %v531 = vpop.f32.mrb[0].mxu0
  %v532 = vpop.f32.mrb[0].mxu0
  %v533 = vadd.f32 %v93, %v532
  %v534 = vpop.f32.mrb[0].mxu0
  %535 = vmatprep.mubr.bf16.mxu0 0
  %536 = vmatmul.mubr.bf16.gmra.mrb[0].mxu0 %v329
  %v537 = vpop.f32.mrb[0].mxu0
  %v538 = vadd.f32 %v93, %v537
  %v539 = vpop.f32.mrb[0].mxu0
  %v540 = vpop.f32.mrb[0].mxu0
  %v541 = vadd.f32 %v93, %v540
  %v542 = vpop.f32.mrb[0].mxu0
  %543 = vmatprep.mubr.bf16.mxu0 0
  %544 = vmatmul.mubr.bf16.gmra.mrb[0].mxu0 %v332
  %v545 = vpop.f32.mrb[0].mxu0
  %v546 = vadd.f32 %v93, %v545
  %v547 = vpop.f32.mrb[0].mxu0
  %v548 = vpop.f32.mrb[0].mxu0
  %v549 = vadd.f32 %v93, %v548
  %v550 = vpop.f32.mrb[0].mxu0
  %551 = vmatprep.mubr.bf16.mxu0 0
  %552 = vmatmul.mubr.bf16.gmra.mrb[0].mxu0 %v335
  %v553 = vpop.f32.mrb[0].mxu0
  %v554 = vadd.f32 %v93, %v553
  %v555 = vpop.f32.mrb[0].mxu0
  %v556 = vpop.f32.mrb[0].mxu0
  %v557 = vadd.f32 %v93, %v556
  %v558 = vpop.f32.mrb[0].mxu0
  %559 = vmatprep.mubr.bf16.mxu0 0
  %560 = vmatmul.mubr.bf16.gmra.mrb[0].mxu0 %v338
  %v561 = vpop.f32.mrb[0].mxu0
  %v562 = vadd.f32 %v93, %v561
  %v563 = vpop.f32.mrb[0].mxu0
  %v564 = vpop.f32.mrb[0].mxu0
  %v565 = vadd.f32 %v93, %v564
  %v566 = vpop.f32.mrb[0].mxu0
  %567 = vmatprep.mubr.bf16.mxu0 0
  %568 = vmatmul.mubr.bf16.gmra.mrb[0].mxu0 %v341
  %v569 = vpop.f32.mrb[0].mxu0
  %v570 = vadd.f32 %v93, %v569
  %v571 = vpop.f32.mrb[0].mxu0
  %v572 = vpop.f32.mrb[0].mxu0
  %v573 = vadd.f32 %v93, %v572
  %v574 = vpop.f32.mrb[0].mxu0
  %575 = vmatprep.mubr.bf16.mxu0 0
  %576 = vmatmul.mubr.bf16.gmra.mrb[0].mxu0 %v344
  %v577 = vpop.f32.mrb[0].mxu0
  %v578 = vadd.f32 %v93, %v577
  %v579 = vpop.f32.mrb[0].mxu0
  %v580 = vpop.f32.mrb[0].mxu0
  %v581 = vadd.f32 %v93, %v580
  %v582 = vpop.f32.mrb[0].mxu0
  %583 = vmatprep.mubr.bf16.mxu0 0
  %584 = vmatmul.mubr.bf16.gmra.mrb[0].mxu0 %v347
  %v585 = vpop.f32.mrb[0].mxu0
  %v586 = vadd.f32 %v93, %v585
  %v587 = vpop.f32.mrb[0].mxu0
  %v588 = vpop.f32.mrb[0].mxu0
  %v589 = vadd.f32 %v93, %v588
  %v590 = vpop.f32.mrb[0].mxu0
  %591 = vmatprep.mubr.bf16.mxu0 0
  %592 = vmatmul.mubr.bf16.gmra.mrb[0].mxu0 %v350
  %v593 = vpop.f32.mrb[0].mxu0
  %v594 = vadd.f32 %v93, %v593
  %v595 = vpop.f32.mrb[0].mxu0
  %v596 = vpop.f32.mrb[0].mxu0
  %v597 = vadd.f32 %v93, %v596
  %v598 = vpop.f32.mrb[0].mxu0
  %599 = vmatprep.mubr.bf16.mxu0 0
  %600 = vmatmul.mubr.bf16.gmra.mrb[0].mxu0 %v353
  %v601 = vpop.f32.mrb[0].mxu0
  %v602 = vadd.f32 %v93, %v601
  %v603 = vpop.f32.mrb[0].mxu0
  %v604 = vpop.f32.mrb[0].mxu0
  %v605 = vadd.f32 %v93, %v604
  %v606 = vpop.f32.mrb[0].mxu0
  %607 = vmatprep.mubr.bf16.mxu0 0
  %608 = vmatmul.mubr.bf16.gmra.mrb[0].mxu0 %v356
  %v609 = vpop.f32.mrb[0].mxu0
  %v610 = vadd.f32 %v93, %v609
  %v611 = vpop.f32.mrb[0].mxu0
  %v612 = vpop.f32.mrb[0].mxu0
  %v613 = vadd.f32 %v93, %v612
  %v614 = vpop.f32.mrb[0].mxu0
  %615 = vmatprep.mubr.bf16.mxu0 0
  %616 = vmatmul.mubr.bf16.gmra.mrb[0].mxu0 %v359
  %v617 = vpop.f32.mrb[0].mxu0
  %v618 = vadd.f32 %v93, %v617
  %v619 = vpop.f32.mrb[0].mxu0
  %v620 = vpop.f32.mrb[0].mxu0
  %v621 = vadd.f32 %v93, %v620
  %v622 = vpop.f32.mrb[0].mxu0
  %623 = vmatprep.mubr.bf16.mxu0 0
  %624 = vmatmul.mubr.bf16.gmra.mrb[0].mxu0 %v362
  %v625 = vpop.f32.mrb[0].mxu0
  %v626 = vadd.f32 %v93, %v625
  %v627 = vpop.f32.mrb[0].mxu0
  %v628 = vpop.f32.mrb[0].mxu0
  %v629 = vadd.f32 %v93, %v628
  %v630 = vpop.f32.mrb[0].mxu0
  %631 = vmatprep.mubr.bf16.mxu0 0
  %632 = vmatmul.mubr.bf16.gmra.mrb[0].mxu0 %v365
  %v633 = vpop.f32.mrb[0].mxu0
  %v634 = vadd.f32 %v93, %v633
  %v635 = vpop.f32.mrb[0].mxu0
  %v636 = vpop.f32.mrb[0].mxu0
  %v637 = vadd.f32 %v93, %v636
  %v638 = vpop.f32.mrb[0].mxu0
  %639 = vmatprep.mubr.bf16.mxu0 0
  %640 = vmatmul.mubr.bf16.gmra.mrb[0].mxu0 %v368
  %v641 = vpop.f32.mrb[0].mxu0
  %v642 = vadd.f32 %v93, %v641
  %v643 = vpop.f32.mrb[0].mxu0
  %v644 = vpop.f32.mrb[0].mxu0
  %v645 = vadd.f32 %v93, %v644
  %v646 = vpop.f32.mrb[0].mxu0
  %647 = vmatprep.mubr.bf16.mxu0 0
  %648 = vmatmul.mubr.bf16.gmra.mrb[0].mxu0 %v371
  %v649 = vpop.f32.mrb[0].mxu0
  %v650 = vadd.f32 %v93, %v649
  %v651 = vpop.f32.mrb[0].mxu0
  %v652 = vpop.f32.mrb[0].mxu0
  %v653 = vadd.f32 %v93, %v652
  %v654 = vpop.f32.mrb[0].mxu0
  %655 = vmatprep.mubr.bf16.mxu0 0
  %656 = vmatmul.mubr.bf16.gmra.mrb[0].mxu0 %v374
  %v657 = vpop.f32.mrb[0].mxu0
  %v658 = vadd.f32 %v93, %v657
  %v659 = vpop.f32.mrb[0].mxu0
  %v660 = vpop.f32.mrb[0].mxu0
  %v661 = vadd.f32 %v93, %v660
  %v662 = vpop.f32.mrb[0].mxu0
  %663 = vmatprep.mubr.bf16.mxu0 0
  %664 = vmatmul.mubr.bf16.gmra.mrb[0].mxu0 %v377
  %v665 = vpop.f32.mrb[0].mxu0
  %v666 = vadd.f32 %v93, %v665
  %v667 = vpop.f32.mrb[0].mxu0
  %v668 = vpop.f32.mrb[0].mxu0
  %v669 = vadd.f32 %v93, %v668
  %v670 = vpop.f32.mrb[0].mxu0
  %671 = vdwg.mxu0
  %vm672 = vcmp.gt.f32.partialorder %v418, 0.0
  %vm673 = vcmp.gt.f32.partialorder %v421, 0.0
  %vm674 = vcmp.gt.f32.partialorder %v426, 0.0
  %vm675 = vcmp.gt.f32.partialorder %v429, 0.0
  %vm676 = vcmp.gt.f32.partialorder %v434, 0.0
  %vm677 = vcmp.gt.f32.partialorder %v437, 0.0
  %vm678 = vcmp.gt.f32.partialorder %v442, 0.0
  %vm679 = vcmp.gt.f32.partialorder %v445, 0.0
  %vm680 = vcmp.gt.f32.partialorder %v450, 0.0
  %vm681 = vcmp.gt.f32.partialorder %v453, 0.0
  %vm682 = vcmp.gt.f32.partialorder %v458, 0.0
  %vm683 = vcmp.gt.f32.partialorder %v461, 0.0
  %vm684 = vcmp.gt.f32.partialorder %v466, 0.0
  %vm685 = vcmp.gt.f32.partialorder %v469, 0.0
  %vm686 = vcmp.gt.f32.partialorder %v474, 0.0
  %vm687 = vcmp.gt.f32.partialorder %v477, 0.0
  %vm688 = vcmp.gt.f32.partialorder %v482, 0.0
  %vm689 = vcmp.gt.f32.partialorder %v485, 0.0
  %vm690 = vcmp.gt.f32.partialorder %v490, 0.0
  %vm691 = vcmp.gt.f32.partialorder %v493, 0.0
  %vm692 = vcmp.gt.f32.partialorder %v498, 0.0
  %vm693 = vcmp.gt.f32.partialorder %v501, 0.0
  %vm694 = vcmp.gt.f32.partialorder %v506, 0.0
  %vm695 = vcmp.gt.f32.partialorder %v509, 0.0
  %vm696 = vcmp.gt.f32.partialorder %v514, 0.0
  %vm697 = vcmp.gt.f32.partialorder %v517, 0.0
  %vm698 = vcmp.gt.f32.partialorder %v522, 0.0
  %vm699 = vcmp.gt.f32.partialorder %v525, 0.0
  %vm700 = vcmp.gt.f32.partialorder %v530, 0.0
  %vm701 = vcmp.gt.f32.partialorder %v533, 0.0
  %vm702 = vcmp.gt.f32.partialorder %v538, 0.0
  %vm703 = vcmp.gt.f32.partialorder %v541, 0.0
  %vm704 = vcmp.gt.f32.partialorder %v546, 0.0
  %vm705 = vcmp.gt.f32.partialorder %v549, 0.0
  %vm706 = vcmp.gt.f32.partialorder %v554, 0.0
  %vm707 = vcmp.gt.f32.partialorder %v557, 0.0
  %vm708 = vcmp.gt.f32.partialorder %v562, 0.0
  %vm709 = vcmp.gt.f32.partialorder %v565, 0.0
  %vm710 = vcmp.gt.f32.partialorder %v570, 0.0
  %vm711 = vcmp.gt.f32.partialorder %v573, 0.0
  %vm712 = vcmp.gt.f32.partialorder %v578, 0.0
  %vm713 = vcmp.gt.f32.partialorder %v581, 0.0
  %vm714 = vcmp.gt.f32.partialorder %v586, 0.0
  %vm715 = vcmp.gt.f32.partialorder %v589, 0.0
  %vm716 = vcmp.gt.f32.partialorder %v594, 0.0
  %vm717 = vcmp.gt.f32.partialorder %v597, 0.0
  %vm718 = vcmp.gt.f32.partialorder %v602, 0.0
  %vm719 = vcmp.gt.f32.partialorder %v605, 0.0
  %vm720 = vcmp.gt.f32.partialorder %v610, 0.0
  %vm721 = vcmp.gt.f32.partialorder %v613, 0.0
  %vm722 = vcmp.gt.f32.partialorder %v618, 0.0
  %vm723 = vcmp.gt.f32.partialorder %v621, 0.0
  %vm724 = vcmp.gt.f32.partialorder %v626, 0.0
  %vm725 = vcmp.gt.f32.partialorder %v629, 0.0
  %vm726 = vcmp.gt.f32.partialorder %v634, 0.0
  %vm727 = vcmp.gt.f32.partialorder %v637, 0.0
  %vm728 = vcmp.gt.f32.partialorder %v642, 0.0
  %vm729 = vcmp.gt.f32.partialorder %v645, 0.0
  %vm730 = vcmp.gt.f32.partialorder %v650, 0.0
  %vm731 = vcmp.gt.f32.partialorder %v653, 0.0
  %vm732 = vcmp.gt.f32.partialorder %v658, 0.0
  %vm733 = vcmp.gt.f32.partialorder %v661, 0.0
  %vm734 = vcmp.gt.f32.partialorder %v666, 0.0
  %vm735 = vcmp.gt.f32.partialorder %v669, 0.0
  %v736 = vmin.f32 %v418, 0.0
  %v737 = vmin.f32 %v421, 0.0
  %v738 = vmin.f32 %v426, 0.0
  %v739 = vmin.f32 %v429, 0.0
  %v740 = vmin.f32 %v434, 0.0
  %v741 = vmin.f32 %v437, 0.0
  %v742 = vmin.f32 %v442, 0.0
  %v743 = vmin.f32 %v445, 0.0
  %v744 = vmin.f32 %v450, 0.0
  %v745 = vmin.f32 %v453, 0.0
  %v746 = vmin.f32 %v458, 0.0
  %v747 = vmin.f32 %v461, 0.0
  %v748 = vmin.f32 %v466, 0.0
  %v749 = vmin.f32 %v469, 0.0
  %v750 = vmin.f32 %v474, 0.0
  %v751 = vmin.f32 %v477, 0.0
  %v752 = vmin.f32 %v482, 0.0
  %v753 = vmin.f32 %v485, 0.0
  %v754 = vmin.f32 %v490, 0.0
  %v755 = vmin.f32 %v493, 0.0
  %v756 = vmin.f32 %v498, 0.0
  %v757 = vmin.f32 %v501, 0.0
  %v758 = vmin.f32 %v506, 0.0
  %v759 = vmin.f32 %v509, 0.0
  %v760 = vmin.f32 %v514, 0.0
  %v761 = vmin.f32 %v517, 0.0
  %v762 = vmin.f32 %v522, 0.0
  %v763 = vmin.f32 %v525, 0.0
  %v764 = vmin.f32 %v530, 0.0
  %v765 = vmin.f32 %v533, 0.0
  %v766 = vmin.f32 %v538, 0.0
  %v767 = vmin.f32 %v541, 0.0
  %v768 = vmin.f32 %v546, 0.0
  %v769 = vmin.f32 %v549, 0.0
  %v770 = vmin.f32 %v554, 0.0
  %v771 = vmin.f32 %v557, 0.0
  %v772 = vmin.f32 %v562, 0.0
  %v773 = vmin.f32 %v565, 0.0
  %v774 = vmin.f32 %v570, 0.0
  %v775 = vmin.f32 %v573, 0.0
  %v776 = vmin.f32 %v578, 0.0
  %v777 = vmin.f32 %v581, 0.0
  %v778 = vmin.f32 %v586, 0.0
  %v779 = vmin.f32 %v589, 0.0
  %v780 = vmin.f32 %v594, 0.0
  %v781 = vmin.f32 %v597, 0.0
  %v782 = vmin.f32 %v602, 0.0
  %v783 = vmin.f32 %v605, 0.0
  %v784 = vmin.f32 %v610, 0.0
  %v785 = vmin.f32 %v613, 0.0
  %v786 = vmin.f32 %v618, 0.0
  %v787 = vmin.f32 %v621, 0.0
  %v788 = vmin.f32 %v626, 0.0
  %v789 = vmin.f32 %v629, 0.0
  %v790 = vmin.f32 %v634, 0.0
  %v791 = vmin.f32 %v637, 0.0
  %v792 = vmin.f32 %v642, 0.0
  %v793 = vmin.f32 %v645, 0.0
  %v794 = vmin.f32 %v650, 0.0
  %v795 = vmin.f32 %v653, 0.0
  %v796 = vmin.f32 %v658, 0.0
  %v797 = vmin.f32 %v661, 0.0
  %v798 = vmin.f32 %v666, 0.0
  %v799 = vmin.f32 %v669, 0.0
  %v800 = vmul.f32 %v736, 1.442695
  %v801 = vpow.pop %v800
  %v802 = vmul.f32 %v737, 1.442695
  %v803 = vpow.pop %v802
  %v804 = vmul.f32 %v738, 1.442695
  %v805 = vpow.pop %v804
  %v806 = vmul.f32 %v739, 1.442695
  %v807 = vpow.pop %v806
  %v808 = vmul.f32 %v740, 1.442695
  %v809 = vpow.pop %v808
  %v810 = vmul.f32 %v741, 1.442695
  %v811 = vpow.pop %v810
  %v812 = vmul.f32 %v742, 1.442695
  %v813 = vpow.pop %v812
  %v814 = vmul.f32 %v743, 1.442695
  %v815 = vpow.pop %v814
  %v816 = vmul.f32 %v744, 1.442695
  %v817 = vpow.pop %v816
  %v818 = vmul.f32 %v745, 1.442695
  %v819 = vpow.pop %v818
  %v820 = vmul.f32 %v746, 1.442695
  %v821 = vpow.pop %v820
  %v822 = vmul.f32 %v747, 1.442695
  %v823 = vpow.pop %v822
  %v824 = vmul.f32 %v748, 1.442695
  %v825 = vpow.pop %v824
  %v826 = vmul.f32 %v749, 1.442695
  %v827 = vpow.pop %v826
  %v828 = vmul.f32 %v750, 1.442695
  %v829 = vpow.pop %v828
  %v830 = vmul.f32 %v751, 1.442695
  %v831 = vpow.pop %v830
  %v832 = vmul.f32 %v752, 1.442695
  %v833 = vpow.pop %v832
  %v834 = vmul.f32 %v753, 1.442695
  %v835 = vpow.pop %v834
  %v836 = vmul.f32 %v754, 1.442695
  %v837 = vpow.pop %v836
  %v838 = vmul.f32 %v755, 1.442695
  %v839 = vpow.pop %v838
  %v840 = vmul.f32 %v756, 1.442695
  %v841 = vpow.pop %v840
  %v842 = vmul.f32 %v757, 1.442695
  %v843 = vpow.pop %v842
  %v844 = vmul.f32 %v758, 1.442695
  %v845 = vpow.pop %v844
  %v846 = vmul.f32 %v759, 1.442695
  %v847 = vpow.pop %v846
  %v848 = vmul.f32 %v760, 1.442695
  %v849 = vpow.pop %v848
  %v850 = vmul.f32 %v761, 1.442695
  %v851 = vpow.pop %v850
  %v852 = vmul.f32 %v762, 1.442695
  %v853 = vpow.pop %v852
  %v854 = vmul.f32 %v763, 1.442695
  %v855 = vpow.pop %v854
  %v856 = vmul.f32 %v764, 1.442695
  %v857 = vpow.pop %v856
  %v858 = vmul.f32 %v765, 1.442695
  %v859 = vpow.pop %v858
  %v860 = vmul.f32 %v766, 1.442695
  %v861 = vpow.pop %v860
  %v862 = vmul.f32 %v767, 1.442695
  %v863 = vpow.pop %v862
  %v864 = vmul.f32 %v768, 1.442695
  %v865 = vpow.pop %v864
  %v866 = vmul.f32 %v769, 1.442695
  %v867 = vpow.pop %v866
  %v868 = vmul.f32 %v770, 1.442695
  %v869 = vpow.pop %v868
  %v870 = vmul.f32 %v771, 1.442695
  %v871 = vpow.pop %v870
  %v872 = vmul.f32 %v772, 1.442695
  %v873 = vpow.pop %v872
  %v874 = vmul.f32 %v773, 1.442695
  %v875 = vpow.pop %v874
  %v876 = vmul.f32 %v774, 1.442695
  %v877 = vpow.pop %v876
  %v878 = vmul.f32 %v775, 1.442695
  %v879 = vpow.pop %v878
  %v880 = vmul.f32 %v776, 1.442695
  %v881 = vpow.pop %v880
  %v882 = vmul.f32 %v777, 1.442695
  %v883 = vpow.pop %v882
  %v884 = vmul.f32 %v778, 1.442695
  %v885 = vpow.pop %v884
  %v886 = vmul.f32 %v779, 1.442695
  %v887 = vpow.pop %v886
  %v888 = vmul.f32 %v780, 1.442695
  %v889 = vpow.pop %v888
  %v890 = vmul.f32 %v781, 1.442695
  %v891 = vpow.pop %v890
  %v892 = vmul.f32 %v782, 1.442695
  %v893 = vpow.pop %v892
  %v894 = vmul.f32 %v783, 1.442695
  %v895 = vpow.pop %v894
  %v896 = vmul.f32 %v784, 1.442695
  %v897 = vpow.pop %v896
  %v898 = vmul.f32 %v785, 1.442695
  %v899 = vpow.pop %v898
  %v900 = vmul.f32 %v786, 1.442695
  %v901 = vpow.pop %v900
  %v902 = vmul.f32 %v787, 1.442695
  %v903 = vpow.pop %v902
  %v904 = vmul.f32 %v788, 1.442695
  %v905 = vpow.pop %v904
  %v906 = vmul.f32 %v789, 1.442695
  %v907 = vpow.pop %v906
  %v908 = vmul.f32 %v790, 1.442695
  %v909 = vpow.pop %v908
  %v910 = vmul.f32 %v791, 1.442695
  %v911 = vpow.pop %v910
  %v912 = vmul.f32 %v792, 1.442695
  %v913 = vpow.pop %v912
  %v914 = vmul.f32 %v793, 1.442695
  %v915 = vpow.pop %v914
  %v916 = vmul.f32 %v794, 1.442695
  %v917 = vpow.pop %v916
  %v918 = vmul.f32 %v795, 1.442695
  %v919 = vpow.pop %v918
  %v920 = vmul.f32 %v796, 1.442695
  %v921 = vpow.pop %v920
  %v922 = vmul.f32 %v797, 1.442695
  %v923 = vpow.pop %v922
  %v924 = vmul.f32 %v798, 1.442695
  %v925 = vpow.pop %v924
  %v926 = vmul.f32 %v799, 1.442695
  %v927 = vpow.pop %v926
  %v928 = vsub.f32 %v801, 1.0
  %v929 = vsub.f32 %v803, 1.0
  %v930 = vsub.f32 %v805, 1.0
  %v931 = vsub.f32 %v807, 1.0
  %v932 = vsub.f32 %v809, 1.0
  %v933 = vsub.f32 %v811, 1.0
  %v934 = vsub.f32 %v813, 1.0
  %v935 = vsub.f32 %v815, 1.0
  %v936 = vsub.f32 %v817, 1.0
  %v937 = vsub.f32 %v819, 1.0
  %v938 = vsub.f32 %v821, 1.0
  %v939 = vsub.f32 %v823, 1.0
  %v940 = vsub.f32 %v825, 1.0
  %v941 = vsub.f32 %v827, 1.0
  %v942 = vsub.f32 %v829, 1.0
  %v943 = vsub.f32 %v831, 1.0
  %v944 = vsub.f32 %v833, 1.0
  %v945 = vsub.f32 %v835, 1.0
  %v946 = vsub.f32 %v837, 1.0
  %v947 = vsub.f32 %v839, 1.0
  %v948 = vsub.f32 %v841, 1.0
  %v949 = vsub.f32 %v843, 1.0
  %v950 = vsub.f32 %v845, 1.0
  %v951 = vsub.f32 %v847, 1.0
  %v952 = vsub.f32 %v849, 1.0
  %v953 = vsub.f32 %v851, 1.0
  %v954 = vsub.f32 %v853, 1.0
  %v955 = vsub.f32 %v855, 1.0
  %v956 = vsub.f32 %v857, 1.0
  %v957 = vsub.f32 %v859, 1.0
  %v958 = vsub.f32 %v861, 1.0
  %v959 = vsub.f32 %v863, 1.0
  %v960 = vsub.f32 %v865, 1.0
  %v961 = vsub.f32 %v867, 1.0
  %v962 = vsub.f32 %v869, 1.0
  %v963 = vsub.f32 %v871, 1.0
  %v964 = vsub.f32 %v873, 1.0
  %v965 = vsub.f32 %v875, 1.0
  %v966 = vsub.f32 %v877, 1.0
  %v967 = vsub.f32 %v879, 1.0
  %v968 = vsub.f32 %v881, 1.0
  %v969 = vsub.f32 %v883, 1.0
  %v970 = vsub.f32 %v885, 1.0
  %v971 = vsub.f32 %v887, 1.0
  %v972 = vsub.f32 %v889, 1.0
  %v973 = vsub.f32 %v891, 1.0
  %v974 = vsub.f32 %v893, 1.0
  %v975 = vsub.f32 %v895, 1.0
  %v976 = vsub.f32 %v897, 1.0
  %v977 = vsub.f32 %v899, 1.0
  %v978 = vsub.f32 %v901, 1.0
  %v979 = vsub.f32 %v903, 1.0
  %v980 = vsub.f32 %v905, 1.0
  %v981 = vsub.f32 %v907, 1.0
  %v982 = vsub.f32 %v909, 1.0
  %v983 = vsub.f32 %v911, 1.0
  %v984 = vsub.f32 %v913, 1.0
  %v985 = vsub.f32 %v915, 1.0
  %v986 = vsub.f32 %v917, 1.0
  %v987 = vsub.f32 %v919, 1.0
  %v988 = vsub.f32 %v921, 1.0
  %v989 = vsub.f32 %v923, 1.0
  %v990 = vsub.f32 %v925, 1.0
  %v991 = vsub.f32 %v927, 1.0
  %v992 = vsel %vm672, %v418, %v928
  %v993 = vsel %vm673, %v421, %v929
  %v994 = vsel %vm674, %v426, %v930
  %v995 = vsel %vm675, %v429, %v931
  %v996 = vsel %vm676, %v434, %v932
  %v997 = vsel %vm677, %v437, %v933
  %v998 = vsel %vm678, %v442, %v934
  %v999 = vsel %vm679, %v445, %v935
  %v1000 = vsel %vm680, %v450, %v936
  %v1001 = vsel %vm681, %v453, %v937
  %v1002 = vsel %vm682, %v458, %v938
  %v1003 = vsel %vm683, %v461, %v939
  %v1004 = vsel %vm684, %v466, %v940
  %v1005 = vsel %vm685, %v469, %v941
  %v1006 = vsel %vm686, %v474, %v942
  %v1007 = vsel %vm687, %v477, %v943
  %v1008 = vsel %vm688, %v482, %v944
  %v1009 = vsel %vm689, %v485, %v945
  %v1010 = vsel %vm690, %v490, %v946
  %v1011 = vsel %vm691, %v493, %v947
  %v1012 = vsel %vm692, %v498, %v948
  %v1013 = vsel %vm693, %v501, %v949
  %v1014 = vsel %vm694, %v506, %v950
  %v1015 = vsel %vm695, %v509, %v951
  %v1016 = vsel %vm696, %v514, %v952
  %v1017 = vsel %vm697, %v517, %v953
  %v1018 = vsel %vm698, %v522, %v954
  %v1019 = vsel %vm699, %v525, %v955
  %v1020 = vsel %vm700, %v530, %v956
  %v1021 = vsel %vm701, %v533, %v957
  %v1022 = vsel %vm702, %v538, %v958
  %v1023 = vsel %vm703, %v541, %v959
  %v1024 = vsel %vm704, %v546, %v960
  %v1025 = vsel %vm705, %v549, %v961
  %v1026 = vsel %vm706, %v554, %v962
  %v1027 = vsel %vm707, %v557, %v963
  %v1028 = vsel %vm708, %v562, %v964
  %v1029 = vsel %vm709, %v565, %v965
  %v1030 = vsel %vm710, %v570, %v966
  %v1031 = vsel %vm711, %v573, %v967
  %v1032 = vsel %vm712, %v578, %v968
  %v1033 = vsel %vm713, %v581, %v969
  %v1034 = vsel %vm714, %v586, %v970
  %v1035 = vsel %vm715, %v589, %v971
  %v1036 = vsel %vm716, %v594, %v972
  %v1037 = vsel %vm717, %v597, %v973
  %v1038 = vsel %vm718, %v602, %v974
  %v1039 = vsel %vm719, %v605, %v975
  %v1040 = vsel %vm720, %v610, %v976
  %v1041 = vsel %vm721, %v613, %v977
  %v1042 = vsel %vm722, %v618, %v978
  %v1043 = vsel %vm723, %v621, %v979
  %v1044 = vsel %vm724, %v626, %v980
  %v1045 = vsel %vm725, %v629, %v981
  %v1046 = vsel %vm726, %v634, %v982
  %v1047 = vsel %vm727, %v637, %v983
  %v1048 = vsel %vm728, %v642, %v984
  %v1049 = vsel %vm729, %v645, %v985
  %v1050 = vsel %vm730, %v650, %v986
  %v1051 = vsel %vm731, %v653, %v987
  %v1052 = vsel %vm732, %v658, %v988
  %v1053 = vsel %vm733, %v661, %v989
  %v1054 = vsel %vm734, %v666, %v990
  %v1055 = vsel %vm735, %v669, %v991
  %v1056 = vpack.c.bf16 %v993, %v992
  %v1057 = vpack.c.bf16 %v995, %v994
  %v1058 = vpack.c.bf16 %v997, %v996
  %v1059 = vpack.c.bf16 %v999, %v998
  %v1060 = vpack.c.bf16 %v1001, %v1000
  %v1061 = vpack.c.bf16 %v1003, %v1002
  %v1062 = vpack.c.bf16 %v1005, %v1004
  %v1063 = vpack.c.bf16 %v1007, %v1006
  %v1064 = vpack.c.bf16 %v1009, %v1008
  %v1065 = vpack.c.bf16 %v1011, %v1010
  %v1066 = vpack.c.bf16 %v1013, %v1012
  %v1067 = vpack.c.bf16 %v1015, %v1014
  %v1068 = vpack.c.bf16 %v1017, %v1016
  %v1069 = vpack.c.bf16 %v1019, %v1018
  %v1070 = vpack.c.bf16 %v1021, %v1020
  %v1071 = vpack.c.bf16 %v1023, %v1022
  %v1072 = vpack.c.bf16 %v1025, %v1024
  %v1073 = vpack.c.bf16 %v1027, %v1026
  %v1074 = vpack.c.bf16 %v1029, %v1028
  %v1075 = vpack.c.bf16 %v1031, %v1030
  %v1076 = vpack.c.bf16 %v1033, %v1032
  %v1077 = vpack.c.bf16 %v1035, %v1034
  %v1078 = vpack.c.bf16 %v1037, %v1036
  %v1079 = vpack.c.bf16 %v1039, %v1038
  %v1080 = vpack.c.bf16 %v1041, %v1040
  %v1081 = vpack.c.bf16 %v1043, %v1042
  %v1082 = vpack.c.bf16 %v1045, %v1044
  %v1083 = vpack.c.bf16 %v1047, %v1046
  %v1084 = vpack.c.bf16 %v1049, %v1048
  %v1085 = vpack.c.bf16 %v1051, %v1050
  %v1086 = vpack.c.bf16 %v1053, %v1052
  %v1087 = vpack.c.bf16 %v1055, %v1054
  %v1120 = vunpack.c.l.b16 %v1056
  %v1121 = vunpack.c.h.b16 %v1056
  %v1122 = vunpack.c.l.b16 %v1057
  %v1123 = vunpack.c.h.b16 %v1057
  %v1124 = vunpack.c.l.b16 %v1058
  %v1125 = vunpack.c.h.b16 %v1058
  %v1126 = vunpack.c.l.b16 %v1059
  %v1127 = vunpack.c.h.b16 %v1059
  %v1128 = vunpack.c.l.b16 %v1060
  %v1129 = vunpack.c.h.b16 %v1060
  %v1130 = vunpack.c.l.b16 %v1061
  %v1131 = vunpack.c.h.b16 %v1061
  %v1132 = vunpack.c.l.b16 %v1062
  %v1133 = vunpack.c.h.b16 %v1062
  %v1134 = vunpack.c.l.b16 %v1063
  %v1135 = vunpack.c.h.b16 %v1063
  %v1136 = vunpack.c.l.b16 %v1064
  %v1137 = vunpack.c.h.b16 %v1064
  %v1138 = vunpack.c.l.b16 %v1065
  %v1139 = vunpack.c.h.b16 %v1065
  %v1140 = vunpack.c.l.b16 %v1066
  %v1141 = vunpack.c.h.b16 %v1066
  %v1142 = vunpack.c.l.b16 %v1067
  %v1143 = vunpack.c.h.b16 %v1067
  %v1144 = vunpack.c.l.b16 %v1068
  %v1145 = vunpack.c.h.b16 %v1068
  %v1146 = vunpack.c.l.b16 %v1069
  %v1147 = vunpack.c.h.b16 %v1069
  %v1148 = vunpack.c.l.b16 %v1070
  %v1149 = vunpack.c.h.b16 %v1070
  %v1150 = vunpack.c.l.b16 %v1071
  %v1151 = vunpack.c.h.b16 %v1071
  %v1152 = vunpack.c.l.b16 %v1072
  %v1153 = vunpack.c.h.b16 %v1072
  %v1154 = vunpack.c.l.b16 %v1073
  %v1155 = vunpack.c.h.b16 %v1073
  %v1156 = vunpack.c.l.b16 %v1074
  %v1157 = vunpack.c.h.b16 %v1074
  %v1158 = vunpack.c.l.b16 %v1075
  %v1159 = vunpack.c.h.b16 %v1075
  %v1160 = vunpack.c.l.b16 %v1076
  %v1161 = vunpack.c.h.b16 %v1076
  %v1162 = vunpack.c.l.b16 %v1077
  %v1163 = vunpack.c.h.b16 %v1077
  %v1164 = vunpack.c.l.b16 %v1078
  %v1165 = vunpack.c.h.b16 %v1078
  %v1166 = vunpack.c.l.b16 %v1079
  %v1167 = vunpack.c.h.b16 %v1079
  %v1168 = vunpack.c.l.b16 %v1080
  %v1169 = vunpack.c.h.b16 %v1080
  %v1170 = vunpack.c.l.b16 %v1081
  %v1171 = vunpack.c.h.b16 %v1081
  %v1172 = vunpack.c.l.b16 %v1082
  %v1173 = vunpack.c.h.b16 %v1082
  %v1174 = vunpack.c.l.b16 %v1083
  %v1175 = vunpack.c.h.b16 %v1083
  %v1176 = vunpack.c.l.b16 %v1084
  %v1177 = vunpack.c.h.b16 %v1084
  %v1178 = vunpack.c.l.b16 %v1085
  %v1179 = vunpack.c.h.b16 %v1085
  %v1180 = vunpack.c.l.b16 %v1086
  %v1181 = vunpack.c.h.b16 %v1086
  %v1182 = vunpack.c.l.b16 %v1087
  %v1183 = vunpack.c.h.b16 %v1087
  %v1184 = vpack.c.b16 %v1120, %v1120
  %v1185 = vpack.c.b16 %v1121, %v1121
  %v1186 = vpack.c.b16 %v1122, %v1122
  %v1187 = vpack.c.b16 %v1123, %v1123
  %v1188 = vpack.c.b16 %v1124, %v1124
  %v1189 = vpack.c.b16 %v1125, %v1125
  %v1190 = vpack.c.b16 %v1126, %v1126
  %v1191 = vpack.c.b16 %v1127, %v1127
  %v1192 = vpack.c.b16 %v1128, %v1128
  %v1193 = vpack.c.b16 %v1129, %v1129
  %v1194 = vpack.c.b16 %v1130, %v1130
  %v1195 = vpack.c.b16 %v1131, %v1131
  %v1196 = vpack.c.b16 %v1132, %v1132
  %v1197 = vpack.c.b16 %v1133, %v1133
  %v1198 = vpack.c.b16 %v1134, %v1134
  %v1199 = vpack.c.b16 %v1135, %v1135
  %v1200 = vpack.c.b16 %v1136, %v1136
  %v1201 = vpack.c.b16 %v1137, %v1137
  %v1202 = vpack.c.b16 %v1138, %v1138
  %v1203 = vpack.c.b16 %v1139, %v1139
  %v1204 = vpack.c.b16 %v1140, %v1140
  %v1205 = vpack.c.b16 %v1141, %v1141
  %v1206 = vpack.c.b16 %v1142, %v1142
  %v1207 = vpack.c.b16 %v1143, %v1143
  %v1208 = vpack.c.b16 %v1144, %v1144
  %v1209 = vpack.c.b16 %v1145, %v1145
  %v1210 = vpack.c.b16 %v1146, %v1146
  %v1211 = vpack.c.b16 %v1147, %v1147
  %v1212 = vpack.c.b16 %v1148, %v1148
  %v1213 = vpack.c.b16 %v1149, %v1149
  %v1214 = vpack.c.b16 %v1150, %v1150
  %v1215 = vpack.c.b16 %v1151, %v1151
  %v1216 = vpack.c.b16 %v1152, %v1152
  %v1217 = vpack.c.b16 %v1153, %v1153
  %v1218 = vpack.c.b16 %v1154, %v1154
  %v1219 = vpack.c.b16 %v1155, %v1155
  %v1220 = vpack.c.b16 %v1156, %v1156
  %v1221 = vpack.c.b16 %v1157, %v1157
  %v1222 = vpack.c.b16 %v1158, %v1158
  %v1223 = vpack.c.b16 %v1159, %v1159
  %v1224 = vpack.c.b16 %v1160, %v1160
  %v1225 = vpack.c.b16 %v1161, %v1161
  %v1226 = vpack.c.b16 %v1162, %v1162
  %v1227 = vpack.c.b16 %v1163, %v1163
  %v1228 = vpack.c.b16 %v1164, %v1164
  %v1229 = vpack.c.b16 %v1165, %v1165
  %v1230 = vpack.c.b16 %v1166, %v1166
  %v1231 = vpack.c.b16 %v1167, %v1167
  %v1232 = vpack.c.b16 %v1168, %v1168
  %v1233 = vpack.c.b16 %v1169, %v1169
  %v1234 = vpack.c.b16 %v1170, %v1170
  %v1235 = vpack.c.b16 %v1171, %v1171
  %v1236 = vpack.c.b16 %v1172, %v1172
  %v1237 = vpack.c.b16 %v1173, %v1173
  %v1238 = vpack.c.b16 %v1174, %v1174
  %v1239 = vpack.c.b16 %v1175, %v1175
  %v1240 = vpack.c.b16 %v1176, %v1176
  %v1241 = vpack.c.b16 %v1177, %v1177
  %v1242 = vpack.c.b16 %v1178, %v1178
  %v1243 = vpack.c.b16 %v1179, %v1179
  %v1244 = vpack.c.b16 %v1180, %v1180
  %v1245 = vpack.c.b16 %v1181, %v1181
  %v1246 = vpack.c.b16 %v1182, %v1182
  %v1247 = vpack.c.b16 %v1183, %v1183
  %vm1312 = vcmask 60416
  %1313 = vst.msk [vmem:[%s3] sm:$0xf] %vm1312, %v1184
  %1314 = vst.msk [vmem:[%s3 + $0x4] sm:$0xf] %vm1312, %v1185
  %1315 = vst.msk [vmem:[%s3 + $0x8] sm:$0xf] %vm1312, %v1186
  %1316 = vst.msk [vmem:[%s3 + $0xc] sm:$0xf] %vm1312, %v1187
  %1317 = vst.msk [vmem:[%s3 + $0x10] sm:$0xf] %vm1312, %v1188
  %1318 = vst.msk [vmem:[%s3 + $0x14] sm:$0xf] %vm1312, %v1189
  %1319 = vst.msk [vmem:[%s3 + $0x18] sm:$0xf] %vm1312, %v1190
  %1320 = vst.msk [vmem:[%s3 + $0x1c] sm:$0xf] %vm1312, %v1191
  %1321 = vst.msk [vmem:[%s3 + $0x20] sm:$0xf] %vm1312, %v1192
  %1322 = vst.msk [vmem:[%s3 + $0x24] sm:$0xf] %vm1312, %v1193
  %1323 = vst.msk [vmem:[%s3 + $0x28] sm:$0xf] %vm1312, %v1194
  %1324 = vst.msk [vmem:[%s3 + $0x2c] sm:$0xf] %vm1312, %v1195
  %1325 = vst.msk [vmem:[%s3 + $0x30] sm:$0xf] %vm1312, %v1196
  %1326 = vst.msk [vmem:[%s3 + $0x34] sm:$0xf] %vm1312, %v1197
  %1327 = vst.msk [vmem:[%s3 + $0x38] sm:$0xf] %vm1312, %v1198
  %1328 = vst.msk [vmem:[%s3 + $0x3c] sm:$0xf] %vm1312, %v1199
  %1329 = vst.msk [vmem:[%s3 + $0x40] sm:$0xf] %vm1312, %v1200
  %1330 = vst.msk [vmem:[%s3 + $0x44] sm:$0xf] %vm1312, %v1201
  %1331 = vst.msk [vmem:[%s3 + $0x48] sm:$0xf] %vm1312, %v1202
  %1332 = vst.msk [vmem:[%s3 + $0x4c] sm:$0xf] %vm1312, %v1203
  %1333 = vst.msk [vmem:[%s3 + $0x50] sm:$0xf] %vm1312, %v1204
  %1334 = vst.msk [vmem:[%s3 + $0x54] sm:$0xf] %vm1312, %v1205
  %1335 = vst.msk [vmem:[%s3 + $0x58] sm:$0xf] %vm1312, %v1206
  %1336 = vst.msk [vmem:[%s3 + $0x5c] sm:$0xf] %vm1312, %v1207
  %1337 = vst.msk [vmem:[%s3 + $0x60] sm:$0xf] %vm1312, %v1208
  %1338 = vst.msk [vmem:[%s3 + $0x64] sm:$0xf] %vm1312, %v1209
  %1339 = vst.msk [vmem:[%s3 + $0x68] sm:$0xf] %vm1312, %v1210
  %1340 = vst.msk [vmem:[%s3 + $0x6c] sm:$0xf] %vm1312, %v1211
  %1341 = vst.msk [vmem:[%s3 + $0x70] sm:$0xf] %vm1312, %v1212
  %1342 = vst.msk [vmem:[%s3 + $0x74] sm:$0xf] %vm1312, %v1213
  %1343 = vst.msk [vmem:[%s3 + $0x78] sm:$0xf] %vm1312, %v1214
  %1344 = vst.msk [vmem:[%s3 + $0x7c] sm:$0xf] %vm1312, %v1215
  %1345 = vst.msk [vmem:[%s3 + $0x80] sm:$0xf] %vm1312, %v1216
  %1346 = vst.msk [vmem:[%s3 + $0x84] sm:$0xf] %vm1312, %v1217
  %1347 = vst.msk [vmem:[%s3 + $0x88] sm:$0xf] %vm1312, %v1218
  %1348 = vst.msk [vmem:[%s3 + $0x8c] sm:$0xf] %vm1312, %v1219
  %1349 = vst.msk [vmem:[%s3 + $0x90] sm:$0xf] %vm1312, %v1220
  %1350 = vst.msk [vmem:[%s3 + $0x94] sm:$0xf] %vm1312, %v1221
  %1351 = vst.msk [vmem:[%s3 + $0x98] sm:$0xf] %vm1312, %v1222
  %1352 = vst.msk [vmem:[%s3 + $0x9c] sm:$0xf] %vm1312, %v1223
  %1353 = vst.msk [vmem:[%s3 + $0xa0] sm:$0xf] %vm1312, %v1224
  %1354 = vst.msk [vmem:[%s3 + $0xa4] sm:$0xf] %vm1312, %v1225
  %1355 = vst.msk [vmem:[%s3 + $0xa8] sm:$0xf] %vm1312, %v1226
  %1356 = vst.msk [vmem:[%s3 + $0xac] sm:$0xf] %vm1312, %v1227
  %1357 = vst.msk [vmem:[%s3 + $0xb0] sm:$0xf] %vm1312, %v1228
  %1358 = vst.msk [vmem:[%s3 + $0xb4] sm:$0xf] %vm1312, %v1229
  %1359 = vst.msk [vmem:[%s3 + $0xb8] sm:$0xf] %vm1312, %v1230
  %1360 = vst.msk [vmem:[%s3 + $0xbc] sm:$0xf] %vm1312, %v1231
  %1361 = vst.msk [vmem:[%s3 + $0xc0] sm:$0xf] %vm1312, %v1232
  %1362 = vst.msk [vmem:[%s3 + $0xc4] sm:$0xf] %vm1312, %v1233
  %1363 = vst.msk [vmem:[%s3 + $0xc8] sm:$0xf] %vm1312, %v1234
  %1364 = vst.msk [vmem:[%s3 + $0xcc] sm:$0xf] %vm1312, %v1235
  %1365 = vst.msk [vmem:[%s3 + $0xd0] sm:$0xf] %vm1312, %v1236
  %1366 = vst.msk [vmem:[%s3 + $0xd4] sm:$0xf] %vm1312, %v1237
  %1367 = vst.msk [vmem:[%s3 + $0xd8] sm:$0xf] %vm1312, %v1238
  %1368 = vst.msk [vmem:[%s3 + $0xdc] sm:$0xf] %vm1312, %v1239
  %1369 = vst.msk [vmem:[%s3 + $0xe0] sm:$0xf] %vm1312, %v1240
  %1370 = vst.msk [vmem:[%s3 + $0xe4] sm:$0xf] %vm1312, %v1241
  %1371 = vst.msk [vmem:[%s3 + $0xe8] sm:$0xf] %vm1312, %v1242
  %1372 = vst.msk [vmem:[%s3 + $0xec] sm:$0xf] %vm1312, %v1243
  %1373 = vst.msk [vmem:[%s3 + $0xf0] sm:$0xf] %vm1312, %v1244
  %1374 = vst.msk [vmem:[%s3 + $0xf4] sm:$0xf] %vm1312, %v1245
  %1375 = vst.msk [vmem:[%s3 + $0xf8] sm:$0xf] %vm1312, %v1246
  %1376 = vst.msk [vmem:[%s3 + $0xfc] sm:$0xf] %vm1312, %v1247
  // Predicated region
  $region14: #{sqnet_forward.23} parent=0 // pred_check
    _
  $region15: #{sqnet_forward.23} parent=0 // pred_check_branch
    %1378 = sbr.rel (0) target = $region17
  $region16: #{sqnet_forward.23} parent=0 // pred_region
    _
  $region17: #{sqnet_forward.23} parent=0 // pred_fallthru
    _
  // Predicated region
  $region18: #{sqnet_forward.23} parent=0 // pred_check
    _
  $region19: #{sqnet_forward.23} parent=0 // pred_check_branch
    %1380 = sbr.rel (0) target = $region21
  $region20: #{sqnet_forward.23} parent=0 // pred_region
    _
  $region21: #{sqnet_forward.23} parent=0 // pred_fallthru
    _

// kernel: sqnet_forward.24
$region0: #{sqnet_forward.24}
  #allocation0 [shape = 'u32[]', space=smem, size = 0x4, offset = 0x4, fixed_abs, tag = 'smem constant byte address 0x4 - core index']
  #allocation1 [shape = 'u32[144,128]{1,0:T(1,128)}', space=vmem, size = 0x12000, scoped, tag = 'internal scratch']
  %s0 = inlined_call_operand.vmem [shape: bf16[512,144], index: 0, kind: input, shape index: {}]
  %s1 = inlined_call_operand.vmem [shape: bf16[144,16], index: 1, kind: input, shape index: {}]
  %s2 = inlined_call_operand.vmem [shape: f32[1,16], index: 2, kind: input, shape index: {}]
  %s3 = inlined_call_operand.vmem [shape: bf16[512,16], index: 3, kind: output, shape index: {}]
  %s4 = sld [smem:[#allocation0]]
  $region22: #{sqnet_forward.24} parent=0
    _
  %s6 = ssub.s32 1, %s4
  %s7 = scalar_select 0, %s6, %s4
  // Predicated region
  $region2: #{sqnet_forward.24} parent=0 // pred_check
    _
  $region3: #{sqnet_forward.24} parent=0 // pred_check_branch
    %9 = sbr.rel (0) target = $region5
  $region4: #{sqnet_forward.24} parent=0 // pred_region
    _
  $region5: #{sqnet_forward.24} parent=0 // pred_fallthru
    _
  // Predicated region
  $region6: #{sqnet_forward.24} parent=0 // pred_check
    _
  $region7: #{sqnet_forward.24} parent=0 // pred_check_branch
    %11 = sbr.rel (0) target = $region9
  $region8: #{sqnet_forward.24} parent=0 // pred_region
    _
  $region9: #{sqnet_forward.24} parent=0 // pred_fallthru
    _
  // Predicated region
  $region10: #{sqnet_forward.24} parent=0 // pred_check
    _
  $region11: #{sqnet_forward.24} parent=0 // pred_check_branch
    %13 = sbr.rel (0) target = $region13
  $region12: #{sqnet_forward.24} parent=0 // pred_region
    _
  $region13: #{sqnet_forward.24} parent=0 // pred_fallthru
    _
  %v15 = vld [vmem:[%s0] sm:$0xff]
  %v16 = vld [vmem:[%s0 + $0x8] sm:$0xff]
  %v17 = vld [vmem:[%s0 + $0x10] sm:$0xff]
  %v18 = vld [vmem:[%s0 + $0x18] sm:$0xff]
  %v19 = vld [vmem:[%s0 + $0x20] sm:$0xff]
  %v20 = vld [vmem:[%s0 + $0x28] sm:$0xff]
  %v21 = vld [vmem:[%s0 + $0x30] sm:$0xff]
  %v22 = vld [vmem:[%s0 + $0x38] sm:$0xff]
  %v23 = vld [vmem:[%s0 + $0x40] sm:$0xff]
  %v24 = vld [vmem:[%s0 + $0x48] sm:$0xff]
  %v25 = vld [vmem:[%s0 + $0x50] sm:$0xff]
  %v26 = vld [vmem:[%s0 + $0x58] sm:$0xff]
  %v27 = vld [vmem:[%s0 + $0x60] sm:$0xff]
  %v28 = vld [vmem:[%s0 + $0x68] sm:$0xff]
  %v29 = vld [vmem:[%s0 + $0x70] sm:$0xff]
  %v30 = vld [vmem:[%s0 + $0x78] sm:$0xff]
  %v31 = vld [vmem:[%s0 + $0x80] sm:$0xff]
  %v32 = vld [vmem:[%s0 + $0x88] sm:$0xff]
  %v33 = vld [vmem:[%s0 + $0x90] sm:$0xff]
  %v34 = vld [vmem:[%s0 + $0x98] sm:$0xff]
  %v35 = vld [vmem:[%s0 + $0xa0] sm:$0xff]
  %v36 = vld [vmem:[%s0 + $0xa8] sm:$0xff]
  %v37 = vld [vmem:[%s0 + $0xb0] sm:$0xff]
  %v38 = vld [vmem:[%s0 + $0xb8] sm:$0xff]
  %v39 = vld [vmem:[%s0 + $0xc0] sm:$0xff]
  %v40 = vld [vmem:[%s0 + $0xc8] sm:$0xff]
  %v41 = vld [vmem:[%s0 + $0xd0] sm:$0xff]
  %v42 = vld [vmem:[%s0 + $0xd8] sm:$0xff]
  %v43 = vld [vmem:[%s0 + $0xe0] sm:$0xff]
  %v44 = vld [vmem:[%s0 + $0xe8] sm:$0xff]
  %v45 = vld [vmem:[%s0 + $0xf0] sm:$0xff]
  %v46 = vld [vmem:[%s0 + $0xf8] sm:$0xff]
  %v47 = vld [vmem:[%s0 + $0x100] sm:$0xff]
  %v48 = vld [vmem:[%s0 + $0x108] sm:$0xff]
  %v49 = vld [vmem:[%s0 + $0x110] sm:$0xff]
  %v50 = vld [vmem:[%s0 + $0x118] sm:$0xff]
  %v51 = vld [vmem:[%s0 + $0x120] sm:$0xff]
  %v52 = vld [vmem:[%s0 + $0x128] sm:$0xff]
  %v53 = vld [vmem:[%s0 + $0x130] sm:$0xff]
  %v54 = vld [vmem:[%s0 + $0x138] sm:$0xff]
  %v55 = vld [vmem:[%s0 + $0x140] sm:$0xff]
  %v56 = vld [vmem:[%s0 + $0x148] sm:$0xff]
  %v57 = vld [vmem:[%s0 + $0x150] sm:$0xff]
  %v58 = vld [vmem:[%s0 + $0x158] sm:$0xff]
  %v59 = vld [vmem:[%s0 + $0x160] sm:$0xff]
  %v60 = vld [vmem:[%s0 + $0x168] sm:$0xff]
  %v61 = vld [vmem:[%s0 + $0x170] sm:$0xff]
  %v62 = vld [vmem:[%s0 + $0x178] sm:$0xff]
  %v63 = vld [vmem:[%s0 + $0x180] sm:$0xff]
  %v64 = vld [vmem:[%s0 + $0x188] sm:$0xff]
  %v65 = vld [vmem:[%s0 + $0x190] sm:$0xff]
  %v66 = vld [vmem:[%s0 + $0x198] sm:$0xff]
  %v67 = vld [vmem:[%s0 + $0x1a0] sm:$0xff]
  %v68 = vld [vmem:[%s0 + $0x1a8] sm:$0xff]
  %v69 = vld [vmem:[%s0 + $0x1b0] sm:$0xff]
  %v70 = vld [vmem:[%s0 + $0x1b8] sm:$0xff]
  %v71 = vld [vmem:[%s0 + $0x1c0] sm:$0xff]
  %v72 = vld [vmem:[%s0 + $0x1c8] sm:$0xff]
  %v73 = vld [vmem:[%s0 + $0x1d0] sm:$0xff]
  %v74 = vld [vmem:[%s0 + $0x1d8] sm:$0xff]
  %v75 = vld [vmem:[%s0 + $0x1e0] sm:$0xff]
  %v76 = vld [vmem:[%s0 + $0x1e8] sm:$0xff]
  %v77 = vld [vmem:[%s0 + $0x1f0] sm:$0xff]
  %v78 = vld [vmem:[%s0 + $0x1f8] sm:$0xff]
  %v79 = vld [vmem:[%s1] sm:$0xf]
  %v80 = vld [vmem:[%s1 + $0x4] sm:$0xf]
  %v81 = vld [vmem:[%s1 + $0x8] sm:$0xf]
  %v82 = vld [vmem:[%s1 + $0xc] sm:$0xf]
  %v83 = vld [vmem:[%s1 + $0x10] sm:$0xf]
  %v84 = vld [vmem:[%s1 + $0x14] sm:$0xf]
  %v85 = vld [vmem:[%s1 + $0x18] sm:$0xf]
  %v86 = vld [vmem:[%s1 + $0x1c] sm:$0xf]
  %v87 = vld [vmem:[%s1 + $0x20] sm:$0xf]
  %v88 = vld [vmem:[%s1 + $0x24] sm:$0xf]
  %v89 = vld [vmem:[%s1 + $0x28] sm:$0xf]
  %v90 = vld [vmem:[%s1 + $0x2c] sm:$0xf]
  %v91 = vld [vmem:[%s1 + $0x30] sm:$0xf]
  %v92 = vld [vmem:[%s1 + $0x34] sm:$0xf]
  %v93 = vld [vmem:[%s1 + $0x38] sm:$0xf]
  %v94 = vld [vmem:[%s1 + $0x3c] sm:$0xf]
  %v95 = vld [vmem:[%s1 + $0x40] sm:$0xf]
  %v96 = vld [vmem:[%s1 + $0x44] sm:$0xf]
  %v97 = vld [vmem:[%s2] sm:$0x1]
  %v99 = vlaneseq
  %v100 = vshrl.u32 %v99, 7
  %v101 = vsub.s32 0, %v100
  %v102 = vrot.slane %v97, %v101
  %v168 = vunpack.c.l.b16 %v15
  %v169 = vunpack.c.h.b16 %v15
  %v170 = vunpack.c.l.b16 %v16
  %v171 = vunpack.c.h.b16 %v16
  %v172 = vunpack.c.l.b16 %v17
  %v173 = vunpack.c.h.b16 %v17
  %v174 = vunpack.c.l.b16 %v18
  %v175 = vunpack.c.h.b16 %v18
  %v176 = vunpack.c.l.b16 %v19
  %v177 = vunpack.c.h.b16 %v19
  %v178 = vunpack.c.l.b16 %v20
  %v179 = vunpack.c.h.b16 %v20
  %v180 = vunpack.c.l.b16 %v21
  %v181 = vunpack.c.h.b16 %v21
  %v182 = vunpack.c.l.b16 %v22
  %v183 = vunpack.c.h.b16 %v22
  %v184 = vunpack.c.l.b16 %v23
  %v185 = vunpack.c.h.b16 %v23
  %v186 = vunpack.c.l.b16 %v24
  %v187 = vunpack.c.h.b16 %v24
  %v188 = vunpack.c.l.b16 %v25
  %v189 = vunpack.c.h.b16 %v25
  %v190 = vunpack.c.l.b16 %v26
  %v191 = vunpack.c.h.b16 %v26
  %v192 = vunpack.c.l.b16 %v27
  %v193 = vunpack.c.h.b16 %v27
  %v194 = vunpack.c.l.b16 %v28
  %v195 = vunpack.c.h.b16 %v28
  %v196 = vunpack.c.l.b16 %v29
  %v197 = vunpack.c.h.b16 %v29
  %v198 = vunpack.c.l.b16 %v30
  %v199 = vunpack.c.h.b16 %v30
  %v200 = vunpack.c.l.b16 %v31
  %v201 = vunpack.c.h.b16 %v31
  %v202 = vunpack.c.l.b16 %v32
  %v203 = vunpack.c.h.b16 %v32
  %v204 = vunpack.c.l.b16 %v33
  %v205 = vunpack.c.h.b16 %v33
  %v206 = vunpack.c.l.b16 %v34
  %v207 = vunpack.c.h.b16 %v34
  %v208 = vunpack.c.l.b16 %v35
  %v209 = vunpack.c.h.b16 %v35
  %v210 = vunpack.c.l.b16 %v36
  %v211 = vunpack.c.h.b16 %v36
  %v212 = vunpack.c.l.b16 %v37
  %v213 = vunpack.c.h.b16 %v37
  %v214 = vunpack.c.l.b16 %v38
  %v215 = vunpack.c.h.b16 %v38
  %v216 = vunpack.c.l.b16 %v39
  %v217 = vunpack.c.h.b16 %v39
  %v218 = vunpack.c.l.b16 %v40
  %v219 = vunpack.c.h.b16 %v40
  %v220 = vunpack.c.l.b16 %v41
  %v221 = vunpack.c.h.b16 %v41
  %v222 = vunpack.c.l.b16 %v42
  %v223 = vunpack.c.h.b16 %v42
  %v224 = vunpack.c.l.b16 %v43
  %v225 = vunpack.c.h.b16 %v43
  %v226 = vunpack.c.l.b16 %v44
  %v227 = vunpack.c.h.b16 %v44
  %v228 = vunpack.c.l.b16 %v45
  %v229 = vunpack.c.h.b16 %v45
  %v230 = vunpack.c.l.b16 %v46
  %v231 = vunpack.c.h.b16 %v46
  %v232 = vunpack.c.l.b16 %v47
  %v233 = vunpack.c.h.b16 %v47
  %v234 = vunpack.c.l.b16 %v48
  %v235 = vunpack.c.h.b16 %v48
  %v236 = vunpack.c.l.b16 %v49
  %v237 = vunpack.c.h.b16 %v49
  %v238 = vunpack.c.l.b16 %v50
  %v239 = vunpack.c.h.b16 %v50
  %v240 = vunpack.c.l.b16 %v51
  %v241 = vunpack.c.h.b16 %v51
  %v242 = vunpack.c.l.b16 %v52
  %v243 = vunpack.c.h.b16 %v52
  %v244 = vunpack.c.l.b16 %v53
  %v245 = vunpack.c.h.b16 %v53
  %v246 = vunpack.c.l.b16 %v54
  %v247 = vunpack.c.h.b16 %v54
  %v248 = vunpack.c.l.b16 %v55
  %v249 = vunpack.c.h.b16 %v55
  %v250 = vunpack.c.l.b16 %v56
  %v251 = vunpack.c.h.b16 %v56
  %v252 = vunpack.c.l.b16 %v57
  %v253 = vunpack.c.h.b16 %v57
  %v254 = vunpack.c.l.b16 %v58
  %v255 = vunpack.c.h.b16 %v58
  %v256 = vunpack.c.l.b16 %v59
  %v257 = vunpack.c.h.b16 %v59
  %v258 = vunpack.c.l.b16 %v60
  %v259 = vunpack.c.h.b16 %v60
  %v260 = vunpack.c.l.b16 %v61
  %v261 = vunpack.c.h.b16 %v61
  %v262 = vunpack.c.l.b16 %v62
  %v263 = vunpack.c.h.b16 %v62
  %v264 = vunpack.c.l.b16 %v63
  %v265 = vunpack.c.h.b16 %v63
  %v266 = vunpack.c.l.b16 %v64
  %v267 = vunpack.c.h.b16 %v64
  %v268 = vunpack.c.l.b16 %v65
  %v269 = vunpack.c.h.b16 %v65
  %v270 = vunpack.c.l.b16 %v66
  %v271 = vunpack.c.h.b16 %v66
  %v272 = vunpack.c.l.b16 %v67
  %v273 = vunpack.c.h.b16 %v67
  %v274 = vunpack.c.l.b16 %v68
  %v275 = vunpack.c.h.b16 %v68
  %v276 = vunpack.c.l.b16 %v69
  %v277 = vunpack.c.h.b16 %v69
  %v278 = vunpack.c.l.b16 %v70
  %v279 = vunpack.c.h.b16 %v70
  %v280 = vunpack.c.l.b16 %v71
  %v281 = vunpack.c.h.b16 %v71
  %v282 = vunpack.c.l.b16 %v72
  %v283 = vunpack.c.h.b16 %v72
  %v284 = vunpack.c.l.b16 %v73
  %v285 = vunpack.c.h.b16 %v73
  %v286 = vunpack.c.l.b16 %v74
  %v287 = vunpack.c.h.b16 %v74
  %v288 = vunpack.c.l.b16 %v75
  %v289 = vunpack.c.h.b16 %v75
  %v290 = vunpack.c.l.b16 %v76
  %v291 = vunpack.c.h.b16 %v76
  %v292 = vunpack.c.l.b16 %v77
  %v293 = vunpack.c.h.b16 %v77
  %v294 = vunpack.c.l.b16 %v78
  %v295 = vunpack.c.h.b16 %v78
  %v296 = vpack.c.b16 %v170, %v168
  %v297 = vpack.c.b16 %v171, %v169
  %v298 = vpack.c.b16 %v174, %v172
  %v299 = vpack.c.b16 %v175, %v173
  %v300 = vpack.c.b16 %v178, %v176
  %v301 = vpack.c.b16 %v179, %v177
  %v302 = vpack.c.b16 %v182, %v180
  %v303 = vpack.c.b16 %v183, %v181
  %v304 = vpack.c.b16 %v186, %v184
  %v305 = vpack.c.b16 %v187, %v185
  %v306 = vpack.c.b16 %v190, %v188
  %v307 = vpack.c.b16 %v191, %v189
  %v308 = vpack.c.b16 %v194, %v192
  %v309 = vpack.c.b16 %v195, %v193
  %v310 = vpack.c.b16 %v198, %v196
  %v311 = vpack.c.b16 %v199, %v197
  %v312 = vpack.c.b16 %v202, %v200
  %v313 = vpack.c.b16 %v203, %v201
  %v314 = vpack.c.b16 %v206, %v204
  %v315 = vpack.c.b16 %v207, %v205
  %v316 = vpack.c.b16 %v210, %v208
  %v317 = vpack.c.b16 %v211, %v209
  %v318 = vpack.c.b16 %v214, %v212
  %v319 = vpack.c.b16 %v215, %v213
  %v320 = vpack.c.b16 %v218, %v216
  %v321 = vpack.c.b16 %v219, %v217
  %v322 = vpack.c.b16 %v222, %v220
  %v323 = vpack.c.b16 %v223, %v221
  %v324 = vpack.c.b16 %v226, %v224
  %v325 = vpack.c.b16 %v227, %v225
  %v326 = vpack.c.b16 %v230, %v228
  %v327 = vpack.c.b16 %v231, %v229
  %v328 = vpack.c.b16 %v234, %v232
  %v329 = vpack.c.b16 %v235, %v233
  %v330 = vpack.c.b16 %v238, %v236
  %v331 = vpack.c.b16 %v239, %v237
  %v332 = vpack.c.b16 %v242, %v240
  %v333 = vpack.c.b16 %v243, %v241
  %v334 = vpack.c.b16 %v246, %v244
  %v335 = vpack.c.b16 %v247, %v245
  %v336 = vpack.c.b16 %v250, %v248
  %v337 = vpack.c.b16 %v251, %v249
  %v338 = vpack.c.b16 %v254, %v252
  %v339 = vpack.c.b16 %v255, %v253
  %v340 = vpack.c.b16 %v258, %v256
  %v341 = vpack.c.b16 %v259, %v257
  %v342 = vpack.c.b16 %v262, %v260
  %v343 = vpack.c.b16 %v263, %v261
  %v344 = vpack.c.b16 %v266, %v264
  %v345 = vpack.c.b16 %v267, %v265
  %v346 = vpack.c.b16 %v270, %v268
  %v347 = vpack.c.b16 %v271, %v269
  %v348 = vpack.c.b16 %v274, %v272
  %v349 = vpack.c.b16 %v275, %v273
  %v350 = vpack.c.b16 %v278, %v276
  %v351 = vpack.c.b16 %v279, %v277
  %v352 = vpack.c.b16 %v282, %v280
  %v353 = vpack.c.b16 %v283, %v281
  %v354 = vpack.c.b16 %v286, %v284
  %v355 = vpack.c.b16 %v287, %v285
  %v356 = vpack.c.b16 %v290, %v288
  %v357 = vpack.c.b16 %v291, %v289
  %v358 = vpack.c.b16 %v294, %v292
  %v359 = vpack.c.b16 %v295, %v293
  %v410 = vunpack.c.l.b16 %v79
  %v411 = vunpack.c.l.b16 %v80
  %v412 = vunpack.c.l.b16 %v81
  %v413 = vunpack.c.l.b16 %v82
  %v414 = vunpack.c.l.b16 %v83
  %v415 = vunpack.c.l.b16 %v84
  %v416 = vunpack.c.l.b16 %v85
  %v417 = vunpack.c.l.b16 %v86
  %v418 = vunpack.c.l.b16 %v87
  %v419 = vunpack.c.l.b16 %v88
  %v420 = vunpack.c.l.b16 %v89
  %v421 = vunpack.c.l.b16 %v90
  %v422 = vunpack.c.l.b16 %v91
  %v423 = vunpack.c.l.b16 %v92
  %v424 = vunpack.c.l.b16 %v93
  %v425 = vunpack.c.l.b16 %v94
  %v426 = vunpack.c.l.b16 %v95
  %v427 = vunpack.c.l.b16 %v96
  %v428 = vpack.c.b16 %v411, %v410
  %v429 = vpack.c.b16 %v413, %v412
  %v430 = vpack.c.b16 %v415, %v414
  %v431 = vpack.c.b16 %v417, %v416
  %v432 = vpack.c.b16 %v419, %v418
  %v433 = vpack.c.b16 %v421, %v420
  %v434 = vpack.c.b16 %v423, %v422
  %v435 = vpack.c.b16 %v425, %v424
  %v436 = vpack.c.b16 %v427, %v426
  %vm446 = vcmask 130048
  %v448 = vsel %vm446, %v297, 0
  %v451 = vsel %vm446, %v299, 0
  %v454 = vsel %vm446, %v301, 0
  %v457 = vsel %vm446, %v303, 0
  %v460 = vsel %vm446, %v305, 0
  %v463 = vsel %vm446, %v307, 0
  %v466 = vsel %vm446, %v309, 0
  %v469 = vsel %vm446, %v311, 0
  %v472 = vsel %vm446, %v313, 0
  %v475 = vsel %vm446, %v315, 0
  %v478 = vsel %vm446, %v317, 0
  %v481 = vsel %vm446, %v319, 0
  %v484 = vsel %vm446, %v321, 0
  %v487 = vsel %vm446, %v323, 0
  %v490 = vsel %vm446, %v325, 0
  %v493 = vsel %vm446, %v327, 0
  %v496 = vsel %vm446, %v329, 0
  %v499 = vsel %vm446, %v331, 0
  %v502 = vsel %vm446, %v333, 0
  %v505 = vsel %vm446, %v335, 0
  %v508 = vsel %vm446, %v337, 0
  %v511 = vsel %vm446, %v339, 0
  %v514 = vsel %vm446, %v341, 0
  %v517 = vsel %vm446, %v343, 0
  %v520 = vsel %vm446, %v345, 0
  %v523 = vsel %vm446, %v347, 0
  %v526 = vsel %vm446, %v349, 0
  %v529 = vsel %vm446, %v351, 0
  %v532 = vsel %vm446, %v353, 0
  %v535 = vsel %vm446, %v355, 0
  %v538 = vsel %vm446, %v357, 0
  %v541 = vsel %vm446, %v359, 0
  %543 = vmatprep.subr.bf16.mxu0 0
  %544 = vmatpush1.bf16.msra.mxu0 %v428
  %545 = vmatprep.subr.bf16.mxu0 0
  %546 = vmatpush1.bf16.msra.mxu0 %v429
  %547 = vmatprep.subr.bf16.mxu0 0
  %548 = vmatpush1.bf16.msra.mxu0 %v430
  %549 = vmatprep.subr.bf16.mxu0 0
  %550 = vmatpush1.bf16.msra.mxu0 %v431
  %551 = vmatprep.subr.bf16.mxu0 0
  %552 = vmatpush1.bf16.msra.mxu0 %v432
  %553 = vmatprep.subr.bf16.mxu0 0
  %554 = vmatpush1.bf16.msra.mxu0 %v433
  %555 = vmatprep.subr.bf16.mxu0 0
  %556 = vmatpush1.bf16.msra.mxu0 %v434
  %557 = vmatprep.subr.bf16.mxu0 0
  %558 = vmatpush1.bf16.msra.mxu0 %v435
  %559 = vmatprep.subr.bf16.mxu0 0
  %560 = vmatpush1.bf16.msra.mxu0 %v436
  %561 = vmatprep.subr.bf16.mxu0 0
  %562 = vmatpush1.bf16.msra.mxu0 0
  %563 = vmatprep.subr.bf16.mxu0 0
  %564 = vmatpush1.bf16.msra.mxu0 0
  %565 = vmatprep.subr.bf16.mxu0 0
  %566 = vmatpush1.bf16.msra.mxu0 0
  %567 = vmatprep.subr.bf16.mxu0 0
  %568 = vmatpush1.bf16.msra.mxu0 0
  %569 = vmatprep.subr.bf16.mxu0 0
  %570 = vmatpush1.bf16.msra.mxu0 0
  %571 = vmatprep.subr.bf16.mxu0 0
  %572 = vmatpush1.bf16.msra.mxu0 0
  %573 = vmatprep.subr.bf16.mxu0 0
  %574 = vmatpush1.bf16.msra.mxu0 0
  %575 = vmatprep.mubr.bf16.mxu0 %v448
  %576 = vmatmul.mubr.bf16.gmra.mrb[0].mxu0 %v296
  %v577 = vpop.f32.mrb[0].mxu0
  %v578 = vadd.f32 %v102, %v577
  %v579 = vpop.f32.mrb[0].mxu0
  %v580 = vpop.f32.mrb[0].mxu0
  %v581 = vadd.f32 %v102, %v580
  %v582 = vpop.f32.mrb[0].mxu0
  %583 = vmatprep.mubr.bf16.mxu0 %v451
  %584 = vmatmul.mubr.bf16.gmra.mrb[0].mxu0 %v298
  %v585 = vpop.f32.mrb[0].mxu0
  %v586 = vadd.f32 %v102, %v585
  %v587 = vpop.f32.mrb[0].mxu0
  %v588 = vpop.f32.mrb[0].mxu0
  %v589 = vadd.f32 %v102, %v588
  %v590 = vpop.f32.mrb[0].mxu0
  %591 = vmatprep.mubr.bf16.mxu0 %v454
  %592 = vmatmul.mubr.bf16.gmra.mrb[0].mxu0 %v300
  %v593 = vpop.f32.mrb[0].mxu0
  %v594 = vadd.f32 %v102, %v593
  %v595 = vpop.f32.mrb[0].mxu0
  %v596 = vpop.f32.mrb[0].mxu0
  %v597 = vadd.f32 %v102, %v596
  %v598 = vpop.f32.mrb[0].mxu0
  %599 = vmatprep.mubr.bf16.mxu0 %v457
  %600 = vmatmul.mubr.bf16.gmra.mrb[0].mxu0 %v302
  %v601 = vpop.f32.mrb[0].mxu0
  %v602 = vadd.f32 %v102, %v601
  %v603 = vpop.f32.mrb[0].mxu0
  %v604 = vpop.f32.mrb[0].mxu0
  %v605 = vadd.f32 %v102, %v604
  %v606 = vpop.f32.mrb[0].mxu0
  %607 = vmatprep.mubr.bf16.mxu0 %v460
  %608 = vmatmul.mubr.bf16.gmra.mrb[0].mxu0 %v304
  %v609 = vpop.f32.mrb[0].mxu0
  %v610 = vadd.f32 %v102, %v609
  %v611 = vpop.f32.mrb[0].mxu0
  %v612 = vpop.f32.mrb[0].mxu0
  %v613 = vadd.f32 %v102, %v612
  %v614 = vpop.f32.mrb[0].mxu0
  %615 = vmatprep.mubr.bf16.mxu0 %v463
  %616 = vmatmul.mubr.bf16.gmra.mrb[0].mxu0 %v306
  %v617 = vpop.f32.mrb[0].mxu0
  %v618 = vadd.f32 %v102, %v617
  %v619 = vpop.f32.mrb[0].mxu0
  %v620 = vpop.f32.mrb[0].mxu0
  %v621 = vadd.f32 %v102, %v620
  %v622 = vpop.f32.mrb[0].mxu0
  %623 = vmatprep.mubr.bf16.mxu0 %v466
  %624 = vmatmul.mubr.bf16.gmra.mrb[0].mxu0 %v308
  %v625 = vpop.f32.mrb[0].mxu0
  %v626 = vadd.f32 %v102, %v625
  %v627 = vpop.f32.mrb[0].mxu0
  %v628 = vpop.f32.mrb[0].mxu0
  %v629 = vadd.f32 %v102, %v628
  %v630 = vpop.f32.mrb[0].mxu0
  %631 = vmatprep.mubr.bf16.mxu0 %v469
  %632 = vmatmul.mubr.bf16.gmra.mrb[0].mxu0 %v310
  %v633 = vpop.f32.mrb[0].mxu0
  %v634 = vadd.f32 %v102, %v633
  %v635 = vpop.f32.mrb[0].mxu0
  %v636 = vpop.f32.mrb[0].mxu0
  %v637 = vadd.f32 %v102, %v636
  %v638 = vpop.f32.mrb[0].mxu0
  %639 = vmatprep.mubr.bf16.mxu0 %v472
  %640 = vmatmul.mubr.bf16.gmra.mrb[0].mxu0 %v312
  %v641 = vpop.f32.mrb[0].mxu0
  %v642 = vadd.f32 %v102, %v641
  %v643 = vpop.f32.mrb[0].mxu0
  %v644 = vpop.f32.mrb[0].mxu0
  %v645 = vadd.f32 %v102, %v644
  %v646 = vpop.f32.mrb[0].mxu0
  %647 = vmatprep.mubr.bf16.mxu0 %v475
  %648 = vmatmul.mubr.bf16.gmra.mrb[0].mxu0 %v314
  %v649 = vpop.f32.mrb[0].mxu0
  %v650 = vadd.f32 %v102, %v649
  %v651 = vpop.f32.mrb[0].mxu0
  %v652 = vpop.f32.mrb[0].mxu0
  %v653 = vadd.f32 %v102, %v652
  %v654 = vpop.f32.mrb[0].mxu0
  %655 = vmatprep.mubr.bf16.mxu0 %v478
  %656 = vmatmul.mubr.bf16.gmra.mrb[0].mxu0 %v316
  %v657 = vpop.f32.mrb[0].mxu0
  %v658 = vadd.f32 %v102, %v657
  %v659 = vpop.f32.mrb[0].mxu0
  %v660 = vpop.f32.mrb[0].mxu0
  %v661 = vadd.f32 %v102, %v660
  %v662 = vpop.f32.mrb[0].mxu0
  %663 = vmatprep.mubr.bf16.mxu0 %v481
  %664 = vmatmul.mubr.bf16.gmra.mrb[0].mxu0 %v318
  %v665 = vpop.f32.mrb[0].mxu0
  %v666 = vadd.f32 %v102, %v665
  %v667 = vpop.f32.mrb[0].mxu0
  %v668 = vpop.f32.mrb[0].mxu0
  %v669 = vadd.f32 %v102, %v668
  %v670 = vpop.f32.mrb[0].mxu0
  %671 = vmatprep.mubr.bf16.mxu0 %v484
  %672 = vmatmul.mubr.bf16.gmra.mrb[0].mxu0 %v320
  %v673 = vpop.f32.mrb[0].mxu0
  %v674 = vadd.f32 %v102, %v673
  %v675 = vpop.f32.mrb[0].mxu0
  %v676 = vpop.f32.mrb[0].mxu0
  %v677 = vadd.f32 %v102, %v676
  %v678 = vpop.f32.mrb[0].mxu0
  %679 = vmatprep.mubr.bf16.mxu0 %v487
  %680 = vmatmul.mubr.bf16.gmra.mrb[0].mxu0 %v322
  %v681 = vpop.f32.mrb[0].mxu0
  %v682 = vadd.f32 %v102, %v681
  %v683 = vpop.f32.mrb[0].mxu0
  %v684 = vpop.f32.mrb[0].mxu0
  %v685 = vadd.f32 %v102, %v684
  %v686 = vpop.f32.mrb[0].mxu0
  %687 = vmatprep.mubr.bf16.mxu0 %v490
  %688 = vmatmul.mubr.bf16.gmra.mrb[0].mxu0 %v324
  %v689 = vpop.f32.mrb[0].mxu0
  %v690 = vadd.f32 %v102, %v689
  %v691 = vpop.f32.mrb[0].mxu0
  %v692 = vpop.f32.mrb[0].mxu0
  %v693 = vadd.f32 %v102, %v692
  %v694 = vpop.f32.mrb[0].mxu0
  %695 = vmatprep.mubr.bf16.mxu0 %v493
  %696 = vmatmul.mubr.bf16.gmra.mrb[0].mxu0 %v326
  %v697 = vpop.f32.mrb[0].mxu0
  %v698 = vadd.f32 %v102, %v697
  %v699 = vpop.f32.mrb[0].mxu0
  %v700 = vpop.f32.mrb[0].mxu0
  %v701 = vadd.f32 %v102, %v700
  %v702 = vpop.f32.mrb[0].mxu0
  %703 = vmatprep.mubr.bf16.mxu0 %v496
  %704 = vmatmul.mubr.bf16.gmra.mrb[0].mxu0 %v328
  %v705 = vpop.f32.mrb[0].mxu0
  %v706 = vadd.f32 %v102, %v705
  %v707 = vpop.f32.mrb[0].mxu0
  %v708 = vpop.f32.mrb[0].mxu0
  %v709 = vadd.f32 %v102, %v708
  %v710 = vpop.f32.mrb[0].mxu0
  %711 = vmatprep.mubr.bf16.mxu0 %v499
  %712 = vmatmul.mubr.bf16.gmra.mrb[0].mxu0 %v330
  %v713 = vpop.f32.mrb[0].mxu0
  %v714 = vadd.f32 %v102, %v713
  %v715 = vpop.f32.mrb[0].mxu0
  %v716 = vpop.f32.mrb[0].mxu0
  %v717 = vadd.f32 %v102, %v716
  %v718 = vpop.f32.mrb[0].mxu0
  %719 = vmatprep.mubr.bf16.mxu0 %v502
  %720 = vmatmul.mubr.bf16.gmra.mrb[0].mxu0 %v332
  %v721 = vpop.f32.mrb[0].mxu0
  %v722 = vadd.f32 %v102, %v721
  %v723 = vpop.f32.mrb[0].mxu0
  %v724 = vpop.f32.mrb[0].mxu0
  %v725 = vadd.f32 %v102, %v724
  %v726 = vpop.f32.mrb[0].mxu0
  %727 = vmatprep.mubr.bf16.mxu0 %v505
  %728 = vmatmul.mubr.bf16.gmra.mrb[0].mxu0 %v334
  %v729 = vpop.f32.mrb[0].mxu0
  %v730 = vadd.f32 %v102, %v729
  %v731 = vpop.f32.mrb[0].mxu0
  %v732 = vpop.f32.mrb[0].mxu0
  %v733 = vadd.f32 %v102, %v732
  %v734 = vpop.f32.mrb[0].mxu0
  %735 = vmatprep.mubr.bf16.mxu0 %v508
  %736 = vmatmul.mubr.bf16.gmra.mrb[0].mxu0 %v336
  %v737 = vpop.f32.mrb[0].mxu0
  %v738 = vadd.f32 %v102, %v737
  %v739 = vpop.f32.mrb[0].mxu0
  %v740 = vpop.f32.mrb[0].mxu0
  %v741 = vadd.f32 %v102, %v740
  %v742 = vpop.f32.mrb[0].mxu0
  %743 = vmatprep.mubr.bf16.mxu0 %v511
  %744 = vmatmul.mubr.bf16.gmra.mrb[0].mxu0 %v338
  %v745 = vpop.f32.mrb[0].mxu0
  %v746 = vadd.f32 %v102, %v745
  %v747 = vpop.f32.mrb[0].mxu0
  %v748 = vpop.f32.mrb[0].mxu0
  %v749 = vadd.f32 %v102, %v748
  %v750 = vpop.f32.mrb[0].mxu0
  %751 = vmatprep.mubr.bf16.mxu0 %v514
  %752 = vmatmul.mubr.bf16.gmra.mrb[0].mxu0 %v340
  %v753 = vpop.f32.mrb[0].mxu0
  %v754 = vadd.f32 %v102, %v753
  %v755 = vpop.f32.mrb[0].mxu0
  %v756 = vpop.f32.mrb[0].mxu0
  %v757 = vadd.f32 %v102, %v756
  %v758 = vpop.f32.mrb[0].mxu0
  %759 = vmatprep.mubr.bf16.mxu0 %v517
  %760 = vmatmul.mubr.bf16.gmra.mrb[0].mxu0 %v342
  %v761 = vpop.f32.mrb[0].mxu0
  %v762 = vadd.f32 %v102, %v761
  %v763 = vpop.f32.mrb[0].mxu0
  %v764 = vpop.f32.mrb[0].mxu0
  %v765 = vadd.f32 %v102, %v764
  %v766 = vpop.f32.mrb[0].mxu0
  %767 = vmatprep.mubr.bf16.mxu0 %v520
  %768 = vmatmul.mubr.bf16.gmra.mrb[0].mxu0 %v344
  %v769 = vpop.f32.mrb[0].mxu0
  %v770 = vadd.f32 %v102, %v769
  %v771 = vpop.f32.mrb[0].mxu0
  %v772 = vpop.f32.mrb[0].mxu0
  %v773 = vadd.f32 %v102, %v772
  %v774 = vpop.f32.mrb[0].mxu0
  %775 = vmatprep.mubr.bf16.mxu0 %v523
  %776 = vmatmul.mubr.bf16.gmra.mrb[0].mxu0 %v346
  %v777 = vpop.f32.mrb[0].mxu0
  %v778 = vadd.f32 %v102, %v777
  %v779 = vpop.f32.mrb[0].mxu0
  %v780 = vpop.f32.mrb[0].mxu0
  %v781 = vadd.f32 %v102, %v780
  %v782 = vpop.f32.mrb[0].mxu0
  %783 = vmatprep.mubr.bf16.mxu0 %v526
  %784 = vmatmul.mubr.bf16.gmra.mrb[0].mxu0 %v348
  %v785 = vpop.f32.mrb[0].mxu0
  %v786 = vadd.f32 %v102, %v785
  %v787 = vpop.f32.mrb[0].mxu0
  %v788 = vpop.f32.mrb[0].mxu0
  %v789 = vadd.f32 %v102, %v788
  %v790 = vpop.f32.mrb[0].mxu0
  %791 = vmatprep.mubr.bf16.mxu0 %v529
  %792 = vmatmul.mubr.bf16.gmra.mrb[0].mxu0 %v350
  %v793 = vpop.f32.mrb[0].mxu0
  %v794 = vadd.f32 %v102, %v793
  %v795 = vpop.f32.mrb[0].mxu0
  %v796 = vpop.f32.mrb[0].mxu0
  %v797 = vadd.f32 %v102, %v796
  %v798 = vpop.f32.mrb[0].mxu0
  %799 = vmatprep.mubr.bf16.mxu0 %v532
  %800 = vmatmul.mubr.bf16.gmra.mrb[0].mxu0 %v352
  %v801 = vpop.f32.mrb[0].mxu0
  %v802 = vadd.f32 %v102, %v801
  %v803 = vpop.f32.mrb[0].mxu0
  %v804 = vpop.f32.mrb[0].mxu0
  %v805 = vadd.f32 %v102, %v804
  %v806 = vpop.f32.mrb[0].mxu0
  %807 = vmatprep.mubr.bf16.mxu0 %v535
  %808 = vmatmul.mubr.bf16.gmra.mrb[0].mxu0 %v354
  %v809 = vpop.f32.mrb[0].mxu0
  %v810 = vadd.f32 %v102, %v809
  %v811 = vpop.f32.mrb[0].mxu0
  %v812 = vpop.f32.mrb[0].mxu0
  %v813 = vadd.f32 %v102, %v812
  %v814 = vpop.f32.mrb[0].mxu0
  %815 = vmatprep.mubr.bf16.mxu0 %v538
  %816 = vmatmul.mubr.bf16.gmra.mrb[0].mxu0 %v356
  %v817 = vpop.f32.mrb[0].mxu0
  %v818 = vadd.f32 %v102, %v817
  %v819 = vpop.f32.mrb[0].mxu0
  %v820 = vpop.f32.mrb[0].mxu0
  %v821 = vadd.f32 %v102, %v820
  %v822 = vpop.f32.mrb[0].mxu0
  %823 = vmatprep.mubr.bf16.mxu0 %v541
  %824 = vmatmul.mubr.bf16.gmra.mrb[0].mxu0 %v358
  %v825 = vpop.f32.mrb[0].mxu0
  %v826 = vadd.f32 %v102, %v825
  %v827 = vpop.f32.mrb[0].mxu0
  %v828 = vpop.f32.mrb[0].mxu0
  %v829 = vadd.f32 %v102, %v828
  %v830 = vpop.f32.mrb[0].mxu0
  %831 = vdwg.mxu0
  %vm832 = vcmp.gt.f32.partialorder %v578, 0.0
  %vm833 = vcmp.gt.f32.partialorder %v581, 0.0
  %vm834 = vcmp.gt.f32.partialorder %v586, 0.0
  %vm835 = vcmp.gt.f32.partialorder %v589, 0.0
  %vm836 = vcmp.gt.f32.partialorder %v594, 0.0
  %vm837 = vcmp.gt.f32.partialorder %v597, 0.0
  %vm838 = vcmp.gt.f32.partialorder %v602, 0.0
  %vm839 = vcmp.gt.f32.partialorder %v605, 0.0
  %vm840 = vcmp.gt.f32.partialorder %v610, 0.0
  %vm841 = vcmp.gt.f32.partialorder %v613, 0.0
  %vm842 = vcmp.gt.f32.partialorder %v618, 0.0
  %vm843 = vcmp.gt.f32.partialorder %v621, 0.0
  %vm844 = vcmp.gt.f32.partialorder %v626, 0.0
  %vm845 = vcmp.gt.f32.partialorder %v629, 0.0
  %vm846 = vcmp.gt.f32.partialorder %v634, 0.0
  %vm847 = vcmp.gt.f32.partialorder %v637, 0.0
  %vm848 = vcmp.gt.f32.partialorder %v642, 0.0
  %vm849 = vcmp.gt.f32.partialorder %v645, 0.0
  %vm850 = vcmp.gt.f32.partialorder %v650, 0.0
  %vm851 = vcmp.gt.f32.partialorder %v653, 0.0
  %vm852 = vcmp.gt.f32.partialorder %v658, 0.0
  %vm853 = vcmp.gt.f32.partialorder %v661, 0.0
  %vm854 = vcmp.gt.f32.partialorder %v666, 0.0
  %vm855 = vcmp.gt.f32.partialorder %v669, 0.0
  %vm856 = vcmp.gt.f32.partialorder %v674, 0.0
  %vm857 = vcmp.gt.f32.partialorder %v677, 0.0
  %vm858 = vcmp.gt.f32.partialorder %v682, 0.0
  %vm859 = vcmp.gt.f32.partialorder %v685, 0.0
  %vm860 = vcmp.gt.f32.partialorder %v690, 0.0
  %vm861 = vcmp.gt.f32.partialorder %v693, 0.0
  %vm862 = vcmp.gt.f32.partialorder %v698, 0.0
  %vm863 = vcmp.gt.f32.partialorder %v701, 0.0
  %vm864 = vcmp.gt.f32.partialorder %v706, 0.0
  %vm865 = vcmp.gt.f32.partialorder %v709, 0.0
  %vm866 = vcmp.gt.f32.partialorder %v714, 0.0
  %vm867 = vcmp.gt.f32.partialorder %v717, 0.0
  %vm868 = vcmp.gt.f32.partialorder %v722, 0.0
  %vm869 = vcmp.gt.f32.partialorder %v725, 0.0
  %vm870 = vcmp.gt.f32.partialorder %v730, 0.0
  %vm871 = vcmp.gt.f32.partialorder %v733, 0.0
  %vm872 = vcmp.gt.f32.partialorder %v738, 0.0
  %vm873 = vcmp.gt.f32.partialorder %v741, 0.0
  %vm874 = vcmp.gt.f32.partialorder %v746, 0.0
  %vm875 = vcmp.gt.f32.partialorder %v749, 0.0
  %vm876 = vcmp.gt.f32.partialorder %v754, 0.0
  %vm877 = vcmp.gt.f32.partialorder %v757, 0.0
  %vm878 = vcmp.gt.f32.partialorder %v762, 0.0
  %vm879 = vcmp.gt.f32.partialorder %v765, 0.0
  %vm880 = vcmp.gt.f32.partialorder %v770, 0.0
  %vm881 = vcmp.gt.f32.partialorder %v773, 0.0
  %vm882 = vcmp.gt.f32.partialorder %v778, 0.0
  %vm883 = vcmp.gt.f32.partialorder %v781, 0.0
  %vm884 = vcmp.gt.f32.partialorder %v786, 0.0
  %vm885 = vcmp.gt.f32.partialorder %v789, 0.0
  %vm886 = vcmp.gt.f32.partialorder %v794, 0.0
  %vm887 = vcmp.gt.f32.partialorder %v797, 0.0
  %vm888 = vcmp.gt.f32.partialorder %v802, 0.0
  %vm889 = vcmp.gt.f32.partialorder %v805, 0.0
  %vm890 = vcmp.gt.f32.partialorder %v810, 0.0
  %vm891 = vcmp.gt.f32.partialorder %v813, 0.0
  %vm892 = vcmp.gt.f32.partialorder %v818, 0.0
  %vm893 = vcmp.gt.f32.partialorder %v821, 0.0
  %vm894 = vcmp.gt.f32.partialorder %v826, 0.0
  %vm895 = vcmp.gt.f32.partialorder %v829, 0.0
  %v896 = vmin.f32 %v578, 0.0
  %v897 = vmin.f32 %v581, 0.0
  %v898 = vmin.f32 %v586, 0.0
  %v899 = vmin.f32 %v589, 0.0
  %v900 = vmin.f32 %v594, 0.0
  %v901 = vmin.f32 %v597, 0.0
  %v902 = vmin.f32 %v602, 0.0
  %v903 = vmin.f32 %v605, 0.0
  %v904 = vmin.f32 %v610, 0.0
  %v905 = vmin.f32 %v613, 0.0
  %v906 = vmin.f32 %v618, 0.0
  %v907 = vmin.f32 %v621, 0.0
  %v908 = vmin.f32 %v626, 0.0
  %v909 = vmin.f32 %v629, 0.0
  %v910 = vmin.f32 %v634, 0.0
  %v911 = vmin.f32 %v637, 0.0
  %v912 = vmin.f32 %v642, 0.0
  %v913 = vmin.f32 %v645, 0.0
  %v914 = vmin.f32 %v650, 0.0
  %v915 = vmin.f32 %v653, 0.0
  %v916 = vmin.f32 %v658, 0.0
  %v917 = vmin.f32 %v661, 0.0
  %v918 = vmin.f32 %v666, 0.0
  %v919 = vmin.f32 %v669, 0.0
  %v920 = vmin.f32 %v674, 0.0
  %v921 = vmin.f32 %v677, 0.0
  %v922 = vmin.f32 %v682, 0.0
  %v923 = vmin.f32 %v685, 0.0
  %v924 = vmin.f32 %v690, 0.0
  %v925 = vmin.f32 %v693, 0.0
  %v926 = vmin.f32 %v698, 0.0
  %v927 = vmin.f32 %v701, 0.0
  %v928 = vmin.f32 %v706, 0.0
  %v929 = vmin.f32 %v709, 0.0
  %v930 = vmin.f32 %v714, 0.0
  %v931 = vmin.f32 %v717, 0.0
  %v932 = vmin.f32 %v722, 0.0
  %v933 = vmin.f32 %v725, 0.0
  %v934 = vmin.f32 %v730, 0.0
  %v935 = vmin.f32 %v733, 0.0
  %v936 = vmin.f32 %v738, 0.0
  %v937 = vmin.f32 %v741, 0.0
  %v938 = vmin.f32 %v746, 0.0
  %v939 = vmin.f32 %v749, 0.0
  %v940 = vmin.f32 %v754, 0.0
  %v941 = vmin.f32 %v757, 0.0
  %v942 = vmin.f32 %v762, 0.0
  %v943 = vmin.f32 %v765, 0.0
  %v944 = vmin.f32 %v770, 0.0
  %v945 = vmin.f32 %v773, 0.0
  %v946 = vmin.f32 %v778, 0.0
  %v947 = vmin.f32 %v781, 0.0
  %v948 = vmin.f32 %v786, 0.0
  %v949 = vmin.f32 %v789, 0.0
  %v950 = vmin.f32 %v794, 0.0
  %v951 = vmin.f32 %v797, 0.0
  %v952 = vmin.f32 %v802, 0.0
  %v953 = vmin.f32 %v805, 0.0
  %v954 = vmin.f32 %v810, 0.0
  %v955 = vmin.f32 %v813, 0.0
  %v956 = vmin.f32 %v818, 0.0
  %v957 = vmin.f32 %v821, 0.0
  %v958 = vmin.f32 %v826, 0.0
  %v959 = vmin.f32 %v829, 0.0
  %v960 = vmul.f32 %v896, 1.442695
  %v961 = vpow.pop %v960
  %v962 = vmul.f32 %v897, 1.442695
  %v963 = vpow.pop %v962
  %v964 = vmul.f32 %v898, 1.442695
  %v965 = vpow.pop %v964
  %v966 = vmul.f32 %v899, 1.442695
  %v967 = vpow.pop %v966
  %v968 = vmul.f32 %v900, 1.442695
  %v969 = vpow.pop %v968
  %v970 = vmul.f32 %v901, 1.442695
  %v971 = vpow.pop %v970
  %v972 = vmul.f32 %v902, 1.442695
  %v973 = vpow.pop %v972
  %v974 = vmul.f32 %v903, 1.442695
  %v975 = vpow.pop %v974
  %v976 = vmul.f32 %v904, 1.442695
  %v977 = vpow.pop %v976
  %v978 = vmul.f32 %v905, 1.442695
  %v979 = vpow.pop %v978
  %v980 = vmul.f32 %v906, 1.442695
  %v981 = vpow.pop %v980
  %v982 = vmul.f32 %v907, 1.442695
  %v983 = vpow.pop %v982
  %v984 = vmul.f32 %v908, 1.442695
  %v985 = vpow.pop %v984
  %v986 = vmul.f32 %v909, 1.442695
  %v987 = vpow.pop %v986
  %v988 = vmul.f32 %v910, 1.442695
  %v989 = vpow.pop %v988
  %v990 = vmul.f32 %v911, 1.442695
  %v991 = vpow.pop %v990
  %v992 = vmul.f32 %v912, 1.442695
  %v993 = vpow.pop %v992
  %v994 = vmul.f32 %v913, 1.442695
  %v995 = vpow.pop %v994
  %v996 = vmul.f32 %v914, 1.442695
  %v997 = vpow.pop %v996
  %v998 = vmul.f32 %v915, 1.442695
  %v999 = vpow.pop %v998
  %v1000 = vmul.f32 %v916, 1.442695
  %v1001 = vpow.pop %v1000
  %v1002 = vmul.f32 %v917, 1.442695
  %v1003 = vpow.pop %v1002
  %v1004 = vmul.f32 %v918, 1.442695
  %v1005 = vpow.pop %v1004
  %v1006 = vmul.f32 %v919, 1.442695
  %v1007 = vpow.pop %v1006
  %v1008 = vmul.f32 %v920, 1.442695
  %v1009 = vpow.pop %v1008
  %v1010 = vmul.f32 %v921, 1.442695
  %v1011 = vpow.pop %v1010
  %v1012 = vmul.f32 %v922, 1.442695
  %v1013 = vpow.pop %v1012
  %v1014 = vmul.f32 %v923, 1.442695
  %v1015 = vpow.pop %v1014
  %v1016 = vmul.f32 %v924, 1.442695
  %v1017 = vpow.pop %v1016
  %v1018 = vmul.f32 %v925, 1.442695
  %v1019 = vpow.pop %v1018
  %v1020 = vmul.f32 %v926, 1.442695
  %v1021 = vpow.pop %v1020
  %v1022 = vmul.f32 %v927, 1.442695
  %v1023 = vpow.pop %v1022
  %v1024 = vmul.f32 %v928, 1.442695
  %v1025 = vpow.pop %v1024
  %v1026 = vmul.f32 %v929, 1.442695
  %v1027 = vpow.pop %v1026
  %v1028 = vmul.f32 %v930, 1.442695
  %v1029 = vpow.pop %v1028
  %v1030 = vmul.f32 %v931, 1.442695
  %v1031 = vpow.pop %v1030
  %v1032 = vmul.f32 %v932, 1.442695
  %v1033 = vpow.pop %v1032
  %v1034 = vmul.f32 %v933, 1.442695
  %v1035 = vpow.pop %v1034
  %v1036 = vmul.f32 %v934, 1.442695
  %v1037 = vpow.pop %v1036
  %v1038 = vmul.f32 %v935, 1.442695
  %v1039 = vpow.pop %v1038
  %v1040 = vmul.f32 %v936, 1.442695
  %v1041 = vpow.pop %v1040
  %v1042 = vmul.f32 %v937, 1.442695
  %v1043 = vpow.pop %v1042
  %v1044 = vmul.f32 %v938, 1.442695
  %v1045 = vpow.pop %v1044
  %v1046 = vmul.f32 %v939, 1.442695
  %v1047 = vpow.pop %v1046
  %v1048 = vmul.f32 %v940, 1.442695
  %v1049 = vpow.pop %v1048
  %v1050 = vmul.f32 %v941, 1.442695
  %v1051 = vpow.pop %v1050
  %v1052 = vmul.f32 %v942, 1.442695
  %v1053 = vpow.pop %v1052
  %v1054 = vmul.f32 %v943, 1.442695
  %v1055 = vpow.pop %v1054
  %v1056 = vmul.f32 %v944, 1.442695
  %v1057 = vpow.pop %v1056
  %v1058 = vmul.f32 %v945, 1.442695
  %v1059 = vpow.pop %v1058
  %v1060 = vmul.f32 %v946, 1.442695
  %v1061 = vpow.pop %v1060
  %v1062 = vmul.f32 %v947, 1.442695
  %v1063 = vpow.pop %v1062
  %v1064 = vmul.f32 %v948, 1.442695
  %v1065 = vpow.pop %v1064
  %v1066 = vmul.f32 %v949, 1.442695
  %v1067 = vpow.pop %v1066
  %v1068 = vmul.f32 %v950, 1.442695
  %v1069 = vpow.pop %v1068
  %v1070 = vmul.f32 %v951, 1.442695
  %v1071 = vpow.pop %v1070
  %v1072 = vmul.f32 %v952, 1.442695
  %v1073 = vpow.pop %v1072
  %v1074 = vmul.f32 %v953, 1.442695
  %v1075 = vpow.pop %v1074
  %v1076 = vmul.f32 %v954, 1.442695
  %v1077 = vpow.pop %v1076
  %v1078 = vmul.f32 %v955, 1.442695
  %v1079 = vpow.pop %v1078
  %v1080 = vmul.f32 %v956, 1.442695
  %v1081 = vpow.pop %v1080
  %v1082 = vmul.f32 %v957, 1.442695
  %v1083 = vpow.pop %v1082
  %v1084 = vmul.f32 %v958, 1.442695
  %v1085 = vpow.pop %v1084
  %v1086 = vmul.f32 %v959, 1.442695
  %v1087 = vpow.pop %v1086
  %v1088 = vsub.f32 %v961, 1.0
  %v1089 = vsub.f32 %v963, 1.0
  %v1090 = vsub.f32 %v965, 1.0
  %v1091 = vsub.f32 %v967, 1.0
  %v1092 = vsub.f32 %v969, 1.0
  %v1093 = vsub.f32 %v971, 1.0
  %v1094 = vsub.f32 %v973, 1.0
  %v1095 = vsub.f32 %v975, 1.0
  %v1096 = vsub.f32 %v977, 1.0
  %v1097 = vsub.f32 %v979, 1.0
  %v1098 = vsub.f32 %v981, 1.0
  %v1099 = vsub.f32 %v983, 1.0
  %v1100 = vsub.f32 %v985, 1.0
  %v1101 = vsub.f32 %v987, 1.0
  %v1102 = vsub.f32 %v989, 1.0
  %v1103 = vsub.f32 %v991, 1.0
  %v1104 = vsub.f32 %v993, 1.0
  %v1105 = vsub.f32 %v995, 1.0
  %v1106 = vsub.f32 %v997, 1.0
  %v1107 = vsub.f32 %v999, 1.0
  %v1108 = vsub.f32 %v1001, 1.0
  %v1109 = vsub.f32 %v1003, 1.0
  %v1110 = vsub.f32 %v1005, 1.0
  %v1111 = vsub.f32 %v1007, 1.0
  %v1112 = vsub.f32 %v1009, 1.0
  %v1113 = vsub.f32 %v1011, 1.0
  %v1114 = vsub.f32 %v1013, 1.0
  %v1115 = vsub.f32 %v1015, 1.0
  %v1116 = vsub.f32 %v1017, 1.0
  %v1117 = vsub.f32 %v1019, 1.0
  %v1118 = vsub.f32 %v1021, 1.0
  %v1119 = vsub.f32 %v1023, 1.0
  %v1120 = vsub.f32 %v1025, 1.0
  %v1121 = vsub.f32 %v1027, 1.0
  %v1122 = vsub.f32 %v1029, 1.0
  %v1123 = vsub.f32 %v1031, 1.0
  %v1124 = vsub.f32 %v1033, 1.0
  %v1125 = vsub.f32 %v1035, 1.0
  %v1126 = vsub.f32 %v1037, 1.0
  %v1127 = vsub.f32 %v1039, 1.0
  %v1128 = vsub.f32 %v1041, 1.0
  %v1129 = vsub.f32 %v1043, 1.0
  %v1130 = vsub.f32 %v1045, 1.0
  %v1131 = vsub.f32 %v1047, 1.0
  %v1132 = vsub.f32 %v1049, 1.0
  %v1133 = vsub.f32 %v1051, 1.0
  %v1134 = vsub.f32 %v1053, 1.0
  %v1135 = vsub.f32 %v1055, 1.0
  %v1136 = vsub.f32 %v1057, 1.0
  %v1137 = vsub.f32 %v1059, 1.0
  %v1138 = vsub.f32 %v1061, 1.0
  %v1139 = vsub.f32 %v1063, 1.0
  %v1140 = vsub.f32 %v1065, 1.0
  %v1141 = vsub.f32 %v1067, 1.0
  %v1142 = vsub.f32 %v1069, 1.0
  %v1143 = vsub.f32 %v1071, 1.0
  %v1144 = vsub.f32 %v1073, 1.0
  %v1145 = vsub.f32 %v1075, 1.0
  %v1146 = vsub.f32 %v1077, 1.0
  %v1147 = vsub.f32 %v1079, 1.0
  %v1148 = vsub.f32 %v1081, 1.0
  %v1149 = vsub.f32 %v1083, 1.0
  %v1150 = vsub.f32 %v1085, 1.0
  %v1151 = vsub.f32 %v1087, 1.0
  %v1152 = vsel %vm832, %v578, %v1088
  %v1153 = vsel %vm833, %v581, %v1089
  %v1154 = vsel %vm834, %v586, %v1090
  %v1155 = vsel %vm835, %v589, %v1091
  %v1156 = vsel %vm836, %v594, %v1092
  %v1157 = vsel %vm837, %v597, %v1093
  %v1158 = vsel %vm838, %v602, %v1094
  %v1159 = vsel %vm839, %v605, %v1095
  %v1160 = vsel %vm840, %v610, %v1096
  %v1161 = vsel %vm841, %v613, %v1097
  %v1162 = vsel %vm842, %v618, %v1098
  %v1163 = vsel %vm843, %v621, %v1099
  %v1164 = vsel %vm844, %v626, %v1100
  %v1165 = vsel %vm845, %v629, %v1101
  %v1166 = vsel %vm846, %v634, %v1102
  %v1167 = vsel %vm847, %v637, %v1103
  %v1168 = vsel %vm848, %v642, %v1104
  %v1169 = vsel %vm849, %v645, %v1105
  %v1170 = vsel %vm850, %v650, %v1106
  %v1171 = vsel %vm851, %v653, %v1107
  %v1172 = vsel %vm852, %v658, %v1108
  %v1173 = vsel %vm853, %v661, %v1109
  %v1174 = vsel %vm854, %v666, %v1110
  %v1175 = vsel %vm855, %v669, %v1111
  %v1176 = vsel %vm856, %v674, %v1112
  %v1177 = vsel %vm857, %v677, %v1113
  %v1178 = vsel %vm858, %v682, %v1114
  %v1179 = vsel %vm859, %v685, %v1115
  %v1180 = vsel %vm860, %v690, %v1116
  %v1181 = vsel %vm861, %v693, %v1117
  %v1182 = vsel %vm862, %v698, %v1118
  %v1183 = vsel %vm863, %v701, %v1119
  %v1184 = vsel %vm864, %v706, %v1120
  %v1185 = vsel %vm865, %v709, %v1121
  %v1186 = vsel %vm866, %v714, %v1122
  %v1187 = vsel %vm867, %v717, %v1123
  %v1188 = vsel %vm868, %v722, %v1124
  %v1189 = vsel %vm869, %v725, %v1125
  %v1190 = vsel %vm870, %v730, %v1126
  %v1191 = vsel %vm871, %v733, %v1127
  %v1192 = vsel %vm872, %v738, %v1128
  %v1193 = vsel %vm873, %v741, %v1129
  %v1194 = vsel %vm874, %v746, %v1130
  %v1195 = vsel %vm875, %v749, %v1131
  %v1196 = vsel %vm876, %v754, %v1132
  %v1197 = vsel %vm877, %v757, %v1133
  %v1198 = vsel %vm878, %v762, %v1134
  %v1199 = vsel %vm879, %v765, %v1135
  %v1200 = vsel %vm880, %v770, %v1136
  %v1201 = vsel %vm881, %v773, %v1137
  %v1202 = vsel %vm882, %v778, %v1138
  %v1203 = vsel %vm883, %v781, %v1139
  %v1204 = vsel %vm884, %v786, %v1140
  %v1205 = vsel %vm885, %v789, %v1141
  %v1206 = vsel %vm886, %v794, %v1142
  %v1207 = vsel %vm887, %v797, %v1143
  %v1208 = vsel %vm888, %v802, %v1144
  %v1209 = vsel %vm889, %v805, %v1145
  %v1210 = vsel %vm890, %v810, %v1146
  %v1211 = vsel %vm891, %v813, %v1147
  %v1212 = vsel %vm892, %v818, %v1148
  %v1213 = vsel %vm893, %v821, %v1149
  %v1214 = vsel %vm894, %v826, %v1150
  %v1215 = vsel %vm895, %v829, %v1151
  %v1216 = vpack.c.bf16 %v1153, %v1152
  %v1217 = vpack.c.bf16 %v1155, %v1154
  %v1218 = vpack.c.bf16 %v1157, %v1156
  %v1219 = vpack.c.bf16 %v1159, %v1158
  %v1220 = vpack.c.bf16 %v1161, %v1160
  %v1221 = vpack.c.bf16 %v1163, %v1162
  %v1222 = vpack.c.bf16 %v1165, %v1164
  %v1223 = vpack.c.bf16 %v1167, %v1166
  %v1224 = vpack.c.bf16 %v1169, %v1168
  %v1225 = vpack.c.bf16 %v1171, %v1170
  %v1226 = vpack.c.bf16 %v1173, %v1172
  %v1227 = vpack.c.bf16 %v1175, %v1174
  %v1228 = vpack.c.bf16 %v1177, %v1176
  %v1229 = vpack.c.bf16 %v1179, %v1178
  %v1230 = vpack.c.bf16 %v1181, %v1180
  %v1231 = vpack.c.bf16 %v1183, %v1182
  %v1232 = vpack.c.bf16 %v1185, %v1184
  %v1233 = vpack.c.bf16 %v1187, %v1186
  %v1234 = vpack.c.bf16 %v1189, %v1188
  %v1235 = vpack.c.bf16 %v1191, %v1190
  %v1236 = vpack.c.bf16 %v1193, %v1192
  %v1237 = vpack.c.bf16 %v1195, %v1194
  %v1238 = vpack.c.bf16 %v1197, %v1196
  %v1239 = vpack.c.bf16 %v1199, %v1198
  %v1240 = vpack.c.bf16 %v1201, %v1200
  %v1241 = vpack.c.bf16 %v1203, %v1202
  %v1242 = vpack.c.bf16 %v1205, %v1204
  %v1243 = vpack.c.bf16 %v1207, %v1206
  %v1244 = vpack.c.bf16 %v1209, %v1208
  %v1245 = vpack.c.bf16 %v1211, %v1210
  %v1246 = vpack.c.bf16 %v1213, %v1212
  %v1247 = vpack.c.bf16 %v1215, %v1214
  %v1280 = vunpack.c.l.b16 %v1216
  %v1281 = vunpack.c.h.b16 %v1216
  %v1282 = vunpack.c.l.b16 %v1217
  %v1283 = vunpack.c.h.b16 %v1217
  %v1284 = vunpack.c.l.b16 %v1218
  %v1285 = vunpack.c.h.b16 %v1218
  %v1286 = vunpack.c.l.b16 %v1219
  %v1287 = vunpack.c.h.b16 %v1219
  %v1288 = vunpack.c.l.b16 %v1220
  %v1289 = vunpack.c.h.b16 %v1220
  %v1290 = vunpack.c.l.b16 %v1221
  %v1291 = vunpack.c.h.b16 %v1221
  %v1292 = vunpack.c.l.b16 %v1222
  %v1293 = vunpack.c.h.b16 %v1222
  %v1294 = vunpack.c.l.b16 %v1223
  %v1295 = vunpack.c.h.b16 %v1223
  %v1296 = vunpack.c.l.b16 %v1224
  %v1297 = vunpack.c.h.b16 %v1224
  %v1298 = vunpack.c.l.b16 %v1225
  %v1299 = vunpack.c.h.b16 %v1225
  %v1300 = vunpack.c.l.b16 %v1226
  %v1301 = vunpack.c.h.b16 %v1226
  %v1302 = vunpack.c.l.b16 %v1227
  %v1303 = vunpack.c.h.b16 %v1227
  %v1304 = vunpack.c.l.b16 %v1228
  %v1305 = vunpack.c.h.b16 %v1228
  %v1306 = vunpack.c.l.b16 %v1229
  %v1307 = vunpack.c.h.b16 %v1229
  %v1308 = vunpack.c.l.b16 %v1230
  %v1309 = vunpack.c.h.b16 %v1230
  %v1310 = vunpack.c.l.b16 %v1231
  %v1311 = vunpack.c.h.b16 %v1231
  %v1312 = vunpack.c.l.b16 %v1232
  %v1313 = vunpack.c.h.b16 %v1232
  %v1314 = vunpack.c.l.b16 %v1233
  %v1315 = vunpack.c.h.b16 %v1233
  %v1316 = vunpack.c.l.b16 %v1234
  %v1317 = vunpack.c.h.b16 %v1234
  %v1318 = vunpack.c.l.b16 %v1235
  %v1319 = vunpack.c.h.b16 %v1235
  %v1320 = vunpack.c.l.b16 %v1236
  %v1321 = vunpack.c.h.b16 %v1236
  %v1322 = vunpack.c.l.b16 %v1237
  %v1323 = vunpack.c.h.b16 %v1237
  %v1324 = vunpack.c.l.b16 %v1238
  %v1325 = vunpack.c.h.b16 %v1238
  %v1326 = vunpack.c.l.b16 %v1239
  %v1327 = vunpack.c.h.b16 %v1239
  %v1328 = vunpack.c.l.b16 %v1240
  %v1329 = vunpack.c.h.b16 %v1240
  %v1330 = vunpack.c.l.b16 %v1241
  %v1331 = vunpack.c.h.b16 %v1241
  %v1332 = vunpack.c.l.b16 %v1242
  %v1333 = vunpack.c.h.b16 %v1242
  %v1334 = vunpack.c.l.b16 %v1243
  %v1335 = vunpack.c.h.b16 %v1243
  %v1336 = vunpack.c.l.b16 %v1244
  %v1337 = vunpack.c.h.b16 %v1244
  %v1338 = vunpack.c.l.b16 %v1245
  %v1339 = vunpack.c.h.b16 %v1245
  %v1340 = vunpack.c.l.b16 %v1246
  %v1341 = vunpack.c.h.b16 %v1246
  %v1342 = vunpack.c.l.b16 %v1247
  %v1343 = vunpack.c.h.b16 %v1247
  %v1344 = vpack.c.b16 %v1280, %v1280
  %v1345 = vpack.c.b16 %v1281, %v1281
  %v1346 = vpack.c.b16 %v1282, %v1282
  %v1347 = vpack.c.b16 %v1283, %v1283
  %v1348 = vpack.c.b16 %v1284, %v1284
  %v1349 = vpack.c.b16 %v1285, %v1285
  %v1350 = vpack.c.b16 %v1286, %v1286
  %v1351 = vpack.c.b16 %v1287, %v1287
  %v1352 = vpack.c.b16 %v1288, %v1288
  %v1353 = vpack.c.b16 %v1289, %v1289
  %v1354 = vpack.c.b16 %v1290, %v1290
  %v1355 = vpack.c.b16 %v1291, %v1291
  %v1356 = vpack.c.b16 %v1292, %v1292
  %v1357 = vpack.c.b16 %v1293, %v1293
  %v1358 = vpack.c.b16 %v1294, %v1294
  %v1359 = vpack.c.b16 %v1295, %v1295
  %v1360 = vpack.c.b16 %v1296, %v1296
  %v1361 = vpack.c.b16 %v1297, %v1297
  %v1362 = vpack.c.b16 %v1298, %v1298
  %v1363 = vpack.c.b16 %v1299, %v1299
  %v1364 = vpack.c.b16 %v1300, %v1300
  %v1365 = vpack.c.b16 %v1301, %v1301
  %v1366 = vpack.c.b16 %v1302, %v1302
  %v1367 = vpack.c.b16 %v1303, %v1303
  %v1368 = vpack.c.b16 %v1304, %v1304
  %v1369 = vpack.c.b16 %v1305, %v1305
  %v1370 = vpack.c.b16 %v1306, %v1306
  %v1371 = vpack.c.b16 %v1307, %v1307
  %v1372 = vpack.c.b16 %v1308, %v1308
  %v1373 = vpack.c.b16 %v1309, %v1309
  %v1374 = vpack.c.b16 %v1310, %v1310
  %v1375 = vpack.c.b16 %v1311, %v1311
  %v1376 = vpack.c.b16 %v1312, %v1312
  %v1377 = vpack.c.b16 %v1313, %v1313
  %v1378 = vpack.c.b16 %v1314, %v1314
  %v1379 = vpack.c.b16 %v1315, %v1315
  %v1380 = vpack.c.b16 %v1316, %v1316
  %v1381 = vpack.c.b16 %v1317, %v1317
  %v1382 = vpack.c.b16 %v1318, %v1318
  %v1383 = vpack.c.b16 %v1319, %v1319
  %v1384 = vpack.c.b16 %v1320, %v1320
  %v1385 = vpack.c.b16 %v1321, %v1321
  %v1386 = vpack.c.b16 %v1322, %v1322
  %v1387 = vpack.c.b16 %v1323, %v1323
  %v1388 = vpack.c.b16 %v1324, %v1324
  %v1389 = vpack.c.b16 %v1325, %v1325
  %v1390 = vpack.c.b16 %v1326, %v1326
  %v1391 = vpack.c.b16 %v1327, %v1327
  %v1392 = vpack.c.b16 %v1328, %v1328
  %v1393 = vpack.c.b16 %v1329, %v1329
  %v1394 = vpack.c.b16 %v1330, %v1330
  %v1395 = vpack.c.b16 %v1331, %v1331
  %v1396 = vpack.c.b16 %v1332, %v1332
  %v1397 = vpack.c.b16 %v1333, %v1333
  %v1398 = vpack.c.b16 %v1334, %v1334
  %v1399 = vpack.c.b16 %v1335, %v1335
  %v1400 = vpack.c.b16 %v1336, %v1336
  %v1401 = vpack.c.b16 %v1337, %v1337
  %v1402 = vpack.c.b16 %v1338, %v1338
  %v1403 = vpack.c.b16 %v1339, %v1339
  %v1404 = vpack.c.b16 %v1340, %v1340
  %v1405 = vpack.c.b16 %v1341, %v1341
  %v1406 = vpack.c.b16 %v1342, %v1342
  %v1407 = vpack.c.b16 %v1343, %v1343
  %vm1472 = vcmask 125952
  %1473 = vst.msk [vmem:[%s3] sm:$0xf] %vm1472, %v1344
  %1474 = vst.msk [vmem:[%s3 + $0x4] sm:$0xf] %vm1472, %v1345
  %1475 = vst.msk [vmem:[%s3 + $0x8] sm:$0xf] %vm1472, %v1346
  %1476 = vst.msk [vmem:[%s3 + $0xc] sm:$0xf] %vm1472, %v1347
  %1477 = vst.msk [vmem:[%s3 + $0x10] sm:$0xf] %vm1472, %v1348
  %1478 = vst.msk [vmem:[%s3 + $0x14] sm:$0xf] %vm1472, %v1349
  %1479 = vst.msk [vmem:[%s3 + $0x18] sm:$0xf] %vm1472, %v1350
  %1480 = vst.msk [vmem:[%s3 + $0x1c] sm:$0xf] %vm1472, %v1351
  %1481 = vst.msk [vmem:[%s3 + $0x20] sm:$0xf] %vm1472, %v1352
  %1482 = vst.msk [vmem:[%s3 + $0x24] sm:$0xf] %vm1472, %v1353
  %1483 = vst.msk [vmem:[%s3 + $0x28] sm:$0xf] %vm1472, %v1354
  %1484 = vst.msk [vmem:[%s3 + $0x2c] sm:$0xf] %vm1472, %v1355
  %1485 = vst.msk [vmem:[%s3 + $0x30] sm:$0xf] %vm1472, %v1356
  %1486 = vst.msk [vmem:[%s3 + $0x34] sm:$0xf] %vm1472, %v1357
  %1487 = vst.msk [vmem:[%s3 + $0x38] sm:$0xf] %vm1472, %v1358
  %1488 = vst.msk [vmem:[%s3 + $0x3c] sm:$0xf] %vm1472, %v1359
  %1489 = vst.msk [vmem:[%s3 + $0x40] sm:$0xf] %vm1472, %v1360
  %1490 = vst.msk [vmem:[%s3 + $0x44] sm:$0xf] %vm1472, %v1361
  %1491 = vst.msk [vmem:[%s3 + $0x48] sm:$0xf] %vm1472, %v1362
  %1492 = vst.msk [vmem:[%s3 + $0x4c] sm:$0xf] %vm1472, %v1363
  %1493 = vst.msk [vmem:[%s3 + $0x50] sm:$0xf] %vm1472, %v1364
  %1494 = vst.msk [vmem:[%s3 + $0x54] sm:$0xf] %vm1472, %v1365
  %1495 = vst.msk [vmem:[%s3 + $0x58] sm:$0xf] %vm1472, %v1366
  %1496 = vst.msk [vmem:[%s3 + $0x5c] sm:$0xf] %vm1472, %v1367
  %1497 = vst.msk [vmem:[%s3 + $0x60] sm:$0xf] %vm1472, %v1368
  %1498 = vst.msk [vmem:[%s3 + $0x64] sm:$0xf] %vm1472, %v1369
  %1499 = vst.msk [vmem:[%s3 + $0x68] sm:$0xf] %vm1472, %v1370
  %1500 = vst.msk [vmem:[%s3 + $0x6c] sm:$0xf] %vm1472, %v1371
  %1501 = vst.msk [vmem:[%s3 + $0x70] sm:$0xf] %vm1472, %v1372
  %1502 = vst.msk [vmem:[%s3 + $0x74] sm:$0xf] %vm1472, %v1373
  %1503 = vst.msk [vmem:[%s3 + $0x78] sm:$0xf] %vm1472, %v1374
  %1504 = vst.msk [vmem:[%s3 + $0x7c] sm:$0xf] %vm1472, %v1375
  %1505 = vst.msk [vmem:[%s3 + $0x80] sm:$0xf] %vm1472, %v1376
  %1506 = vst.msk [vmem:[%s3 + $0x84] sm:$0xf] %vm1472, %v1377
  %1507 = vst.msk [vmem:[%s3 + $0x88] sm:$0xf] %vm1472, %v1378
  %1508 = vst.msk [vmem:[%s3 + $0x8c] sm:$0xf] %vm1472, %v1379
  %1509 = vst.msk [vmem:[%s3 + $0x90] sm:$0xf] %vm1472, %v1380
  %1510 = vst.msk [vmem:[%s3 + $0x94] sm:$0xf] %vm1472, %v1381
  %1511 = vst.msk [vmem:[%s3 + $0x98] sm:$0xf] %vm1472, %v1382
  %1512 = vst.msk [vmem:[%s3 + $0x9c] sm:$0xf] %vm1472, %v1383
  %1513 = vst.msk [vmem:[%s3 + $0xa0] sm:$0xf] %vm1472, %v1384
  %1514 = vst.msk [vmem:[%s3 + $0xa4] sm:$0xf] %vm1472, %v1385
  %1515 = vst.msk [vmem:[%s3 + $0xa8] sm:$0xf] %vm1472, %v1386
  %1516 = vst.msk [vmem:[%s3 + $0xac] sm:$0xf] %vm1472, %v1387
  %1517 = vst.msk [vmem:[%s3 + $0xb0] sm:$0xf] %vm1472, %v1388
  %1518 = vst.msk [vmem:[%s3 + $0xb4] sm:$0xf] %vm1472, %v1389
  %1519 = vst.msk [vmem:[%s3 + $0xb8] sm:$0xf] %vm1472, %v1390
  %1520 = vst.msk [vmem:[%s3 + $0xbc] sm:$0xf] %vm1472, %v1391
  %1521 = vst.msk [vmem:[%s3 + $0xc0] sm:$0xf] %vm1472, %v1392
  %1522 = vst.msk [vmem:[%s3 + $0xc4] sm:$0xf] %vm1472, %v1393
  %1523 = vst.msk [vmem:[%s3 + $0xc8] sm:$0xf] %vm1472, %v1394
  %1524 = vst.msk [vmem:[%s3 + $0xcc] sm:$0xf] %vm1472, %v1395
  %1525 = vst.msk [vmem:[%s3 + $0xd0] sm:$0xf] %vm1472, %v1396
  %1526 = vst.msk [vmem:[%s3 + $0xd4] sm:$0xf] %vm1472, %v1397
  %1527 = vst.msk [vmem:[%s3 + $0xd8] sm:$0xf] %vm1472, %v1398
  %1528 = vst.msk [vmem:[%s3 + $0xdc] sm:$0xf] %vm1472, %v1399
  %1529 = vst.msk [vmem:[%s3 + $0xe0] sm:$0xf] %vm1472, %v1400
  %1530 = vst.msk [vmem:[%s3 + $0xe4] sm:$0xf] %vm1472, %v1401
  %1531 = vst.msk [vmem:[%s3 + $0xe8] sm:$0xf] %vm1472, %v1402
  %1532 = vst.msk [vmem:[%s3 + $0xec] sm:$0xf] %vm1472, %v1403
  %1533 = vst.msk [vmem:[%s3 + $0xf0] sm:$0xf] %vm1472, %v1404
  %1534 = vst.msk [vmem:[%s3 + $0xf4] sm:$0xf] %vm1472, %v1405
  %1535 = vst.msk [vmem:[%s3 + $0xf8] sm:$0xf] %vm1472, %v1406
  %1536 = vst.msk [vmem:[%s3 + $0xfc] sm:$0xf] %vm1472, %v1407
  // Predicated region
  $region14: #{sqnet_forward.24} parent=0 // pred_check
    _
  $region15: #{sqnet_forward.24} parent=0 // pred_check_branch
    %1538 = sbr.rel (0) target = $region17
  $region16: #{sqnet_forward.24} parent=0 // pred_region
    _
  $region17: #{sqnet_forward.24} parent=0 // pred_fallthru
    _
  // Predicated region
  $region18: #{sqnet_forward.24} parent=0 // pred_check
    _
  $region19: #{sqnet_forward.24} parent=0 // pred_check_branch
    %1540 = sbr.rel (0) target = $region21
  $region20: #{sqnet_forward.24} parent=0 // pred_region
    _
  $region21: #{sqnet_forward.24} parent=0 // pred_fallthru
    _

// kernel: tile.28
$region0: #{tile.28}
  #allocation0 [shape = 's32[1]{0}', space=sflag, size = 0x4, scoped, tag = 'scoped memory for tile.28']
  %s0 = inlined_call_operand.vmem [shape: f32[4], index: 0, kind: input, shape index: {}]
  %s1 = inlined_call_operand.vmem [shape: f32[4,4], index: 1, kind: output, shape index: {}]
  // Predicated region
  $region2: #{tile.28} parent=0 // pred_check
    _
  $region3: #{tile.28} parent=0 // pred_check_branch
    %3 = sbr.rel (0) target = $region5
  $region4: #{tile.28} parent=0 // pred_region
    _
  $region5: #{tile.28} parent=0 // pred_fallthru
    _
  %v4 = vld [vmem:[%s0] ss:$0 sm:$0xff]
  %5 = vst [vmem:[%s1] sm:$0xf] %v4

// kernel: tile.29
$region0: #{tile.29}
  %s0 = inlined_call_operand.vmem [shape: f32[4,4], index: 0, kind: input, shape index: {}]
  %s1 = inlined_call_operand.vmem [shape: f32[1,16], index: 1, kind: output, shape index: {}]
  $region1: #{tile.29} parent=0
    #allocation0 [shape = 'u8[4096]{0}', space=vmem, size = 0x1000, scoped, tag = 'scoped mem for output reshape']
    #allocation1 [shape = 'u8[4096]{0}', space=vmem, size = 0x1000, scoped, tag = 'scoped mem for input reshape']
    %s3 = sshllo.u32 0, 4
    %v4 = vld [vmem:[%s0] sm:%s3]
    %5 = vst [vmem:[#allocation1] sm:%s3] %v4
    %v6 = vld [vmem:[#allocation1] sm:$0x1]
    %vm7 = vcmask 31744
    %8 = vst.msk [vmem:[#allocation0] sm:$0x1] %vm7, %v6
    %s9 = scalar_lea.vmem [#allocation1], 3
    %v10 = vld [vmem:[%s9] sm:$0x1]
    %11 = vrot.lane.b32.xlu0 %v10, 12
    %v12 = vpop.permute.xlu0 %11
    %vm13 = vcmask 130144
    %14 = vst.msk [vmem:[#allocation0] sm:$0x1] %vm13, %v12
    %s15 = scalar_lea.vmem [#allocation1], 2
    %v16 = vld [vmem:[%s15] sm:$0x1]
    %17 = vrot.lane.b32.xlu0 %v16, 8
    %v18 = vpop.permute.xlu0 %17
    %vm19 = vcmask 97344
    %20 = vst.msk [vmem:[#allocation0] sm:$0x1] %vm19, %v18
    %s21 = scalar_lea.vmem [#allocation1], 1
    %v22 = vld [vmem:[%s21] sm:$0x1]
    %23 = vrot.lane.b32.xlu0 %v22, 4
    %v24 = vpop.permute.xlu0 %23
    %vm25 = vcmask 64544
    %26 = vst.msk [vmem:[#allocation0] sm:$0x1] %vm25, %v24
    %s28 = sshllo.u32 0, 1
    %v30 = vld [vmem:[#allocation0] sm:%s28]
    %s31 = sshllo.u32 0, 1
    %32 = vst [vmem:[%s1] sm:%s31] %v30

// kernel: sqnet_forward.25
$region0: #{sqnet_forward.25}
  #allocation0 [shape = 'u32[]', space=smem, size = 0x4, offset = 0x4, fixed_abs, tag = 'smem constant byte address 0x4 - core index']
  #allocation1 [shape = 'u32[144,128]{1,0:T(1,128)}', space=vmem, size = 0x12000, scoped, tag = 'internal scratch']
  %s0 = inlined_call_operand.vmem [shape: bf16[512,64], index: 0, kind: input, shape index: {}]
  %s1 = inlined_call_operand.vmem [shape: bf16[64,16], index: 1, kind: input, shape index: {}]
  %s2 = inlined_call_operand.vmem [shape: f32[1,16], index: 2, kind: input, shape index: {}]
  %s3 = inlined_call_operand.vmem [shape: bf16[512,16], index: 3, kind: output, shape index: {}]
  %s4 = sld [smem:[#allocation0]]
  $region22: #{sqnet_forward.25} parent=0
    _
  %s6 = ssub.s32 1, %s4
  %s7 = scalar_select 0, %s6, %s4
  // Predicated region
  $region2: #{sqnet_forward.25} parent=0 // pred_check
    _
  $region3: #{sqnet_forward.25} parent=0 // pred_check_branch
    %9 = sbr.rel (0) target = $region5
  $region4: #{sqnet_forward.25} parent=0 // pred_region
    _
  $region5: #{sqnet_forward.25} parent=0 // pred_fallthru
    _
  // Predicated region
  $region6: #{sqnet_forward.25} parent=0 // pred_check
    _
  $region7: #{sqnet_forward.25} parent=0 // pred_check_branch
    %11 = sbr.rel (0) target = $region9
  $region8: #{sqnet_forward.25} parent=0 // pred_region
    _
  $region9: #{sqnet_forward.25} parent=0 // pred_fallthru
    _
  // Predicated region
  $region10: #{sqnet_forward.25} parent=0 // pred_check
    _
  $region11: #{sqnet_forward.25} parent=0 // pred_check_branch
    %13 = sbr.rel (0) target = $region13
  $region12: #{sqnet_forward.25} parent=0 // pred_region
    _
  $region13: #{sqnet_forward.25} parent=0 // pred_fallthru
    _
  %v15 = vld [vmem:[%s0] sm:$0xf]
  %v16 = vld [vmem:[%s0 + $0x4] sm:$0xf]
  %v17 = vld [vmem:[%s0 + $0x8] sm:$0xf]
  %v18 = vld [vmem:[%s0 + $0xc] sm:$0xf]
  %v19 = vld [vmem:[%s0 + $0x10] sm:$0xf]
  %v20 = vld [vmem:[%s0 + $0x14] sm:$0xf]
  %v21 = vld [vmem:[%s0 + $0x18] sm:$0xf]
  %v22 = vld [vmem:[%s0 + $0x1c] sm:$0xf]
  %v23 = vld [vmem:[%s0 + $0x20] sm:$0xf]
  %v24 = vld [vmem:[%s0 + $0x24] sm:$0xf]
  %v25 = vld [vmem:[%s0 + $0x28] sm:$0xf]
  %v26 = vld [vmem:[%s0 + $0x2c] sm:$0xf]
  %v27 = vld [vmem:[%s0 + $0x30] sm:$0xf]
  %v28 = vld [vmem:[%s0 + $0x34] sm:$0xf]
  %v29 = vld [vmem:[%s0 + $0x38] sm:$0xf]
  %v30 = vld [vmem:[%s0 + $0x3c] sm:$0xf]
  %v31 = vld [vmem:[%s0 + $0x40] sm:$0xf]
  %v32 = vld [vmem:[%s0 + $0x44] sm:$0xf]
  %v33 = vld [vmem:[%s0 + $0x48] sm:$0xf]
  %v34 = vld [vmem:[%s0 + $0x4c] sm:$0xf]
  %v35 = vld [vmem:[%s0 + $0x50] sm:$0xf]
  %v36 = vld [vmem:[%s0 + $0x54] sm:$0xf]
  %v37 = vld [vmem:[%s0 + $0x58] sm:$0xf]
  %v38 = vld [vmem:[%s0 + $0x5c] sm:$0xf]
  %v39 = vld [vmem:[%s0 + $0x60] sm:$0xf]
  %v40 = vld [vmem:[%s0 + $0x64] sm:$0xf]
  %v41 = vld [vmem:[%s0 + $0x68] sm:$0xf]
  %v42 = vld [vmem:[%s0 + $0x6c] sm:$0xf]
  %v43 = vld [vmem:[%s0 + $0x70] sm:$0xf]
  %v44 = vld [vmem:[%s0 + $0x74] sm:$0xf]
  %v45 = vld [vmem:[%s0 + $0x78] sm:$0xf]
  %v46 = vld [vmem:[%s0 + $0x7c] sm:$0xf]
  %v47 = vld [vmem:[%s0 + $0x80] sm:$0xf]
  %v48 = vld [vmem:[%s0 + $0x84] sm:$0xf]
  %v49 = vld [vmem:[%s0 + $0x88] sm:$0xf]
  %v50 = vld [vmem:[%s0 + $0x8c] sm:$0xf]
  %v51 = vld [vmem:[%s0 + $0x90] sm:$0xf]
  %v52 = vld [vmem:[%s0 + $0x94] sm:$0xf]
  %v53 = vld [vmem:[%s0 + $0x98] sm:$0xf]
  %v54 = vld [vmem:[%s0 + $0x9c] sm:$0xf]
  %v55 = vld [vmem:[%s0 + $0xa0] sm:$0xf]
  %v56 = vld [vmem:[%s0 + $0xa4] sm:$0xf]
  %v57 = vld [vmem:[%s0 + $0xa8] sm:$0xf]
  %v58 = vld [vmem:[%s0 + $0xac] sm:$0xf]
  %v59 = vld [vmem:[%s0 + $0xb0] sm:$0xf]
  %v60 = vld [vmem:[%s0 + $0xb4] sm:$0xf]
  %v61 = vld [vmem:[%s0 + $0xb8] sm:$0xf]
  %v62 = vld [vmem:[%s0 + $0xbc] sm:$0xf]
  %v63 = vld [vmem:[%s0 + $0xc0] sm:$0xf]
  %v64 = vld [vmem:[%s0 + $0xc4] sm:$0xf]
  %v65 = vld [vmem:[%s0 + $0xc8] sm:$0xf]
  %v66 = vld [vmem:[%s0 + $0xcc] sm:$0xf]
  %v67 = vld [vmem:[%s0 + $0xd0] sm:$0xf]
  %v68 = vld [vmem:[%s0 + $0xd4] sm:$0xf]
  %v69 = vld [vmem:[%s0 + $0xd8] sm:$0xf]
  %v70 = vld [vmem:[%s0 + $0xdc] sm:$0xf]
  %v71 = vld [vmem:[%s0 + $0xe0] sm:$0xf]
  %v72 = vld [vmem:[%s0 + $0xe4] sm:$0xf]
  %v73 = vld [vmem:[%s0 + $0xe8] sm:$0xf]
  %v74 = vld [vmem:[%s0 + $0xec] sm:$0xf]
  %v75 = vld [vmem:[%s0 + $0xf0] sm:$0xf]
  %v76 = vld [vmem:[%s0 + $0xf4] sm:$0xf]
  %v77 = vld [vmem:[%s0 + $0xf8] sm:$0xf]
  %v78 = vld [vmem:[%s0 + $0xfc] sm:$0xf]
  %v79 = vld [vmem:[%s1] sm:$0xf]
  %v80 = vld [vmem:[%s1 + $0x4] sm:$0xf]
  %v81 = vld [vmem:[%s1 + $0x8] sm:$0xf]
  %v82 = vld [vmem:[%s1 + $0xc] sm:$0xf]
  %v83 = vld [vmem:[%s1 + $0x10] sm:$0xf]
  %v84 = vld [vmem:[%s1 + $0x14] sm:$0xf]
  %v85 = vld [vmem:[%s1 + $0x18] sm:$0xf]
  %v86 = vld [vmem:[%s1 + $0x1c] sm:$0xf]
  %v87 = vld [vmem:[%s2] sm:$0x1]
  %v89 = vlaneseq
  %v90 = vshrl.u32 %v89, 7
  %v91 = vsub.s32 0, %v90
  %v92 = vrot.slane %v87, %v91
  %v158 = vunpack.c.l.b16 %v15
  %v159 = vunpack.c.l.b16 %v16
  %v160 = vunpack.c.l.b16 %v17
  %v161 = vunpack.c.l.b16 %v18
  %v162 = vunpack.c.l.b16 %v19
  %v163 = vunpack.c.l.b16 %v20
  %v164 = vunpack.c.l.b16 %v21
  %v165 = vunpack.c.l.b16 %v22
  %v166 = vunpack.c.l.b16 %v23
  %v167 = vunpack.c.l.b16 %v24
  %v168 = vunpack.c.l.b16 %v25
  %v169 = vunpack.c.l.b16 %v26
  %v170 = vunpack.c.l.b16 %v27
  %v171 = vunpack.c.l.b16 %v28
  %v172 = vunpack.c.l.b16 %v29
  %v173 = vunpack.c.l.b16 %v30
  %v174 = vunpack.c.l.b16 %v31
  %v175 = vunpack.c.l.b16 %v32
  %v176 = vunpack.c.l.b16 %v33
  %v177 = vunpack.c.l.b16 %v34
  %v178 = vunpack.c.l.b16 %v35
  %v179 = vunpack.c.l.b16 %v36
  %v180 = vunpack.c.l.b16 %v37
  %v181 = vunpack.c.l.b16 %v38
  %v182 = vunpack.c.l.b16 %v39
  %v183 = vunpack.c.l.b16 %v40
  %v184 = vunpack.c.l.b16 %v41
  %v185 = vunpack.c.l.b16 %v42
  %v186 = vunpack.c.l.b16 %v43
  %v187 = vunpack.c.l.b16 %v44
  %v188 = vunpack.c.l.b16 %v45
  %v189 = vunpack.c.l.b16 %v46
  %v190 = vunpack.c.l.b16 %v47
  %v191 = vunpack.c.l.b16 %v48
  %v192 = vunpack.c.l.b16 %v49
  %v193 = vunpack.c.l.b16 %v50
  %v194 = vunpack.c.l.b16 %v51
  %v195 = vunpack.c.l.b16 %v52
  %v196 = vunpack.c.l.b16 %v53
  %v197 = vunpack.c.l.b16 %v54
  %v198 = vunpack.c.l.b16 %v55
  %v199 = vunpack.c.l.b16 %v56
  %v200 = vunpack.c.l.b16 %v57
  %v201 = vunpack.c.l.b16 %v58
  %v202 = vunpack.c.l.b16 %v59
  %v203 = vunpack.c.l.b16 %v60
  %v204 = vunpack.c.l.b16 %v61
  %v205 = vunpack.c.l.b16 %v62
  %v206 = vunpack.c.l.b16 %v63
  %v207 = vunpack.c.l.b16 %v64
  %v208 = vunpack.c.l.b16 %v65
  %v209 = vunpack.c.l.b16 %v66
  %v210 = vunpack.c.l.b16 %v67
  %v211 = vunpack.c.l.b16 %v68
  %v212 = vunpack.c.l.b16 %v69
  %v213 = vunpack.c.l.b16 %v70
  %v214 = vunpack.c.l.b16 %v71
  %v215 = vunpack.c.l.b16 %v72
  %v216 = vunpack.c.l.b16 %v73
  %v217 = vunpack.c.l.b16 %v74
  %v218 = vunpack.c.l.b16 %v75
  %v219 = vunpack.c.l.b16 %v76
  %v220 = vunpack.c.l.b16 %v77
  %v221 = vunpack.c.l.b16 %v78
  %v222 = vpack.c.b16 %v159, %v158
  %v223 = vpack.c.b16 %v161, %v160
  %v224 = vpack.c.b16 %v163, %v162
  %v225 = vpack.c.b16 %v165, %v164
  %v226 = vpack.c.b16 %v167, %v166
  %v227 = vpack.c.b16 %v169, %v168
  %v228 = vpack.c.b16 %v171, %v170
  %v229 = vpack.c.b16 %v173, %v172
  %v230 = vpack.c.b16 %v175, %v174
  %v231 = vpack.c.b16 %v177, %v176
  %v232 = vpack.c.b16 %v179, %v178
  %v233 = vpack.c.b16 %v181, %v180
  %v234 = vpack.c.b16 %v183, %v182
  %v235 = vpack.c.b16 %v185, %v184
  %v236 = vpack.c.b16 %v187, %v186
  %v237 = vpack.c.b16 %v189, %v188
  %v238 = vpack.c.b16 %v191, %v190
  %v239 = vpack.c.b16 %v193, %v192
  %v240 = vpack.c.b16 %v195, %v194
  %v241 = vpack.c.b16 %v197, %v196
  %v242 = vpack.c.b16 %v199, %v198
  %v243 = vpack.c.b16 %v201, %v200
  %v244 = vpack.c.b16 %v203, %v202
  %v245 = vpack.c.b16 %v205, %v204
  %v246 = vpack.c.b16 %v207, %v206
  %v247 = vpack.c.b16 %v209, %v208
  %v248 = vpack.c.b16 %v211, %v210
  %v249 = vpack.c.b16 %v213, %v212
  %v250 = vpack.c.b16 %v215, %v214
  %v251 = vpack.c.b16 %v217, %v216
  %v252 = vpack.c.b16 %v219, %v218
  %v253 = vpack.c.b16 %v221, %v220
  %v262 = vunpack.c.l.b16 %v79
  %v263 = vunpack.c.l.b16 %v80
  %v264 = vunpack.c.l.b16 %v81
  %v265 = vunpack.c.l.b16 %v82
  %v266 = vunpack.c.l.b16 %v83
  %v267 = vunpack.c.l.b16 %v84
  %v268 = vunpack.c.l.b16 %v85
  %v269 = vunpack.c.l.b16 %v86
  %v270 = vpack.c.b16 %v263, %v262
  %v271 = vpack.c.b16 %v265, %v264
  %v272 = vpack.c.b16 %v267, %v266
  %v273 = vpack.c.b16 %v269, %v268
  %vm278 = vcmask 523264
  %v280 = vsel %vm278, %v222, 0
  %v283 = vsel %vm278, %v223, 0
  %v286 = vsel %vm278, %v224, 0
  %v289 = vsel %vm278, %v225, 0
  %v292 = vsel %vm278, %v226, 0
  %v295 = vsel %vm278, %v227, 0
  %v298 = vsel %vm278, %v228, 0
  %v301 = vsel %vm278, %v229, 0
  %v304 = vsel %vm278, %v230, 0
  %v307 = vsel %vm278, %v231, 0
  %v310 = vsel %vm278, %v232, 0
  %v313 = vsel %vm278, %v233, 0
  %v316 = vsel %vm278, %v234, 0
  %v319 = vsel %vm278, %v235, 0
  %v322 = vsel %vm278, %v236, 0
  %v325 = vsel %vm278, %v237, 0
  %v328 = vsel %vm278, %v238, 0
  %v331 = vsel %vm278, %v239, 0
  %v334 = vsel %vm278, %v240, 0
  %v337 = vsel %vm278, %v241, 0
  %v340 = vsel %vm278, %v242, 0
  %v343 = vsel %vm278, %v243, 0
  %v346 = vsel %vm278, %v244, 0
  %v349 = vsel %vm278, %v245, 0
  %v352 = vsel %vm278, %v246, 0
  %v355 = vsel %vm278, %v247, 0
  %v358 = vsel %vm278, %v248, 0
  %v361 = vsel %vm278, %v249, 0
  %v364 = vsel %vm278, %v250, 0
  %v367 = vsel %vm278, %v251, 0
  %v370 = vsel %vm278, %v252, 0
  %v373 = vsel %vm278, %v253, 0
  %375 = vmatprep.subr.bf16.mxu0 0
  %376 = vmatpush1.bf16.msra.mxu0 %v270
  %377 = vmatprep.subr.bf16.mxu0 0
  %378 = vmatpush1.bf16.msra.mxu0 %v271
  %379 = vmatprep.subr.bf16.mxu0 0
  %380 = vmatpush1.bf16.msra.mxu0 %v272
  %381 = vmatprep.subr.bf16.mxu0 0
  %382 = vmatpush1.bf16.msra.mxu0 %v273
  %383 = vmatprep.subr.bf16.mxu0 0
  %384 = vmatpush1.bf16.msra.mxu0 0
  %385 = vmatprep.subr.bf16.mxu0 0
  %386 = vmatpush1.bf16.msra.mxu0 0
  %387 = vmatprep.subr.bf16.mxu0 0
  %388 = vmatpush1.bf16.msra.mxu0 0
  %389 = vmatprep.subr.bf16.mxu0 0
  %390 = vmatpush1.bf16.msra.mxu0 0
  %391 = vmatprep.subr.bf16.mxu0 0
  %392 = vmatpush1.bf16.msra.mxu0 0
  %393 = vmatprep.subr.bf16.mxu0 0
  %394 = vmatpush1.bf16.msra.mxu0 0
  %395 = vmatprep.subr.bf16.mxu0 0
  %396 = vmatpush1.bf16.msra.mxu0 0
  %397 = vmatprep.subr.bf16.mxu0 0
  %398 = vmatpush1.bf16.msra.mxu0 0
  %399 = vmatprep.subr.bf16.mxu0 0
  %400 = vmatpush1.bf16.msra.mxu0 0
  %401 = vmatprep.subr.bf16.mxu0 0
  %402 = vmatpush1.bf16.msra.mxu0 0
  %403 = vmatprep.subr.bf16.mxu0 0
  %404 = vmatpush1.bf16.msra.mxu0 0
  %405 = vmatprep.subr.bf16.mxu0 0
  %406 = vmatpush1.bf16.msra.mxu0 0
  %407 = vmatprep.mubr.bf16.mxu0 0
  %408 = vmatmul.mubr.bf16.gmra.mrb[0].mxu0 %v280
  %v409 = vpop.f32.mrb[0].mxu0
  %v410 = vadd.f32 %v92, %v409
  %v411 = vpop.f32.mrb[0].mxu0
  %v412 = vpop.f32.mrb[0].mxu0
  %v413 = vadd.f32 %v92, %v412
  %v414 = vpop.f32.mrb[0].mxu0
  %415 = vmatprep.mubr.bf16.mxu0 0
  %416 = vmatmul.mubr.bf16.gmra.mrb[0].mxu0 %v283
  %v417 = vpop.f32.mrb[0].mxu0
  %v418 = vadd.f32 %v92, %v417
  %v419 = vpop.f32.mrb[0].mxu0
  %v420 = vpop.f32.mrb[0].mxu0
  %v421 = vadd.f32 %v92, %v420
  %v422 = vpop.f32.mrb[0].mxu0
  %423 = vmatprep.mubr.bf16.mxu0 0
  %424 = vmatmul.mubr.bf16.gmra.mrb[0].mxu0 %v286
  %v425 = vpop.f32.mrb[0].mxu0
  %v426 = vadd.f32 %v92, %v425
  %v427 = vpop.f32.mrb[0].mxu0
  %v428 = vpop.f32.mrb[0].mxu0
  %v429 = vadd.f32 %v92, %v428
  %v430 = vpop.f32.mrb[0].mxu0
  %431 = vmatprep.mubr.bf16.mxu0 0
  %432 = vmatmul.mubr.bf16.gmra.mrb[0].mxu0 %v289
  %v433 = vpop.f32.mrb[0].mxu0
  %v434 = vadd.f32 %v92, %v433
  %v435 = vpop.f32.mrb[0].mxu0
  %v436 = vpop.f32.mrb[0].mxu0
  %v437 = vadd.f32 %v92, %v436
  %v438 = vpop.f32.mrb[0].mxu0
  %439 = vmatprep.mubr.bf16.mxu0 0
  %440 = vmatmul.mubr.bf16.gmra.mrb[0].mxu0 %v292
  %v441 = vpop.f32.mrb[0].mxu0
  %v442 = vadd.f32 %v92, %v441
  %v443 = vpop.f32.mrb[0].mxu0
  %v444 = vpop.f32.mrb[0].mxu0
  %v445 = vadd.f32 %v92, %v444
  %v446 = vpop.f32.mrb[0].mxu0
  %447 = vmatprep.mubr.bf16.mxu0 0
  %448 = vmatmul.mubr.bf16.gmra.mrb[0].mxu0 %v295
  %v449 = vpop.f32.mrb[0].mxu0
  %v450 = vadd.f32 %v92, %v449
  %v451 = vpop.f32.mrb[0].mxu0
  %v452 = vpop.f32.mrb[0].mxu0
  %v453 = vadd.f32 %v92, %v452
  %v454 = vpop.f32.mrb[0].mxu0
  %455 = vmatprep.mubr.bf16.mxu0 0
  %456 = vmatmul.mubr.bf16.gmra.mrb[0].mxu0 %v298
  %v457 = vpop.f32.mrb[0].mxu0
  %v458 = vadd.f32 %v92, %v457
  %v459 = vpop.f32.mrb[0].mxu0
  %v460 = vpop.f32.mrb[0].mxu0
  %v461 = vadd.f32 %v92, %v460
  %v462 = vpop.f32.mrb[0].mxu0
  %463 = vmatprep.mubr.bf16.mxu0 0
  %464 = vmatmul.mubr.bf16.gmra.mrb[0].mxu0 %v301
  %v465 = vpop.f32.mrb[0].mxu0
  %v466 = vadd.f32 %v92, %v465
  %v467 = vpop.f32.mrb[0].mxu0
  %v468 = vpop.f32.mrb[0].mxu0
  %v469 = vadd.f32 %v92, %v468
  %v470 = vpop.f32.mrb[0].mxu0
  %471 = vmatprep.mubr.bf16.mxu0 0
  %472 = vmatmul.mubr.bf16.gmra.mrb[0].mxu0 %v304
  %v473 = vpop.f32.mrb[0].mxu0
  %v474 = vadd.f32 %v92, %v473
  %v475 = vpop.f32.mrb[0].mxu0
  %v476 = vpop.f32.mrb[0].mxu0
  %v477 = vadd.f32 %v92, %v476
  %v478 = vpop.f32.mrb[0].mxu0
  %479 = vmatprep.mubr.bf16.mxu0 0
  %480 = vmatmul.mubr.bf16.gmra.mrb[0].mxu0 %v307
  %v481 = vpop.f32.mrb[0].mxu0
  %v482 = vadd.f32 %v92, %v481
  %v483 = vpop.f32.mrb[0].mxu0
  %v484 = vpop.f32.mrb[0].mxu0
  %v485 = vadd.f32 %v92, %v484
  %v486 = vpop.f32.mrb[0].mxu0
  %487 = vmatprep.mubr.bf16.mxu0 0
  %488 = vmatmul.mubr.bf16.gmra.mrb[0].mxu0 %v310
  %v489 = vpop.f32.mrb[0].mxu0
  %v490 = vadd.f32 %v92, %v489
  %v491 = vpop.f32.mrb[0].mxu0
  %v492 = vpop.f32.mrb[0].mxu0
  %v493 = vadd.f32 %v92, %v492
  %v494 = vpop.f32.mrb[0].mxu0
  %495 = vmatprep.mubr.bf16.mxu0 0
  %496 = vmatmul.mubr.bf16.gmra.mrb[0].mxu0 %v313
  %v497 = vpop.f32.mrb[0].mxu0
  %v498 = vadd.f32 %v92, %v497
  %v499 = vpop.f32.mrb[0].mxu0
  %v500 = vpop.f32.mrb[0].mxu0
  %v501 = vadd.f32 %v92, %v500
  %v502 = vpop.f32.mrb[0].mxu0
  %503 = vmatprep.mubr.bf16.mxu0 0
  %504 = vmatmul.mubr.bf16.gmra.mrb[0].mxu0 %v316
  %v505 = vpop.f32.mrb[0].mxu0
  %v506 = vadd.f32 %v92, %v505
  %v507 = vpop.f32.mrb[0].mxu0
  %v508 = vpop.f32.mrb[0].mxu0
  %v509 = vadd.f32 %v92, %v508
  %v510 = vpop.f32.mrb[0].mxu0
  %511 = vmatprep.mubr.bf16.mxu0 0
  %512 = vmatmul.mubr.bf16.gmra.mrb[0].mxu0 %v319
  %v513 = vpop.f32.mrb[0].mxu0
  %v514 = vadd.f32 %v92, %v513
  %v515 = vpop.f32.mrb[0].mxu0
  %v516 = vpop.f32.mrb[0].mxu0
  %v517 = vadd.f32 %v92, %v516
  %v518 = vpop.f32.mrb[0].mxu0
  %519 = vmatprep.mubr.bf16.mxu0 0
  %520 = vmatmul.mubr.bf16.gmra.mrb[0].mxu0 %v322
  %v521 = vpop.f32.mrb[0].mxu0
  %v522 = vadd.f32 %v92, %v521
  %v523 = vpop.f32.mrb[0].mxu0
  %v524 = vpop.f32.mrb[0].mxu0
  %v525 = vadd.f32 %v92, %v524
  %v526 = vpop.f32.mrb[0].mxu0
  %527 = vmatprep.mubr.bf16.mxu0 0
  %528 = vmatmul.mubr.bf16.gmra.mrb[0].mxu0 %v325
  %v529 = vpop.f32.mrb[0].mxu0
  %v530 = vadd.f32 %v92, %v529
  %v531 = vpop.f32.mrb[0].mxu0
  %v532 = vpop.f32.mrb[0].mxu0
  %v533 = vadd.f32 %v92, %v532
  %v534 = vpop.f32.mrb[0].mxu0
  %535 = vmatprep.mubr.bf16.mxu0 0
  %536 = vmatmul.mubr.bf16.gmra.mrb[0].mxu0 %v328
  %v537 = vpop.f32.mrb[0].mxu0
  %v538 = vadd.f32 %v92, %v537
  %v539 = vpop.f32.mrb[0].mxu0
  %v540 = vpop.f32.mrb[0].mxu0
  %v541 = vadd.f32 %v92, %v540
  %v542 = vpop.f32.mrb[0].mxu0
  %543 = vmatprep.mubr.bf16.mxu0 0
  %544 = vmatmul.mubr.bf16.gmra.mrb[0].mxu0 %v331
  %v545 = vpop.f32.mrb[0].mxu0
  %v546 = vadd.f32 %v92, %v545
  %v547 = vpop.f32.mrb[0].mxu0
  %v548 = vpop.f32.mrb[0].mxu0
  %v549 = vadd.f32 %v92, %v548
  %v550 = vpop.f32.mrb[0].mxu0
  %551 = vmatprep.mubr.bf16.mxu0 0
  %552 = vmatmul.mubr.bf16.gmra.mrb[0].mxu0 %v334
  %v553 = vpop.f32.mrb[0].mxu0
  %v554 = vadd.f32 %v92, %v553
  %v555 = vpop.f32.mrb[0].mxu0
  %v556 = vpop.f32.mrb[0].mxu0
  %v557 = vadd.f32 %v92, %v556
  %v558 = vpop.f32.mrb[0].mxu0
  %559 = vmatprep.mubr.bf16.mxu0 0
  %560 = vmatmul.mubr.bf16.gmra.mrb[0].mxu0 %v337
  %v561 = vpop.f32.mrb[0].mxu0
  %v562 = vadd.f32 %v92, %v561
  %v563 = vpop.f32.mrb[0].mxu0
  %v564 = vpop.f32.mrb[0].mxu0
  %v565 = vadd.f32 %v92, %v564
  %v566 = vpop.f32.mrb[0].mxu0
  %567 = vmatprep.mubr.bf16.mxu0 0
  %568 = vmatmul.mubr.bf16.gmra.mrb[0].mxu0 %v340
  %v569 = vpop.f32.mrb[0].mxu0
  %v570 = vadd.f32 %v92, %v569
  %v571 = vpop.f32.mrb[0].mxu0
  %v572 = vpop.f32.mrb[0].mxu0
  %v573 = vadd.f32 %v92, %v572
  %v574 = vpop.f32.mrb[0].mxu0
  %575 = vmatprep.mubr.bf16.mxu0 0
  %576 = vmatmul.mubr.bf16.gmra.mrb[0].mxu0 %v343
  %v577 = vpop.f32.mrb[0].mxu0
  %v578 = vadd.f32 %v92, %v577
  %v579 = vpop.f32.mrb[0].mxu0
  %v580 = vpop.f32.mrb[0].mxu0
  %v581 = vadd.f32 %v92, %v580
  %v582 = vpop.f32.mrb[0].mxu0
  %583 = vmatprep.mubr.bf16.mxu0 0
  %584 = vmatmul.mubr.bf16.gmra.mrb[0].mxu0 %v346
  %v585 = vpop.f32.mrb[0].mxu0
  %v586 = vadd.f32 %v92, %v585
  %v587 = vpop.f32.mrb[0].mxu0
  %v588 = vpop.f32.mrb[0].mxu0
  %v589 = vadd.f32 %v92, %v588
  %v590 = vpop.f32.mrb[0].mxu0
  %591 = vmatprep.mubr.bf16.mxu0 0
  %592 = vmatmul.mubr.bf16.gmra.mrb[0].mxu0 %v349
  %v593 = vpop.f32.mrb[0].mxu0
  %v594 = vadd.f32 %v92, %v593
  %v595 = vpop.f32.mrb[0].mxu0
  %v596 = vpop.f32.mrb[0].mxu0
  %v597 = vadd.f32 %v92, %v596
  %v598 = vpop.f32.mrb[0].mxu0
  %599 = vmatprep.mubr.bf16.mxu0 0
  %600 = vmatmul.mubr.bf16.gmra.mrb[0].mxu0 %v352
  %v601 = vpop.f32.mrb[0].mxu0
  %v602 = vadd.f32 %v92, %v601
  %v603 = vpop.f32.mrb[0].mxu0
  %v604 = vpop.f32.mrb[0].mxu0
  %v605 = vadd.f32 %v92, %v604
  %v606 = vpop.f32.mrb[0].mxu0
  %607 = vmatprep.mubr.bf16.mxu0 0
  %608 = vmatmul.mubr.bf16.gmra.mrb[0].mxu0 %v355
  %v609 = vpop.f32.mrb[0].mxu0
  %v610 = vadd.f32 %v92, %v609
  %v611 = vpop.f32.mrb[0].mxu0
  %v612 = vpop.f32.mrb[0].mxu0
  %v613 = vadd.f32 %v92, %v612
  %v614 = vpop.f32.mrb[0].mxu0
  %615 = vmatprep.mubr.bf16.mxu0 0
  %616 = vmatmul.mubr.bf16.gmra.mrb[0].mxu0 %v358
  %v617 = vpop.f32.mrb[0].mxu0
  %v618 = vadd.f32 %v92, %v617
  %v619 = vpop.f32.mrb[0].mxu0
  %v620 = vpop.f32.mrb[0].mxu0
  %v621 = vadd.f32 %v92, %v620
  %v622 = vpop.f32.mrb[0].mxu0
  %623 = vmatprep.mubr.bf16.mxu0 0
  %624 = vmatmul.mubr.bf16.gmra.mrb[0].mxu0 %v361
  %v625 = vpop.f32.mrb[0].mxu0
  %v626 = vadd.f32 %v92, %v625
  %v627 = vpop.f32.mrb[0].mxu0
  %v628 = vpop.f32.mrb[0].mxu0
  %v629 = vadd.f32 %v92, %v628
  %v630 = vpop.f32.mrb[0].mxu0
  %631 = vmatprep.mubr.bf16.mxu0 0
  %632 = vmatmul.mubr.bf16.gmra.mrb[0].mxu0 %v364
  %v633 = vpop.f32.mrb[0].mxu0
  %v634 = vadd.f32 %v92, %v633
  %v635 = vpop.f32.mrb[0].mxu0
  %v636 = vpop.f32.mrb[0].mxu0
  %v637 = vadd.f32 %v92, %v636
  %v638 = vpop.f32.mrb[0].mxu0
  %639 = vmatprep.mubr.bf16.mxu0 0
  %640 = vmatmul.mubr.bf16.gmra.mrb[0].mxu0 %v367
  %v641 = vpop.f32.mrb[0].mxu0
  %v642 = vadd.f32 %v92, %v641
  %v643 = vpop.f32.mrb[0].mxu0
  %v644 = vpop.f32.mrb[0].mxu0
  %v645 = vadd.f32 %v92, %v644
  %v646 = vpop.f32.mrb[0].mxu0
  %647 = vmatprep.mubr.bf16.mxu0 0
  %648 = vmatmul.mubr.bf16.gmra.mrb[0].mxu0 %v370
  %v649 = vpop.f32.mrb[0].mxu0
  %v650 = vadd.f32 %v92, %v649
  %v651 = vpop.f32.mrb[0].mxu0
  %v652 = vpop.f32.mrb[0].mxu0
  %v653 = vadd.f32 %v92, %v652
  %v654 = vpop.f32.mrb[0].mxu0
  %655 = vmatprep.mubr.bf16.mxu0 0
  %656 = vmatmul.mubr.bf16.gmra.mrb[0].mxu0 %v373
  %v657 = vpop.f32.mrb[0].mxu0
  %v658 = vadd.f32 %v92, %v657
  %v659 = vpop.f32.mrb[0].mxu0
  %v660 = vpop.f32.mrb[0].mxu0
  %v661 = vadd.f32 %v92, %v660
  %v662 = vpop.f32.mrb[0].mxu0
  %663 = vdwg.mxu0
  %vm664 = vcmp.gt.f32.partialorder %v410, 0.0
  %vm665 = vcmp.gt.f32.partialorder %v413, 0.0
  %vm666 = vcmp.gt.f32.partialorder %v418, 0.0
  %vm667 = vcmp.gt.f32.partialorder %v421, 0.0
  %vm668 = vcmp.gt.f32.partialorder %v426, 0.0
  %vm669 = vcmp.gt.f32.partialorder %v429, 0.0
  %vm670 = vcmp.gt.f32.partialorder %v434, 0.0
  %vm671 = vcmp.gt.f32.partialorder %v437, 0.0
  %vm672 = vcmp.gt.f32.partialorder %v442, 0.0
  %vm673 = vcmp.gt.f32.partialorder %v445, 0.0
  %vm674 = vcmp.gt.f32.partialorder %v450, 0.0
  %vm675 = vcmp.gt.f32.partialorder %v453, 0.0
  %vm676 = vcmp.gt.f32.partialorder %v458, 0.0
  %vm677 = vcmp.gt.f32.partialorder %v461, 0.0
  %vm678 = vcmp.gt.f32.partialorder %v466, 0.0
  %vm679 = vcmp.gt.f32.partialorder %v469, 0.0
  %vm680 = vcmp.gt.f32.partialorder %v474, 0.0
  %vm681 = vcmp.gt.f32.partialorder %v477, 0.0
  %vm682 = vcmp.gt.f32.partialorder %v482, 0.0
  %vm683 = vcmp.gt.f32.partialorder %v485, 0.0
  %vm684 = vcmp.gt.f32.partialorder %v490, 0.0
  %vm685 = vcmp.gt.f32.partialorder %v493, 0.0
  %vm686 = vcmp.gt.f32.partialorder %v498, 0.0
  %vm687 = vcmp.gt.f32.partialorder %v501, 0.0
  %vm688 = vcmp.gt.f32.partialorder %v506, 0.0
  %vm689 = vcmp.gt.f32.partialorder %v509, 0.0
  %vm690 = vcmp.gt.f32.partialorder %v514, 0.0
  %vm691 = vcmp.gt.f32.partialorder %v517, 0.0
  %vm692 = vcmp.gt.f32.partialorder %v522, 0.0
  %vm693 = vcmp.gt.f32.partialorder %v525, 0.0
  %vm694 = vcmp.gt.f32.partialorder %v530, 0.0
  %vm695 = vcmp.gt.f32.partialorder %v533, 0.0
  %vm696 = vcmp.gt.f32.partialorder %v538, 0.0
  %vm697 = vcmp.gt.f32.partialorder %v541, 0.0
  %vm698 = vcmp.gt.f32.partialorder %v546, 0.0
  %vm699 = vcmp.gt.f32.partialorder %v549, 0.0
  %vm700 = vcmp.gt.f32.partialorder %v554, 0.0
  %vm701 = vcmp.gt.f32.partialorder %v557, 0.0
  %vm702 = vcmp.gt.f32.partialorder %v562, 0.0
  %vm703 = vcmp.gt.f32.partialorder %v565, 0.0
  %vm704 = vcmp.gt.f32.partialorder %v570, 0.0
  %vm705 = vcmp.gt.f32.partialorder %v573, 0.0
  %vm706 = vcmp.gt.f32.partialorder %v578, 0.0
  %vm707 = vcmp.gt.f32.partialorder %v581, 0.0
  %vm708 = vcmp.gt.f32.partialorder %v586, 0.0
  %vm709 = vcmp.gt.f32.partialorder %v589, 0.0
  %vm710 = vcmp.gt.f32.partialorder %v594, 0.0
  %vm711 = vcmp.gt.f32.partialorder %v597, 0.0
  %vm712 = vcmp.gt.f32.partialorder %v602, 0.0
  %vm713 = vcmp.gt.f32.partialorder %v605, 0.0
  %vm714 = vcmp.gt.f32.partialorder %v610, 0.0
  %vm715 = vcmp.gt.f32.partialorder %v613, 0.0
  %vm716 = vcmp.gt.f32.partialorder %v618, 0.0
  %vm717 = vcmp.gt.f32.partialorder %v621, 0.0
  %vm718 = vcmp.gt.f32.partialorder %v626, 0.0
  %vm719 = vcmp.gt.f32.partialorder %v629, 0.0
  %vm720 = vcmp.gt.f32.partialorder %v634, 0.0
  %vm721 = vcmp.gt.f32.partialorder %v637, 0.0
  %vm722 = vcmp.gt.f32.partialorder %v642, 0.0
  %vm723 = vcmp.gt.f32.partialorder %v645, 0.0
  %vm724 = vcmp.gt.f32.partialorder %v650, 0.0
  %vm725 = vcmp.gt.f32.partialorder %v653, 0.0
  %vm726 = vcmp.gt.f32.partialorder %v658, 0.0
  %vm727 = vcmp.gt.f32.partialorder %v661, 0.0
  %v728 = vmin.f32 %v410, 0.0
  %v729 = vmin.f32 %v413, 0.0
  %v730 = vmin.f32 %v418, 0.0
  %v731 = vmin.f32 %v421, 0.0
  %v732 = vmin.f32 %v426, 0.0
  %v733 = vmin.f32 %v429, 0.0
  %v734 = vmin.f32 %v434, 0.0
  %v735 = vmin.f32 %v437, 0.0
  %v736 = vmin.f32 %v442, 0.0
  %v737 = vmin.f32 %v445, 0.0
  %v738 = vmin.f32 %v450, 0.0
  %v739 = vmin.f32 %v453, 0.0
  %v740 = vmin.f32 %v458, 0.0
  %v741 = vmin.f32 %v461, 0.0
  %v742 = vmin.f32 %v466, 0.0
  %v743 = vmin.f32 %v469, 0.0
  %v744 = vmin.f32 %v474, 0.0
  %v745 = vmin.f32 %v477, 0.0
  %v746 = vmin.f32 %v482, 0.0
  %v747 = vmin.f32 %v485, 0.0
  %v748 = vmin.f32 %v490, 0.0
  %v749 = vmin.f32 %v493, 0.0
  %v750 = vmin.f32 %v498, 0.0
  %v751 = vmin.f32 %v501, 0.0
  %v752 = vmin.f32 %v506, 0.0
  %v753 = vmin.f32 %v509, 0.0
  %v754 = vmin.f32 %v514, 0.0
  %v755 = vmin.f32 %v517, 0.0
  %v756 = vmin.f32 %v522, 0.0
  %v757 = vmin.f32 %v525, 0.0
  %v758 = vmin.f32 %v530, 0.0
  %v759 = vmin.f32 %v533, 0.0
  %v760 = vmin.f32 %v538, 0.0
  %v761 = vmin.f32 %v541, 0.0
  %v762 = vmin.f32 %v546, 0.0
  %v763 = vmin.f32 %v549, 0.0
  %v764 = vmin.f32 %v554, 0.0
  %v765 = vmin.f32 %v557, 0.0
  %v766 = vmin.f32 %v562, 0.0
  %v767 = vmin.f32 %v565, 0.0
  %v768 = vmin.f32 %v570, 0.0
  %v769 = vmin.f32 %v573, 0.0
  %v770 = vmin.f32 %v578, 0.0
  %v771 = vmin.f32 %v581, 0.0
  %v772 = vmin.f32 %v586, 0.0
  %v773 = vmin.f32 %v589, 0.0
  %v774 = vmin.f32 %v594, 0.0
  %v775 = vmin.f32 %v597, 0.0
  %v776 = vmin.f32 %v602, 0.0
  %v777 = vmin.f32 %v605, 0.0
  %v778 = vmin.f32 %v610, 0.0
  %v779 = vmin.f32 %v613, 0.0
  %v780 = vmin.f32 %v618, 0.0
  %v781 = vmin.f32 %v621, 0.0
  %v782 = vmin.f32 %v626, 0.0
  %v783 = vmin.f32 %v629, 0.0
  %v784 = vmin.f32 %v634, 0.0
  %v785 = vmin.f32 %v637, 0.0
  %v786 = vmin.f32 %v642, 0.0
  %v787 = vmin.f32 %v645, 0.0
  %v788 = vmin.f32 %v650, 0.0
  %v789 = vmin.f32 %v653, 0.0
  %v790 = vmin.f32 %v658, 0.0
  %v791 = vmin.f32 %v661, 0.0
  %v792 = vmul.f32 %v728, 1.442695
  %v793 = vpow.pop %v792
  %v794 = vmul.f32 %v729, 1.442695
  %v795 = vpow.pop %v794
  %v796 = vmul.f32 %v730, 1.442695
  %v797 = vpow.pop %v796
  %v798 = vmul.f32 %v731, 1.442695
  %v799 = vpow.pop %v798
  %v800 = vmul.f32 %v732, 1.442695
  %v801 = vpow.pop %v800
  %v802 = vmul.f32 %v733, 1.442695
  %v803 = vpow.pop %v802
  %v804 = vmul.f32 %v734, 1.442695
  %v805 = vpow.pop %v804
  %v806 = vmul.f32 %v735, 1.442695
  %v807 = vpow.pop %v806
  %v808 = vmul.f32 %v736, 1.442695
  %v809 = vpow.pop %v808
  %v810 = vmul.f32 %v737, 1.442695
  %v811 = vpow.pop %v810
  %v812 = vmul.f32 %v738, 1.442695
  %v813 = vpow.pop %v812
  %v814 = vmul.f32 %v739, 1.442695
  %v815 = vpow.pop %v814
  %v816 = vmul.f32 %v740, 1.442695
  %v817 = vpow.pop %v816
  %v818 = vmul.f32 %v741, 1.442695
  %v819 = vpow.pop %v818
  %v820 = vmul.f32 %v742, 1.442695
  %v821 = vpow.pop %v820
  %v822 = vmul.f32 %v743, 1.442695
  %v823 = vpow.pop %v822
  %v824 = vmul.f32 %v744, 1.442695
  %v825 = vpow.pop %v824
  %v826 = vmul.f32 %v745, 1.442695
  %v827 = vpow.pop %v826
  %v828 = vmul.f32 %v746, 1.442695
  %v829 = vpow.pop %v828
  %v830 = vmul.f32 %v747, 1.442695
  %v831 = vpow.pop %v830
  %v832 = vmul.f32 %v748, 1.442695
  %v833 = vpow.pop %v832
  %v834 = vmul.f32 %v749, 1.442695
  %v835 = vpow.pop %v834
  %v836 = vmul.f32 %v750, 1.442695
  %v837 = vpow.pop %v836
  %v838 = vmul.f32 %v751, 1.442695
  %v839 = vpow.pop %v838
  %v840 = vmul.f32 %v752, 1.442695
  %v841 = vpow.pop %v840
  %v842 = vmul.f32 %v753, 1.442695
  %v843 = vpow.pop %v842
  %v844 = vmul.f32 %v754, 1.442695
  %v845 = vpow.pop %v844
  %v846 = vmul.f32 %v755, 1.442695
  %v847 = vpow.pop %v846
  %v848 = vmul.f32 %v756, 1.442695
  %v849 = vpow.pop %v848
  %v850 = vmul.f32 %v757, 1.442695
  %v851 = vpow.pop %v850
  %v852 = vmul.f32 %v758, 1.442695
  %v853 = vpow.pop %v852
  %v854 = vmul.f32 %v759, 1.442695
  %v855 = vpow.pop %v854
  %v856 = vmul.f32 %v760, 1.442695
  %v857 = vpow.pop %v856
  %v858 = vmul.f32 %v761, 1.442695
  %v859 = vpow.pop %v858
  %v860 = vmul.f32 %v762, 1.442695
  %v861 = vpow.pop %v860
  %v862 = vmul.f32 %v763, 1.442695
  %v863 = vpow.pop %v862
  %v864 = vmul.f32 %v764, 1.442695
  %v865 = vpow.pop %v864
  %v866 = vmul.f32 %v765, 1.442695
  %v867 = vpow.pop %v866
  %v868 = vmul.f32 %v766, 1.442695
  %v869 = vpow.pop %v868
  %v870 = vmul.f32 %v767, 1.442695
  %v871 = vpow.pop %v870
  %v872 = vmul.f32 %v768, 1.442695
  %v873 = vpow.pop %v872
  %v874 = vmul.f32 %v769, 1.442695
  %v875 = vpow.pop %v874
  %v876 = vmul.f32 %v770, 1.442695
  %v877 = vpow.pop %v876
  %v878 = vmul.f32 %v771, 1.442695
  %v879 = vpow.pop %v878
  %v880 = vmul.f32 %v772, 1.442695
  %v881 = vpow.pop %v880
  %v882 = vmul.f32 %v773, 1.442695
  %v883 = vpow.pop %v882
  %v884 = vmul.f32 %v774, 1.442695
  %v885 = vpow.pop %v884
  %v886 = vmul.f32 %v775, 1.442695
  %v887 = vpow.pop %v886
  %v888 = vmul.f32 %v776, 1.442695
  %v889 = vpow.pop %v888
  %v890 = vmul.f32 %v777, 1.442695
  %v891 = vpow.pop %v890
  %v892 = vmul.f32 %v778, 1.442695
  %v893 = vpow.pop %v892
  %v894 = vmul.f32 %v779, 1.442695
  %v895 = vpow.pop %v894
  %v896 = vmul.f32 %v780, 1.442695
  %v897 = vpow.pop %v896
  %v898 = vmul.f32 %v781, 1.442695
  %v899 = vpow.pop %v898
  %v900 = vmul.f32 %v782, 1.442695
  %v901 = vpow.pop %v900
  %v902 = vmul.f32 %v783, 1.442695
  %v903 = vpow.pop %v902
  %v904 = vmul.f32 %v784, 1.442695
  %v905 = vpow.pop %v904
  %v906 = vmul.f32 %v785, 1.442695
  %v907 = vpow.pop %v906
  %v908 = vmul.f32 %v786, 1.442695
  %v909 = vpow.pop %v908
  %v910 = vmul.f32 %v787, 1.442695
  %v911 = vpow.pop %v910
  %v912 = vmul.f32 %v788, 1.442695
  %v913 = vpow.pop %v912
  %v914 = vmul.f32 %v789, 1.442695
  %v915 = vpow.pop %v914
  %v916 = vmul.f32 %v790, 1.442695
  %v917 = vpow.pop %v916
  %v918 = vmul.f32 %v791, 1.442695
  %v919 = vpow.pop %v918
  %v920 = vsub.f32 %v793, 1.0
  %v921 = vsub.f32 %v795, 1.0
  %v922 = vsub.f32 %v797, 1.0
  %v923 = vsub.f32 %v799, 1.0
  %v924 = vsub.f32 %v801, 1.0
  %v925 = vsub.f32 %v803, 1.0
  %v926 = vsub.f32 %v805, 1.0
  %v927 = vsub.f32 %v807, 1.0
  %v928 = vsub.f32 %v809, 1.0
  %v929 = vsub.f32 %v811, 1.0
  %v930 = vsub.f32 %v813, 1.0
  %v931 = vsub.f32 %v815, 1.0
  %v932 = vsub.f32 %v817, 1.0
  %v933 = vsub.f32 %v819, 1.0
  %v934 = vsub.f32 %v821, 1.0
  %v935 = vsub.f32 %v823, 1.0
  %v936 = vsub.f32 %v825, 1.0
  %v937 = vsub.f32 %v827, 1.0
  %v938 = vsub.f32 %v829, 1.0
  %v939 = vsub.f32 %v831, 1.0
  %v940 = vsub.f32 %v833, 1.0
  %v941 = vsub.f32 %v835, 1.0
  %v942 = vsub.f32 %v837, 1.0
  %v943 = vsub.f32 %v839, 1.0
  %v944 = vsub.f32 %v841, 1.0
  %v945 = vsub.f32 %v843, 1.0
  %v946 = vsub.f32 %v845, 1.0
  %v947 = vsub.f32 %v847, 1.0
  %v948 = vsub.f32 %v849, 1.0
  %v949 = vsub.f32 %v851, 1.0
  %v950 = vsub.f32 %v853, 1.0
  %v951 = vsub.f32 %v855, 1.0
  %v952 = vsub.f32 %v857, 1.0
  %v953 = vsub.f32 %v859, 1.0
  %v954 = vsub.f32 %v861, 1.0
  %v955 = vsub.f32 %v863, 1.0
  %v956 = vsub.f32 %v865, 1.0
  %v957 = vsub.f32 %v867, 1.0
  %v958 = vsub.f32 %v869, 1.0
  %v959 = vsub.f32 %v871, 1.0
  %v960 = vsub.f32 %v873, 1.0
  %v961 = vsub.f32 %v875, 1.0
  %v962 = vsub.f32 %v877, 1.0
  %v963 = vsub.f32 %v879, 1.0
  %v964 = vsub.f32 %v881, 1.0
  %v965 = vsub.f32 %v883, 1.0
  %v966 = vsub.f32 %v885, 1.0
  %v967 = vsub.f32 %v887, 1.0
  %v968 = vsub.f32 %v889, 1.0
  %v969 = vsub.f32 %v891, 1.0
  %v970 = vsub.f32 %v893, 1.0
  %v971 = vsub.f32 %v895, 1.0
  %v972 = vsub.f32 %v897, 1.0
  %v973 = vsub.f32 %v899, 1.0
  %v974 = vsub.f32 %v901, 1.0
  %v975 = vsub.f32 %v903, 1.0
  %v976 = vsub.f32 %v905, 1.0
  %v977 = vsub.f32 %v907, 1.0
  %v978 = vsub.f32 %v909, 1.0
  %v979 = vsub.f32 %v911, 1.0
  %v980 = vsub.f32 %v913, 1.0
  %v981 = vsub.f32 %v915, 1.0
  %v982 = vsub.f32 %v917, 1.0
  %v983 = vsub.f32 %v919, 1.0
  %v984 = vsel %vm664, %v410, %v920
  %v985 = vsel %vm665, %v413, %v921
  %v986 = vsel %vm666, %v418, %v922
  %v987 = vsel %vm667, %v421, %v923
  %v988 = vsel %vm668, %v426, %v924
  %v989 = vsel %vm669, %v429, %v925
  %v990 = vsel %vm670, %v434, %v926
  %v991 = vsel %vm671, %v437, %v927
  %v992 = vsel %vm672, %v442, %v928
  %v993 = vsel %vm673, %v445, %v929
  %v994 = vsel %vm674, %v450, %v930
  %v995 = vsel %vm675, %v453, %v931
  %v996 = vsel %vm676, %v458, %v932
  %v997 = vsel %vm677, %v461, %v933
  %v998 = vsel %vm678, %v466, %v934
  %v999 = vsel %vm679, %v469, %v935
  %v1000 = vsel %vm680, %v474, %v936
  %v1001 = vsel %vm681, %v477, %v937
  %v1002 = vsel %vm682, %v482, %v938
  %v1003 = vsel %vm683, %v485, %v939
  %v1004 = vsel %vm684, %v490, %v940
  %v1005 = vsel %vm685, %v493, %v941
  %v1006 = vsel %vm686, %v498, %v942
  %v1007 = vsel %vm687, %v501, %v943
  %v1008 = vsel %vm688, %v506, %v944
  %v1009 = vsel %vm689, %v509, %v945
  %v1010 = vsel %vm690, %v514, %v946
  %v1011 = vsel %vm691, %v517, %v947
  %v1012 = vsel %vm692, %v522, %v948
  %v1013 = vsel %vm693, %v525, %v949
  %v1014 = vsel %vm694, %v530, %v950
  %v1015 = vsel %vm695, %v533, %v951
  %v1016 = vsel %vm696, %v538, %v952
  %v1017 = vsel %vm697, %v541, %v953
  %v1018 = vsel %vm698, %v546, %v954
  %v1019 = vsel %vm699, %v549, %v955
  %v1020 = vsel %vm700, %v554, %v956
  %v1021 = vsel %vm701, %v557, %v957
  %v1022 = vsel %vm702, %v562, %v958
  %v1023 = vsel %vm703, %v565, %v959
  %v1024 = vsel %vm704, %v570, %v960
  %v1025 = vsel %vm705, %v573, %v961
  %v1026 = vsel %vm706, %v578, %v962
  %v1027 = vsel %vm707, %v581, %v963
  %v1028 = vsel %vm708, %v586, %v964
  %v1029 = vsel %vm709, %v589, %v965
  %v1030 = vsel %vm710, %v594, %v966
  %v1031 = vsel %vm711, %v597, %v967
  %v1032 = vsel %vm712, %v602, %v968
  %v1033 = vsel %vm713, %v605, %v969
  %v1034 = vsel %vm714, %v610, %v970
  %v1035 = vsel %vm715, %v613, %v971
  %v1036 = vsel %vm716, %v618, %v972
  %v1037 = vsel %vm717, %v621, %v973
  %v1038 = vsel %vm718, %v626, %v974
  %v1039 = vsel %vm719, %v629, %v975
  %v1040 = vsel %vm720, %v634, %v976
  %v1041 = vsel %vm721, %v637, %v977
  %v1042 = vsel %vm722, %v642, %v978
  %v1043 = vsel %vm723, %v645, %v979
  %v1044 = vsel %vm724, %v650, %v980
  %v1045 = vsel %vm725, %v653, %v981
  %v1046 = vsel %vm726, %v658, %v982
  %v1047 = vsel %vm727, %v661, %v983
  %v1048 = vpack.c.bf16 %v985, %v984
  %v1049 = vpack.c.bf16 %v987, %v986
  %v1050 = vpack.c.bf16 %v989, %v988
  %v1051 = vpack.c.bf16 %v991, %v990
  %v1052 = vpack.c.bf16 %v993, %v992
  %v1053 = vpack.c.bf16 %v995, %v994
  %v1054 = vpack.c.bf16 %v997, %v996
  %v1055 = vpack.c.bf16 %v999, %v998
  %v1056 = vpack.c.bf16 %v1001, %v1000
  %v1057 = vpack.c.bf16 %v1003, %v1002
  %v1058 = vpack.c.bf16 %v1005, %v1004
  %v1059 = vpack.c.bf16 %v1007, %v1006
  %v1060 = vpack.c.bf16 %v1009, %v1008
  %v1061 = vpack.c.bf16 %v1011, %v1010
  %v1062 = vpack.c.bf16 %v1013, %v1012
  %v1063 = vpack.c.bf16 %v1015, %v1014
  %v1064 = vpack.c.bf16 %v1017, %v1016
  %v1065 = vpack.c.bf16 %v1019, %v1018
  %v1066 = vpack.c.bf16 %v1021, %v1020
  %v1067 = vpack.c.bf16 %v1023, %v1022
  %v1068 = vpack.c.bf16 %v1025, %v1024
  %v1069 = vpack.c.bf16 %v1027, %v1026
  %v1070 = vpack.c.bf16 %v1029, %v1028
  %v1071 = vpack.c.bf16 %v1031, %v1030
  %v1072 = vpack.c.bf16 %v1033, %v1032
  %v1073 = vpack.c.bf16 %v1035, %v1034
  %v1074 = vpack.c.bf16 %v1037, %v1036
  %v1075 = vpack.c.bf16 %v1039, %v1038
  %v1076 = vpack.c.bf16 %v1041, %v1040
  %v1077 = vpack.c.bf16 %v1043, %v1042
  %v1078 = vpack.c.bf16 %v1045, %v1044
  %v1079 = vpack.c.bf16 %v1047, %v1046
  %v1112 = vunpack.c.l.b16 %v1048
  %v1113 = vunpack.c.h.b16 %v1048
  %v1114 = vunpack.c.l.b16 %v1049
  %v1115 = vunpack.c.h.b16 %v1049
  %v1116 = vunpack.c.l.b16 %v1050
  %v1117 = vunpack.c.h.b16 %v1050
  %v1118 = vunpack.c.l.b16 %v1051
  %v1119 = vunpack.c.h.b16 %v1051
  %v1120 = vunpack.c.l.b16 %v1052
  %v1121 = vunpack.c.h.b16 %v1052
  %v1122 = vunpack.c.l.b16 %v1053
  %v1123 = vunpack.c.h.b16 %v1053
  %v1124 = vunpack.c.l.b16 %v1054
  %v1125 = vunpack.c.h.b16 %v1054
  %v1126 = vunpack.c.l.b16 %v1055
  %v1127 = vunpack.c.h.b16 %v1055
  %v1128 = vunpack.c.l.b16 %v1056
  %v1129 = vunpack.c.h.b16 %v1056
  %v1130 = vunpack.c.l.b16 %v1057
  %v1131 = vunpack.c.h.b16 %v1057
  %v1132 = vunpack.c.l.b16 %v1058
  %v1133 = vunpack.c.h.b16 %v1058
  %v1134 = vunpack.c.l.b16 %v1059
  %v1135 = vunpack.c.h.b16 %v1059
  %v1136 = vunpack.c.l.b16 %v1060
  %v1137 = vunpack.c.h.b16 %v1060
  %v1138 = vunpack.c.l.b16 %v1061
  %v1139 = vunpack.c.h.b16 %v1061
  %v1140 = vunpack.c.l.b16 %v1062
  %v1141 = vunpack.c.h.b16 %v1062
  %v1142 = vunpack.c.l.b16 %v1063
  %v1143 = vunpack.c.h.b16 %v1063
  %v1144 = vunpack.c.l.b16 %v1064
  %v1145 = vunpack.c.h.b16 %v1064
  %v1146 = vunpack.c.l.b16 %v1065
  %v1147 = vunpack.c.h.b16 %v1065
  %v1148 = vunpack.c.l.b16 %v1066
  %v1149 = vunpack.c.h.b16 %v1066
  %v1150 = vunpack.c.l.b16 %v1067
  %v1151 = vunpack.c.h.b16 %v1067
  %v1152 = vunpack.c.l.b16 %v1068
  %v1153 = vunpack.c.h.b16 %v1068
  %v1154 = vunpack.c.l.b16 %v1069
  %v1155 = vunpack.c.h.b16 %v1069
  %v1156 = vunpack.c.l.b16 %v1070
  %v1157 = vunpack.c.h.b16 %v1070
  %v1158 = vunpack.c.l.b16 %v1071
  %v1159 = vunpack.c.h.b16 %v1071
  %v1160 = vunpack.c.l.b16 %v1072
  %v1161 = vunpack.c.h.b16 %v1072
  %v1162 = vunpack.c.l.b16 %v1073
  %v1163 = vunpack.c.h.b16 %v1073
  %v1164 = vunpack.c.l.b16 %v1074
  %v1165 = vunpack.c.h.b16 %v1074
  %v1166 = vunpack.c.l.b16 %v1075
  %v1167 = vunpack.c.h.b16 %v1075
  %v1168 = vunpack.c.l.b16 %v1076
  %v1169 = vunpack.c.h.b16 %v1076
  %v1170 = vunpack.c.l.b16 %v1077
  %v1171 = vunpack.c.h.b16 %v1077
  %v1172 = vunpack.c.l.b16 %v1078
  %v1173 = vunpack.c.h.b16 %v1078
  %v1174 = vunpack.c.l.b16 %v1079
  %v1175 = vunpack.c.h.b16 %v1079
  %v1176 = vpack.c.b16 %v1112, %v1112
  %v1177 = vpack.c.b16 %v1113, %v1113
  %v1178 = vpack.c.b16 %v1114, %v1114
  %v1179 = vpack.c.b16 %v1115, %v1115
  %v1180 = vpack.c.b16 %v1116, %v1116
  %v1181 = vpack.c.b16 %v1117, %v1117
  %v1182 = vpack.c.b16 %v1118, %v1118
  %v1183 = vpack.c.b16 %v1119, %v1119
  %v1184 = vpack.c.b16 %v1120, %v1120
  %v1185 = vpack.c.b16 %v1121, %v1121
  %v1186 = vpack.c.b16 %v1122, %v1122
  %v1187 = vpack.c.b16 %v1123, %v1123
  %v1188 = vpack.c.b16 %v1124, %v1124
  %v1189 = vpack.c.b16 %v1125, %v1125
  %v1190 = vpack.c.b16 %v1126, %v1126
  %v1191 = vpack.c.b16 %v1127, %v1127
  %v1192 = vpack.c.b16 %v1128, %v1128
  %v1193 = vpack.c.b16 %v1129, %v1129
  %v1194 = vpack.c.b16 %v1130, %v1130
  %v1195 = vpack.c.b16 %v1131, %v1131
  %v1196 = vpack.c.b16 %v1132, %v1132
  %v1197 = vpack.c.b16 %v1133, %v1133
  %v1198 = vpack.c.b16 %v1134, %v1134
  %v1199 = vpack.c.b16 %v1135, %v1135
  %v1200 = vpack.c.b16 %v1136, %v1136
  %v1201 = vpack.c.b16 %v1137, %v1137
  %v1202 = vpack.c.b16 %v1138, %v1138
  %v1203 = vpack.c.b16 %v1139, %v1139
  %v1204 = vpack.c.b16 %v1140, %v1140
  %v1205 = vpack.c.b16 %v1141, %v1141
  %v1206 = vpack.c.b16 %v1142, %v1142
  %v1207 = vpack.c.b16 %v1143, %v1143
  %v1208 = vpack.c.b16 %v1144, %v1144
  %v1209 = vpack.c.b16 %v1145, %v1145
  %v1210 = vpack.c.b16 %v1146, %v1146
  %v1211 = vpack.c.b16 %v1147, %v1147
  %v1212 = vpack.c.b16 %v1148, %v1148
  %v1213 = vpack.c.b16 %v1149, %v1149
  %v1214 = vpack.c.b16 %v1150, %v1150
  %v1215 = vpack.c.b16 %v1151, %v1151
  %v1216 = vpack.c.b16 %v1152, %v1152
  %v1217 = vpack.c.b16 %v1153, %v1153
  %v1218 = vpack.c.b16 %v1154, %v1154
  %v1219 = vpack.c.b16 %v1155, %v1155
  %v1220 = vpack.c.b16 %v1156, %v1156
  %v1221 = vpack.c.b16 %v1157, %v1157
  %v1222 = vpack.c.b16 %v1158, %v1158
  %v1223 = vpack.c.b16 %v1159, %v1159
  %v1224 = vpack.c.b16 %v1160, %v1160
  %v1225 = vpack.c.b16 %v1161, %v1161
  %v1226 = vpack.c.b16 %v1162, %v1162
  %v1227 = vpack.c.b16 %v1163, %v1163
  %v1228 = vpack.c.b16 %v1164, %v1164
  %v1229 = vpack.c.b16 %v1165, %v1165
  %v1230 = vpack.c.b16 %v1166, %v1166
  %v1231 = vpack.c.b16 %v1167, %v1167
  %v1232 = vpack.c.b16 %v1168, %v1168
  %v1233 = vpack.c.b16 %v1169, %v1169
  %v1234 = vpack.c.b16 %v1170, %v1170
  %v1235 = vpack.c.b16 %v1171, %v1171
  %v1236 = vpack.c.b16 %v1172, %v1172
  %v1237 = vpack.c.b16 %v1173, %v1173
  %v1238 = vpack.c.b16 %v1174, %v1174
  %v1239 = vpack.c.b16 %v1175, %v1175
  %vm1304 = vcmask 125952
  %1305 = vst.msk [vmem:[%s3] sm:$0xf] %vm1304, %v1176
  %1306 = vst.msk [vmem:[%s3 + $0x4] sm:$0xf] %vm1304, %v1177
  %1307 = vst.msk [vmem:[%s3 + $0x8] sm:$0xf] %vm1304, %v1178
  %1308 = vst.msk [vmem:[%s3 + $0xc] sm:$0xf] %vm1304, %v1179
  %1309 = vst.msk [vmem:[%s3 + $0x10] sm:$0xf] %vm1304, %v1180
  %1310 = vst.msk [vmem:[%s3 + $0x14] sm:$0xf] %vm1304, %v1181
  %1311 = vst.msk [vmem:[%s3 + $0x18] sm:$0xf] %vm1304, %v1182
  %1312 = vst.msk [vmem:[%s3 + $0x1c] sm:$0xf] %vm1304, %v1183
  %1313 = vst.msk [vmem:[%s3 + $0x20] sm:$0xf] %vm1304, %v1184
  %1314 = vst.msk [vmem:[%s3 + $0x24] sm:$0xf] %vm1304, %v1185
  %1315 = vst.msk [vmem:[%s3 + $0x28] sm:$0xf] %vm1304, %v1186
  %1316 = vst.msk [vmem:[%s3 + $0x2c] sm:$0xf] %vm1304, %v1187
  %1317 = vst.msk [vmem:[%s3 + $0x30] sm:$0xf] %vm1304, %v1188
  %1318 = vst.msk [vmem:[%s3 + $0x34] sm:$0xf] %vm1304, %v1189
  %1319 = vst.msk [vmem:[%s3 + $0x38] sm:$0xf] %vm1304, %v1190
  %1320 = vst.msk [vmem:[%s3 + $0x3c] sm:$0xf] %vm1304, %v1191
  %1321 = vst.msk [vmem:[%s3 + $0x40] sm:$0xf] %vm1304, %v1192
  %1322 = vst.msk [vmem:[%s3 + $0x44] sm:$0xf] %vm1304, %v1193
  %1323 = vst.msk [vmem:[%s3 + $0x48] sm:$0xf] %vm1304, %v1194
  %1324 = vst.msk [vmem:[%s3 + $0x4c] sm:$0xf] %vm1304, %v1195
  %1325 = vst.msk [vmem:[%s3 + $0x50] sm:$0xf] %vm1304, %v1196
  %1326 = vst.msk [vmem:[%s3 + $0x54] sm:$0xf] %vm1304, %v1197
  %1327 = vst.msk [vmem:[%s3 + $0x58] sm:$0xf] %vm1304, %v1198
  %1328 = vst.msk [vmem:[%s3 + $0x5c] sm:$0xf] %vm1304, %v1199
  %1329 = vst.msk [vmem:[%s3 + $0x60] sm:$0xf] %vm1304, %v1200
  %1330 = vst.msk [vmem:[%s3 + $0x64] sm:$0xf] %vm1304, %v1201
  %1331 = vst.msk [vmem:[%s3 + $0x68] sm:$0xf] %vm1304, %v1202
  %1332 = vst.msk [vmem:[%s3 + $0x6c] sm:$0xf] %vm1304, %v1203
  %1333 = vst.msk [vmem:[%s3 + $0x70] sm:$0xf] %vm1304, %v1204
  %1334 = vst.msk [vmem:[%s3 + $0x74] sm:$0xf] %vm1304, %v1205
  %1335 = vst.msk [vmem:[%s3 + $0x78] sm:$0xf] %vm1304, %v1206
  %1336 = vst.msk [vmem:[%s3 + $0x7c] sm:$0xf] %vm1304, %v1207
  %1337 = vst.msk [vmem:[%s3 + $0x80] sm:$0xf] %vm1304, %v1208
  %1338 = vst.msk [vmem:[%s3 + $0x84] sm:$0xf] %vm1304, %v1209
  %1339 = vst.msk [vmem:[%s3 + $0x88] sm:$0xf] %vm1304, %v1210
  %1340 = vst.msk [vmem:[%s3 + $0x8c] sm:$0xf] %vm1304, %v1211
  %1341 = vst.msk [vmem:[%s3 + $0x90] sm:$0xf] %vm1304, %v1212
  %1342 = vst.msk [vmem:[%s3 + $0x94] sm:$0xf] %vm1304, %v1213
  %1343 = vst.msk [vmem:[%s3 + $0x98] sm:$0xf] %vm1304, %v1214
  %1344 = vst.msk [vmem:[%s3 + $0x9c] sm:$0xf] %vm1304, %v1215
  %1345 = vst.msk [vmem:[%s3 + $0xa0] sm:$0xf] %vm1304, %v1216
  %1346 = vst.msk [vmem:[%s3 + $0xa4] sm:$0xf] %vm1304, %v1217
  %1347 = vst.msk [vmem:[%s3 + $0xa8] sm:$0xf] %vm1304, %v1218
  %1348 = vst.msk [vmem:[%s3 + $0xac] sm:$0xf] %vm1304, %v1219
  %1349 = vst.msk [vmem:[%s3 + $0xb0] sm:$0xf] %vm1304, %v1220
  %1350 = vst.msk [vmem:[%s3 + $0xb4] sm:$0xf] %vm1304, %v1221
  %1351 = vst.msk [vmem:[%s3 + $0xb8] sm:$0xf] %vm1304, %v1222
  %1352 = vst.msk [vmem:[%s3 + $0xbc] sm:$0xf] %vm1304, %v1223
  %1353 = vst.msk [vmem:[%s3 + $0xc0] sm:$0xf] %vm1304, %v1224
  %1354 = vst.msk [vmem:[%s3 + $0xc4] sm:$0xf] %vm1304, %v1225
  %1355 = vst.msk [vmem:[%s3 + $0xc8] sm:$0xf] %vm1304, %v1226
  %1356 = vst.msk [vmem:[%s3 + $0xcc] sm:$0xf] %vm1304, %v1227
  %1357 = vst.msk [vmem:[%s3 + $0xd0] sm:$0xf] %vm1304, %v1228
  %1358 = vst.msk [vmem:[%s3 + $0xd4] sm:$0xf] %vm1304, %v1229
  %1359 = vst.msk [vmem:[%s3 + $0xd8] sm:$0xf] %vm1304, %v1230
  %1360 = vst.msk [vmem:[%s3 + $0xdc] sm:$0xf] %vm1304, %v1231
  %1361 = vst.msk [vmem:[%s3 + $0xe0] sm:$0xf] %vm1304, %v1232
  %1362 = vst.msk [vmem:[%s3 + $0xe4] sm:$0xf] %vm1304, %v1233
  %1363 = vst.msk [vmem:[%s3 + $0xe8] sm:$0xf] %vm1304, %v1234
  %1364 = vst.msk [vmem:[%s3 + $0xec] sm:$0xf] %vm1304, %v1235
  %1365 = vst.msk [vmem:[%s3 + $0xf0] sm:$0xf] %vm1304, %v1236
  %1366 = vst.msk [vmem:[%s3 + $0xf4] sm:$0xf] %vm1304, %v1237
  %1367 = vst.msk [vmem:[%s3 + $0xf8] sm:$0xf] %vm1304, %v1238
  %1368 = vst.msk [vmem:[%s3 + $0xfc] sm:$0xf] %vm1304, %v1239
  // Predicated region
  $region14: #{sqnet_forward.25} parent=0 // pred_check
    _
  $region15: #{sqnet_forward.25} parent=0 // pred_check_branch
    %1370 = sbr.rel (0) target = $region17
  $region16: #{sqnet_forward.25} parent=0 // pred_region
    _
  $region17: #{sqnet_forward.25} parent=0 // pred_fallthru
    _
  // Predicated region
  $region18: #{sqnet_forward.25} parent=0 // pred_check
    _
  $region19: #{sqnet_forward.25} parent=0 // pred_check_branch
    %1372 = sbr.rel (0) target = $region21
  $region20: #{sqnet_forward.25} parent=0 // pred_region
    _
  $region21: #{sqnet_forward.25} parent=0 // pred_fallthru
    _

</llo_original>
